<compile_context>
chip_gen: v7x
topology: tpu7x:2x2x1
jax: 0.10.0
libtpu: 0.0.40
codegen_flags: <defaults>
</compile_context>

<pallas_src>
import jax
import jax.numpy as jnp
from jax.experimental import pallas as pl
from jax.experimental.pallas import tpu as pltpu

STFT_DIM = 1536
Z_DIM = 32
Z_PAD = 128  # lane-dense output width; wrapper slices back to Z_DIM
DIMS = [STFT_DIM, 1024, 512, 256, 128, 64, Z_DIM]


def _encoder_kernel(x_ref,
                    w1_ref, b1_ref,
                    w2_ref, b2_ref,
                    w3_ref, b3_ref,
                    w4_ref, b4_ref,
                    w5_ref, b5_ref,
                    w6_ref, b6_ref,
                    out_ref):
    """One (tile_m, STFT_DIM) batch tile through the 6-layer MLP.

    bf16 operands on the MXU, f32 accumulation, f32 bias + ReLU on the VPU.
    """

    def dense(h_bf16, w_ref, b_ref, relu):
        y = jnp.dot(h_bf16, w_ref[...], preferred_element_type=jnp.float32)
        y = y + b_ref[...]          # bias (1, out) broadcasts over rows, f32
        if relu:
            y = jnp.maximum(y, 0.0)
        return y

    h = x_ref[...].astype(jnp.bfloat16)
    h = dense(h, w1_ref, b1_ref, True).astype(jnp.bfloat16)
    h = dense(h, w2_ref, b2_ref, True).astype(jnp.bfloat16)
    h = dense(h, w3_ref, b3_ref, True).astype(jnp.bfloat16)
    h = dense(h, w4_ref, b4_ref, True).astype(jnp.bfloat16)
    h = dense(h, w5_ref, b5_ref, True).astype(jnp.bfloat16)
    z = dense(h, w6_ref, b6_ref, False)          # (tile_m, Z_PAD), f32
    out_ref[...] = z.astype(out_ref.dtype)


def encoder_forward(x, params, *, tile_m=128):
    """x: (B, STFT_DIM) f32. params: list of (W(in,out) f32, b(1,out) f32).

    Returns (B, Z_DIM) f32. tile_m=128 is good everywhere; use 256 on v6e/v7x
    when the batch is large enough.
    """
    B, D = x.shape
    assert D == STFT_DIM

    # Ragged batch: pad to a multiple of tile_m, slice the result afterwards.
    grid_m = pl.cdiv(B, tile_m)
    B_pad = grid_m * tile_m
    if B_pad != B:
        x = jnp.pad(x, ((0, B_pad - B), (0, 0)))

    in_specs = [pl.BlockSpec((tile_m, STFT_DIM), lambda i: (i, 0))]
    flat_params = []
    n_layers = len(params)
    for li, (w, b) in enumerate(params):
        w = w.astype(jnp.bfloat16)                 # bf16 MXU operands
        b = b.astype(jnp.float32).reshape(1, -1)   # f32 bias
        if li == n_layers - 1:
            # Pad final layer to 128 output columns for a lane-dense store.
            w = jnp.pad(w, ((0, 0), (0, Z_PAD - w.shape[1])))
            b = jnp.pad(b, ((0, 0), (0, Z_PAD - b.shape[1])))
        # Full-extent block, constant index_map -> loaded once, VMEM-resident
        # across all batch tiles. (Could be single-buffered via
        # pipeline_mode=pl.Buffered(1) on v7x, but bf16 already keeps the
        # double-buffered footprint at ~9 MB, well inside every VMEM budget.)
        in_specs.append(pl.BlockSpec(w.shape, lambda i: (0, 0)))
        in_specs.append(pl.BlockSpec(b.shape, lambda i: (0, 0)))
        flat_params.extend([w, b])

    out_spec = pl.BlockSpec((tile_m, Z_PAD), lambda i: (i, 0))

    fn = pl.pallas_call(
        _encoder_kernel,
        out_shape=jax.ShapeDtypeStruct((B_pad, Z_PAD), jnp.float32),
        grid_spec=pltpu.PrefetchScalarGridSpec(
            num_scalar_prefetch=0,
            grid=(grid_m,),
            in_specs=in_specs,
            out_specs=out_spec,
        ),
        compiler_params=pltpu.CompilerParams(
            dimension_semantics=("parallel",),
            vmem_limit_bytes=40 << 20,   # sized for weights + tiles + headroom
        ),
    )
    z_pad = fn(x, *flat_params)
    return z_pad[:B, :Z_DIM]


def init_params(key):
    """Deterministic init matching nn.Linear shapes (W stored as (in, out))."""
    params = []
    for i in range(len(DIMS) - 1):
        fan_in, fan_out = DIMS[i], DIMS[i + 1]
        key, kw, kb = jax.random.split(key, 3)
        bound = 1.0 / jnp.sqrt(fan_in)
        w = jax.random.uniform(kw, (fan_in, fan_out), jnp.float32, -bound, bound)
        b = jax.random.uniform(kb, (1, fan_out), jnp.float32, -bound, bound)
        params.append((w, b))
    return params


def reference_forward(x, params, *, bf16_operands=False):
    """Plain-JAX reference. bf16_operands=True mirrors the kernel's precision."""
    h = x
    for i, (w, b) in enumerate(params):
        if bf16_operands:
            y = jnp.dot(h.astype(jnp.bfloat16), w.astype(jnp.bfloat16),
                        preferred_element_type=jnp.float32) + b
        else:
            y = h @ w + b
        h = jnp.maximum(y, 0.0) if i < len(params) - 1 else y
    return h


if __name__ == "__main__":
    key = jax.random.PRNGKey(0)
    kx, kp = jax.random.split(key)

    B = 4  # small batch (not a multiple of tile_m -> exercises ragged padding)
    x = jax.random.normal(kx, (B, STFT_DIM), dtype=jnp.float32)
    params = init_params(kp)

    z = encoder_forward(x, params, tile_m=128)
    z = jax.block_until_ready(z)
    assert z.shape == (B, Z_DIM)

    # Exact-semantics check against a bf16-operand / f32-accumulate reference.
    z_ref_bf16 = reference_forward(x, params, bf16_operands=True)
    assert jnp.allclose(z, z_ref_bf16, atol=2e-3, rtol=2e-3), \
        "mismatch vs bf16-matched reference"

    # Relaxed check against the full-f32 reference (operand precision is bf16).
    z_ref_f32 = reference_forward(x, params, bf16_operands=False)
    assert jnp.allclose(z, z_ref_f32, atol=1e-1, rtol=1e-1), \
        "mismatch vs f32 reference"

    print("KERNEL_OK")
</pallas_src>

<mosaic_0001>
module attributes {stable_mosaic.version = 11 : i64} {
  func.func @_encoder_kernel(%arg0: i32, %arg1: memref<128x1536xf32, #tpu.memory_space<vmem>>, %arg2: memref<1536x1024xbf16, #tpu.memory_space<vmem>>, %arg3: memref<1x1024xf32, #tpu.memory_space<vmem>>, %arg4: memref<1024x512xbf16, #tpu.memory_space<vmem>>, %arg5: memref<1x512xf32, #tpu.memory_space<vmem>>, %arg6: memref<512x256xbf16, #tpu.memory_space<vmem>>, %arg7: memref<1x256xf32, #tpu.memory_space<vmem>>, %arg8: memref<256x128xbf16, #tpu.memory_space<vmem>>, %arg9: memref<1x128xf32, #tpu.memory_space<vmem>>, %arg10: memref<128x64xbf16, #tpu.memory_space<vmem>>, %arg11: memref<1x64xf32, #tpu.memory_space<vmem>>, %arg12: memref<64x128xbf16, #tpu.memory_space<vmem>>, %arg13: memref<1x128xf32, #tpu.memory_space<vmem>>, %arg14: memref<128x128xf32, #tpu.memory_space<vmem>>) attributes {dimension_semantics = [#tpu.dimension_semantics<parallel>], iteration_bounds = array<i64: 1>, scalar_prefetch = 0 : i64, scratch_operands = 0 : i64, tpu.core_type = #tpu.core_type<tc>, window_params = [{transform_indices = @transform_0, window_bounds = array<i64: 128, 1536>}, {pipeline_mode = #tpu.pipeline_mode<synchronous>, transform_indices = @transform_1, window_bounds = array<i64: 1536, 1024>}, {pipeline_mode = #tpu.pipeline_mode<synchronous>, transform_indices = @transform_2, window_bounds = array<i64: 1, 1024>}, {pipeline_mode = #tpu.pipeline_mode<synchronous>, transform_indices = @transform_3, window_bounds = array<i64: 1024, 512>}, {pipeline_mode = #tpu.pipeline_mode<synchronous>, transform_indices = @transform_4, window_bounds = array<i64: 1, 512>}, {pipeline_mode = #tpu.pipeline_mode<synchronous>, transform_indices = @transform_5, window_bounds = array<i64: 512, 256>}, {pipeline_mode = #tpu.pipeline_mode<synchronous>, transform_indices = @transform_6, window_bounds = array<i64: 1, 256>}, {pipeline_mode = #tpu.pipeline_mode<synchronous>, transform_indices = @transform_7, window_bounds = array<i64: 256, 128>}, {pipeline_mode = #tpu.pipeline_mode<synchronous>, transform_indices = @transform_8, window_bounds = array<i64: 1, 128>}, {pipeline_mode = #tpu.pipeline_mode<synchronous>, transform_indices = @transform_9, window_bounds = array<i64: 128, 64>}, {pipeline_mode = #tpu.pipeline_mode<synchronous>, transform_indices = @transform_10, window_bounds = array<i64: 1, 64>}, {pipeline_mode = #tpu.pipeline_mode<synchronous>, transform_indices = @transform_11, window_bounds = array<i64: 64, 128>}, {pipeline_mode = #tpu.pipeline_mode<synchronous>, transform_indices = @transform_12, window_bounds = array<i64: 1, 128>}, {transform_indices = @transform_13, window_bounds = array<i64: 128, 128>}]} {
    %c0 = arith.constant 0 : index
    %c0_0 = arith.constant 0 : index
    %0 = vector.load %arg1[%c0, %c0_0] : memref<128x1536xf32, #tpu.memory_space<vmem>>, vector<128x1536xf32>
    %1 = arith.truncf %0 : vector<128x1536xf32> to vector<128x1536xbf16>
    %c0_1 = arith.constant 0 : index
    %c0_2 = arith.constant 0 : index
    %2 = vector.load %arg2[%c0_1, %c0_2] : memref<1536x1024xbf16, #tpu.memory_space<vmem>>, vector<1536x1024xbf16>
    %cst = arith.constant dense<0.000000e+00> : vector<128x1024xf32>
    %3 = tpu.matmul %1, %2, %cst {dimension_numbers = #tpu.dot_dimension_numbers<[1], [0], [0], [1], [0, 0, 1, 1], [], []>} : vector<128x1536xbf16>, vector<1536x1024xbf16>, vector<128x1024xf32> -> vector<128x1024xf32>
    %c0_3 = arith.constant 0 : index
    %c0_4 = arith.constant 0 : index
    %4 = vector.load %arg3[%c0_3, %c0_4] : memref<1x1024xf32, #tpu.memory_space<vmem>>, vector<1x1024xf32>
    %5 = vector.broadcast %4 : vector<1x1024xf32> to vector<128x1024xf32>
    %6 = arith.addf %3, %5 : vector<128x1024xf32>
    %cst_5 = arith.constant 0.000000e+00 : f32
    %7 = vector.broadcast %cst_5 : f32 to vector<128x1024xf32>
    %8 = arith.maximumf %6, %7 : vector<128x1024xf32>
    %9 = arith.truncf %8 : vector<128x1024xf32> to vector<128x1024xbf16>
    %c0_6 = arith.constant 0 : index
    %c0_7 = arith.constant 0 : index
    %10 = vector.load %arg4[%c0_6, %c0_7] : memref<1024x512xbf16, #tpu.memory_space<vmem>>, vector<1024x512xbf16>
    %cst_8 = arith.constant dense<0.000000e+00> : vector<128x512xf32>
    %11 = tpu.matmul %9, %10, %cst_8 {dimension_numbers = #tpu.dot_dimension_numbers<[1], [0], [0], [1], [0, 0, 1, 1], [], []>} : vector<128x1024xbf16>, vector<1024x512xbf16>, vector<128x512xf32> -> vector<128x512xf32>
    %c0_9 = arith.constant 0 : index
    %c0_10 = arith.constant 0 : index
    %12 = vector.load %arg5[%c0_9, %c0_10] : memref<1x512xf32, #tpu.memory_space<vmem>>, vector<1x512xf32>
    %13 = vector.broadcast %12 : vector<1x512xf32> to vector<128x512xf32>
    %14 = arith.addf %11, %13 : vector<128x512xf32>
    %cst_11 = arith.constant 0.000000e+00 : f32
    %15 = vector.broadcast %cst_11 : f32 to vector<128x512xf32>
    %16 = arith.maximumf %14, %15 : vector<128x512xf32>
    %17 = arith.truncf %16 : vector<128x512xf32> to vector<128x512xbf16>
    %c0_12 = arith.constant 0 : index
    %c0_13 = arith.constant 0 : index
    %18 = vector.load %arg6[%c0_12, %c0_13] : memref<512x256xbf16, #tpu.memory_space<vmem>>, vector<512x256xbf16>
    %cst_14 = arith.constant dense<0.000000e+00> : vector<128x256xf32>
    %19 = tpu.matmul %17, %18, %cst_14 {dimension_numbers = #tpu.dot_dimension_numbers<[1], [0], [0], [1], [0, 0, 1, 1], [], []>} : vector<128x512xbf16>, vector<512x256xbf16>, vector<128x256xf32> -> vector<128x256xf32>
    %c0_15 = arith.constant 0 : index
    %c0_16 = arith.constant 0 : index
    %20 = vector.load %arg7[%c0_15, %c0_16] : memref<1x256xf32, #tpu.memory_space<vmem>>, vector<1x256xf32>
    %21 = vector.broadcast %20 : vector<1x256xf32> to vector<128x256xf32>
    %22 = arith.addf %19, %21 : vector<128x256xf32>
    %cst_17 = arith.constant 0.000000e+00 : f32
    %23 = vector.broadcast %cst_17 : f32 to vector<128x256xf32>
    %24 = arith.maximumf %22, %23 : vector<128x256xf32>
    %25 = arith.truncf %24 : vector<128x256xf32> to vector<128x256xbf16>
    %c0_18 = arith.constant 0 : index
    %c0_19 = arith.constant 0 : index
    %26 = vector.load %arg8[%c0_18, %c0_19] : memref<256x128xbf16, #tpu.memory_space<vmem>>, vector<256x128xbf16>
    %cst_20 = arith.constant dense<0.000000e+00> : vector<128x128xf32>
    %27 = tpu.matmul %25, %26, %cst_20 {dimension_numbers = #tpu.dot_dimension_numbers<[1], [0], [0], [1], [0, 0, 1, 1], [], []>} : vector<128x256xbf16>, vector<256x128xbf16>, vector<128x128xf32> -> vector<128x128xf32>
    %c0_21 = arith.constant 0 : index
    %c0_22 = arith.constant 0 : index
    %28 = vector.load %arg9[%c0_21, %c0_22] : memref<1x128xf32, #tpu.memory_space<vmem>>, vector<1x128xf32>
    %29 = vector.broadcast %28 : vector<1x128xf32> to vector<128x128xf32>
    %30 = arith.addf %27, %29 : vector<128x128xf32>
    %cst_23 = arith.constant 0.000000e+00 : f32
    %31 = vector.broadcast %cst_23 : f32 to vector<128x128xf32>
    %32 = arith.maximumf %30, %31 : vector<128x128xf32>
    %33 = arith.truncf %32 : vector<128x128xf32> to vector<128x128xbf16>
    %c0_24 = arith.constant 0 : index
    %c0_25 = arith.constant 0 : index
    %34 = vector.load %arg10[%c0_24, %c0_25] : memref<128x64xbf16, #tpu.memory_space<vmem>>, vector<128x64xbf16>
    %cst_26 = arith.constant dense<0.000000e+00> : vector<128x64xf32>
    %35 = tpu.matmul %33, %34, %cst_26 {dimension_numbers = #tpu.dot_dimension_numbers<[1], [0], [0], [1], [0, 0, 1, 1], [], []>} : vector<128x128xbf16>, vector<128x64xbf16>, vector<128x64xf32> -> vector<128x64xf32>
    %c0_27 = arith.constant 0 : index
    %c0_28 = arith.constant 0 : index
    %36 = vector.load %arg11[%c0_27, %c0_28] : memref<1x64xf32, #tpu.memory_space<vmem>>, vector<1x64xf32>
    %37 = vector.broadcast %36 : vector<1x64xf32> to vector<128x64xf32>
    %38 = arith.addf %35, %37 : vector<128x64xf32>
    %cst_29 = arith.constant 0.000000e+00 : f32
    %39 = vector.broadcast %cst_29 : f32 to vector<128x64xf32>
    %40 = arith.maximumf %38, %39 : vector<128x64xf32>
    %41 = arith.truncf %40 : vector<128x64xf32> to vector<128x64xbf16>
    %c0_30 = arith.constant 0 : index
    %c0_31 = arith.constant 0 : index
    %42 = vector.load %arg12[%c0_30, %c0_31] : memref<64x128xbf16, #tpu.memory_space<vmem>>, vector<64x128xbf16>
    %cst_32 = arith.constant dense<0.000000e+00> : vector<128x128xf32>
    %43 = tpu.matmul %41, %42, %cst_32 {dimension_numbers = #tpu.dot_dimension_numbers<[1], [0], [0], [1], [0, 0, 1, 1], [], []>} : vector<128x64xbf16>, vector<64x128xbf16>, vector<128x128xf32> -> vector<128x128xf32>
    %c0_33 = arith.constant 0 : index
    %c0_34 = arith.constant 0 : index
    %44 = vector.load %arg13[%c0_33, %c0_34] : memref<1x128xf32, #tpu.memory_space<vmem>>, vector<1x128xf32>
    %45 = vector.broadcast %44 : vector<1x128xf32> to vector<128x128xf32>
    %46 = arith.addf %43, %45 : vector<128x128xf32>
    %c0_35 = arith.constant 0 : index
    %c0_36 = arith.constant 0 : index
    %47 = vector.load %arg14[%c0_35, %c0_36] : memref<128x128xf32, #tpu.memory_space<vmem>>, vector<128x128xf32>
    tpu.vector_store %arg14[%c0_35, %c0_36], %46 {strides = array<i32>} : memref<128x128xf32, #tpu.memory_space<vmem>>, vector<128x128xf32>,
    return
  }
  func.func @transform_0(%arg0: i32) -> (i32, i32) {
    %c0_i32 = arith.constant 0 : i32
    %c0_i32_0 = arith.constant 0 : i32
    return %arg0, %c0_i32 : i32, i32
  }
  func.func @transform_1(%arg0: i32) -> (i32, i32) {
    %c0_i32 = arith.constant 0 : i32
    %c0_i32_0 = arith.constant 0 : i32
    %c0_i32_1 = arith.constant 0 : i32
    return %c0_i32, %c0_i32_0 : i32, i32
  }
  func.func @transform_2(%arg0: i32) -> (i32, i32) {
    %c0_i32 = arith.constant 0 : i32
    %c0_i32_0 = arith.constant 0 : i32
    %c0_i32_1 = arith.constant 0 : i32
    return %c0_i32, %c0_i32_0 : i32, i32
  }
  func.func @transform_3(%arg0: i32) -> (i32, i32) {
    %c0_i32 = arith.constant 0 : i32
    %c0_i32_0 = arith.constant 0 : i32
    %c0_i32_1 = arith.constant 0 : i32
    return %c0_i32, %c0_i32_0 : i32, i32
  }
  func.func @transform_4(%arg0: i32) -> (i32, i32) {
    %c0_i32 = arith.constant 0 : i32
    %c0_i32_0 = arith.constant 0 : i32
    %c0_i32_1 = arith.constant 0 : i32
    return %c0_i32, %c0_i32_0 : i32, i32
  }
  func.func @transform_5(%arg0: i32) -> (i32, i32) {
    %c0_i32 = arith.constant 0 : i32
    %c0_i32_0 = arith.constant 0 : i32
    %c0_i32_1 = arith.constant 0 : i32
    return %c0_i32, %c0_i32_0 : i32, i32
  }
  func.func @transform_6(%arg0: i32) -> (i32, i32) {
    %c0_i32 = arith.constant 0 : i32
    %c0_i32_0 = arith.constant 0 : i32
    %c0_i32_1 = arith.constant 0 : i32
    return %c0_i32, %c0_i32_0 : i32, i32
  }
  func.func @transform_7(%arg0: i32) -> (i32, i32) {
    %c0_i32 = arith.constant 0 : i32
    %c0_i32_0 = arith.constant 0 : i32
    %c0_i32_1 = arith.constant 0 : i32
    return %c0_i32, %c0_i32_0 : i32, i32
  }
  func.func @transform_8(%arg0: i32) -> (i32, i32) {
    %c0_i32 = arith.constant 0 : i32
    %c0_i32_0 = arith.constant 0 : i32
    %c0_i32_1 = arith.constant 0 : i32
    return %c0_i32, %c0_i32_0 : i32, i32
  }
  func.func @transform_9(%arg0: i32) -> (i32, i32) {
    %c0_i32 = arith.constant 0 : i32
    %c0_i32_0 = arith.constant 0 : i32
    %c0_i32_1 = arith.constant 0 : i32
    return %c0_i32, %c0_i32_0 : i32, i32
  }
  func.func @transform_10(%arg0: i32) -> (i32, i32) {
    %c0_i32 = arith.constant 0 : i32
    %c0_i32_0 = arith.constant 0 : i32
    %c0_i32_1 = arith.constant 0 : i32
    return %c0_i32, %c0_i32_0 : i32, i32
  }
  func.func @transform_11(%arg0: i32) -> (i32, i32) {
    %c0_i32 = arith.constant 0 : i32
    %c0_i32_0 = arith.constant 0 : i32
    %c0_i32_1 = arith.constant 0 : i32
    return %c0_i32, %c0_i32_0 : i32, i32
  }
  func.func @transform_12(%arg0: i32) -> (i32, i32) {
    %c0_i32 = arith.constant 0 : i32
    %c0_i32_0 = arith.constant 0 : i32
    %c0_i32_1 = arith.constant 0 : i32
    return %c0_i32, %c0_i32_0 : i32, i32
  }
  func.func @transform_13(%arg0: i32) -> (i32, i32) {
    %c0_i32 = arith.constant 0 : i32
    %c0_i32_0 = arith.constant 0 : i32
    return %arg0, %c0_i32 : i32, i32
  }
}

</mosaic_0001>

<llo_original>
// kernel: tpu_custom_call.1
$region0: #{tpu_custom_call.1}
  #allocation0 [shape = 'u32[]', space=smem, size = 0x4, offset = 0x4, fixed_abs, tag = 'smem constant byte address 0x4 - core index']
  #allocation1 [shape = 'u32[144,128]{1,0:T(1,128)}', space=vmem, size = 0x12000, scoped, tag = 'internal scratch']
  %s0 = inlined_call_operand.hbm [shape: f32[128,1536], index: 0, kind: input, shape index: {}]
  %s1 = inlined_call_operand.hbm [shape: bf16[1536,1024], index: 1, kind: input, shape index: {}]
  %s2 = inlined_call_operand.hbm [shape: f32[1,1024], index: 2, kind: input, shape index: {}]
  %s3 = inlined_call_operand.hbm [shape: bf16[1024,512], index: 3, kind: input, shape index: {}]
  %s4 = inlined_call_operand.hbm [shape: f32[1,512], index: 4, kind: input, shape index: {}]
  %s5 = inlined_call_operand.hbm [shape: bf16[512,256], index: 5, kind: input, shape index: {}]
  %s6 = inlined_call_operand.hbm [shape: f32[1,256], index: 6, kind: input, shape index: {}]
  %s7 = inlined_call_operand.hbm [shape: bf16[256,128], index: 7, kind: input, shape index: {}]
  %s8 = inlined_call_operand.hbm [shape: f32[1,128], index: 8, kind: input, shape index: {}]
  %s9 = inlined_call_operand.vmem [shape: bf16[128,64], index: 9, kind: input, shape index: {}]
  %s10 = inlined_call_operand.hbm [shape: f32[1,64], index: 10, kind: input, shape index: {}]
  %s11 = inlined_call_operand.hbm [shape: bf16[64,128], index: 11, kind: input, shape index: {}]
  %s12 = inlined_call_operand.hbm [shape: f32[1,128], index: 12, kind: input, shape index: {}]
  %s13 = inlined_call_operand.hbm [shape: f32[128,128], index: 13, kind: output, shape index: {}]
  %s14 = sld [smem:[#allocation0]]
  $region110: #{tpu_custom_call.1} parent=0
    _
  %s16 = ssub.s32 1, %s14
  %s17 = scalar_select 0, %s16, %s14
  $region1: #{tpu_custom_call.1} parent=0
    #allocation2 [shape = 'u8[786432]{0}', space=vmem, size = 0xc0000, scoped, tag = 'input window, operand 0, single buffered']
    #allocation3 [shape = 's32[1]{0}', space=sflag, size = 0x4, scoped, tag = 'scoped memory for tpu_custom_call.1']
    #allocation4 [shape = 's32[1]{0}', space=sflag, size = 0x4, scoped, tag = 'scoped memory for tpu_custom_call.1']
    #allocation5 [shape = 'u8[3145728]{0}', space=vmem, size = 0x300000, scoped, tag = 'input window, operand 1, single buffered']
    #allocation6 [shape = 's32[1]{0}', space=sflag, size = 0x4, scoped, tag = 'scoped memory for tpu_custom_call.1']
    #allocation7 [shape = 'u8[4096]{0}', space=vmem, size = 0x1000, scoped, tag = 'input window, operand 2, single buffered']
    #allocation8 [shape = 'u8[1048576]{0}', space=vmem, size = 0x100000, scoped, tag = 'input window, operand 3, single buffered']
    #allocation9 [shape = 's32[1]{0}', space=sflag, size = 0x4, scoped, tag = 'scoped memory for tpu_custom_call.1']
    #allocation10 [shape = 'u8[2048]{0}', space=vmem, size = 0x800, scoped, tag = 'input window, operand 4, single buffered']
    #allocation11 [shape = 'u8[262144]{0}', space=vmem, size = 0x40000, scoped, tag = 'input window, operand 5, single buffered']
    #allocation12 [shape = 's32[1]{0}', space=sflag, size = 0x4, scoped, tag = 'scoped memory for tpu_custom_call.1']
    #allocation13 [shape = 'u8[1024]{0}', space=vmem, size = 0x400, scoped, tag = 'input window, operand 6, single buffered']
    #allocation14 [shape = 'u8[65536]{0}', space=vmem, size = 0x10000, scoped, tag = 'input window, operand 7, single buffered']
    #allocation15 [shape = 's32[1]{0}', space=sflag, size = 0x4, scoped, tag = 'scoped memory for tpu_custom_call.1']
    #allocation16 [shape = 'u8[512]{0}', space=vmem, size = 0x400, scoped, tag = 'input window, operand 8, single buffered']
    #allocation17 [shape = 'u8[512]{0}', space=vmem, size = 0x400, scoped, tag = 'input window, operand 10, single buffered']
    #allocation18 [shape = 's32[1]{0}', space=sflag, size = 0x4, scoped, tag = 'scoped memory for tpu_custom_call.1']
    #allocation19 [shape = 'u8[16384]{0}', space=vmem, size = 0x4000, scoped, tag = 'input window, operand 11, single buffered']
    #allocation20 [shape = 'u8[512]{0}', space=vmem, size = 0x400, scoped, tag = 'input window, operand 12, single buffered']
    #allocation21 [shape = 's32[1]{0}', space=sflag, size = 0x4, scoped, tag = 'scoped memory for tpu_custom_call.1']
    #allocation22 [shape = 'u8[65536]{0}', space=vmem, size = 0x10000, scoped, tag = 'output window, operand 0, single buffered']
    %18 = vsyncpa [#allocation3], 0
    %19 = vsyncpa [#allocation6], 0
    %20 = vsyncpa [#allocation9], 0
    %21 = vsyncpa [#allocation12], 0
    %22 = vsyncpa [#allocation15], 0
    %23 = vsyncpa [#allocation18], 0
    %24 = vsyncpa [#allocation21], 0
    %25 = vsyncpa [#allocation4], 0
    // Predicated region
    $region2: #{tpu_custom_call.1} parent=1 // pred_check
      _
    $region3: #{tpu_custom_call.1} parent=1 // pred_check_branch
      %27 = sbr.rel (0) target = $region5
    $region4: #{tpu_custom_call.1} parent=1 // pred_region
      %s29 = ssub.s32 24576, 24576
      %30 = vsyncadd [#allocation3], %s29
      %s31 = sshll.u32 [#allocation2], 4
      %s32 = int_to_ptr.vmem [resolvable:$true] %s31
      %37 = dma.hbm_to_vmem [thread:$0]  %s0, 24576, %s32, [#allocation3], 1536, 1536, 96
    $region5: #{tpu_custom_call.1} parent=1 // pred_fallthru
      _
    // Predicated region
    $region6: #{tpu_custom_call.1} parent=1 // pred_check
      _
    $region7: #{tpu_custom_call.1} parent=1 // pred_check_branch
      %39 = sbr.rel (0) target = $region9
    $region8: #{tpu_custom_call.1} parent=1 // pred_region
      %s41 = ssub.s32 98304, 98304
      %42 = vsyncadd [#allocation6], %s41
      %s43 = sshll.u32 [#allocation5], 4
      %s44 = int_to_ptr.vmem [resolvable:$true] %s43
      %49 = dma.hbm_to_vmem [thread:$0]  %s1, 98304, %s44, [#allocation6], 512, 512, 32
    $region9: #{tpu_custom_call.1} parent=1 // pred_fallthru
      _
    // Predicated region
    $region10: #{tpu_custom_call.1} parent=1 // pred_check
      _
    $region11: #{tpu_custom_call.1} parent=1 // pred_check_branch
      %51 = sbr.rel (0) target = $region13
    $region12: #{tpu_custom_call.1} parent=1 // pred_region
      %s53 = ssub.s32 128, 128
      %54 = vsyncadd [#allocation6], %s53
      %s56 = sshll.u32 [#allocation7], 4
      %s57 = int_to_ptr.vmem [resolvable:$true] %s56
      %59 = dma.hbm_to_vmem [thread:$0]  %s2, 128, %s57, [#allocation6]
    $region13: #{tpu_custom_call.1} parent=1 // pred_fallthru
      _
    // Predicated region
    $region14: #{tpu_custom_call.1} parent=1 // pred_check
      _
    $region15: #{tpu_custom_call.1} parent=1 // pred_check_branch
      %61 = sbr.rel (0) target = $region17
    $region16: #{tpu_custom_call.1} parent=1 // pred_region
      %s63 = ssub.s32 32768, 32768
      %64 = vsyncadd [#allocation9], %s63
      %s65 = sshll.u32 [#allocation8], 4
      %s66 = int_to_ptr.vmem [resolvable:$true] %s65
      %71 = dma.hbm_to_vmem [thread:$0]  %s3, 32768, %s66, [#allocation9], 256, 256, 16
    $region17: #{tpu_custom_call.1} parent=1 // pred_fallthru
      _
    // Predicated region
    $region18: #{tpu_custom_call.1} parent=1 // pred_check
      _
    $region19: #{tpu_custom_call.1} parent=1 // pred_check_branch
      %73 = sbr.rel (0) target = $region21
    $region20: #{tpu_custom_call.1} parent=1 // pred_region
      %s75 = ssub.s32 64, 64
      %76 = vsyncadd [#allocation9], %s75
      %s78 = sshll.u32 [#allocation10], 4
      %s79 = int_to_ptr.vmem [resolvable:$true] %s78
      %81 = dma.hbm_to_vmem [thread:$0]  %s4, 64, %s79, [#allocation9]
    $region21: #{tpu_custom_call.1} parent=1 // pred_fallthru
      _
    // Predicated region
    $region22: #{tpu_custom_call.1} parent=1 // pred_check
      _
    $region23: #{tpu_custom_call.1} parent=1 // pred_check_branch
      %83 = sbr.rel (0) target = $region25
    $region24: #{tpu_custom_call.1} parent=1 // pred_region
      %s85 = ssub.s32 8192, 8192
      %86 = vsyncadd [#allocation12], %s85
      %s87 = sshll.u32 [#allocation11], 4
      %s88 = int_to_ptr.vmem [resolvable:$true] %s87
      %93 = dma.hbm_to_vmem [thread:$0]  %s5, 8192, %s88, [#allocation12], 128, 128, 8
    $region25: #{tpu_custom_call.1} parent=1 // pred_fallthru
      _
    // Predicated region
    $region26: #{tpu_custom_call.1} parent=1 // pred_check
      _
    $region27: #{tpu_custom_call.1} parent=1 // pred_check_branch
      %95 = sbr.rel (0) target = $region29
    $region28: #{tpu_custom_call.1} parent=1 // pred_region
      %s97 = ssub.s32 32, 32
      %98 = vsyncadd [#allocation12], %s97
      %s100 = sshll.u32 [#allocation13], 4
      %s101 = int_to_ptr.vmem [resolvable:$true] %s100
      %103 = dma.hbm_to_vmem [thread:$0]  %s6, 32, %s101, [#allocation12]
    $region29: #{tpu_custom_call.1} parent=1 // pred_fallthru
      _
    // Predicated region
    $region30: #{tpu_custom_call.1} parent=1 // pred_check
      _
    $region31: #{tpu_custom_call.1} parent=1 // pred_check_branch
      %105 = sbr.rel (0) target = $region33
    $region32: #{tpu_custom_call.1} parent=1 // pred_region
      %s107 = ssub.s32 2048, 2048
      %108 = vsyncadd [#allocation15], %s107
      %s109 = sshll.u32 [#allocation14], 4
      %s110 = int_to_ptr.vmem [resolvable:$true] %s109
      %115 = dma.hbm_to_vmem [thread:$0]  %s7, 2048, %s110, [#allocation15], 64, 64, 4
    $region33: #{tpu_custom_call.1} parent=1 // pred_fallthru
      _
    // Predicated region
    $region34: #{tpu_custom_call.1} parent=1 // pred_check
      _
    $region35: #{tpu_custom_call.1} parent=1 // pred_check_branch
      %117 = sbr.rel (0) target = $region37
    $region36: #{tpu_custom_call.1} parent=1 // pred_region
      %s119 = ssub.s32 16, 16
      %120 = vsyncadd [#allocation15], %s119
      %s122 = sshll.u32 [#allocation16], 4
      %s123 = int_to_ptr.vmem [resolvable:$true] %s122
      %125 = dma.hbm_to_vmem [thread:$0]  %s8, 16, %s123, [#allocation15]
    $region37: #{tpu_custom_call.1} parent=1 // pred_fallthru
      _
    // Predicated region
    $region38: #{tpu_custom_call.1} parent=1 // pred_check
      _
    $region39: #{tpu_custom_call.1} parent=1 // pred_check_branch
      %127 = sbr.rel (0) target = $region41
    $region40: #{tpu_custom_call.1} parent=1 // pred_region
      _
    $region41: #{tpu_custom_call.1} parent=1 // pred_fallthru
      _
    // Predicated region
    $region42: #{tpu_custom_call.1} parent=1 // pred_check
      _
    $region43: #{tpu_custom_call.1} parent=1 // pred_check_branch
      %129 = sbr.rel (0) target = $region45
    $region44: #{tpu_custom_call.1} parent=1 // pred_region
      %s131 = ssub.s32 16, 16
      %132 = vsyncadd [#allocation18], %s131
      %s134 = sshll.u32 [#allocation17], 4
      %s135 = int_to_ptr.vmem [resolvable:$true] %s134
      %137 = dma.hbm_to_vmem [thread:$0]  %s10, 16, %s135, [#allocation18]
    $region45: #{tpu_custom_call.1} parent=1 // pred_fallthru
      _
    // Predicated region
    $region46: #{tpu_custom_call.1} parent=1 // pred_check
      _
    $region47: #{tpu_custom_call.1} parent=1 // pred_check_branch
      %139 = sbr.rel (0) target = $region49
    $region48: #{tpu_custom_call.1} parent=1 // pred_region
      %s141 = ssub.s32 512, 512
      %142 = vsyncadd [#allocation18], %s141
      %s143 = sshll.u32 [#allocation19], 4
      %s144 = int_to_ptr.vmem [resolvable:$true] %s143
      %149 = dma.hbm_to_vmem [thread:$0]  %s11, 512, %s144, [#allocation18], 64, 64, 4
    $region49: #{tpu_custom_call.1} parent=1 // pred_fallthru
      _
    // Predicated region
    $region50: #{tpu_custom_call.1} parent=1 // pred_check
      _
    $region51: #{tpu_custom_call.1} parent=1 // pred_check_branch
      %151 = sbr.rel (0) target = $region53
    $region52: #{tpu_custom_call.1} parent=1 // pred_region
      %s153 = ssub.s32 16, 16
      %154 = vsyncadd [#allocation21], %s153
      %s156 = sshll.u32 [#allocation20], 4
      %s157 = int_to_ptr.vmem [resolvable:$true] %s156
      %159 = dma.hbm_to_vmem [thread:$0]  %s12, 16, %s157, [#allocation21]
    $region53: #{tpu_custom_call.1} parent=1 // pred_fallthru
      _
    // Predicated region
    $region54: #{tpu_custom_call.1} parent=1 // pred_check
      _
    $region55: #{tpu_custom_call.1} parent=1 // pred_check_branch
      %161 = sbr.rel (0) target = $region57
    $region56: #{tpu_custom_call.1} parent=1 // pred_region
      %162 = dma.done [#allocation3], 24576
    $region57: #{tpu_custom_call.1} parent=1 // pred_fallthru
      _
    // Predicated region
    $region58: #{tpu_custom_call.1} parent=1 // pred_check
      _
    $region59: #{tpu_custom_call.1} parent=1 // pred_check_branch
      %164 = sbr.rel (0) target = $region61
    $region60: #{tpu_custom_call.1} parent=1 // pred_region
      %165 = dma.done [#allocation6], 98304
    $region61: #{tpu_custom_call.1} parent=1 // pred_fallthru
      _
    // Predicated region
    $region62: #{tpu_custom_call.1} parent=1 // pred_check
      _
    $region63: #{tpu_custom_call.1} parent=1 // pred_check_branch
      %167 = sbr.rel (0) target = $region65
    $region64: #{tpu_custom_call.1} parent=1 // pred_region
      %168 = dma.done [#allocation6], 128
    $region65: #{tpu_custom_call.1} parent=1 // pred_fallthru
      _
    // Predicated region
    $region66: #{tpu_custom_call.1} parent=1 // pred_check
      _
    $region67: #{tpu_custom_call.1} parent=1 // pred_check_branch
      %170 = sbr.rel (0) target = $region69
    $region68: #{tpu_custom_call.1} parent=1 // pred_region
      %171 = dma.done [#allocation9], 32768
    $region69: #{tpu_custom_call.1} parent=1 // pred_fallthru
      _
    // Predicated region
    $region70: #{tpu_custom_call.1} parent=1 // pred_check
      _
    $region71: #{tpu_custom_call.1} parent=1 // pred_check_branch
      %173 = sbr.rel (0) target = $region73
    $region72: #{tpu_custom_call.1} parent=1 // pred_region
      %174 = dma.done [#allocation9], 64
    $region73: #{tpu_custom_call.1} parent=1 // pred_fallthru
      _
    // Predicated region
    $region74: #{tpu_custom_call.1} parent=1 // pred_check
      _
    $region75: #{tpu_custom_call.1} parent=1 // pred_check_branch
      %176 = sbr.rel (0) target = $region77
    $region76: #{tpu_custom_call.1} parent=1 // pred_region
      %177 = dma.done [#allocation12], 8192
    $region77: #{tpu_custom_call.1} parent=1 // pred_fallthru
      _
    // Predicated region
    $region78: #{tpu_custom_call.1} parent=1 // pred_check
      _
    $region79: #{tpu_custom_call.1} parent=1 // pred_check_branch
      %179 = sbr.rel (0) target = $region81
    $region80: #{tpu_custom_call.1} parent=1 // pred_region
      %180 = dma.done [#allocation12], 32
    $region81: #{tpu_custom_call.1} parent=1 // pred_fallthru
      _
    // Predicated region
    $region82: #{tpu_custom_call.1} parent=1 // pred_check
      _
    $region83: #{tpu_custom_call.1} parent=1 // pred_check_branch
      %182 = sbr.rel (0) target = $region85
    $region84: #{tpu_custom_call.1} parent=1 // pred_region
      %183 = dma.done [#allocation15], 2048
    $region85: #{tpu_custom_call.1} parent=1 // pred_fallthru
      _
    // Predicated region
    $region86: #{tpu_custom_call.1} parent=1 // pred_check
      _
    $region87: #{tpu_custom_call.1} parent=1 // pred_check_branch
      %185 = sbr.rel (0) target = $region89
    $region88: #{tpu_custom_call.1} parent=1 // pred_region
      %186 = dma.done [#allocation15], 16
    $region89: #{tpu_custom_call.1} parent=1 // pred_fallthru
      _
    // Predicated region
    $region90: #{tpu_custom_call.1} parent=1 // pred_check
      _
    $region91: #{tpu_custom_call.1} parent=1 // pred_check_branch
      %188 = sbr.rel (0) target = $region93
    $region92: #{tpu_custom_call.1} parent=1 // pred_region
      %189 = dma.done [#allocation18], 16
    $region93: #{tpu_custom_call.1} parent=1 // pred_fallthru
      _
    // Predicated region
    $region94: #{tpu_custom_call.1} parent=1 // pred_check
      _
    $region95: #{tpu_custom_call.1} parent=1 // pred_check_branch
      %191 = sbr.rel (0) target = $region97
    $region96: #{tpu_custom_call.1} parent=1 // pred_region
      %192 = dma.done [#allocation18], 512
    $region97: #{tpu_custom_call.1} parent=1 // pred_fallthru
      _
    // Predicated region
    $region98: #{tpu_custom_call.1} parent=1 // pred_check
      _
    $region99: #{tpu_custom_call.1} parent=1 // pred_check_branch
      %194 = sbr.rel (0) target = $region101
    $region100: #{tpu_custom_call.1} parent=1 // pred_region
      %195 = dma.done [#allocation21], 16
    $region101: #{tpu_custom_call.1} parent=1 // pred_fallthru
      _
    %v197 = vld [vmem:[#allocation2] sm:$0xff]
    %v198 = vld [vmem:[#allocation2 + $0x8] sm:$0xff]
    %v199 = vld [vmem:[#allocation2 + $0x10] sm:$0xff]
    %v200 = vld [vmem:[#allocation2 + $0x18] sm:$0xff]
    %v201 = vld [vmem:[#allocation2 + $0x20] sm:$0xff]
    %v202 = vld [vmem:[#allocation2 + $0x28] sm:$0xff]
    %v203 = vld [vmem:[#allocation2 + $0x30] sm:$0xff]
    %v204 = vld [vmem:[#allocation2 + $0x38] sm:$0xff]
    %v205 = vld [vmem:[#allocation2 + $0x40] sm:$0xff]
    %v206 = vld [vmem:[#allocation2 + $0x48] sm:$0xff]
    %v207 = vld [vmem:[#allocation2 + $0x50] sm:$0xff]
    %v208 = vld [vmem:[#allocation2 + $0x58] sm:$0xff]
    %v209 = vld [vmem:[#allocation2 + $0x60] sm:$0xff]
    %v210 = vld [vmem:[#allocation2 + $0x68] sm:$0xff]
    %v211 = vld [vmem:[#allocation2 + $0x70] sm:$0xff]
    %v212 = vld [vmem:[#allocation2 + $0x78] sm:$0xff]
    %v213 = vld [vmem:[#allocation2 + $0x80] sm:$0xff]
    %v214 = vld [vmem:[#allocation2 + $0x88] sm:$0xff]
    %v215 = vld [vmem:[#allocation2 + $0x90] sm:$0xff]
    %v216 = vld [vmem:[#allocation2 + $0x98] sm:$0xff]
    %v217 = vld [vmem:[#allocation2 + $0xa0] sm:$0xff]
    %v218 = vld [vmem:[#allocation2 + $0xa8] sm:$0xff]
    %v219 = vld [vmem:[#allocation2 + $0xb0] sm:$0xff]
    %v220 = vld [vmem:[#allocation2 + $0xb8] sm:$0xff]
    %v221 = vld [vmem:[#allocation2 + $0xc0] sm:$0xff]
    %v222 = vld [vmem:[#allocation2 + $0xc8] sm:$0xff]
    %v223 = vld [vmem:[#allocation2 + $0xd0] sm:$0xff]
    %v224 = vld [vmem:[#allocation2 + $0xd8] sm:$0xff]
    %v225 = vld [vmem:[#allocation2 + $0xe0] sm:$0xff]
    %v226 = vld [vmem:[#allocation2 + $0xe8] sm:$0xff]
    %v227 = vld [vmem:[#allocation2 + $0xf0] sm:$0xff]
    %v228 = vld [vmem:[#allocation2 + $0xf8] sm:$0xff]
    %v229 = vld [vmem:[#allocation2 + $0x100] sm:$0xff]
    %v230 = vld [vmem:[#allocation2 + $0x108] sm:$0xff]
    %v231 = vld [vmem:[#allocation2 + $0x110] sm:$0xff]
    %v232 = vld [vmem:[#allocation2 + $0x118] sm:$0xff]
    %v233 = vld [vmem:[#allocation2 + $0x120] sm:$0xff]
    %v234 = vld [vmem:[#allocation2 + $0x128] sm:$0xff]
    %v235 = vld [vmem:[#allocation2 + $0x130] sm:$0xff]
    %v236 = vld [vmem:[#allocation2 + $0x138] sm:$0xff]
    %v237 = vld [vmem:[#allocation2 + $0x140] sm:$0xff]
    %v238 = vld [vmem:[#allocation2 + $0x148] sm:$0xff]
    %v239 = vld [vmem:[#allocation2 + $0x150] sm:$0xff]
    %v240 = vld [vmem:[#allocation2 + $0x158] sm:$0xff]
    %v241 = vld [vmem:[#allocation2 + $0x160] sm:$0xff]
    %v242 = vld [vmem:[#allocation2 + $0x168] sm:$0xff]
    %v243 = vld [vmem:[#allocation2 + $0x170] sm:$0xff]
    %v244 = vld [vmem:[#allocation2 + $0x178] sm:$0xff]
    %v245 = vld [vmem:[#allocation2 + $0x180] sm:$0xff]
    %v246 = vld [vmem:[#allocation2 + $0x188] sm:$0xff]
    %v247 = vld [vmem:[#allocation2 + $0x190] sm:$0xff]
    %v248 = vld [vmem:[#allocation2 + $0x198] sm:$0xff]
    %v249 = vld [vmem:[#allocation2 + $0x1a0] sm:$0xff]
    %v250 = vld [vmem:[#allocation2 + $0x1a8] sm:$0xff]
    %v251 = vld [vmem:[#allocation2 + $0x1b0] sm:$0xff]
    %v252 = vld [vmem:[#allocation2 + $0x1b8] sm:$0xff]
    %v253 = vld [vmem:[#allocation2 + $0x1c0] sm:$0xff]
    %v254 = vld [vmem:[#allocation2 + $0x1c8] sm:$0xff]
    %v255 = vld [vmem:[#allocation2 + $0x1d0] sm:$0xff]
    %v256 = vld [vmem:[#allocation2 + $0x1d8] sm:$0xff]
    %v257 = vld [vmem:[#allocation2 + $0x1e0] sm:$0xff]
    %v258 = vld [vmem:[#allocation2 + $0x1e8] sm:$0xff]
    %v259 = vld [vmem:[#allocation2 + $0x1f0] sm:$0xff]
    %v260 = vld [vmem:[#allocation2 + $0x1f8] sm:$0xff]
    %v261 = vld [vmem:[#allocation2 + $0x200] sm:$0xff]
    %v262 = vld [vmem:[#allocation2 + $0x208] sm:$0xff]
    %v263 = vld [vmem:[#allocation2 + $0x210] sm:$0xff]
    %v264 = vld [vmem:[#allocation2 + $0x218] sm:$0xff]
    %v265 = vld [vmem:[#allocation2 + $0x220] sm:$0xff]
    %v266 = vld [vmem:[#allocation2 + $0x228] sm:$0xff]
    %v267 = vld [vmem:[#allocation2 + $0x230] sm:$0xff]
    %v268 = vld [vmem:[#allocation2 + $0x238] sm:$0xff]
    %v269 = vld [vmem:[#allocation2 + $0x240] sm:$0xff]
    %v270 = vld [vmem:[#allocation2 + $0x248] sm:$0xff]
    %v271 = vld [vmem:[#allocation2 + $0x250] sm:$0xff]
    %v272 = vld [vmem:[#allocation2 + $0x258] sm:$0xff]
    %v273 = vld [vmem:[#allocation2 + $0x260] sm:$0xff]
    %v274 = vld [vmem:[#allocation2 + $0x268] sm:$0xff]
    %v275 = vld [vmem:[#allocation2 + $0x270] sm:$0xff]
    %v276 = vld [vmem:[#allocation2 + $0x278] sm:$0xff]
    %v277 = vld [vmem:[#allocation2 + $0x280] sm:$0xff]
    %v278 = vld [vmem:[#allocation2 + $0x288] sm:$0xff]
    %v279 = vld [vmem:[#allocation2 + $0x290] sm:$0xff]
    %v280 = vld [vmem:[#allocation2 + $0x298] sm:$0xff]
    %v281 = vld [vmem:[#allocation2 + $0x2a0] sm:$0xff]
    %v282 = vld [vmem:[#allocation2 + $0x2a8] sm:$0xff]
    %v283 = vld [vmem:[#allocation2 + $0x2b0] sm:$0xff]
    %v284 = vld [vmem:[#allocation2 + $0x2b8] sm:$0xff]
    %v285 = vld [vmem:[#allocation2 + $0x2c0] sm:$0xff]
    %v286 = vld [vmem:[#allocation2 + $0x2c8] sm:$0xff]
    %v287 = vld [vmem:[#allocation2 + $0x2d0] sm:$0xff]
    %v288 = vld [vmem:[#allocation2 + $0x2d8] sm:$0xff]
    %v289 = vld [vmem:[#allocation2 + $0x2e0] sm:$0xff]
    %v290 = vld [vmem:[#allocation2 + $0x2e8] sm:$0xff]
    %v291 = vld [vmem:[#allocation2 + $0x2f0] sm:$0xff]
    %v292 = vld [vmem:[#allocation2 + $0x2f8] sm:$0xff]
    %v293 = vld [vmem:[#allocation2 + $0x300] sm:$0xff]
    %v294 = vld [vmem:[#allocation2 + $0x308] sm:$0xff]
    %v295 = vld [vmem:[#allocation2 + $0x310] sm:$0xff]
    %v296 = vld [vmem:[#allocation2 + $0x318] sm:$0xff]
    %v297 = vld [vmem:[#allocation2 + $0x320] sm:$0xff]
    %v298 = vld [vmem:[#allocation2 + $0x328] sm:$0xff]
    %v299 = vld [vmem:[#allocation2 + $0x330] sm:$0xff]
    %v300 = vld [vmem:[#allocation2 + $0x338] sm:$0xff]
    %v301 = vld [vmem:[#allocation2 + $0x340] sm:$0xff]
    %v302 = vld [vmem:[#allocation2 + $0x348] sm:$0xff]
    %v303 = vld [vmem:[#allocation2 + $0x350] sm:$0xff]
    %v304 = vld [vmem:[#allocation2 + $0x358] sm:$0xff]
    %v305 = vld [vmem:[#allocation2 + $0x360] sm:$0xff]
    %v306 = vld [vmem:[#allocation2 + $0x368] sm:$0xff]
    %v307 = vld [vmem:[#allocation2 + $0x370] sm:$0xff]
    %v308 = vld [vmem:[#allocation2 + $0x378] sm:$0xff]
    %v309 = vld [vmem:[#allocation2 + $0x380] sm:$0xff]
    %v310 = vld [vmem:[#allocation2 + $0x388] sm:$0xff]
    %v311 = vld [vmem:[#allocation2 + $0x390] sm:$0xff]
    %v312 = vld [vmem:[#allocation2 + $0x398] sm:$0xff]
    %v313 = vld [vmem:[#allocation2 + $0x3a0] sm:$0xff]
    %v314 = vld [vmem:[#allocation2 + $0x3a8] sm:$0xff]
    %v315 = vld [vmem:[#allocation2 + $0x3b0] sm:$0xff]
    %v316 = vld [vmem:[#allocation2 + $0x3b8] sm:$0xff]
    %v317 = vld [vmem:[#allocation2 + $0x3c0] sm:$0xff]
    %v318 = vld [vmem:[#allocation2 + $0x3c8] sm:$0xff]
    %v319 = vld [vmem:[#allocation2 + $0x3d0] sm:$0xff]
    %v320 = vld [vmem:[#allocation2 + $0x3d8] sm:$0xff]
    %v321 = vld [vmem:[#allocation2 + $0x3e0] sm:$0xff]
    %v322 = vld [vmem:[#allocation2 + $0x3e8] sm:$0xff]
    %v323 = vld [vmem:[#allocation2 + $0x3f0] sm:$0xff]
    %v324 = vld [vmem:[#allocation2 + $0x3f8] sm:$0xff]
    %v325 = vld [vmem:[#allocation2 + $0x400] sm:$0xff]
    %v326 = vld [vmem:[#allocation2 + $0x408] sm:$0xff]
    %v327 = vld [vmem:[#allocation2 + $0x410] sm:$0xff]
    %v328 = vld [vmem:[#allocation2 + $0x418] sm:$0xff]
    %v329 = vld [vmem:[#allocation2 + $0x420] sm:$0xff]
    %v330 = vld [vmem:[#allocation2 + $0x428] sm:$0xff]
    %v331 = vld [vmem:[#allocation2 + $0x430] sm:$0xff]
    %v332 = vld [vmem:[#allocation2 + $0x438] sm:$0xff]
    %v333 = vld [vmem:[#allocation2 + $0x440] sm:$0xff]
    %v334 = vld [vmem:[#allocation2 + $0x448] sm:$0xff]
    %v335 = vld [vmem:[#allocation2 + $0x450] sm:$0xff]
    %v336 = vld [vmem:[#allocation2 + $0x458] sm:$0xff]
    %v337 = vld [vmem:[#allocation2 + $0x460] sm:$0xff]
    %v338 = vld [vmem:[#allocation2 + $0x468] sm:$0xff]
    %v339 = vld [vmem:[#allocation2 + $0x470] sm:$0xff]
    %v340 = vld [vmem:[#allocation2 + $0x478] sm:$0xff]
    %v341 = vld [vmem:[#allocation2 + $0x480] sm:$0xff]
    %v342 = vld [vmem:[#allocation2 + $0x488] sm:$0xff]
    %v343 = vld [vmem:[#allocation2 + $0x490] sm:$0xff]
    %v344 = vld [vmem:[#allocation2 + $0x498] sm:$0xff]
    %v345 = vld [vmem:[#allocation2 + $0x4a0] sm:$0xff]
    %v346 = vld [vmem:[#allocation2 + $0x4a8] sm:$0xff]
    %v347 = vld [vmem:[#allocation2 + $0x4b0] sm:$0xff]
    %v348 = vld [vmem:[#allocation2 + $0x4b8] sm:$0xff]
    %v349 = vld [vmem:[#allocation2 + $0x4c0] sm:$0xff]
    %v350 = vld [vmem:[#allocation2 + $0x4c8] sm:$0xff]
    %v351 = vld [vmem:[#allocation2 + $0x4d0] sm:$0xff]
    %v352 = vld [vmem:[#allocation2 + $0x4d8] sm:$0xff]
    %v353 = vld [vmem:[#allocation2 + $0x4e0] sm:$0xff]
    %v354 = vld [vmem:[#allocation2 + $0x4e8] sm:$0xff]
    %v355 = vld [vmem:[#allocation2 + $0x4f0] sm:$0xff]
    %v356 = vld [vmem:[#allocation2 + $0x4f8] sm:$0xff]
    %v357 = vld [vmem:[#allocation2 + $0x500] sm:$0xff]
    %v358 = vld [vmem:[#allocation2 + $0x508] sm:$0xff]
    %v359 = vld [vmem:[#allocation2 + $0x510] sm:$0xff]
    %v360 = vld [vmem:[#allocation2 + $0x518] sm:$0xff]
    %v361 = vld [vmem:[#allocation2 + $0x520] sm:$0xff]
    %v362 = vld [vmem:[#allocation2 + $0x528] sm:$0xff]
    %v363 = vld [vmem:[#allocation2 + $0x530] sm:$0xff]
    %v364 = vld [vmem:[#allocation2 + $0x538] sm:$0xff]
    %v365 = vld [vmem:[#allocation2 + $0x540] sm:$0xff]
    %v366 = vld [vmem:[#allocation2 + $0x548] sm:$0xff]
    %v367 = vld [vmem:[#allocation2 + $0x550] sm:$0xff]
    %v368 = vld [vmem:[#allocation2 + $0x558] sm:$0xff]
    %v369 = vld [vmem:[#allocation2 + $0x560] sm:$0xff]
    %v370 = vld [vmem:[#allocation2 + $0x568] sm:$0xff]
    %v371 = vld [vmem:[#allocation2 + $0x570] sm:$0xff]
    %v372 = vld [vmem:[#allocation2 + $0x578] sm:$0xff]
    %v373 = vld [vmem:[#allocation2 + $0x580] sm:$0xff]
    %v374 = vld [vmem:[#allocation2 + $0x588] sm:$0xff]
    %v375 = vld [vmem:[#allocation2 + $0x590] sm:$0xff]
    %v376 = vld [vmem:[#allocation2 + $0x598] sm:$0xff]
    %v377 = vld [vmem:[#allocation2 + $0x5a0] sm:$0xff]
    %v378 = vld [vmem:[#allocation2 + $0x5a8] sm:$0xff]
    %v379 = vld [vmem:[#allocation2 + $0x5b0] sm:$0xff]
    %v380 = vld [vmem:[#allocation2 + $0x5b8] sm:$0xff]
    %v381 = vld [vmem:[#allocation2 + $0x5c0] sm:$0xff]
    %v382 = vld [vmem:[#allocation2 + $0x5c8] sm:$0xff]
    %v383 = vld [vmem:[#allocation2 + $0x5d0] sm:$0xff]
    %v384 = vld [vmem:[#allocation2 + $0x5d8] sm:$0xff]
    %v385 = vld [vmem:[#allocation2 + $0x5e0] sm:$0xff]
    %v386 = vld [vmem:[#allocation2 + $0x5e8] sm:$0xff]
    %v387 = vld [vmem:[#allocation2 + $0x5f0] sm:$0xff]
    %v388 = vld [vmem:[#allocation2 + $0x5f8] sm:$0xff]
    %v389 = vpack.c.bf16 %v209, %v197
    %v390 = vpack.c.bf16 %v210, %v198
    %v391 = vpack.c.bf16 %v211, %v199
    %v392 = vpack.c.bf16 %v212, %v200
    %v393 = vpack.c.bf16 %v213, %v201
    %v394 = vpack.c.bf16 %v214, %v202
    %v395 = vpack.c.bf16 %v215, %v203
    %v396 = vpack.c.bf16 %v216, %v204
    %v397 = vpack.c.bf16 %v217, %v205
    %v398 = vpack.c.bf16 %v218, %v206
    %v399 = vpack.c.bf16 %v219, %v207
    %v400 = vpack.c.bf16 %v220, %v208
    %v401 = vpack.c.bf16 %v233, %v221
    %v402 = vpack.c.bf16 %v234, %v222
    %v403 = vpack.c.bf16 %v235, %v223
    %v404 = vpack.c.bf16 %v236, %v224
    %v405 = vpack.c.bf16 %v237, %v225
    %v406 = vpack.c.bf16 %v238, %v226
    %v407 = vpack.c.bf16 %v239, %v227
    %v408 = vpack.c.bf16 %v240, %v228
    %v409 = vpack.c.bf16 %v241, %v229
    %v410 = vpack.c.bf16 %v242, %v230
    %v411 = vpack.c.bf16 %v243, %v231
    %v412 = vpack.c.bf16 %v244, %v232
    %v413 = vpack.c.bf16 %v257, %v245
    %v414 = vpack.c.bf16 %v258, %v246
    %v415 = vpack.c.bf16 %v259, %v247
    %v416 = vpack.c.bf16 %v260, %v248
    %v417 = vpack.c.bf16 %v261, %v249
    %v418 = vpack.c.bf16 %v262, %v250
    %v419 = vpack.c.bf16 %v263, %v251
    %v420 = vpack.c.bf16 %v264, %v252
    %v421 = vpack.c.bf16 %v265, %v253
    %v422 = vpack.c.bf16 %v266, %v254
    %v423 = vpack.c.bf16 %v267, %v255
    %v424 = vpack.c.bf16 %v268, %v256
    %v425 = vpack.c.bf16 %v281, %v269
    %v426 = vpack.c.bf16 %v282, %v270
    %v427 = vpack.c.bf16 %v283, %v271
    %v428 = vpack.c.bf16 %v284, %v272
    %v429 = vpack.c.bf16 %v285, %v273
    %v430 = vpack.c.bf16 %v286, %v274
    %v431 = vpack.c.bf16 %v287, %v275
    %v432 = vpack.c.bf16 %v288, %v276
    %v433 = vpack.c.bf16 %v289, %v277
    %v434 = vpack.c.bf16 %v290, %v278
    %v435 = vpack.c.bf16 %v291, %v279
    %v436 = vpack.c.bf16 %v292, %v280
    %v437 = vpack.c.bf16 %v305, %v293
    %v438 = vpack.c.bf16 %v306, %v294
    %v439 = vpack.c.bf16 %v307, %v295
    %v440 = vpack.c.bf16 %v308, %v296
    %v441 = vpack.c.bf16 %v309, %v297
    %v442 = vpack.c.bf16 %v310, %v298
    %v443 = vpack.c.bf16 %v311, %v299
    %v444 = vpack.c.bf16 %v312, %v300
    %v445 = vpack.c.bf16 %v313, %v301
    %v446 = vpack.c.bf16 %v314, %v302
    %v447 = vpack.c.bf16 %v315, %v303
    %v448 = vpack.c.bf16 %v316, %v304
    %v449 = vpack.c.bf16 %v329, %v317
    %v450 = vpack.c.bf16 %v330, %v318
    %v451 = vpack.c.bf16 %v331, %v319
    %v452 = vpack.c.bf16 %v332, %v320
    %v453 = vpack.c.bf16 %v333, %v321
    %v454 = vpack.c.bf16 %v334, %v322
    %v455 = vpack.c.bf16 %v335, %v323
    %v456 = vpack.c.bf16 %v336, %v324
    %v457 = vpack.c.bf16 %v337, %v325
    %v458 = vpack.c.bf16 %v338, %v326
    %v459 = vpack.c.bf16 %v339, %v327
    %v460 = vpack.c.bf16 %v340, %v328
    %v461 = vpack.c.bf16 %v353, %v341
    %v462 = vpack.c.bf16 %v354, %v342
    %v463 = vpack.c.bf16 %v355, %v343
    %v464 = vpack.c.bf16 %v356, %v344
    %v465 = vpack.c.bf16 %v357, %v345
    %v466 = vpack.c.bf16 %v358, %v346
    %v467 = vpack.c.bf16 %v359, %v347
    %v468 = vpack.c.bf16 %v360, %v348
    %v469 = vpack.c.bf16 %v361, %v349
    %v470 = vpack.c.bf16 %v362, %v350
    %v471 = vpack.c.bf16 %v363, %v351
    %v472 = vpack.c.bf16 %v364, %v352
    %v473 = vpack.c.bf16 %v377, %v365
    %v474 = vpack.c.bf16 %v378, %v366
    %v475 = vpack.c.bf16 %v379, %v367
    %v476 = vpack.c.bf16 %v380, %v368
    %v477 = vpack.c.bf16 %v381, %v369
    %v478 = vpack.c.bf16 %v382, %v370
    %v479 = vpack.c.bf16 %v383, %v371
    %v480 = vpack.c.bf16 %v384, %v372
    %v481 = vpack.c.bf16 %v385, %v373
    %v482 = vpack.c.bf16 %v386, %v374
    %v483 = vpack.c.bf16 %v387, %v375
    %v484 = vpack.c.bf16 %v388, %v376
    %v485 = vld [vmem:[#allocation5] sm:$0xff]
    %v486 = vld [vmem:[#allocation5 + $0x8] sm:$0xff]
    %v487 = vld [vmem:[#allocation5 + $0x10] sm:$0xff]
    %v488 = vld [vmem:[#allocation5 + $0x18] sm:$0xff]
    %v489 = vld [vmem:[#allocation5 + $0x20] sm:$0xff]
    %v490 = vld [vmem:[#allocation5 + $0x28] sm:$0xff]
    %v491 = vld [vmem:[#allocation5 + $0x30] sm:$0xff]
    %v492 = vld [vmem:[#allocation5 + $0x38] sm:$0xff]
    %v493 = vld [vmem:[#allocation5 + $0x40] sm:$0xff]
    %v494 = vld [vmem:[#allocation5 + $0x48] sm:$0xff]
    %v495 = vld [vmem:[#allocation5 + $0x50] sm:$0xff]
    %v496 = vld [vmem:[#allocation5 + $0x58] sm:$0xff]
    %v497 = vld [vmem:[#allocation5 + $0x60] sm:$0xff]
    %v498 = vld [vmem:[#allocation5 + $0x68] sm:$0xff]
    %v499 = vld [vmem:[#allocation5 + $0x70] sm:$0xff]
    %v500 = vld [vmem:[#allocation5 + $0x78] sm:$0xff]
    %v501 = vld [vmem:[#allocation5 + $0x80] sm:$0xff]
    %v502 = vld [vmem:[#allocation5 + $0x88] sm:$0xff]
    %v503 = vld [vmem:[#allocation5 + $0x90] sm:$0xff]
    %v504 = vld [vmem:[#allocation5 + $0x98] sm:$0xff]
    %v505 = vld [vmem:[#allocation5 + $0xa0] sm:$0xff]
    %v506 = vld [vmem:[#allocation5 + $0xa8] sm:$0xff]
    %v507 = vld [vmem:[#allocation5 + $0xb0] sm:$0xff]
    %v508 = vld [vmem:[#allocation5 + $0xb8] sm:$0xff]
    %v509 = vld [vmem:[#allocation5 + $0xc0] sm:$0xff]
    %v510 = vld [vmem:[#allocation5 + $0xc8] sm:$0xff]
    %v511 = vld [vmem:[#allocation5 + $0xd0] sm:$0xff]
    %v512 = vld [vmem:[#allocation5 + $0xd8] sm:$0xff]
    %v513 = vld [vmem:[#allocation5 + $0xe0] sm:$0xff]
    %v514 = vld [vmem:[#allocation5 + $0xe8] sm:$0xff]
    %v515 = vld [vmem:[#allocation5 + $0xf0] sm:$0xff]
    %v516 = vld [vmem:[#allocation5 + $0xf8] sm:$0xff]
    %v517 = vld [vmem:[#allocation5 + $0x100] sm:$0xff]
    %v518 = vld [vmem:[#allocation5 + $0x108] sm:$0xff]
    %v519 = vld [vmem:[#allocation5 + $0x110] sm:$0xff]
    %v520 = vld [vmem:[#allocation5 + $0x118] sm:$0xff]
    %v521 = vld [vmem:[#allocation5 + $0x120] sm:$0xff]
    %v522 = vld [vmem:[#allocation5 + $0x128] sm:$0xff]
    %v523 = vld [vmem:[#allocation5 + $0x130] sm:$0xff]
    %v524 = vld [vmem:[#allocation5 + $0x138] sm:$0xff]
    %v525 = vld [vmem:[#allocation5 + $0x140] sm:$0xff]
    %v526 = vld [vmem:[#allocation5 + $0x148] sm:$0xff]
    %v527 = vld [vmem:[#allocation5 + $0x150] sm:$0xff]
    %v528 = vld [vmem:[#allocation5 + $0x158] sm:$0xff]
    %v529 = vld [vmem:[#allocation5 + $0x160] sm:$0xff]
    %v530 = vld [vmem:[#allocation5 + $0x168] sm:$0xff]
    %v531 = vld [vmem:[#allocation5 + $0x170] sm:$0xff]
    %v532 = vld [vmem:[#allocation5 + $0x178] sm:$0xff]
    %v533 = vld [vmem:[#allocation5 + $0x180] sm:$0xff]
    %v534 = vld [vmem:[#allocation5 + $0x188] sm:$0xff]
    %v535 = vld [vmem:[#allocation5 + $0x190] sm:$0xff]
    %v536 = vld [vmem:[#allocation5 + $0x198] sm:$0xff]
    %v537 = vld [vmem:[#allocation5 + $0x1a0] sm:$0xff]
    %v538 = vld [vmem:[#allocation5 + $0x1a8] sm:$0xff]
    %v539 = vld [vmem:[#allocation5 + $0x1b0] sm:$0xff]
    %v540 = vld [vmem:[#allocation5 + $0x1b8] sm:$0xff]
    %v541 = vld [vmem:[#allocation5 + $0x1c0] sm:$0xff]
    %v542 = vld [vmem:[#allocation5 + $0x1c8] sm:$0xff]
    %v543 = vld [vmem:[#allocation5 + $0x1d0] sm:$0xff]
    %v544 = vld [vmem:[#allocation5 + $0x1d8] sm:$0xff]
    %v545 = vld [vmem:[#allocation5 + $0x1e0] sm:$0xff]
    %v546 = vld [vmem:[#allocation5 + $0x1e8] sm:$0xff]
    %v547 = vld [vmem:[#allocation5 + $0x1f0] sm:$0xff]
    %v548 = vld [vmem:[#allocation5 + $0x1f8] sm:$0xff]
    %v549 = vld [vmem:[#allocation5 + $0x200] sm:$0xff]
    %v550 = vld [vmem:[#allocation5 + $0x208] sm:$0xff]
    %v551 = vld [vmem:[#allocation5 + $0x210] sm:$0xff]
    %v552 = vld [vmem:[#allocation5 + $0x218] sm:$0xff]
    %v553 = vld [vmem:[#allocation5 + $0x220] sm:$0xff]
    %v554 = vld [vmem:[#allocation5 + $0x228] sm:$0xff]
    %v555 = vld [vmem:[#allocation5 + $0x230] sm:$0xff]
    %v556 = vld [vmem:[#allocation5 + $0x238] sm:$0xff]
    %v557 = vld [vmem:[#allocation5 + $0x240] sm:$0xff]
    %v558 = vld [vmem:[#allocation5 + $0x248] sm:$0xff]
    %v559 = vld [vmem:[#allocation5 + $0x250] sm:$0xff]
    %v560 = vld [vmem:[#allocation5 + $0x258] sm:$0xff]
    %v561 = vld [vmem:[#allocation5 + $0x260] sm:$0xff]
    %v562 = vld [vmem:[#allocation5 + $0x268] sm:$0xff]
    %v563 = vld [vmem:[#allocation5 + $0x270] sm:$0xff]
    %v564 = vld [vmem:[#allocation5 + $0x278] sm:$0xff]
    %v565 = vld [vmem:[#allocation5 + $0x280] sm:$0xff]
    %v566 = vld [vmem:[#allocation5 + $0x288] sm:$0xff]
    %v567 = vld [vmem:[#allocation5 + $0x290] sm:$0xff]
    %v568 = vld [vmem:[#allocation5 + $0x298] sm:$0xff]
    %v569 = vld [vmem:[#allocation5 + $0x2a0] sm:$0xff]
    %v570 = vld [vmem:[#allocation5 + $0x2a8] sm:$0xff]
    %v571 = vld [vmem:[#allocation5 + $0x2b0] sm:$0xff]
    %v572 = vld [vmem:[#allocation5 + $0x2b8] sm:$0xff]
    %v573 = vld [vmem:[#allocation5 + $0x2c0] sm:$0xff]
    %v574 = vld [vmem:[#allocation5 + $0x2c8] sm:$0xff]
    %v575 = vld [vmem:[#allocation5 + $0x2d0] sm:$0xff]
    %v576 = vld [vmem:[#allocation5 + $0x2d8] sm:$0xff]
    %v577 = vld [vmem:[#allocation5 + $0x2e0] sm:$0xff]
    %v578 = vld [vmem:[#allocation5 + $0x2e8] sm:$0xff]
    %v579 = vld [vmem:[#allocation5 + $0x2f0] sm:$0xff]
    %v580 = vld [vmem:[#allocation5 + $0x2f8] sm:$0xff]
    %v581 = vld [vmem:[#allocation5 + $0x300] sm:$0xff]
    %v582 = vld [vmem:[#allocation5 + $0x308] sm:$0xff]
    %v583 = vld [vmem:[#allocation5 + $0x310] sm:$0xff]
    %v584 = vld [vmem:[#allocation5 + $0x318] sm:$0xff]
    %v585 = vld [vmem:[#allocation5 + $0x320] sm:$0xff]
    %v586 = vld [vmem:[#allocation5 + $0x328] sm:$0xff]
    %v587 = vld [vmem:[#allocation5 + $0x330] sm:$0xff]
    %v588 = vld [vmem:[#allocation5 + $0x338] sm:$0xff]
    %v589 = vld [vmem:[#allocation5 + $0x340] sm:$0xff]
    %v590 = vld [vmem:[#allocation5 + $0x348] sm:$0xff]
    %v591 = vld [vmem:[#allocation5 + $0x350] sm:$0xff]
    %v592 = vld [vmem:[#allocation5 + $0x358] sm:$0xff]
    %v593 = vld [vmem:[#allocation5 + $0x360] sm:$0xff]
    %v594 = vld [vmem:[#allocation5 + $0x368] sm:$0xff]
    %v595 = vld [vmem:[#allocation5 + $0x370] sm:$0xff]
    %v596 = vld [vmem:[#allocation5 + $0x378] sm:$0xff]
    %v597 = vld [vmem:[#allocation5 + $0x380] sm:$0xff]
    %v598 = vld [vmem:[#allocation5 + $0x388] sm:$0xff]
    %v599 = vld [vmem:[#allocation5 + $0x390] sm:$0xff]
    %v600 = vld [vmem:[#allocation5 + $0x398] sm:$0xff]
    %v601 = vld [vmem:[#allocation5 + $0x3a0] sm:$0xff]
    %v602 = vld [vmem:[#allocation5 + $0x3a8] sm:$0xff]
    %v603 = vld [vmem:[#allocation5 + $0x3b0] sm:$0xff]
    %v604 = vld [vmem:[#allocation5 + $0x3b8] sm:$0xff]
    %v605 = vld [vmem:[#allocation5 + $0x3c0] sm:$0xff]
    %v606 = vld [vmem:[#allocation5 + $0x3c8] sm:$0xff]
    %v607 = vld [vmem:[#allocation5 + $0x3d0] sm:$0xff]
    %v608 = vld [vmem:[#allocation5 + $0x3d8] sm:$0xff]
    %v609 = vld [vmem:[#allocation5 + $0x3e0] sm:$0xff]
    %v610 = vld [vmem:[#allocation5 + $0x3e8] sm:$0xff]
    %v611 = vld [vmem:[#allocation5 + $0x3f0] sm:$0xff]
    %v612 = vld [vmem:[#allocation5 + $0x3f8] sm:$0xff]
    %v613 = vld [vmem:[#allocation5 + $0x400] sm:$0xff]
    %v614 = vld [vmem:[#allocation5 + $0x408] sm:$0xff]
    %v615 = vld [vmem:[#allocation5 + $0x410] sm:$0xff]
    %v616 = vld [vmem:[#allocation5 + $0x418] sm:$0xff]
    %v617 = vld [vmem:[#allocation5 + $0x420] sm:$0xff]
    %v618 = vld [vmem:[#allocation5 + $0x428] sm:$0xff]
    %v619 = vld [vmem:[#allocation5 + $0x430] sm:$0xff]
    %v620 = vld [vmem:[#allocation5 + $0x438] sm:$0xff]
    %v621 = vld [vmem:[#allocation5 + $0x440] sm:$0xff]
    %v622 = vld [vmem:[#allocation5 + $0x448] sm:$0xff]
    %v623 = vld [vmem:[#allocation5 + $0x450] sm:$0xff]
    %v624 = vld [vmem:[#allocation5 + $0x458] sm:$0xff]
    %v625 = vld [vmem:[#allocation5 + $0x460] sm:$0xff]
    %v626 = vld [vmem:[#allocation5 + $0x468] sm:$0xff]
    %v627 = vld [vmem:[#allocation5 + $0x470] sm:$0xff]
    %v628 = vld [vmem:[#allocation5 + $0x478] sm:$0xff]
    %v629 = vld [vmem:[#allocation5 + $0x480] sm:$0xff]
    %v630 = vld [vmem:[#allocation5 + $0x488] sm:$0xff]
    %v631 = vld [vmem:[#allocation5 + $0x490] sm:$0xff]
    %v632 = vld [vmem:[#allocation5 + $0x498] sm:$0xff]
    %v633 = vld [vmem:[#allocation5 + $0x4a0] sm:$0xff]
    %v634 = vld [vmem:[#allocation5 + $0x4a8] sm:$0xff]
    %v635 = vld [vmem:[#allocation5 + $0x4b0] sm:$0xff]
    %v636 = vld [vmem:[#allocation5 + $0x4b8] sm:$0xff]
    %v637 = vld [vmem:[#allocation5 + $0x4c0] sm:$0xff]
    %v638 = vld [vmem:[#allocation5 + $0x4c8] sm:$0xff]
    %v639 = vld [vmem:[#allocation5 + $0x4d0] sm:$0xff]
    %v640 = vld [vmem:[#allocation5 + $0x4d8] sm:$0xff]
    %v641 = vld [vmem:[#allocation5 + $0x4e0] sm:$0xff]
    %v642 = vld [vmem:[#allocation5 + $0x4e8] sm:$0xff]
    %v643 = vld [vmem:[#allocation5 + $0x4f0] sm:$0xff]
    %v644 = vld [vmem:[#allocation5 + $0x4f8] sm:$0xff]
    %v645 = vld [vmem:[#allocation5 + $0x500] sm:$0xff]
    %v646 = vld [vmem:[#allocation5 + $0x508] sm:$0xff]
    %v647 = vld [vmem:[#allocation5 + $0x510] sm:$0xff]
    %v648 = vld [vmem:[#allocation5 + $0x518] sm:$0xff]
    %v649 = vld [vmem:[#allocation5 + $0x520] sm:$0xff]
    %v650 = vld [vmem:[#allocation5 + $0x528] sm:$0xff]
    %v651 = vld [vmem:[#allocation5 + $0x530] sm:$0xff]
    %v652 = vld [vmem:[#allocation5 + $0x538] sm:$0xff]
    %v653 = vld [vmem:[#allocation5 + $0x540] sm:$0xff]
    %v654 = vld [vmem:[#allocation5 + $0x548] sm:$0xff]
    %v655 = vld [vmem:[#allocation5 + $0x550] sm:$0xff]
    %v656 = vld [vmem:[#allocation5 + $0x558] sm:$0xff]
    %v657 = vld [vmem:[#allocation5 + $0x560] sm:$0xff]
    %v658 = vld [vmem:[#allocation5 + $0x568] sm:$0xff]
    %v659 = vld [vmem:[#allocation5 + $0x570] sm:$0xff]
    %v660 = vld [vmem:[#allocation5 + $0x578] sm:$0xff]
    %v661 = vld [vmem:[#allocation5 + $0x580] sm:$0xff]
    %v662 = vld [vmem:[#allocation5 + $0x588] sm:$0xff]
    %v663 = vld [vmem:[#allocation5 + $0x590] sm:$0xff]
    %v664 = vld [vmem:[#allocation5 + $0x598] sm:$0xff]
    %v665 = vld [vmem:[#allocation5 + $0x5a0] sm:$0xff]
    %v666 = vld [vmem:[#allocation5 + $0x5a8] sm:$0xff]
    %v667 = vld [vmem:[#allocation5 + $0x5b0] sm:$0xff]
    %v668 = vld [vmem:[#allocation5 + $0x5b8] sm:$0xff]
    %v669 = vld [vmem:[#allocation5 + $0x5c0] sm:$0xff]
    %v670 = vld [vmem:[#allocation5 + $0x5c8] sm:$0xff]
    %v671 = vld [vmem:[#allocation5 + $0x5d0] sm:$0xff]
    %v672 = vld [vmem:[#allocation5 + $0x5d8] sm:$0xff]
    %v673 = vld [vmem:[#allocation5 + $0x5e0] sm:$0xff]
    %v674 = vld [vmem:[#allocation5 + $0x5e8] sm:$0xff]
    %v675 = vld [vmem:[#allocation5 + $0x5f0] sm:$0xff]
    %v676 = vld [vmem:[#allocation5 + $0x5f8] sm:$0xff]
    %v677 = vld [vmem:[#allocation5 + $0x600] sm:$0xff]
    %v678 = vld [vmem:[#allocation5 + $0x608] sm:$0xff]
    %v679 = vld [vmem:[#allocation5 + $0x610] sm:$0xff]
    %v680 = vld [vmem:[#allocation5 + $0x618] sm:$0xff]
    %v681 = vld [vmem:[#allocation5 + $0x620] sm:$0xff]
    %v682 = vld [vmem:[#allocation5 + $0x628] sm:$0xff]
    %v683 = vld [vmem:[#allocation5 + $0x630] sm:$0xff]
    %v684 = vld [vmem:[#allocation5 + $0x638] sm:$0xff]
    %v685 = vld [vmem:[#allocation5 + $0x640] sm:$0xff]
    %v686 = vld [vmem:[#allocation5 + $0x648] sm:$0xff]
    %v687 = vld [vmem:[#allocation5 + $0x650] sm:$0xff]
    %v688 = vld [vmem:[#allocation5 + $0x658] sm:$0xff]
    %v689 = vld [vmem:[#allocation5 + $0x660] sm:$0xff]
    %v690 = vld [vmem:[#allocation5 + $0x668] sm:$0xff]
    %v691 = vld [vmem:[#allocation5 + $0x670] sm:$0xff]
    %v692 = vld [vmem:[#allocation5 + $0x678] sm:$0xff]
    %v693 = vld [vmem:[#allocation5 + $0x680] sm:$0xff]
    %v694 = vld [vmem:[#allocation5 + $0x688] sm:$0xff]
    %v695 = vld [vmem:[#allocation5 + $0x690] sm:$0xff]
    %v696 = vld [vmem:[#allocation5 + $0x698] sm:$0xff]
    %v697 = vld [vmem:[#allocation5 + $0x6a0] sm:$0xff]
    %v698 = vld [vmem:[#allocation5 + $0x6a8] sm:$0xff]
    %v699 = vld [vmem:[#allocation5 + $0x6b0] sm:$0xff]
    %v700 = vld [vmem:[#allocation5 + $0x6b8] sm:$0xff]
    %v701 = vld [vmem:[#allocation5 + $0x6c0] sm:$0xff]
    %v702 = vld [vmem:[#allocation5 + $0x6c8] sm:$0xff]
    %v703 = vld [vmem:[#allocation5 + $0x6d0] sm:$0xff]
    %v704 = vld [vmem:[#allocation5 + $0x6d8] sm:$0xff]
    %v705 = vld [vmem:[#allocation5 + $0x6e0] sm:$0xff]
    %v706 = vld [vmem:[#allocation5 + $0x6e8] sm:$0xff]
    %v707 = vld [vmem:[#allocation5 + $0x6f0] sm:$0xff]
    %v708 = vld [vmem:[#allocation5 + $0x6f8] sm:$0xff]
    %v709 = vld [vmem:[#allocation5 + $0x700] sm:$0xff]
    %v710 = vld [vmem:[#allocation5 + $0x708] sm:$0xff]
    %v711 = vld [vmem:[#allocation5 + $0x710] sm:$0xff]
    %v712 = vld [vmem:[#allocation5 + $0x718] sm:$0xff]
    %v713 = vld [vmem:[#allocation5 + $0x720] sm:$0xff]
    %v714 = vld [vmem:[#allocation5 + $0x728] sm:$0xff]
    %v715 = vld [vmem:[#allocation5 + $0x730] sm:$0xff]
    %v716 = vld [vmem:[#allocation5 + $0x738] sm:$0xff]
    %v717 = vld [vmem:[#allocation5 + $0x740] sm:$0xff]
    %v718 = vld [vmem:[#allocation5 + $0x748] sm:$0xff]
    %v719 = vld [vmem:[#allocation5 + $0x750] sm:$0xff]
    %v720 = vld [vmem:[#allocation5 + $0x758] sm:$0xff]
    %v721 = vld [vmem:[#allocation5 + $0x760] sm:$0xff]
    %v722 = vld [vmem:[#allocation5 + $0x768] sm:$0xff]
    %v723 = vld [vmem:[#allocation5 + $0x770] sm:$0xff]
    %v724 = vld [vmem:[#allocation5 + $0x778] sm:$0xff]
    %v725 = vld [vmem:[#allocation5 + $0x780] sm:$0xff]
    %v726 = vld [vmem:[#allocation5 + $0x788] sm:$0xff]
    %v727 = vld [vmem:[#allocation5 + $0x790] sm:$0xff]
    %v728 = vld [vmem:[#allocation5 + $0x798] sm:$0xff]
    %v729 = vld [vmem:[#allocation5 + $0x7a0] sm:$0xff]
    %v730 = vld [vmem:[#allocation5 + $0x7a8] sm:$0xff]
    %v731 = vld [vmem:[#allocation5 + $0x7b0] sm:$0xff]
    %v732 = vld [vmem:[#allocation5 + $0x7b8] sm:$0xff]
    %v733 = vld [vmem:[#allocation5 + $0x7c0] sm:$0xff]
    %v734 = vld [vmem:[#allocation5 + $0x7c8] sm:$0xff]
    %v735 = vld [vmem:[#allocation5 + $0x7d0] sm:$0xff]
    %v736 = vld [vmem:[#allocation5 + $0x7d8] sm:$0xff]
    %v737 = vld [vmem:[#allocation5 + $0x7e0] sm:$0xff]
    %v738 = vld [vmem:[#allocation5 + $0x7e8] sm:$0xff]
    %v739 = vld [vmem:[#allocation5 + $0x7f0] sm:$0xff]
    %v740 = vld [vmem:[#allocation5 + $0x7f8] sm:$0xff]
    %v741 = vld [vmem:[#allocation5 + $0x800] sm:$0xff]
    %v742 = vld [vmem:[#allocation5 + $0x808] sm:$0xff]
    %v743 = vld [vmem:[#allocation5 + $0x810] sm:$0xff]
    %v744 = vld [vmem:[#allocation5 + $0x818] sm:$0xff]
    %v745 = vld [vmem:[#allocation5 + $0x820] sm:$0xff]
    %v746 = vld [vmem:[#allocation5 + $0x828] sm:$0xff]
    %v747 = vld [vmem:[#allocation5 + $0x830] sm:$0xff]
    %v748 = vld [vmem:[#allocation5 + $0x838] sm:$0xff]
    %v749 = vld [vmem:[#allocation5 + $0x840] sm:$0xff]
    %v750 = vld [vmem:[#allocation5 + $0x848] sm:$0xff]
    %v751 = vld [vmem:[#allocation5 + $0x850] sm:$0xff]
    %v752 = vld [vmem:[#allocation5 + $0x858] sm:$0xff]
    %v753 = vld [vmem:[#allocation5 + $0x860] sm:$0xff]
    %v754 = vld [vmem:[#allocation5 + $0x868] sm:$0xff]
    %v755 = vld [vmem:[#allocation5 + $0x870] sm:$0xff]
    %v756 = vld [vmem:[#allocation5 + $0x878] sm:$0xff]
    %v757 = vld [vmem:[#allocation5 + $0x880] sm:$0xff]
    %v758 = vld [vmem:[#allocation5 + $0x888] sm:$0xff]
    %v759 = vld [vmem:[#allocation5 + $0x890] sm:$0xff]
    %v760 = vld [vmem:[#allocation5 + $0x898] sm:$0xff]
    %v761 = vld [vmem:[#allocation5 + $0x8a0] sm:$0xff]
    %v762 = vld [vmem:[#allocation5 + $0x8a8] sm:$0xff]
    %v763 = vld [vmem:[#allocation5 + $0x8b0] sm:$0xff]
    %v764 = vld [vmem:[#allocation5 + $0x8b8] sm:$0xff]
    %v765 = vld [vmem:[#allocation5 + $0x8c0] sm:$0xff]
    %v766 = vld [vmem:[#allocation5 + $0x8c8] sm:$0xff]
    %v767 = vld [vmem:[#allocation5 + $0x8d0] sm:$0xff]
    %v768 = vld [vmem:[#allocation5 + $0x8d8] sm:$0xff]
    %v769 = vld [vmem:[#allocation5 + $0x8e0] sm:$0xff]
    %v770 = vld [vmem:[#allocation5 + $0x8e8] sm:$0xff]
    %v771 = vld [vmem:[#allocation5 + $0x8f0] sm:$0xff]
    %v772 = vld [vmem:[#allocation5 + $0x8f8] sm:$0xff]
    %v773 = vld [vmem:[#allocation5 + $0x900] sm:$0xff]
    %v774 = vld [vmem:[#allocation5 + $0x908] sm:$0xff]
    %v775 = vld [vmem:[#allocation5 + $0x910] sm:$0xff]
    %v776 = vld [vmem:[#allocation5 + $0x918] sm:$0xff]
    %v777 = vld [vmem:[#allocation5 + $0x920] sm:$0xff]
    %v778 = vld [vmem:[#allocation5 + $0x928] sm:$0xff]
    %v779 = vld [vmem:[#allocation5 + $0x930] sm:$0xff]
    %v780 = vld [vmem:[#allocation5 + $0x938] sm:$0xff]
    %v781 = vld [vmem:[#allocation5 + $0x940] sm:$0xff]
    %v782 = vld [vmem:[#allocation5 + $0x948] sm:$0xff]
    %v783 = vld [vmem:[#allocation5 + $0x950] sm:$0xff]
    %v784 = vld [vmem:[#allocation5 + $0x958] sm:$0xff]
    %v785 = vld [vmem:[#allocation5 + $0x960] sm:$0xff]
    %v786 = vld [vmem:[#allocation5 + $0x968] sm:$0xff]
    %v787 = vld [vmem:[#allocation5 + $0x970] sm:$0xff]
    %v788 = vld [vmem:[#allocation5 + $0x978] sm:$0xff]
    %v789 = vld [vmem:[#allocation5 + $0x980] sm:$0xff]
    %v790 = vld [vmem:[#allocation5 + $0x988] sm:$0xff]
    %v791 = vld [vmem:[#allocation5 + $0x990] sm:$0xff]
    %v792 = vld [vmem:[#allocation5 + $0x998] sm:$0xff]
    %v793 = vld [vmem:[#allocation5 + $0x9a0] sm:$0xff]
    %v794 = vld [vmem:[#allocation5 + $0x9a8] sm:$0xff]
    %v795 = vld [vmem:[#allocation5 + $0x9b0] sm:$0xff]
    %v796 = vld [vmem:[#allocation5 + $0x9b8] sm:$0xff]
    %v797 = vld [vmem:[#allocation5 + $0x9c0] sm:$0xff]
    %v798 = vld [vmem:[#allocation5 + $0x9c8] sm:$0xff]
    %v799 = vld [vmem:[#allocation5 + $0x9d0] sm:$0xff]
    %v800 = vld [vmem:[#allocation5 + $0x9d8] sm:$0xff]
    %v801 = vld [vmem:[#allocation5 + $0x9e0] sm:$0xff]
    %v802 = vld [vmem:[#allocation5 + $0x9e8] sm:$0xff]
    %v803 = vld [vmem:[#allocation5 + $0x9f0] sm:$0xff]
    %v804 = vld [vmem:[#allocation5 + $0x9f8] sm:$0xff]
    %v805 = vld [vmem:[#allocation5 + $0xa00] sm:$0xff]
    %v806 = vld [vmem:[#allocation5 + $0xa08] sm:$0xff]
    %v807 = vld [vmem:[#allocation5 + $0xa10] sm:$0xff]
    %v808 = vld [vmem:[#allocation5 + $0xa18] sm:$0xff]
    %v809 = vld [vmem:[#allocation5 + $0xa20] sm:$0xff]
    %v810 = vld [vmem:[#allocation5 + $0xa28] sm:$0xff]
    %v811 = vld [vmem:[#allocation5 + $0xa30] sm:$0xff]
    %v812 = vld [vmem:[#allocation5 + $0xa38] sm:$0xff]
    %v813 = vld [vmem:[#allocation5 + $0xa40] sm:$0xff]
    %v814 = vld [vmem:[#allocation5 + $0xa48] sm:$0xff]
    %v815 = vld [vmem:[#allocation5 + $0xa50] sm:$0xff]
    %v816 = vld [vmem:[#allocation5 + $0xa58] sm:$0xff]
    %v817 = vld [vmem:[#allocation5 + $0xa60] sm:$0xff]
    %v818 = vld [vmem:[#allocation5 + $0xa68] sm:$0xff]
    %v819 = vld [vmem:[#allocation5 + $0xa70] sm:$0xff]
    %v820 = vld [vmem:[#allocation5 + $0xa78] sm:$0xff]
    %v821 = vld [vmem:[#allocation5 + $0xa80] sm:$0xff]
    %v822 = vld [vmem:[#allocation5 + $0xa88] sm:$0xff]
    %v823 = vld [vmem:[#allocation5 + $0xa90] sm:$0xff]
    %v824 = vld [vmem:[#allocation5 + $0xa98] sm:$0xff]
    %v825 = vld [vmem:[#allocation5 + $0xaa0] sm:$0xff]
    %v826 = vld [vmem:[#allocation5 + $0xaa8] sm:$0xff]
    %v827 = vld [vmem:[#allocation5 + $0xab0] sm:$0xff]
    %v828 = vld [vmem:[#allocation5 + $0xab8] sm:$0xff]
    %v829 = vld [vmem:[#allocation5 + $0xac0] sm:$0xff]
    %v830 = vld [vmem:[#allocation5 + $0xac8] sm:$0xff]
    %v831 = vld [vmem:[#allocation5 + $0xad0] sm:$0xff]
    %v832 = vld [vmem:[#allocation5 + $0xad8] sm:$0xff]
    %v833 = vld [vmem:[#allocation5 + $0xae0] sm:$0xff]
    %v834 = vld [vmem:[#allocation5 + $0xae8] sm:$0xff]
    %v835 = vld [vmem:[#allocation5 + $0xaf0] sm:$0xff]
    %v836 = vld [vmem:[#allocation5 + $0xaf8] sm:$0xff]
    %v837 = vld [vmem:[#allocation5 + $0xb00] sm:$0xff]
    %v838 = vld [vmem:[#allocation5 + $0xb08] sm:$0xff]
    %v839 = vld [vmem:[#allocation5 + $0xb10] sm:$0xff]
    %v840 = vld [vmem:[#allocation5 + $0xb18] sm:$0xff]
    %v841 = vld [vmem:[#allocation5 + $0xb20] sm:$0xff]
    %v842 = vld [vmem:[#allocation5 + $0xb28] sm:$0xff]
    %v843 = vld [vmem:[#allocation5 + $0xb30] sm:$0xff]
    %v844 = vld [vmem:[#allocation5 + $0xb38] sm:$0xff]
    %v845 = vld [vmem:[#allocation5 + $0xb40] sm:$0xff]
    %v846 = vld [vmem:[#allocation5 + $0xb48] sm:$0xff]
    %v847 = vld [vmem:[#allocation5 + $0xb50] sm:$0xff]
    %v848 = vld [vmem:[#allocation5 + $0xb58] sm:$0xff]
    %v849 = vld [vmem:[#allocation5 + $0xb60] sm:$0xff]
    %v850 = vld [vmem:[#allocation5 + $0xb68] sm:$0xff]
    %v851 = vld [vmem:[#allocation5 + $0xb70] sm:$0xff]
    %v852 = vld [vmem:[#allocation5 + $0xb78] sm:$0xff]
    %v853 = vld [vmem:[#allocation5 + $0xb80] sm:$0xff]
    %v854 = vld [vmem:[#allocation5 + $0xb88] sm:$0xff]
    %v855 = vld [vmem:[#allocation5 + $0xb90] sm:$0xff]
    %v856 = vld [vmem:[#allocation5 + $0xb98] sm:$0xff]
    %v857 = vld [vmem:[#allocation5 + $0xba0] sm:$0xff]
    %v858 = vld [vmem:[#allocation5 + $0xba8] sm:$0xff]
    %v859 = vld [vmem:[#allocation5 + $0xbb0] sm:$0xff]
    %v860 = vld [vmem:[#allocation5 + $0xbb8] sm:$0xff]
    %v861 = vld [vmem:[#allocation5 + $0xbc0] sm:$0xff]
    %v862 = vld [vmem:[#allocation5 + $0xbc8] sm:$0xff]
    %v863 = vld [vmem:[#allocation5 + $0xbd0] sm:$0xff]
    %v864 = vld [vmem:[#allocation5 + $0xbd8] sm:$0xff]
    %v865 = vld [vmem:[#allocation5 + $0xbe0] sm:$0xff]
    %v866 = vld [vmem:[#allocation5 + $0xbe8] sm:$0xff]
    %v867 = vld [vmem:[#allocation5 + $0xbf0] sm:$0xff]
    %v868 = vld [vmem:[#allocation5 + $0xbf8] sm:$0xff]
    %v869 = vld [vmem:[#allocation5 + $0xc00] sm:$0xff]
    %v870 = vld [vmem:[#allocation5 + $0xc08] sm:$0xff]
    %v871 = vld [vmem:[#allocation5 + $0xc10] sm:$0xff]
    %v872 = vld [vmem:[#allocation5 + $0xc18] sm:$0xff]
    %v873 = vld [vmem:[#allocation5 + $0xc20] sm:$0xff]
    %v874 = vld [vmem:[#allocation5 + $0xc28] sm:$0xff]
    %v875 = vld [vmem:[#allocation5 + $0xc30] sm:$0xff]
    %v876 = vld [vmem:[#allocation5 + $0xc38] sm:$0xff]
    %v877 = vld [vmem:[#allocation5 + $0xc40] sm:$0xff]
    %v878 = vld [vmem:[#allocation5 + $0xc48] sm:$0xff]
    %v879 = vld [vmem:[#allocation5 + $0xc50] sm:$0xff]
    %v880 = vld [vmem:[#allocation5 + $0xc58] sm:$0xff]
    %v881 = vld [vmem:[#allocation5 + $0xc60] sm:$0xff]
    %v882 = vld [vmem:[#allocation5 + $0xc68] sm:$0xff]
    %v883 = vld [vmem:[#allocation5 + $0xc70] sm:$0xff]
    %v884 = vld [vmem:[#allocation5 + $0xc78] sm:$0xff]
    %v885 = vld [vmem:[#allocation5 + $0xc80] sm:$0xff]
    %v886 = vld [vmem:[#allocation5 + $0xc88] sm:$0xff]
    %v887 = vld [vmem:[#allocation5 + $0xc90] sm:$0xff]
    %v888 = vld [vmem:[#allocation5 + $0xc98] sm:$0xff]
    %v889 = vld [vmem:[#allocation5 + $0xca0] sm:$0xff]
    %v890 = vld [vmem:[#allocation5 + $0xca8] sm:$0xff]
    %v891 = vld [vmem:[#allocation5 + $0xcb0] sm:$0xff]
    %v892 = vld [vmem:[#allocation5 + $0xcb8] sm:$0xff]
    %v893 = vld [vmem:[#allocation5 + $0xcc0] sm:$0xff]
    %v894 = vld [vmem:[#allocation5 + $0xcc8] sm:$0xff]
    %v895 = vld [vmem:[#allocation5 + $0xcd0] sm:$0xff]
    %v896 = vld [vmem:[#allocation5 + $0xcd8] sm:$0xff]
    %v897 = vld [vmem:[#allocation5 + $0xce0] sm:$0xff]
    %v898 = vld [vmem:[#allocation5 + $0xce8] sm:$0xff]
    %v899 = vld [vmem:[#allocation5 + $0xcf0] sm:$0xff]
    %v900 = vld [vmem:[#allocation5 + $0xcf8] sm:$0xff]
    %v901 = vld [vmem:[#allocation5 + $0xd00] sm:$0xff]
    %v902 = vld [vmem:[#allocation5 + $0xd08] sm:$0xff]
    %v903 = vld [vmem:[#allocation5 + $0xd10] sm:$0xff]
    %v904 = vld [vmem:[#allocation5 + $0xd18] sm:$0xff]
    %v905 = vld [vmem:[#allocation5 + $0xd20] sm:$0xff]
    %v906 = vld [vmem:[#allocation5 + $0xd28] sm:$0xff]
    %v907 = vld [vmem:[#allocation5 + $0xd30] sm:$0xff]
    %v908 = vld [vmem:[#allocation5 + $0xd38] sm:$0xff]
    %v909 = vld [vmem:[#allocation5 + $0xd40] sm:$0xff]
    %v910 = vld [vmem:[#allocation5 + $0xd48] sm:$0xff]
    %v911 = vld [vmem:[#allocation5 + $0xd50] sm:$0xff]
    %v912 = vld [vmem:[#allocation5 + $0xd58] sm:$0xff]
    %v913 = vld [vmem:[#allocation5 + $0xd60] sm:$0xff]
    %v914 = vld [vmem:[#allocation5 + $0xd68] sm:$0xff]
    %v915 = vld [vmem:[#allocation5 + $0xd70] sm:$0xff]
    %v916 = vld [vmem:[#allocation5 + $0xd78] sm:$0xff]
    %v917 = vld [vmem:[#allocation5 + $0xd80] sm:$0xff]
    %v918 = vld [vmem:[#allocation5 + $0xd88] sm:$0xff]
    %v919 = vld [vmem:[#allocation5 + $0xd90] sm:$0xff]
    %v920 = vld [vmem:[#allocation5 + $0xd98] sm:$0xff]
    %v921 = vld [vmem:[#allocation5 + $0xda0] sm:$0xff]
    %v922 = vld [vmem:[#allocation5 + $0xda8] sm:$0xff]
    %v923 = vld [vmem:[#allocation5 + $0xdb0] sm:$0xff]
    %v924 = vld [vmem:[#allocation5 + $0xdb8] sm:$0xff]
    %v925 = vld [vmem:[#allocation5 + $0xdc0] sm:$0xff]
    %v926 = vld [vmem:[#allocation5 + $0xdc8] sm:$0xff]
    %v927 = vld [vmem:[#allocation5 + $0xdd0] sm:$0xff]
    %v928 = vld [vmem:[#allocation5 + $0xdd8] sm:$0xff]
    %v929 = vld [vmem:[#allocation5 + $0xde0] sm:$0xff]
    %v930 = vld [vmem:[#allocation5 + $0xde8] sm:$0xff]
    %v931 = vld [vmem:[#allocation5 + $0xdf0] sm:$0xff]
    %v932 = vld [vmem:[#allocation5 + $0xdf8] sm:$0xff]
    %v933 = vld [vmem:[#allocation5 + $0xe00] sm:$0xff]
    %v934 = vld [vmem:[#allocation5 + $0xe08] sm:$0xff]
    %v935 = vld [vmem:[#allocation5 + $0xe10] sm:$0xff]
    %v936 = vld [vmem:[#allocation5 + $0xe18] sm:$0xff]
    %v937 = vld [vmem:[#allocation5 + $0xe20] sm:$0xff]
    %v938 = vld [vmem:[#allocation5 + $0xe28] sm:$0xff]
    %v939 = vld [vmem:[#allocation5 + $0xe30] sm:$0xff]
    %v940 = vld [vmem:[#allocation5 + $0xe38] sm:$0xff]
    %v941 = vld [vmem:[#allocation5 + $0xe40] sm:$0xff]
    %v942 = vld [vmem:[#allocation5 + $0xe48] sm:$0xff]
    %v943 = vld [vmem:[#allocation5 + $0xe50] sm:$0xff]
    %v944 = vld [vmem:[#allocation5 + $0xe58] sm:$0xff]
    %v945 = vld [vmem:[#allocation5 + $0xe60] sm:$0xff]
    %v946 = vld [vmem:[#allocation5 + $0xe68] sm:$0xff]
    %v947 = vld [vmem:[#allocation5 + $0xe70] sm:$0xff]
    %v948 = vld [vmem:[#allocation5 + $0xe78] sm:$0xff]
    %v949 = vld [vmem:[#allocation5 + $0xe80] sm:$0xff]
    %v950 = vld [vmem:[#allocation5 + $0xe88] sm:$0xff]
    %v951 = vld [vmem:[#allocation5 + $0xe90] sm:$0xff]
    %v952 = vld [vmem:[#allocation5 + $0xe98] sm:$0xff]
    %v953 = vld [vmem:[#allocation5 + $0xea0] sm:$0xff]
    %v954 = vld [vmem:[#allocation5 + $0xea8] sm:$0xff]
    %v955 = vld [vmem:[#allocation5 + $0xeb0] sm:$0xff]
    %v956 = vld [vmem:[#allocation5 + $0xeb8] sm:$0xff]
    %v957 = vld [vmem:[#allocation5 + $0xec0] sm:$0xff]
    %v958 = vld [vmem:[#allocation5 + $0xec8] sm:$0xff]
    %v959 = vld [vmem:[#allocation5 + $0xed0] sm:$0xff]
    %v960 = vld [vmem:[#allocation5 + $0xed8] sm:$0xff]
    %v961 = vld [vmem:[#allocation5 + $0xee0] sm:$0xff]
    %v962 = vld [vmem:[#allocation5 + $0xee8] sm:$0xff]
    %v963 = vld [vmem:[#allocation5 + $0xef0] sm:$0xff]
    %v964 = vld [vmem:[#allocation5 + $0xef8] sm:$0xff]
    %v965 = vld [vmem:[#allocation5 + $0xf00] sm:$0xff]
    %v966 = vld [vmem:[#allocation5 + $0xf08] sm:$0xff]
    %v967 = vld [vmem:[#allocation5 + $0xf10] sm:$0xff]
    %v968 = vld [vmem:[#allocation5 + $0xf18] sm:$0xff]
    %v969 = vld [vmem:[#allocation5 + $0xf20] sm:$0xff]
    %v970 = vld [vmem:[#allocation5 + $0xf28] sm:$0xff]
    %v971 = vld [vmem:[#allocation5 + $0xf30] sm:$0xff]
    %v972 = vld [vmem:[#allocation5 + $0xf38] sm:$0xff]
    %v973 = vld [vmem:[#allocation5 + $0xf40] sm:$0xff]
    %v974 = vld [vmem:[#allocation5 + $0xf48] sm:$0xff]
    %v975 = vld [vmem:[#allocation5 + $0xf50] sm:$0xff]
    %v976 = vld [vmem:[#allocation5 + $0xf58] sm:$0xff]
    %v977 = vld [vmem:[#allocation5 + $0xf60] sm:$0xff]
    %v978 = vld [vmem:[#allocation5 + $0xf68] sm:$0xff]
    %v979 = vld [vmem:[#allocation5 + $0xf70] sm:$0xff]
    %v980 = vld [vmem:[#allocation5 + $0xf78] sm:$0xff]
    %v981 = vld [vmem:[#allocation5 + $0xf80] sm:$0xff]
    %v982 = vld [vmem:[#allocation5 + $0xf88] sm:$0xff]
    %v983 = vld [vmem:[#allocation5 + $0xf90] sm:$0xff]
    %v984 = vld [vmem:[#allocation5 + $0xf98] sm:$0xff]
    %v985 = vld [vmem:[#allocation5 + $0xfa0] sm:$0xff]
    %v986 = vld [vmem:[#allocation5 + $0xfa8] sm:$0xff]
    %v987 = vld [vmem:[#allocation5 + $0xfb0] sm:$0xff]
    %v988 = vld [vmem:[#allocation5 + $0xfb8] sm:$0xff]
    %v989 = vld [vmem:[#allocation5 + $0xfc0] sm:$0xff]
    %v990 = vld [vmem:[#allocation5 + $0xfc8] sm:$0xff]
    %v991 = vld [vmem:[#allocation5 + $0xfd0] sm:$0xff]
    %v992 = vld [vmem:[#allocation5 + $0xfd8] sm:$0xff]
    %v993 = vld [vmem:[#allocation5 + $0xfe0] sm:$0xff]
    %v994 = vld [vmem:[#allocation5 + $0xfe8] sm:$0xff]
    %v995 = vld [vmem:[#allocation5 + $0xff0] sm:$0xff]
    %v996 = vld [vmem:[#allocation5 + $0xff8] sm:$0xff]
    %v997 = vld [vmem:[#allocation5 + $0x1000] sm:$0xff]
    %v998 = vld [vmem:[#allocation5 + $0x1008] sm:$0xff]
    %v999 = vld [vmem:[#allocation5 + $0x1010] sm:$0xff]
    %v1000 = vld [vmem:[#allocation5 + $0x1018] sm:$0xff]
    %v1001 = vld [vmem:[#allocation5 + $0x1020] sm:$0xff]
    %v1002 = vld [vmem:[#allocation5 + $0x1028] sm:$0xff]
    %v1003 = vld [vmem:[#allocation5 + $0x1030] sm:$0xff]
    %v1004 = vld [vmem:[#allocation5 + $0x1038] sm:$0xff]
    %v1005 = vld [vmem:[#allocation5 + $0x1040] sm:$0xff]
    %v1006 = vld [vmem:[#allocation5 + $0x1048] sm:$0xff]
    %v1007 = vld [vmem:[#allocation5 + $0x1050] sm:$0xff]
    %v1008 = vld [vmem:[#allocation5 + $0x1058] sm:$0xff]
    %v1009 = vld [vmem:[#allocation5 + $0x1060] sm:$0xff]
    %v1010 = vld [vmem:[#allocation5 + $0x1068] sm:$0xff]
    %v1011 = vld [vmem:[#allocation5 + $0x1070] sm:$0xff]
    %v1012 = vld [vmem:[#allocation5 + $0x1078] sm:$0xff]
    %v1013 = vld [vmem:[#allocation5 + $0x1080] sm:$0xff]
    %v1014 = vld [vmem:[#allocation5 + $0x1088] sm:$0xff]
    %v1015 = vld [vmem:[#allocation5 + $0x1090] sm:$0xff]
    %v1016 = vld [vmem:[#allocation5 + $0x1098] sm:$0xff]
    %v1017 = vld [vmem:[#allocation5 + $0x10a0] sm:$0xff]
    %v1018 = vld [vmem:[#allocation5 + $0x10a8] sm:$0xff]
    %v1019 = vld [vmem:[#allocation5 + $0x10b0] sm:$0xff]
    %v1020 = vld [vmem:[#allocation5 + $0x10b8] sm:$0xff]
    %v1021 = vld [vmem:[#allocation5 + $0x10c0] sm:$0xff]
    %v1022 = vld [vmem:[#allocation5 + $0x10c8] sm:$0xff]
    %v1023 = vld [vmem:[#allocation5 + $0x10d0] sm:$0xff]
    %v1024 = vld [vmem:[#allocation5 + $0x10d8] sm:$0xff]
    %v1025 = vld [vmem:[#allocation5 + $0x10e0] sm:$0xff]
    %v1026 = vld [vmem:[#allocation5 + $0x10e8] sm:$0xff]
    %v1027 = vld [vmem:[#allocation5 + $0x10f0] sm:$0xff]
    %v1028 = vld [vmem:[#allocation5 + $0x10f8] sm:$0xff]
    %v1029 = vld [vmem:[#allocation5 + $0x1100] sm:$0xff]
    %v1030 = vld [vmem:[#allocation5 + $0x1108] sm:$0xff]
    %v1031 = vld [vmem:[#allocation5 + $0x1110] sm:$0xff]
    %v1032 = vld [vmem:[#allocation5 + $0x1118] sm:$0xff]
    %v1033 = vld [vmem:[#allocation5 + $0x1120] sm:$0xff]
    %v1034 = vld [vmem:[#allocation5 + $0x1128] sm:$0xff]
    %v1035 = vld [vmem:[#allocation5 + $0x1130] sm:$0xff]
    %v1036 = vld [vmem:[#allocation5 + $0x1138] sm:$0xff]
    %v1037 = vld [vmem:[#allocation5 + $0x1140] sm:$0xff]
    %v1038 = vld [vmem:[#allocation5 + $0x1148] sm:$0xff]
    %v1039 = vld [vmem:[#allocation5 + $0x1150] sm:$0xff]
    %v1040 = vld [vmem:[#allocation5 + $0x1158] sm:$0xff]
    %v1041 = vld [vmem:[#allocation5 + $0x1160] sm:$0xff]
    %v1042 = vld [vmem:[#allocation5 + $0x1168] sm:$0xff]
    %v1043 = vld [vmem:[#allocation5 + $0x1170] sm:$0xff]
    %v1044 = vld [vmem:[#allocation5 + $0x1178] sm:$0xff]
    %v1045 = vld [vmem:[#allocation5 + $0x1180] sm:$0xff]
    %v1046 = vld [vmem:[#allocation5 + $0x1188] sm:$0xff]
    %v1047 = vld [vmem:[#allocation5 + $0x1190] sm:$0xff]
    %v1048 = vld [vmem:[#allocation5 + $0x1198] sm:$0xff]
    %v1049 = vld [vmem:[#allocation5 + $0x11a0] sm:$0xff]
    %v1050 = vld [vmem:[#allocation5 + $0x11a8] sm:$0xff]
    %v1051 = vld [vmem:[#allocation5 + $0x11b0] sm:$0xff]
    %v1052 = vld [vmem:[#allocation5 + $0x11b8] sm:$0xff]
    %v1053 = vld [vmem:[#allocation5 + $0x11c0] sm:$0xff]
    %v1054 = vld [vmem:[#allocation5 + $0x11c8] sm:$0xff]
    %v1055 = vld [vmem:[#allocation5 + $0x11d0] sm:$0xff]
    %v1056 = vld [vmem:[#allocation5 + $0x11d8] sm:$0xff]
    %v1057 = vld [vmem:[#allocation5 + $0x11e0] sm:$0xff]
    %v1058 = vld [vmem:[#allocation5 + $0x11e8] sm:$0xff]
    %v1059 = vld [vmem:[#allocation5 + $0x11f0] sm:$0xff]
    %v1060 = vld [vmem:[#allocation5 + $0x11f8] sm:$0xff]
    %v1061 = vld [vmem:[#allocation5 + $0x1200] sm:$0xff]
    %v1062 = vld [vmem:[#allocation5 + $0x1208] sm:$0xff]
    %v1063 = vld [vmem:[#allocation5 + $0x1210] sm:$0xff]
    %v1064 = vld [vmem:[#allocation5 + $0x1218] sm:$0xff]
    %v1065 = vld [vmem:[#allocation5 + $0x1220] sm:$0xff]
    %v1066 = vld [vmem:[#allocation5 + $0x1228] sm:$0xff]
    %v1067 = vld [vmem:[#allocation5 + $0x1230] sm:$0xff]
    %v1068 = vld [vmem:[#allocation5 + $0x1238] sm:$0xff]
    %v1069 = vld [vmem:[#allocation5 + $0x1240] sm:$0xff]
    %v1070 = vld [vmem:[#allocation5 + $0x1248] sm:$0xff]
    %v1071 = vld [vmem:[#allocation5 + $0x1250] sm:$0xff]
    %v1072 = vld [vmem:[#allocation5 + $0x1258] sm:$0xff]
    %v1073 = vld [vmem:[#allocation5 + $0x1260] sm:$0xff]
    %v1074 = vld [vmem:[#allocation5 + $0x1268] sm:$0xff]
    %v1075 = vld [vmem:[#allocation5 + $0x1270] sm:$0xff]
    %v1076 = vld [vmem:[#allocation5 + $0x1278] sm:$0xff]
    %v1077 = vld [vmem:[#allocation5 + $0x1280] sm:$0xff]
    %v1078 = vld [vmem:[#allocation5 + $0x1288] sm:$0xff]
    %v1079 = vld [vmem:[#allocation5 + $0x1290] sm:$0xff]
    %v1080 = vld [vmem:[#allocation5 + $0x1298] sm:$0xff]
    %v1081 = vld [vmem:[#allocation5 + $0x12a0] sm:$0xff]
    %v1082 = vld [vmem:[#allocation5 + $0x12a8] sm:$0xff]
    %v1083 = vld [vmem:[#allocation5 + $0x12b0] sm:$0xff]
    %v1084 = vld [vmem:[#allocation5 + $0x12b8] sm:$0xff]
    %v1085 = vld [vmem:[#allocation5 + $0x12c0] sm:$0xff]
    %v1086 = vld [vmem:[#allocation5 + $0x12c8] sm:$0xff]
    %v1087 = vld [vmem:[#allocation5 + $0x12d0] sm:$0xff]
    %v1088 = vld [vmem:[#allocation5 + $0x12d8] sm:$0xff]
    %v1089 = vld [vmem:[#allocation5 + $0x12e0] sm:$0xff]
    %v1090 = vld [vmem:[#allocation5 + $0x12e8] sm:$0xff]
    %v1091 = vld [vmem:[#allocation5 + $0x12f0] sm:$0xff]
    %v1092 = vld [vmem:[#allocation5 + $0x12f8] sm:$0xff]
    %v1093 = vld [vmem:[#allocation5 + $0x1300] sm:$0xff]
    %v1094 = vld [vmem:[#allocation5 + $0x1308] sm:$0xff]
    %v1095 = vld [vmem:[#allocation5 + $0x1310] sm:$0xff]
    %v1096 = vld [vmem:[#allocation5 + $0x1318] sm:$0xff]
    %v1097 = vld [vmem:[#allocation5 + $0x1320] sm:$0xff]
    %v1098 = vld [vmem:[#allocation5 + $0x1328] sm:$0xff]
    %v1099 = vld [vmem:[#allocation5 + $0x1330] sm:$0xff]
    %v1100 = vld [vmem:[#allocation5 + $0x1338] sm:$0xff]
    %v1101 = vld [vmem:[#allocation5 + $0x1340] sm:$0xff]
    %v1102 = vld [vmem:[#allocation5 + $0x1348] sm:$0xff]
    %v1103 = vld [vmem:[#allocation5 + $0x1350] sm:$0xff]
    %v1104 = vld [vmem:[#allocation5 + $0x1358] sm:$0xff]
    %v1105 = vld [vmem:[#allocation5 + $0x1360] sm:$0xff]
    %v1106 = vld [vmem:[#allocation5 + $0x1368] sm:$0xff]
    %v1107 = vld [vmem:[#allocation5 + $0x1370] sm:$0xff]
    %v1108 = vld [vmem:[#allocation5 + $0x1378] sm:$0xff]
    %v1109 = vld [vmem:[#allocation5 + $0x1380] sm:$0xff]
    %v1110 = vld [vmem:[#allocation5 + $0x1388] sm:$0xff]
    %v1111 = vld [vmem:[#allocation5 + $0x1390] sm:$0xff]
    %v1112 = vld [vmem:[#allocation5 + $0x1398] sm:$0xff]
    %v1113 = vld [vmem:[#allocation5 + $0x13a0] sm:$0xff]
    %v1114 = vld [vmem:[#allocation5 + $0x13a8] sm:$0xff]
    %v1115 = vld [vmem:[#allocation5 + $0x13b0] sm:$0xff]
    %v1116 = vld [vmem:[#allocation5 + $0x13b8] sm:$0xff]
    %v1117 = vld [vmem:[#allocation5 + $0x13c0] sm:$0xff]
    %v1118 = vld [vmem:[#allocation5 + $0x13c8] sm:$0xff]
    %v1119 = vld [vmem:[#allocation5 + $0x13d0] sm:$0xff]
    %v1120 = vld [vmem:[#allocation5 + $0x13d8] sm:$0xff]
    %v1121 = vld [vmem:[#allocation5 + $0x13e0] sm:$0xff]
    %v1122 = vld [vmem:[#allocation5 + $0x13e8] sm:$0xff]
    %v1123 = vld [vmem:[#allocation5 + $0x13f0] sm:$0xff]
    %v1124 = vld [vmem:[#allocation5 + $0x13f8] sm:$0xff]
    %v1125 = vld [vmem:[#allocation5 + $0x1400] sm:$0xff]
    %v1126 = vld [vmem:[#allocation5 + $0x1408] sm:$0xff]
    %v1127 = vld [vmem:[#allocation5 + $0x1410] sm:$0xff]
    %v1128 = vld [vmem:[#allocation5 + $0x1418] sm:$0xff]
    %v1129 = vld [vmem:[#allocation5 + $0x1420] sm:$0xff]
    %v1130 = vld [vmem:[#allocation5 + $0x1428] sm:$0xff]
    %v1131 = vld [vmem:[#allocation5 + $0x1430] sm:$0xff]
    %v1132 = vld [vmem:[#allocation5 + $0x1438] sm:$0xff]
    %v1133 = vld [vmem:[#allocation5 + $0x1440] sm:$0xff]
    %v1134 = vld [vmem:[#allocation5 + $0x1448] sm:$0xff]
    %v1135 = vld [vmem:[#allocation5 + $0x1450] sm:$0xff]
    %v1136 = vld [vmem:[#allocation5 + $0x1458] sm:$0xff]
    %v1137 = vld [vmem:[#allocation5 + $0x1460] sm:$0xff]
    %v1138 = vld [vmem:[#allocation5 + $0x1468] sm:$0xff]
    %v1139 = vld [vmem:[#allocation5 + $0x1470] sm:$0xff]
    %v1140 = vld [vmem:[#allocation5 + $0x1478] sm:$0xff]
    %v1141 = vld [vmem:[#allocation5 + $0x1480] sm:$0xff]
    %v1142 = vld [vmem:[#allocation5 + $0x1488] sm:$0xff]
    %v1143 = vld [vmem:[#allocation5 + $0x1490] sm:$0xff]
    %v1144 = vld [vmem:[#allocation5 + $0x1498] sm:$0xff]
    %v1145 = vld [vmem:[#allocation5 + $0x14a0] sm:$0xff]
    %v1146 = vld [vmem:[#allocation5 + $0x14a8] sm:$0xff]
    %v1147 = vld [vmem:[#allocation5 + $0x14b0] sm:$0xff]
    %v1148 = vld [vmem:[#allocation5 + $0x14b8] sm:$0xff]
    %v1149 = vld [vmem:[#allocation5 + $0x14c0] sm:$0xff]
    %v1150 = vld [vmem:[#allocation5 + $0x14c8] sm:$0xff]
    %v1151 = vld [vmem:[#allocation5 + $0x14d0] sm:$0xff]
    %v1152 = vld [vmem:[#allocation5 + $0x14d8] sm:$0xff]
    %v1153 = vld [vmem:[#allocation5 + $0x14e0] sm:$0xff]
    %v1154 = vld [vmem:[#allocation5 + $0x14e8] sm:$0xff]
    %v1155 = vld [vmem:[#allocation5 + $0x14f0] sm:$0xff]
    %v1156 = vld [vmem:[#allocation5 + $0x14f8] sm:$0xff]
    %v1157 = vld [vmem:[#allocation5 + $0x1500] sm:$0xff]
    %v1158 = vld [vmem:[#allocation5 + $0x1508] sm:$0xff]
    %v1159 = vld [vmem:[#allocation5 + $0x1510] sm:$0xff]
    %v1160 = vld [vmem:[#allocation5 + $0x1518] sm:$0xff]
    %v1161 = vld [vmem:[#allocation5 + $0x1520] sm:$0xff]
    %v1162 = vld [vmem:[#allocation5 + $0x1528] sm:$0xff]
    %v1163 = vld [vmem:[#allocation5 + $0x1530] sm:$0xff]
    %v1164 = vld [vmem:[#allocation5 + $0x1538] sm:$0xff]
    %v1165 = vld [vmem:[#allocation5 + $0x1540] sm:$0xff]
    %v1166 = vld [vmem:[#allocation5 + $0x1548] sm:$0xff]
    %v1167 = vld [vmem:[#allocation5 + $0x1550] sm:$0xff]
    %v1168 = vld [vmem:[#allocation5 + $0x1558] sm:$0xff]
    %v1169 = vld [vmem:[#allocation5 + $0x1560] sm:$0xff]
    %v1170 = vld [vmem:[#allocation5 + $0x1568] sm:$0xff]
    %v1171 = vld [vmem:[#allocation5 + $0x1570] sm:$0xff]
    %v1172 = vld [vmem:[#allocation5 + $0x1578] sm:$0xff]
    %v1173 = vld [vmem:[#allocation5 + $0x1580] sm:$0xff]
    %v1174 = vld [vmem:[#allocation5 + $0x1588] sm:$0xff]
    %v1175 = vld [vmem:[#allocation5 + $0x1590] sm:$0xff]
    %v1176 = vld [vmem:[#allocation5 + $0x1598] sm:$0xff]
    %v1177 = vld [vmem:[#allocation5 + $0x15a0] sm:$0xff]
    %v1178 = vld [vmem:[#allocation5 + $0x15a8] sm:$0xff]
    %v1179 = vld [vmem:[#allocation5 + $0x15b0] sm:$0xff]
    %v1180 = vld [vmem:[#allocation5 + $0x15b8] sm:$0xff]
    %v1181 = vld [vmem:[#allocation5 + $0x15c0] sm:$0xff]
    %v1182 = vld [vmem:[#allocation5 + $0x15c8] sm:$0xff]
    %v1183 = vld [vmem:[#allocation5 + $0x15d0] sm:$0xff]
    %v1184 = vld [vmem:[#allocation5 + $0x15d8] sm:$0xff]
    %v1185 = vld [vmem:[#allocation5 + $0x15e0] sm:$0xff]
    %v1186 = vld [vmem:[#allocation5 + $0x15e8] sm:$0xff]
    %v1187 = vld [vmem:[#allocation5 + $0x15f0] sm:$0xff]
    %v1188 = vld [vmem:[#allocation5 + $0x15f8] sm:$0xff]
    %v1189 = vld [vmem:[#allocation5 + $0x1600] sm:$0xff]
    %v1190 = vld [vmem:[#allocation5 + $0x1608] sm:$0xff]
    %v1191 = vld [vmem:[#allocation5 + $0x1610] sm:$0xff]
    %v1192 = vld [vmem:[#allocation5 + $0x1618] sm:$0xff]
    %v1193 = vld [vmem:[#allocation5 + $0x1620] sm:$0xff]
    %v1194 = vld [vmem:[#allocation5 + $0x1628] sm:$0xff]
    %v1195 = vld [vmem:[#allocation5 + $0x1630] sm:$0xff]
    %v1196 = vld [vmem:[#allocation5 + $0x1638] sm:$0xff]
    %v1197 = vld [vmem:[#allocation5 + $0x1640] sm:$0xff]
    %v1198 = vld [vmem:[#allocation5 + $0x1648] sm:$0xff]
    %v1199 = vld [vmem:[#allocation5 + $0x1650] sm:$0xff]
    %v1200 = vld [vmem:[#allocation5 + $0x1658] sm:$0xff]
    %v1201 = vld [vmem:[#allocation5 + $0x1660] sm:$0xff]
    %v1202 = vld [vmem:[#allocation5 + $0x1668] sm:$0xff]
    %v1203 = vld [vmem:[#allocation5 + $0x1670] sm:$0xff]
    %v1204 = vld [vmem:[#allocation5 + $0x1678] sm:$0xff]
    %v1205 = vld [vmem:[#allocation5 + $0x1680] sm:$0xff]
    %v1206 = vld [vmem:[#allocation5 + $0x1688] sm:$0xff]
    %v1207 = vld [vmem:[#allocation5 + $0x1690] sm:$0xff]
    %v1208 = vld [vmem:[#allocation5 + $0x1698] sm:$0xff]
    %v1209 = vld [vmem:[#allocation5 + $0x16a0] sm:$0xff]
    %v1210 = vld [vmem:[#allocation5 + $0x16a8] sm:$0xff]
    %v1211 = vld [vmem:[#allocation5 + $0x16b0] sm:$0xff]
    %v1212 = vld [vmem:[#allocation5 + $0x16b8] sm:$0xff]
    %v1213 = vld [vmem:[#allocation5 + $0x16c0] sm:$0xff]
    %v1214 = vld [vmem:[#allocation5 + $0x16c8] sm:$0xff]
    %v1215 = vld [vmem:[#allocation5 + $0x16d0] sm:$0xff]
    %v1216 = vld [vmem:[#allocation5 + $0x16d8] sm:$0xff]
    %v1217 = vld [vmem:[#allocation5 + $0x16e0] sm:$0xff]
    %v1218 = vld [vmem:[#allocation5 + $0x16e8] sm:$0xff]
    %v1219 = vld [vmem:[#allocation5 + $0x16f0] sm:$0xff]
    %v1220 = vld [vmem:[#allocation5 + $0x16f8] sm:$0xff]
    %v1221 = vld [vmem:[#allocation5 + $0x1700] sm:$0xff]
    %v1222 = vld [vmem:[#allocation5 + $0x1708] sm:$0xff]
    %v1223 = vld [vmem:[#allocation5 + $0x1710] sm:$0xff]
    %v1224 = vld [vmem:[#allocation5 + $0x1718] sm:$0xff]
    %v1225 = vld [vmem:[#allocation5 + $0x1720] sm:$0xff]
    %v1226 = vld [vmem:[#allocation5 + $0x1728] sm:$0xff]
    %v1227 = vld [vmem:[#allocation5 + $0x1730] sm:$0xff]
    %v1228 = vld [vmem:[#allocation5 + $0x1738] sm:$0xff]
    %v1229 = vld [vmem:[#allocation5 + $0x1740] sm:$0xff]
    %v1230 = vld [vmem:[#allocation5 + $0x1748] sm:$0xff]
    %v1231 = vld [vmem:[#allocation5 + $0x1750] sm:$0xff]
    %v1232 = vld [vmem:[#allocation5 + $0x1758] sm:$0xff]
    %v1233 = vld [vmem:[#allocation5 + $0x1760] sm:$0xff]
    %v1234 = vld [vmem:[#allocation5 + $0x1768] sm:$0xff]
    %v1235 = vld [vmem:[#allocation5 + $0x1770] sm:$0xff]
    %v1236 = vld [vmem:[#allocation5 + $0x1778] sm:$0xff]
    %v1237 = vld [vmem:[#allocation5 + $0x1780] sm:$0xff]
    %v1238 = vld [vmem:[#allocation5 + $0x1788] sm:$0xff]
    %v1239 = vld [vmem:[#allocation5 + $0x1790] sm:$0xff]
    %v1240 = vld [vmem:[#allocation5 + $0x1798] sm:$0xff]
    %v1241 = vld [vmem:[#allocation5 + $0x17a0] sm:$0xff]
    %v1242 = vld [vmem:[#allocation5 + $0x17a8] sm:$0xff]
    %v1243 = vld [vmem:[#allocation5 + $0x17b0] sm:$0xff]
    %v1244 = vld [vmem:[#allocation5 + $0x17b8] sm:$0xff]
    %v1245 = vld [vmem:[#allocation5 + $0x17c0] sm:$0xff]
    %v1246 = vld [vmem:[#allocation5 + $0x17c8] sm:$0xff]
    %v1247 = vld [vmem:[#allocation5 + $0x17d0] sm:$0xff]
    %v1248 = vld [vmem:[#allocation5 + $0x17d8] sm:$0xff]
    %v1249 = vld [vmem:[#allocation5 + $0x17e0] sm:$0xff]
    %v1250 = vld [vmem:[#allocation5 + $0x17e8] sm:$0xff]
    %v1251 = vld [vmem:[#allocation5 + $0x17f0] sm:$0xff]
    %v1252 = vld [vmem:[#allocation5 + $0x17f8] sm:$0xff]
    %v1253 = vld [vmem:[#allocation7] sm:$0xff]
    %v1255 = vlaneseq
    %v1256 = vshrl.u32 %v1255, 7
    %v1257 = vsub.s32 0, %v1256
    %v1258 = vrot.slane %v1253, %v1257
    %v1259 = vlaneseq
    %v1260 = vshrl.u32 %v1259, 7
    %v1261 = vsub.s32 1, %v1260
    %v1262 = vrot.slane %v1253, %v1261
    %v1263 = vlaneseq
    %v1264 = vshrl.u32 %v1263, 7
    %v1265 = vsub.s32 2, %v1264
    %v1266 = vrot.slane %v1253, %v1265
    %v1267 = vlaneseq
    %v1268 = vshrl.u32 %v1267, 7
    %v1269 = vsub.s32 3, %v1268
    %v1270 = vrot.slane %v1253, %v1269
    %v1271 = vlaneseq
    %v1272 = vshrl.u32 %v1271, 7
    %v1273 = vsub.s32 4, %v1272
    %v1274 = vrot.slane %v1253, %v1273
    %v1275 = vlaneseq
    %v1276 = vshrl.u32 %v1275, 7
    %v1277 = vsub.s32 5, %v1276
    %v1278 = vrot.slane %v1253, %v1277
    %v1279 = vlaneseq
    %v1280 = vshrl.u32 %v1279, 7
    %v1281 = vsub.s32 6, %v1280
    %v1282 = vrot.slane %v1253, %v1281
    %v1283 = vlaneseq
    %v1284 = vshrl.u32 %v1283, 7
    %v1285 = vsub.s32 7, %v1284
    %v1286 = vrot.slane %v1253, %v1285
    %v2063 = vunpack.c.l.b16 %v485
    %v2064 = vunpack.c.h.b16 %v485
    %v2065 = vunpack.c.l.b16 %v486
    %v2066 = vunpack.c.h.b16 %v486
    %v2067 = vunpack.c.l.b16 %v487
    %v2068 = vunpack.c.h.b16 %v487
    %v2069 = vunpack.c.l.b16 %v488
    %v2070 = vunpack.c.h.b16 %v488
    %v2071 = vunpack.c.l.b16 %v489
    %v2072 = vunpack.c.h.b16 %v489
    %v2073 = vunpack.c.l.b16 %v490
    %v2074 = vunpack.c.h.b16 %v490
    %v2075 = vunpack.c.l.b16 %v491
    %v2076 = vunpack.c.h.b16 %v491
    %v2077 = vunpack.c.l.b16 %v492
    %v2078 = vunpack.c.h.b16 %v492
    %v2079 = vunpack.c.l.b16 %v493
    %v2080 = vunpack.c.h.b16 %v493
    %v2081 = vunpack.c.l.b16 %v494
    %v2082 = vunpack.c.h.b16 %v494
    %v2083 = vunpack.c.l.b16 %v495
    %v2084 = vunpack.c.h.b16 %v495
    %v2085 = vunpack.c.l.b16 %v496
    %v2086 = vunpack.c.h.b16 %v496
    %v2087 = vunpack.c.l.b16 %v497
    %v2088 = vunpack.c.h.b16 %v497
    %v2089 = vunpack.c.l.b16 %v498
    %v2090 = vunpack.c.h.b16 %v498
    %v2091 = vunpack.c.l.b16 %v499
    %v2092 = vunpack.c.h.b16 %v499
    %v2093 = vunpack.c.l.b16 %v500
    %v2094 = vunpack.c.h.b16 %v500
    %v2095 = vunpack.c.l.b16 %v501
    %v2096 = vunpack.c.h.b16 %v501
    %v2097 = vunpack.c.l.b16 %v502
    %v2098 = vunpack.c.h.b16 %v502
    %v2099 = vunpack.c.l.b16 %v503
    %v2100 = vunpack.c.h.b16 %v503
    %v2101 = vunpack.c.l.b16 %v504
    %v2102 = vunpack.c.h.b16 %v504
    %v2103 = vunpack.c.l.b16 %v505
    %v2104 = vunpack.c.h.b16 %v505
    %v2105 = vunpack.c.l.b16 %v506
    %v2106 = vunpack.c.h.b16 %v506
    %v2107 = vunpack.c.l.b16 %v507
    %v2108 = vunpack.c.h.b16 %v507
    %v2109 = vunpack.c.l.b16 %v508
    %v2110 = vunpack.c.h.b16 %v508
    %v2111 = vunpack.c.l.b16 %v509
    %v2112 = vunpack.c.h.b16 %v509
    %v2113 = vunpack.c.l.b16 %v510
    %v2114 = vunpack.c.h.b16 %v510
    %v2115 = vunpack.c.l.b16 %v511
    %v2116 = vunpack.c.h.b16 %v511
    %v2117 = vunpack.c.l.b16 %v512
    %v2118 = vunpack.c.h.b16 %v512
    %v2119 = vunpack.c.l.b16 %v513
    %v2120 = vunpack.c.h.b16 %v513
    %v2121 = vunpack.c.l.b16 %v514
    %v2122 = vunpack.c.h.b16 %v514
    %v2123 = vunpack.c.l.b16 %v515
    %v2124 = vunpack.c.h.b16 %v515
    %v2125 = vunpack.c.l.b16 %v516
    %v2126 = vunpack.c.h.b16 %v516
    %v2127 = vunpack.c.l.b16 %v517
    %v2128 = vunpack.c.h.b16 %v517
    %v2129 = vunpack.c.l.b16 %v518
    %v2130 = vunpack.c.h.b16 %v518
    %v2131 = vunpack.c.l.b16 %v519
    %v2132 = vunpack.c.h.b16 %v519
    %v2133 = vunpack.c.l.b16 %v520
    %v2134 = vunpack.c.h.b16 %v520
    %v2135 = vunpack.c.l.b16 %v521
    %v2136 = vunpack.c.h.b16 %v521
    %v2137 = vunpack.c.l.b16 %v522
    %v2138 = vunpack.c.h.b16 %v522
    %v2139 = vunpack.c.l.b16 %v523
    %v2140 = vunpack.c.h.b16 %v523
    %v2141 = vunpack.c.l.b16 %v524
    %v2142 = vunpack.c.h.b16 %v524
    %v2143 = vunpack.c.l.b16 %v525
    %v2144 = vunpack.c.h.b16 %v525
    %v2145 = vunpack.c.l.b16 %v526
    %v2146 = vunpack.c.h.b16 %v526
    %v2147 = vunpack.c.l.b16 %v527
    %v2148 = vunpack.c.h.b16 %v527
    %v2149 = vunpack.c.l.b16 %v528
    %v2150 = vunpack.c.h.b16 %v528
    %v2151 = vunpack.c.l.b16 %v529
    %v2152 = vunpack.c.h.b16 %v529
    %v2153 = vunpack.c.l.b16 %v530
    %v2154 = vunpack.c.h.b16 %v530
    %v2155 = vunpack.c.l.b16 %v531
    %v2156 = vunpack.c.h.b16 %v531
    %v2157 = vunpack.c.l.b16 %v532
    %v2158 = vunpack.c.h.b16 %v532
    %v2159 = vunpack.c.l.b16 %v533
    %v2160 = vunpack.c.h.b16 %v533
    %v2161 = vunpack.c.l.b16 %v534
    %v2162 = vunpack.c.h.b16 %v534
    %v2163 = vunpack.c.l.b16 %v535
    %v2164 = vunpack.c.h.b16 %v535
    %v2165 = vunpack.c.l.b16 %v536
    %v2166 = vunpack.c.h.b16 %v536
    %v2167 = vunpack.c.l.b16 %v537
    %v2168 = vunpack.c.h.b16 %v537
    %v2169 = vunpack.c.l.b16 %v538
    %v2170 = vunpack.c.h.b16 %v538
    %v2171 = vunpack.c.l.b16 %v539
    %v2172 = vunpack.c.h.b16 %v539
    %v2173 = vunpack.c.l.b16 %v540
    %v2174 = vunpack.c.h.b16 %v540
    %v2175 = vunpack.c.l.b16 %v541
    %v2176 = vunpack.c.h.b16 %v541
    %v2177 = vunpack.c.l.b16 %v542
    %v2178 = vunpack.c.h.b16 %v542
    %v2179 = vunpack.c.l.b16 %v543
    %v2180 = vunpack.c.h.b16 %v543
    %v2181 = vunpack.c.l.b16 %v544
    %v2182 = vunpack.c.h.b16 %v544
    %v2183 = vunpack.c.l.b16 %v545
    %v2184 = vunpack.c.h.b16 %v545
    %v2185 = vunpack.c.l.b16 %v546
    %v2186 = vunpack.c.h.b16 %v546
    %v2187 = vunpack.c.l.b16 %v547
    %v2188 = vunpack.c.h.b16 %v547
    %v2189 = vunpack.c.l.b16 %v548
    %v2190 = vunpack.c.h.b16 %v548
    %v2191 = vunpack.c.l.b16 %v549
    %v2192 = vunpack.c.h.b16 %v549
    %v2193 = vunpack.c.l.b16 %v550
    %v2194 = vunpack.c.h.b16 %v550
    %v2195 = vunpack.c.l.b16 %v551
    %v2196 = vunpack.c.h.b16 %v551
    %v2197 = vunpack.c.l.b16 %v552
    %v2198 = vunpack.c.h.b16 %v552
    %v2199 = vunpack.c.l.b16 %v553
    %v2200 = vunpack.c.h.b16 %v553
    %v2201 = vunpack.c.l.b16 %v554
    %v2202 = vunpack.c.h.b16 %v554
    %v2203 = vunpack.c.l.b16 %v555
    %v2204 = vunpack.c.h.b16 %v555
    %v2205 = vunpack.c.l.b16 %v556
    %v2206 = vunpack.c.h.b16 %v556
    %v2207 = vunpack.c.l.b16 %v557
    %v2208 = vunpack.c.h.b16 %v557
    %v2209 = vunpack.c.l.b16 %v558
    %v2210 = vunpack.c.h.b16 %v558
    %v2211 = vunpack.c.l.b16 %v559
    %v2212 = vunpack.c.h.b16 %v559
    %v2213 = vunpack.c.l.b16 %v560
    %v2214 = vunpack.c.h.b16 %v560
    %v2215 = vunpack.c.l.b16 %v561
    %v2216 = vunpack.c.h.b16 %v561
    %v2217 = vunpack.c.l.b16 %v562
    %v2218 = vunpack.c.h.b16 %v562
    %v2219 = vunpack.c.l.b16 %v563
    %v2220 = vunpack.c.h.b16 %v563
    %v2221 = vunpack.c.l.b16 %v564
    %v2222 = vunpack.c.h.b16 %v564
    %v2223 = vunpack.c.l.b16 %v565
    %v2224 = vunpack.c.h.b16 %v565
    %v2225 = vunpack.c.l.b16 %v566
    %v2226 = vunpack.c.h.b16 %v566
    %v2227 = vunpack.c.l.b16 %v567
    %v2228 = vunpack.c.h.b16 %v567
    %v2229 = vunpack.c.l.b16 %v568
    %v2230 = vunpack.c.h.b16 %v568
    %v2231 = vunpack.c.l.b16 %v569
    %v2232 = vunpack.c.h.b16 %v569
    %v2233 = vunpack.c.l.b16 %v570
    %v2234 = vunpack.c.h.b16 %v570
    %v2235 = vunpack.c.l.b16 %v571
    %v2236 = vunpack.c.h.b16 %v571
    %v2237 = vunpack.c.l.b16 %v572
    %v2238 = vunpack.c.h.b16 %v572
    %v2239 = vunpack.c.l.b16 %v573
    %v2240 = vunpack.c.h.b16 %v573
    %v2241 = vunpack.c.l.b16 %v574
    %v2242 = vunpack.c.h.b16 %v574
    %v2243 = vunpack.c.l.b16 %v575
    %v2244 = vunpack.c.h.b16 %v575
    %v2245 = vunpack.c.l.b16 %v576
    %v2246 = vunpack.c.h.b16 %v576
    %v2247 = vunpack.c.l.b16 %v577
    %v2248 = vunpack.c.h.b16 %v577
    %v2249 = vunpack.c.l.b16 %v578
    %v2250 = vunpack.c.h.b16 %v578
    %v2251 = vunpack.c.l.b16 %v579
    %v2252 = vunpack.c.h.b16 %v579
    %v2253 = vunpack.c.l.b16 %v580
    %v2254 = vunpack.c.h.b16 %v580
    %v2255 = vunpack.c.l.b16 %v581
    %v2256 = vunpack.c.h.b16 %v581
    %v2257 = vunpack.c.l.b16 %v582
    %v2258 = vunpack.c.h.b16 %v582
    %v2259 = vunpack.c.l.b16 %v583
    %v2260 = vunpack.c.h.b16 %v583
    %v2261 = vunpack.c.l.b16 %v584
    %v2262 = vunpack.c.h.b16 %v584
    %v2263 = vunpack.c.l.b16 %v585
    %v2264 = vunpack.c.h.b16 %v585
    %v2265 = vunpack.c.l.b16 %v586
    %v2266 = vunpack.c.h.b16 %v586
    %v2267 = vunpack.c.l.b16 %v587
    %v2268 = vunpack.c.h.b16 %v587
    %v2269 = vunpack.c.l.b16 %v588
    %v2270 = vunpack.c.h.b16 %v588
    %v2271 = vunpack.c.l.b16 %v589
    %v2272 = vunpack.c.h.b16 %v589
    %v2273 = vunpack.c.l.b16 %v590
    %v2274 = vunpack.c.h.b16 %v590
    %v2275 = vunpack.c.l.b16 %v591
    %v2276 = vunpack.c.h.b16 %v591
    %v2277 = vunpack.c.l.b16 %v592
    %v2278 = vunpack.c.h.b16 %v592
    %v2279 = vunpack.c.l.b16 %v593
    %v2280 = vunpack.c.h.b16 %v593
    %v2281 = vunpack.c.l.b16 %v594
    %v2282 = vunpack.c.h.b16 %v594
    %v2283 = vunpack.c.l.b16 %v595
    %v2284 = vunpack.c.h.b16 %v595
    %v2285 = vunpack.c.l.b16 %v596
    %v2286 = vunpack.c.h.b16 %v596
    %v2287 = vunpack.c.l.b16 %v597
    %v2288 = vunpack.c.h.b16 %v597
    %v2289 = vunpack.c.l.b16 %v598
    %v2290 = vunpack.c.h.b16 %v598
    %v2291 = vunpack.c.l.b16 %v599
    %v2292 = vunpack.c.h.b16 %v599
    %v2293 = vunpack.c.l.b16 %v600
    %v2294 = vunpack.c.h.b16 %v600
    %v2295 = vunpack.c.l.b16 %v601
    %v2296 = vunpack.c.h.b16 %v601
    %v2297 = vunpack.c.l.b16 %v602
    %v2298 = vunpack.c.h.b16 %v602
    %v2299 = vunpack.c.l.b16 %v603
    %v2300 = vunpack.c.h.b16 %v603
    %v2301 = vunpack.c.l.b16 %v604
    %v2302 = vunpack.c.h.b16 %v604
    %v2303 = vunpack.c.l.b16 %v605
    %v2304 = vunpack.c.h.b16 %v605
    %v2305 = vunpack.c.l.b16 %v606
    %v2306 = vunpack.c.h.b16 %v606
    %v2307 = vunpack.c.l.b16 %v607
    %v2308 = vunpack.c.h.b16 %v607
    %v2309 = vunpack.c.l.b16 %v608
    %v2310 = vunpack.c.h.b16 %v608
    %v2311 = vunpack.c.l.b16 %v609
    %v2312 = vunpack.c.h.b16 %v609
    %v2313 = vunpack.c.l.b16 %v610
    %v2314 = vunpack.c.h.b16 %v610
    %v2315 = vunpack.c.l.b16 %v611
    %v2316 = vunpack.c.h.b16 %v611
    %v2317 = vunpack.c.l.b16 %v612
    %v2318 = vunpack.c.h.b16 %v612
    %v2319 = vunpack.c.l.b16 %v613
    %v2320 = vunpack.c.h.b16 %v613
    %v2321 = vunpack.c.l.b16 %v614
    %v2322 = vunpack.c.h.b16 %v614
    %v2323 = vunpack.c.l.b16 %v615
    %v2324 = vunpack.c.h.b16 %v615
    %v2325 = vunpack.c.l.b16 %v616
    %v2326 = vunpack.c.h.b16 %v616
    %v2327 = vunpack.c.l.b16 %v617
    %v2328 = vunpack.c.h.b16 %v617
    %v2329 = vunpack.c.l.b16 %v618
    %v2330 = vunpack.c.h.b16 %v618
    %v2331 = vunpack.c.l.b16 %v619
    %v2332 = vunpack.c.h.b16 %v619
    %v2333 = vunpack.c.l.b16 %v620
    %v2334 = vunpack.c.h.b16 %v620
    %v2335 = vunpack.c.l.b16 %v621
    %v2336 = vunpack.c.h.b16 %v621
    %v2337 = vunpack.c.l.b16 %v622
    %v2338 = vunpack.c.h.b16 %v622
    %v2339 = vunpack.c.l.b16 %v623
    %v2340 = vunpack.c.h.b16 %v623
    %v2341 = vunpack.c.l.b16 %v624
    %v2342 = vunpack.c.h.b16 %v624
    %v2343 = vunpack.c.l.b16 %v625
    %v2344 = vunpack.c.h.b16 %v625
    %v2345 = vunpack.c.l.b16 %v626
    %v2346 = vunpack.c.h.b16 %v626
    %v2347 = vunpack.c.l.b16 %v627
    %v2348 = vunpack.c.h.b16 %v627
    %v2349 = vunpack.c.l.b16 %v628
    %v2350 = vunpack.c.h.b16 %v628
    %v2351 = vunpack.c.l.b16 %v629
    %v2352 = vunpack.c.h.b16 %v629
    %v2353 = vunpack.c.l.b16 %v630
    %v2354 = vunpack.c.h.b16 %v630
    %v2355 = vunpack.c.l.b16 %v631
    %v2356 = vunpack.c.h.b16 %v631
    %v2357 = vunpack.c.l.b16 %v632
    %v2358 = vunpack.c.h.b16 %v632
    %v2359 = vunpack.c.l.b16 %v633
    %v2360 = vunpack.c.h.b16 %v633
    %v2361 = vunpack.c.l.b16 %v634
    %v2362 = vunpack.c.h.b16 %v634
    %v2363 = vunpack.c.l.b16 %v635
    %v2364 = vunpack.c.h.b16 %v635
    %v2365 = vunpack.c.l.b16 %v636
    %v2366 = vunpack.c.h.b16 %v636
    %v2367 = vunpack.c.l.b16 %v637
    %v2368 = vunpack.c.h.b16 %v637
    %v2369 = vunpack.c.l.b16 %v638
    %v2370 = vunpack.c.h.b16 %v638
    %v2371 = vunpack.c.l.b16 %v639
    %v2372 = vunpack.c.h.b16 %v639
    %v2373 = vunpack.c.l.b16 %v640
    %v2374 = vunpack.c.h.b16 %v640
    %v2375 = vunpack.c.l.b16 %v641
    %v2376 = vunpack.c.h.b16 %v641
    %v2377 = vunpack.c.l.b16 %v642
    %v2378 = vunpack.c.h.b16 %v642
    %v2379 = vunpack.c.l.b16 %v643
    %v2380 = vunpack.c.h.b16 %v643
    %v2381 = vunpack.c.l.b16 %v644
    %v2382 = vunpack.c.h.b16 %v644
    %v2383 = vunpack.c.l.b16 %v645
    %v2384 = vunpack.c.h.b16 %v645
    %v2385 = vunpack.c.l.b16 %v646
    %v2386 = vunpack.c.h.b16 %v646
    %v2387 = vunpack.c.l.b16 %v647
    %v2388 = vunpack.c.h.b16 %v647
    %v2389 = vunpack.c.l.b16 %v648
    %v2390 = vunpack.c.h.b16 %v648
    %v2391 = vunpack.c.l.b16 %v649
    %v2392 = vunpack.c.h.b16 %v649
    %v2393 = vunpack.c.l.b16 %v650
    %v2394 = vunpack.c.h.b16 %v650
    %v2395 = vunpack.c.l.b16 %v651
    %v2396 = vunpack.c.h.b16 %v651
    %v2397 = vunpack.c.l.b16 %v652
    %v2398 = vunpack.c.h.b16 %v652
    %v2399 = vunpack.c.l.b16 %v653
    %v2400 = vunpack.c.h.b16 %v653
    %v2401 = vunpack.c.l.b16 %v654
    %v2402 = vunpack.c.h.b16 %v654
    %v2403 = vunpack.c.l.b16 %v655
    %v2404 = vunpack.c.h.b16 %v655
    %v2405 = vunpack.c.l.b16 %v656
    %v2406 = vunpack.c.h.b16 %v656
    %v2407 = vunpack.c.l.b16 %v657
    %v2408 = vunpack.c.h.b16 %v657
    %v2409 = vunpack.c.l.b16 %v658
    %v2410 = vunpack.c.h.b16 %v658
    %v2411 = vunpack.c.l.b16 %v659
    %v2412 = vunpack.c.h.b16 %v659
    %v2413 = vunpack.c.l.b16 %v660
    %v2414 = vunpack.c.h.b16 %v660
    %v2415 = vunpack.c.l.b16 %v661
    %v2416 = vunpack.c.h.b16 %v661
    %v2417 = vunpack.c.l.b16 %v662
    %v2418 = vunpack.c.h.b16 %v662
    %v2419 = vunpack.c.l.b16 %v663
    %v2420 = vunpack.c.h.b16 %v663
    %v2421 = vunpack.c.l.b16 %v664
    %v2422 = vunpack.c.h.b16 %v664
    %v2423 = vunpack.c.l.b16 %v665
    %v2424 = vunpack.c.h.b16 %v665
    %v2425 = vunpack.c.l.b16 %v666
    %v2426 = vunpack.c.h.b16 %v666
    %v2427 = vunpack.c.l.b16 %v667
    %v2428 = vunpack.c.h.b16 %v667
    %v2429 = vunpack.c.l.b16 %v668
    %v2430 = vunpack.c.h.b16 %v668
    %v2431 = vunpack.c.l.b16 %v669
    %v2432 = vunpack.c.h.b16 %v669
    %v2433 = vunpack.c.l.b16 %v670
    %v2434 = vunpack.c.h.b16 %v670
    %v2435 = vunpack.c.l.b16 %v671
    %v2436 = vunpack.c.h.b16 %v671
    %v2437 = vunpack.c.l.b16 %v672
    %v2438 = vunpack.c.h.b16 %v672
    %v2439 = vunpack.c.l.b16 %v673
    %v2440 = vunpack.c.h.b16 %v673
    %v2441 = vunpack.c.l.b16 %v674
    %v2442 = vunpack.c.h.b16 %v674
    %v2443 = vunpack.c.l.b16 %v675
    %v2444 = vunpack.c.h.b16 %v675
    %v2445 = vunpack.c.l.b16 %v676
    %v2446 = vunpack.c.h.b16 %v676
    %v2447 = vunpack.c.l.b16 %v677
    %v2448 = vunpack.c.h.b16 %v677
    %v2449 = vunpack.c.l.b16 %v678
    %v2450 = vunpack.c.h.b16 %v678
    %v2451 = vunpack.c.l.b16 %v679
    %v2452 = vunpack.c.h.b16 %v679
    %v2453 = vunpack.c.l.b16 %v680
    %v2454 = vunpack.c.h.b16 %v680
    %v2455 = vunpack.c.l.b16 %v681
    %v2456 = vunpack.c.h.b16 %v681
    %v2457 = vunpack.c.l.b16 %v682
    %v2458 = vunpack.c.h.b16 %v682
    %v2459 = vunpack.c.l.b16 %v683
    %v2460 = vunpack.c.h.b16 %v683
    %v2461 = vunpack.c.l.b16 %v684
    %v2462 = vunpack.c.h.b16 %v684
    %v2463 = vunpack.c.l.b16 %v685
    %v2464 = vunpack.c.h.b16 %v685
    %v2465 = vunpack.c.l.b16 %v686
    %v2466 = vunpack.c.h.b16 %v686
    %v2467 = vunpack.c.l.b16 %v687
    %v2468 = vunpack.c.h.b16 %v687
    %v2469 = vunpack.c.l.b16 %v688
    %v2470 = vunpack.c.h.b16 %v688
    %v2471 = vunpack.c.l.b16 %v689
    %v2472 = vunpack.c.h.b16 %v689
    %v2473 = vunpack.c.l.b16 %v690
    %v2474 = vunpack.c.h.b16 %v690
    %v2475 = vunpack.c.l.b16 %v691
    %v2476 = vunpack.c.h.b16 %v691
    %v2477 = vunpack.c.l.b16 %v692
    %v2478 = vunpack.c.h.b16 %v692
    %v2479 = vunpack.c.l.b16 %v693
    %v2480 = vunpack.c.h.b16 %v693
    %v2481 = vunpack.c.l.b16 %v694
    %v2482 = vunpack.c.h.b16 %v694
    %v2483 = vunpack.c.l.b16 %v695
    %v2484 = vunpack.c.h.b16 %v695
    %v2485 = vunpack.c.l.b16 %v696
    %v2486 = vunpack.c.h.b16 %v696
    %v2487 = vunpack.c.l.b16 %v697
    %v2488 = vunpack.c.h.b16 %v697
    %v2489 = vunpack.c.l.b16 %v698
    %v2490 = vunpack.c.h.b16 %v698
    %v2491 = vunpack.c.l.b16 %v699
    %v2492 = vunpack.c.h.b16 %v699
    %v2493 = vunpack.c.l.b16 %v700
    %v2494 = vunpack.c.h.b16 %v700
    %v2495 = vunpack.c.l.b16 %v701
    %v2496 = vunpack.c.h.b16 %v701
    %v2497 = vunpack.c.l.b16 %v702
    %v2498 = vunpack.c.h.b16 %v702
    %v2499 = vunpack.c.l.b16 %v703
    %v2500 = vunpack.c.h.b16 %v703
    %v2501 = vunpack.c.l.b16 %v704
    %v2502 = vunpack.c.h.b16 %v704
    %v2503 = vunpack.c.l.b16 %v705
    %v2504 = vunpack.c.h.b16 %v705
    %v2505 = vunpack.c.l.b16 %v706
    %v2506 = vunpack.c.h.b16 %v706
    %v2507 = vunpack.c.l.b16 %v707
    %v2508 = vunpack.c.h.b16 %v707
    %v2509 = vunpack.c.l.b16 %v708
    %v2510 = vunpack.c.h.b16 %v708
    %v2511 = vunpack.c.l.b16 %v709
    %v2512 = vunpack.c.h.b16 %v709
    %v2513 = vunpack.c.l.b16 %v710
    %v2514 = vunpack.c.h.b16 %v710
    %v2515 = vunpack.c.l.b16 %v711
    %v2516 = vunpack.c.h.b16 %v711
    %v2517 = vunpack.c.l.b16 %v712
    %v2518 = vunpack.c.h.b16 %v712
    %v2519 = vunpack.c.l.b16 %v713
    %v2520 = vunpack.c.h.b16 %v713
    %v2521 = vunpack.c.l.b16 %v714
    %v2522 = vunpack.c.h.b16 %v714
    %v2523 = vunpack.c.l.b16 %v715
    %v2524 = vunpack.c.h.b16 %v715
    %v2525 = vunpack.c.l.b16 %v716
    %v2526 = vunpack.c.h.b16 %v716
    %v2527 = vunpack.c.l.b16 %v717
    %v2528 = vunpack.c.h.b16 %v717
    %v2529 = vunpack.c.l.b16 %v718
    %v2530 = vunpack.c.h.b16 %v718
    %v2531 = vunpack.c.l.b16 %v719
    %v2532 = vunpack.c.h.b16 %v719
    %v2533 = vunpack.c.l.b16 %v720
    %v2534 = vunpack.c.h.b16 %v720
    %v2535 = vunpack.c.l.b16 %v721
    %v2536 = vunpack.c.h.b16 %v721
    %v2537 = vunpack.c.l.b16 %v722
    %v2538 = vunpack.c.h.b16 %v722
    %v2539 = vunpack.c.l.b16 %v723
    %v2540 = vunpack.c.h.b16 %v723
    %v2541 = vunpack.c.l.b16 %v724
    %v2542 = vunpack.c.h.b16 %v724
    %v2543 = vunpack.c.l.b16 %v725
    %v2544 = vunpack.c.h.b16 %v725
    %v2545 = vunpack.c.l.b16 %v726
    %v2546 = vunpack.c.h.b16 %v726
    %v2547 = vunpack.c.l.b16 %v727
    %v2548 = vunpack.c.h.b16 %v727
    %v2549 = vunpack.c.l.b16 %v728
    %v2550 = vunpack.c.h.b16 %v728
    %v2551 = vunpack.c.l.b16 %v729
    %v2552 = vunpack.c.h.b16 %v729
    %v2553 = vunpack.c.l.b16 %v730
    %v2554 = vunpack.c.h.b16 %v730
    %v2555 = vunpack.c.l.b16 %v731
    %v2556 = vunpack.c.h.b16 %v731
    %v2557 = vunpack.c.l.b16 %v732
    %v2558 = vunpack.c.h.b16 %v732
    %v2559 = vunpack.c.l.b16 %v733
    %v2560 = vunpack.c.h.b16 %v733
    %v2561 = vunpack.c.l.b16 %v734
    %v2562 = vunpack.c.h.b16 %v734
    %v2563 = vunpack.c.l.b16 %v735
    %v2564 = vunpack.c.h.b16 %v735
    %v2565 = vunpack.c.l.b16 %v736
    %v2566 = vunpack.c.h.b16 %v736
    %v2567 = vunpack.c.l.b16 %v737
    %v2568 = vunpack.c.h.b16 %v737
    %v2569 = vunpack.c.l.b16 %v738
    %v2570 = vunpack.c.h.b16 %v738
    %v2571 = vunpack.c.l.b16 %v739
    %v2572 = vunpack.c.h.b16 %v739
    %v2573 = vunpack.c.l.b16 %v740
    %v2574 = vunpack.c.h.b16 %v740
    %v2575 = vunpack.c.l.b16 %v741
    %v2576 = vunpack.c.h.b16 %v741
    %v2577 = vunpack.c.l.b16 %v742
    %v2578 = vunpack.c.h.b16 %v742
    %v2579 = vunpack.c.l.b16 %v743
    %v2580 = vunpack.c.h.b16 %v743
    %v2581 = vunpack.c.l.b16 %v744
    %v2582 = vunpack.c.h.b16 %v744
    %v2583 = vunpack.c.l.b16 %v745
    %v2584 = vunpack.c.h.b16 %v745
    %v2585 = vunpack.c.l.b16 %v746
    %v2586 = vunpack.c.h.b16 %v746
    %v2587 = vunpack.c.l.b16 %v747
    %v2588 = vunpack.c.h.b16 %v747
    %v2589 = vunpack.c.l.b16 %v748
    %v2590 = vunpack.c.h.b16 %v748
    %v2591 = vunpack.c.l.b16 %v749
    %v2592 = vunpack.c.h.b16 %v749
    %v2593 = vunpack.c.l.b16 %v750
    %v2594 = vunpack.c.h.b16 %v750
    %v2595 = vunpack.c.l.b16 %v751
    %v2596 = vunpack.c.h.b16 %v751
    %v2597 = vunpack.c.l.b16 %v752
    %v2598 = vunpack.c.h.b16 %v752
    %v2599 = vunpack.c.l.b16 %v753
    %v2600 = vunpack.c.h.b16 %v753
    %v2601 = vunpack.c.l.b16 %v754
    %v2602 = vunpack.c.h.b16 %v754
    %v2603 = vunpack.c.l.b16 %v755
    %v2604 = vunpack.c.h.b16 %v755
    %v2605 = vunpack.c.l.b16 %v756
    %v2606 = vunpack.c.h.b16 %v756
    %v2607 = vunpack.c.l.b16 %v757
    %v2608 = vunpack.c.h.b16 %v757
    %v2609 = vunpack.c.l.b16 %v758
    %v2610 = vunpack.c.h.b16 %v758
    %v2611 = vunpack.c.l.b16 %v759
    %v2612 = vunpack.c.h.b16 %v759
    %v2613 = vunpack.c.l.b16 %v760
    %v2614 = vunpack.c.h.b16 %v760
    %v2615 = vunpack.c.l.b16 %v761
    %v2616 = vunpack.c.h.b16 %v761
    %v2617 = vunpack.c.l.b16 %v762
    %v2618 = vunpack.c.h.b16 %v762
    %v2619 = vunpack.c.l.b16 %v763
    %v2620 = vunpack.c.h.b16 %v763
    %v2621 = vunpack.c.l.b16 %v764
    %v2622 = vunpack.c.h.b16 %v764
    %v2623 = vunpack.c.l.b16 %v765
    %v2624 = vunpack.c.h.b16 %v765
    %v2625 = vunpack.c.l.b16 %v766
    %v2626 = vunpack.c.h.b16 %v766
    %v2627 = vunpack.c.l.b16 %v767
    %v2628 = vunpack.c.h.b16 %v767
    %v2629 = vunpack.c.l.b16 %v768
    %v2630 = vunpack.c.h.b16 %v768
    %v2631 = vunpack.c.l.b16 %v769
    %v2632 = vunpack.c.h.b16 %v769
    %v2633 = vunpack.c.l.b16 %v770
    %v2634 = vunpack.c.h.b16 %v770
    %v2635 = vunpack.c.l.b16 %v771
    %v2636 = vunpack.c.h.b16 %v771
    %v2637 = vunpack.c.l.b16 %v772
    %v2638 = vunpack.c.h.b16 %v772
    %v2639 = vunpack.c.l.b16 %v773
    %v2640 = vunpack.c.h.b16 %v773
    %v2641 = vunpack.c.l.b16 %v774
    %v2642 = vunpack.c.h.b16 %v774
    %v2643 = vunpack.c.l.b16 %v775
    %v2644 = vunpack.c.h.b16 %v775
    %v2645 = vunpack.c.l.b16 %v776
    %v2646 = vunpack.c.h.b16 %v776
    %v2647 = vunpack.c.l.b16 %v777
    %v2648 = vunpack.c.h.b16 %v777
    %v2649 = vunpack.c.l.b16 %v778
    %v2650 = vunpack.c.h.b16 %v778
    %v2651 = vunpack.c.l.b16 %v779
    %v2652 = vunpack.c.h.b16 %v779
    %v2653 = vunpack.c.l.b16 %v780
    %v2654 = vunpack.c.h.b16 %v780
    %v2655 = vunpack.c.l.b16 %v781
    %v2656 = vunpack.c.h.b16 %v781
    %v2657 = vunpack.c.l.b16 %v782
    %v2658 = vunpack.c.h.b16 %v782
    %v2659 = vunpack.c.l.b16 %v783
    %v2660 = vunpack.c.h.b16 %v783
    %v2661 = vunpack.c.l.b16 %v784
    %v2662 = vunpack.c.h.b16 %v784
    %v2663 = vunpack.c.l.b16 %v785
    %v2664 = vunpack.c.h.b16 %v785
    %v2665 = vunpack.c.l.b16 %v786
    %v2666 = vunpack.c.h.b16 %v786
    %v2667 = vunpack.c.l.b16 %v787
    %v2668 = vunpack.c.h.b16 %v787
    %v2669 = vunpack.c.l.b16 %v788
    %v2670 = vunpack.c.h.b16 %v788
    %v2671 = vunpack.c.l.b16 %v789
    %v2672 = vunpack.c.h.b16 %v789
    %v2673 = vunpack.c.l.b16 %v790
    %v2674 = vunpack.c.h.b16 %v790
    %v2675 = vunpack.c.l.b16 %v791
    %v2676 = vunpack.c.h.b16 %v791
    %v2677 = vunpack.c.l.b16 %v792
    %v2678 = vunpack.c.h.b16 %v792
    %v2679 = vunpack.c.l.b16 %v793
    %v2680 = vunpack.c.h.b16 %v793
    %v2681 = vunpack.c.l.b16 %v794
    %v2682 = vunpack.c.h.b16 %v794
    %v2683 = vunpack.c.l.b16 %v795
    %v2684 = vunpack.c.h.b16 %v795
    %v2685 = vunpack.c.l.b16 %v796
    %v2686 = vunpack.c.h.b16 %v796
    %v2687 = vunpack.c.l.b16 %v797
    %v2688 = vunpack.c.h.b16 %v797
    %v2689 = vunpack.c.l.b16 %v798
    %v2690 = vunpack.c.h.b16 %v798
    %v2691 = vunpack.c.l.b16 %v799
    %v2692 = vunpack.c.h.b16 %v799
    %v2693 = vunpack.c.l.b16 %v800
    %v2694 = vunpack.c.h.b16 %v800
    %v2695 = vunpack.c.l.b16 %v801
    %v2696 = vunpack.c.h.b16 %v801
    %v2697 = vunpack.c.l.b16 %v802
    %v2698 = vunpack.c.h.b16 %v802
    %v2699 = vunpack.c.l.b16 %v803
    %v2700 = vunpack.c.h.b16 %v803
    %v2701 = vunpack.c.l.b16 %v804
    %v2702 = vunpack.c.h.b16 %v804
    %v2703 = vunpack.c.l.b16 %v805
    %v2704 = vunpack.c.h.b16 %v805
    %v2705 = vunpack.c.l.b16 %v806
    %v2706 = vunpack.c.h.b16 %v806
    %v2707 = vunpack.c.l.b16 %v807
    %v2708 = vunpack.c.h.b16 %v807
    %v2709 = vunpack.c.l.b16 %v808
    %v2710 = vunpack.c.h.b16 %v808
    %v2711 = vunpack.c.l.b16 %v809
    %v2712 = vunpack.c.h.b16 %v809
    %v2713 = vunpack.c.l.b16 %v810
    %v2714 = vunpack.c.h.b16 %v810
    %v2715 = vunpack.c.l.b16 %v811
    %v2716 = vunpack.c.h.b16 %v811
    %v2717 = vunpack.c.l.b16 %v812
    %v2718 = vunpack.c.h.b16 %v812
    %v2719 = vunpack.c.l.b16 %v813
    %v2720 = vunpack.c.h.b16 %v813
    %v2721 = vunpack.c.l.b16 %v814
    %v2722 = vunpack.c.h.b16 %v814
    %v2723 = vunpack.c.l.b16 %v815
    %v2724 = vunpack.c.h.b16 %v815
    %v2725 = vunpack.c.l.b16 %v816
    %v2726 = vunpack.c.h.b16 %v816
    %v2727 = vunpack.c.l.b16 %v817
    %v2728 = vunpack.c.h.b16 %v817
    %v2729 = vunpack.c.l.b16 %v818
    %v2730 = vunpack.c.h.b16 %v818
    %v2731 = vunpack.c.l.b16 %v819
    %v2732 = vunpack.c.h.b16 %v819
    %v2733 = vunpack.c.l.b16 %v820
    %v2734 = vunpack.c.h.b16 %v820
    %v2735 = vunpack.c.l.b16 %v821
    %v2736 = vunpack.c.h.b16 %v821
    %v2737 = vunpack.c.l.b16 %v822
    %v2738 = vunpack.c.h.b16 %v822
    %v2739 = vunpack.c.l.b16 %v823
    %v2740 = vunpack.c.h.b16 %v823
    %v2741 = vunpack.c.l.b16 %v824
    %v2742 = vunpack.c.h.b16 %v824
    %v2743 = vunpack.c.l.b16 %v825
    %v2744 = vunpack.c.h.b16 %v825
    %v2745 = vunpack.c.l.b16 %v826
    %v2746 = vunpack.c.h.b16 %v826
    %v2747 = vunpack.c.l.b16 %v827
    %v2748 = vunpack.c.h.b16 %v827
    %v2749 = vunpack.c.l.b16 %v828
    %v2750 = vunpack.c.h.b16 %v828
    %v2751 = vunpack.c.l.b16 %v829
    %v2752 = vunpack.c.h.b16 %v829
    %v2753 = vunpack.c.l.b16 %v830
    %v2754 = vunpack.c.h.b16 %v830
    %v2755 = vunpack.c.l.b16 %v831
    %v2756 = vunpack.c.h.b16 %v831
    %v2757 = vunpack.c.l.b16 %v832
    %v2758 = vunpack.c.h.b16 %v832
    %v2759 = vunpack.c.l.b16 %v833
    %v2760 = vunpack.c.h.b16 %v833
    %v2761 = vunpack.c.l.b16 %v834
    %v2762 = vunpack.c.h.b16 %v834
    %v2763 = vunpack.c.l.b16 %v835
    %v2764 = vunpack.c.h.b16 %v835
    %v2765 = vunpack.c.l.b16 %v836
    %v2766 = vunpack.c.h.b16 %v836
    %v2767 = vunpack.c.l.b16 %v837
    %v2768 = vunpack.c.h.b16 %v837
    %v2769 = vunpack.c.l.b16 %v838
    %v2770 = vunpack.c.h.b16 %v838
    %v2771 = vunpack.c.l.b16 %v839
    %v2772 = vunpack.c.h.b16 %v839
    %v2773 = vunpack.c.l.b16 %v840
    %v2774 = vunpack.c.h.b16 %v840
    %v2775 = vunpack.c.l.b16 %v841
    %v2776 = vunpack.c.h.b16 %v841
    %v2777 = vunpack.c.l.b16 %v842
    %v2778 = vunpack.c.h.b16 %v842
    %v2779 = vunpack.c.l.b16 %v843
    %v2780 = vunpack.c.h.b16 %v843
    %v2781 = vunpack.c.l.b16 %v844
    %v2782 = vunpack.c.h.b16 %v844
    %v2783 = vunpack.c.l.b16 %v845
    %v2784 = vunpack.c.h.b16 %v845
    %v2785 = vunpack.c.l.b16 %v846
    %v2786 = vunpack.c.h.b16 %v846
    %v2787 = vunpack.c.l.b16 %v847
    %v2788 = vunpack.c.h.b16 %v847
    %v2789 = vunpack.c.l.b16 %v848
    %v2790 = vunpack.c.h.b16 %v848
    %v2791 = vunpack.c.l.b16 %v849
    %v2792 = vunpack.c.h.b16 %v849
    %v2793 = vunpack.c.l.b16 %v850
    %v2794 = vunpack.c.h.b16 %v850
    %v2795 = vunpack.c.l.b16 %v851
    %v2796 = vunpack.c.h.b16 %v851
    %v2797 = vunpack.c.l.b16 %v852
    %v2798 = vunpack.c.h.b16 %v852
    %v2799 = vunpack.c.l.b16 %v853
    %v2800 = vunpack.c.h.b16 %v853
    %v2801 = vunpack.c.l.b16 %v854
    %v2802 = vunpack.c.h.b16 %v854
    %v2803 = vunpack.c.l.b16 %v855
    %v2804 = vunpack.c.h.b16 %v855
    %v2805 = vunpack.c.l.b16 %v856
    %v2806 = vunpack.c.h.b16 %v856
    %v2807 = vunpack.c.l.b16 %v857
    %v2808 = vunpack.c.h.b16 %v857
    %v2809 = vunpack.c.l.b16 %v858
    %v2810 = vunpack.c.h.b16 %v858
    %v2811 = vunpack.c.l.b16 %v859
    %v2812 = vunpack.c.h.b16 %v859
    %v2813 = vunpack.c.l.b16 %v860
    %v2814 = vunpack.c.h.b16 %v860
    %v2815 = vunpack.c.l.b16 %v861
    %v2816 = vunpack.c.h.b16 %v861
    %v2817 = vunpack.c.l.b16 %v862
    %v2818 = vunpack.c.h.b16 %v862
    %v2819 = vunpack.c.l.b16 %v863
    %v2820 = vunpack.c.h.b16 %v863
    %v2821 = vunpack.c.l.b16 %v864
    %v2822 = vunpack.c.h.b16 %v864
    %v2823 = vunpack.c.l.b16 %v865
    %v2824 = vunpack.c.h.b16 %v865
    %v2825 = vunpack.c.l.b16 %v866
    %v2826 = vunpack.c.h.b16 %v866
    %v2827 = vunpack.c.l.b16 %v867
    %v2828 = vunpack.c.h.b16 %v867
    %v2829 = vunpack.c.l.b16 %v868
    %v2830 = vunpack.c.h.b16 %v868
    %v2831 = vunpack.c.l.b16 %v869
    %v2832 = vunpack.c.h.b16 %v869
    %v2833 = vunpack.c.l.b16 %v870
    %v2834 = vunpack.c.h.b16 %v870
    %v2835 = vunpack.c.l.b16 %v871
    %v2836 = vunpack.c.h.b16 %v871
    %v2837 = vunpack.c.l.b16 %v872
    %v2838 = vunpack.c.h.b16 %v872
    %v2839 = vunpack.c.l.b16 %v873
    %v2840 = vunpack.c.h.b16 %v873
    %v2841 = vunpack.c.l.b16 %v874
    %v2842 = vunpack.c.h.b16 %v874
    %v2843 = vunpack.c.l.b16 %v875
    %v2844 = vunpack.c.h.b16 %v875
    %v2845 = vunpack.c.l.b16 %v876
    %v2846 = vunpack.c.h.b16 %v876
    %v2847 = vunpack.c.l.b16 %v877
    %v2848 = vunpack.c.h.b16 %v877
    %v2849 = vunpack.c.l.b16 %v878
    %v2850 = vunpack.c.h.b16 %v878
    %v2851 = vunpack.c.l.b16 %v879
    %v2852 = vunpack.c.h.b16 %v879
    %v2853 = vunpack.c.l.b16 %v880
    %v2854 = vunpack.c.h.b16 %v880
    %v2855 = vunpack.c.l.b16 %v881
    %v2856 = vunpack.c.h.b16 %v881
    %v2857 = vunpack.c.l.b16 %v882
    %v2858 = vunpack.c.h.b16 %v882
    %v2859 = vunpack.c.l.b16 %v883
    %v2860 = vunpack.c.h.b16 %v883
    %v2861 = vunpack.c.l.b16 %v884
    %v2862 = vunpack.c.h.b16 %v884
    %v2863 = vunpack.c.l.b16 %v885
    %v2864 = vunpack.c.h.b16 %v885
    %v2865 = vunpack.c.l.b16 %v886
    %v2866 = vunpack.c.h.b16 %v886
    %v2867 = vunpack.c.l.b16 %v887
    %v2868 = vunpack.c.h.b16 %v887
    %v2869 = vunpack.c.l.b16 %v888
    %v2870 = vunpack.c.h.b16 %v888
    %v2871 = vunpack.c.l.b16 %v889
    %v2872 = vunpack.c.h.b16 %v889
    %v2873 = vunpack.c.l.b16 %v890
    %v2874 = vunpack.c.h.b16 %v890
    %v2875 = vunpack.c.l.b16 %v891
    %v2876 = vunpack.c.h.b16 %v891
    %v2877 = vunpack.c.l.b16 %v892
    %v2878 = vunpack.c.h.b16 %v892
    %v2879 = vunpack.c.l.b16 %v893
    %v2880 = vunpack.c.h.b16 %v893
    %v2881 = vunpack.c.l.b16 %v894
    %v2882 = vunpack.c.h.b16 %v894
    %v2883 = vunpack.c.l.b16 %v895
    %v2884 = vunpack.c.h.b16 %v895
    %v2885 = vunpack.c.l.b16 %v896
    %v2886 = vunpack.c.h.b16 %v896
    %v2887 = vunpack.c.l.b16 %v897
    %v2888 = vunpack.c.h.b16 %v897
    %v2889 = vunpack.c.l.b16 %v898
    %v2890 = vunpack.c.h.b16 %v898
    %v2891 = vunpack.c.l.b16 %v899
    %v2892 = vunpack.c.h.b16 %v899
    %v2893 = vunpack.c.l.b16 %v900
    %v2894 = vunpack.c.h.b16 %v900
    %v2895 = vunpack.c.l.b16 %v901
    %v2896 = vunpack.c.h.b16 %v901
    %v2897 = vunpack.c.l.b16 %v902
    %v2898 = vunpack.c.h.b16 %v902
    %v2899 = vunpack.c.l.b16 %v903
    %v2900 = vunpack.c.h.b16 %v903
    %v2901 = vunpack.c.l.b16 %v904
    %v2902 = vunpack.c.h.b16 %v904
    %v2903 = vunpack.c.l.b16 %v905
    %v2904 = vunpack.c.h.b16 %v905
    %v2905 = vunpack.c.l.b16 %v906
    %v2906 = vunpack.c.h.b16 %v906
    %v2907 = vunpack.c.l.b16 %v907
    %v2908 = vunpack.c.h.b16 %v907
    %v2909 = vunpack.c.l.b16 %v908
    %v2910 = vunpack.c.h.b16 %v908
    %v2911 = vunpack.c.l.b16 %v909
    %v2912 = vunpack.c.h.b16 %v909
    %v2913 = vunpack.c.l.b16 %v910
    %v2914 = vunpack.c.h.b16 %v910
    %v2915 = vunpack.c.l.b16 %v911
    %v2916 = vunpack.c.h.b16 %v911
    %v2917 = vunpack.c.l.b16 %v912
    %v2918 = vunpack.c.h.b16 %v912
    %v2919 = vunpack.c.l.b16 %v913
    %v2920 = vunpack.c.h.b16 %v913
    %v2921 = vunpack.c.l.b16 %v914
    %v2922 = vunpack.c.h.b16 %v914
    %v2923 = vunpack.c.l.b16 %v915
    %v2924 = vunpack.c.h.b16 %v915
    %v2925 = vunpack.c.l.b16 %v916
    %v2926 = vunpack.c.h.b16 %v916
    %v2927 = vunpack.c.l.b16 %v917
    %v2928 = vunpack.c.h.b16 %v917
    %v2929 = vunpack.c.l.b16 %v918
    %v2930 = vunpack.c.h.b16 %v918
    %v2931 = vunpack.c.l.b16 %v919
    %v2932 = vunpack.c.h.b16 %v919
    %v2933 = vunpack.c.l.b16 %v920
    %v2934 = vunpack.c.h.b16 %v920
    %v2935 = vunpack.c.l.b16 %v921
    %v2936 = vunpack.c.h.b16 %v921
    %v2937 = vunpack.c.l.b16 %v922
    %v2938 = vunpack.c.h.b16 %v922
    %v2939 = vunpack.c.l.b16 %v923
    %v2940 = vunpack.c.h.b16 %v923
    %v2941 = vunpack.c.l.b16 %v924
    %v2942 = vunpack.c.h.b16 %v924
    %v2943 = vunpack.c.l.b16 %v925
    %v2944 = vunpack.c.h.b16 %v925
    %v2945 = vunpack.c.l.b16 %v926
    %v2946 = vunpack.c.h.b16 %v926
    %v2947 = vunpack.c.l.b16 %v927
    %v2948 = vunpack.c.h.b16 %v927
    %v2949 = vunpack.c.l.b16 %v928
    %v2950 = vunpack.c.h.b16 %v928
    %v2951 = vunpack.c.l.b16 %v929
    %v2952 = vunpack.c.h.b16 %v929
    %v2953 = vunpack.c.l.b16 %v930
    %v2954 = vunpack.c.h.b16 %v930
    %v2955 = vunpack.c.l.b16 %v931
    %v2956 = vunpack.c.h.b16 %v931
    %v2957 = vunpack.c.l.b16 %v932
    %v2958 = vunpack.c.h.b16 %v932
    %v2959 = vunpack.c.l.b16 %v933
    %v2960 = vunpack.c.h.b16 %v933
    %v2961 = vunpack.c.l.b16 %v934
    %v2962 = vunpack.c.h.b16 %v934
    %v2963 = vunpack.c.l.b16 %v935
    %v2964 = vunpack.c.h.b16 %v935
    %v2965 = vunpack.c.l.b16 %v936
    %v2966 = vunpack.c.h.b16 %v936
    %v2967 = vunpack.c.l.b16 %v937
    %v2968 = vunpack.c.h.b16 %v937
    %v2969 = vunpack.c.l.b16 %v938
    %v2970 = vunpack.c.h.b16 %v938
    %v2971 = vunpack.c.l.b16 %v939
    %v2972 = vunpack.c.h.b16 %v939
    %v2973 = vunpack.c.l.b16 %v940
    %v2974 = vunpack.c.h.b16 %v940
    %v2975 = vunpack.c.l.b16 %v941
    %v2976 = vunpack.c.h.b16 %v941
    %v2977 = vunpack.c.l.b16 %v942
    %v2978 = vunpack.c.h.b16 %v942
    %v2979 = vunpack.c.l.b16 %v943
    %v2980 = vunpack.c.h.b16 %v943
    %v2981 = vunpack.c.l.b16 %v944
    %v2982 = vunpack.c.h.b16 %v944
    %v2983 = vunpack.c.l.b16 %v945
    %v2984 = vunpack.c.h.b16 %v945
    %v2985 = vunpack.c.l.b16 %v946
    %v2986 = vunpack.c.h.b16 %v946
    %v2987 = vunpack.c.l.b16 %v947
    %v2988 = vunpack.c.h.b16 %v947
    %v2989 = vunpack.c.l.b16 %v948
    %v2990 = vunpack.c.h.b16 %v948
    %v2991 = vunpack.c.l.b16 %v949
    %v2992 = vunpack.c.h.b16 %v949
    %v2993 = vunpack.c.l.b16 %v950
    %v2994 = vunpack.c.h.b16 %v950
    %v2995 = vunpack.c.l.b16 %v951
    %v2996 = vunpack.c.h.b16 %v951
    %v2997 = vunpack.c.l.b16 %v952
    %v2998 = vunpack.c.h.b16 %v952
    %v2999 = vunpack.c.l.b16 %v953
    %v3000 = vunpack.c.h.b16 %v953
    %v3001 = vunpack.c.l.b16 %v954
    %v3002 = vunpack.c.h.b16 %v954
    %v3003 = vunpack.c.l.b16 %v955
    %v3004 = vunpack.c.h.b16 %v955
    %v3005 = vunpack.c.l.b16 %v956
    %v3006 = vunpack.c.h.b16 %v956
    %v3007 = vunpack.c.l.b16 %v957
    %v3008 = vunpack.c.h.b16 %v957
    %v3009 = vunpack.c.l.b16 %v958
    %v3010 = vunpack.c.h.b16 %v958
    %v3011 = vunpack.c.l.b16 %v959
    %v3012 = vunpack.c.h.b16 %v959
    %v3013 = vunpack.c.l.b16 %v960
    %v3014 = vunpack.c.h.b16 %v960
    %v3015 = vunpack.c.l.b16 %v961
    %v3016 = vunpack.c.h.b16 %v961
    %v3017 = vunpack.c.l.b16 %v962
    %v3018 = vunpack.c.h.b16 %v962
    %v3019 = vunpack.c.l.b16 %v963
    %v3020 = vunpack.c.h.b16 %v963
    %v3021 = vunpack.c.l.b16 %v964
    %v3022 = vunpack.c.h.b16 %v964
    %v3023 = vunpack.c.l.b16 %v965
    %v3024 = vunpack.c.h.b16 %v965
    %v3025 = vunpack.c.l.b16 %v966
    %v3026 = vunpack.c.h.b16 %v966
    %v3027 = vunpack.c.l.b16 %v967
    %v3028 = vunpack.c.h.b16 %v967
    %v3029 = vunpack.c.l.b16 %v968
    %v3030 = vunpack.c.h.b16 %v968
    %v3031 = vunpack.c.l.b16 %v969
    %v3032 = vunpack.c.h.b16 %v969
    %v3033 = vunpack.c.l.b16 %v970
    %v3034 = vunpack.c.h.b16 %v970
    %v3035 = vunpack.c.l.b16 %v971
    %v3036 = vunpack.c.h.b16 %v971
    %v3037 = vunpack.c.l.b16 %v972
    %v3038 = vunpack.c.h.b16 %v972
    %v3039 = vunpack.c.l.b16 %v973
    %v3040 = vunpack.c.h.b16 %v973
    %v3041 = vunpack.c.l.b16 %v974
    %v3042 = vunpack.c.h.b16 %v974
    %v3043 = vunpack.c.l.b16 %v975
    %v3044 = vunpack.c.h.b16 %v975
    %v3045 = vunpack.c.l.b16 %v976
    %v3046 = vunpack.c.h.b16 %v976
    %v3047 = vunpack.c.l.b16 %v977
    %v3048 = vunpack.c.h.b16 %v977
    %v3049 = vunpack.c.l.b16 %v978
    %v3050 = vunpack.c.h.b16 %v978
    %v3051 = vunpack.c.l.b16 %v979
    %v3052 = vunpack.c.h.b16 %v979
    %v3053 = vunpack.c.l.b16 %v980
    %v3054 = vunpack.c.h.b16 %v980
    %v3055 = vunpack.c.l.b16 %v981
    %v3056 = vunpack.c.h.b16 %v981
    %v3057 = vunpack.c.l.b16 %v982
    %v3058 = vunpack.c.h.b16 %v982
    %v3059 = vunpack.c.l.b16 %v983
    %v3060 = vunpack.c.h.b16 %v983
    %v3061 = vunpack.c.l.b16 %v984
    %v3062 = vunpack.c.h.b16 %v984
    %v3063 = vunpack.c.l.b16 %v985
    %v3064 = vunpack.c.h.b16 %v985
    %v3065 = vunpack.c.l.b16 %v986
    %v3066 = vunpack.c.h.b16 %v986
    %v3067 = vunpack.c.l.b16 %v987
    %v3068 = vunpack.c.h.b16 %v987
    %v3069 = vunpack.c.l.b16 %v988
    %v3070 = vunpack.c.h.b16 %v988
    %v3071 = vunpack.c.l.b16 %v989
    %v3072 = vunpack.c.h.b16 %v989
    %v3073 = vunpack.c.l.b16 %v990
    %v3074 = vunpack.c.h.b16 %v990
    %v3075 = vunpack.c.l.b16 %v991
    %v3076 = vunpack.c.h.b16 %v991
    %v3077 = vunpack.c.l.b16 %v992
    %v3078 = vunpack.c.h.b16 %v992
    %v3079 = vunpack.c.l.b16 %v993
    %v3080 = vunpack.c.h.b16 %v993
    %v3081 = vunpack.c.l.b16 %v994
    %v3082 = vunpack.c.h.b16 %v994
    %v3083 = vunpack.c.l.b16 %v995
    %v3084 = vunpack.c.h.b16 %v995
    %v3085 = vunpack.c.l.b16 %v996
    %v3086 = vunpack.c.h.b16 %v996
    %v3087 = vunpack.c.l.b16 %v997
    %v3088 = vunpack.c.h.b16 %v997
    %v3089 = vunpack.c.l.b16 %v998
    %v3090 = vunpack.c.h.b16 %v998
    %v3091 = vunpack.c.l.b16 %v999
    %v3092 = vunpack.c.h.b16 %v999
    %v3093 = vunpack.c.l.b16 %v1000
    %v3094 = vunpack.c.h.b16 %v1000
    %v3095 = vunpack.c.l.b16 %v1001
    %v3096 = vunpack.c.h.b16 %v1001
    %v3097 = vunpack.c.l.b16 %v1002
    %v3098 = vunpack.c.h.b16 %v1002
    %v3099 = vunpack.c.l.b16 %v1003
    %v3100 = vunpack.c.h.b16 %v1003
    %v3101 = vunpack.c.l.b16 %v1004
    %v3102 = vunpack.c.h.b16 %v1004
    %v3103 = vunpack.c.l.b16 %v1005
    %v3104 = vunpack.c.h.b16 %v1005
    %v3105 = vunpack.c.l.b16 %v1006
    %v3106 = vunpack.c.h.b16 %v1006
    %v3107 = vunpack.c.l.b16 %v1007
    %v3108 = vunpack.c.h.b16 %v1007
    %v3109 = vunpack.c.l.b16 %v1008
    %v3110 = vunpack.c.h.b16 %v1008
    %v3111 = vunpack.c.l.b16 %v1009
    %v3112 = vunpack.c.h.b16 %v1009
    %v3113 = vunpack.c.l.b16 %v1010
    %v3114 = vunpack.c.h.b16 %v1010
    %v3115 = vunpack.c.l.b16 %v1011
    %v3116 = vunpack.c.h.b16 %v1011
    %v3117 = vunpack.c.l.b16 %v1012
    %v3118 = vunpack.c.h.b16 %v1012
    %v3119 = vunpack.c.l.b16 %v1013
    %v3120 = vunpack.c.h.b16 %v1013
    %v3121 = vunpack.c.l.b16 %v1014
    %v3122 = vunpack.c.h.b16 %v1014
    %v3123 = vunpack.c.l.b16 %v1015
    %v3124 = vunpack.c.h.b16 %v1015
    %v3125 = vunpack.c.l.b16 %v1016
    %v3126 = vunpack.c.h.b16 %v1016
    %v3127 = vunpack.c.l.b16 %v1017
    %v3128 = vunpack.c.h.b16 %v1017
    %v3129 = vunpack.c.l.b16 %v1018
    %v3130 = vunpack.c.h.b16 %v1018
    %v3131 = vunpack.c.l.b16 %v1019
    %v3132 = vunpack.c.h.b16 %v1019
    %v3133 = vunpack.c.l.b16 %v1020
    %v3134 = vunpack.c.h.b16 %v1020
    %v3135 = vunpack.c.l.b16 %v1021
    %v3136 = vunpack.c.h.b16 %v1021
    %v3137 = vunpack.c.l.b16 %v1022
    %v3138 = vunpack.c.h.b16 %v1022
    %v3139 = vunpack.c.l.b16 %v1023
    %v3140 = vunpack.c.h.b16 %v1023
    %v3141 = vunpack.c.l.b16 %v1024
    %v3142 = vunpack.c.h.b16 %v1024
    %v3143 = vunpack.c.l.b16 %v1025
    %v3144 = vunpack.c.h.b16 %v1025
    %v3145 = vunpack.c.l.b16 %v1026
    %v3146 = vunpack.c.h.b16 %v1026
    %v3147 = vunpack.c.l.b16 %v1027
    %v3148 = vunpack.c.h.b16 %v1027
    %v3149 = vunpack.c.l.b16 %v1028
    %v3150 = vunpack.c.h.b16 %v1028
    %v3151 = vunpack.c.l.b16 %v1029
    %v3152 = vunpack.c.h.b16 %v1029
    %v3153 = vunpack.c.l.b16 %v1030
    %v3154 = vunpack.c.h.b16 %v1030
    %v3155 = vunpack.c.l.b16 %v1031
    %v3156 = vunpack.c.h.b16 %v1031
    %v3157 = vunpack.c.l.b16 %v1032
    %v3158 = vunpack.c.h.b16 %v1032
    %v3159 = vunpack.c.l.b16 %v1033
    %v3160 = vunpack.c.h.b16 %v1033
    %v3161 = vunpack.c.l.b16 %v1034
    %v3162 = vunpack.c.h.b16 %v1034
    %v3163 = vunpack.c.l.b16 %v1035
    %v3164 = vunpack.c.h.b16 %v1035
    %v3165 = vunpack.c.l.b16 %v1036
    %v3166 = vunpack.c.h.b16 %v1036
    %v3167 = vunpack.c.l.b16 %v1037
    %v3168 = vunpack.c.h.b16 %v1037
    %v3169 = vunpack.c.l.b16 %v1038
    %v3170 = vunpack.c.h.b16 %v1038
    %v3171 = vunpack.c.l.b16 %v1039
    %v3172 = vunpack.c.h.b16 %v1039
    %v3173 = vunpack.c.l.b16 %v1040
    %v3174 = vunpack.c.h.b16 %v1040
    %v3175 = vunpack.c.l.b16 %v1041
    %v3176 = vunpack.c.h.b16 %v1041
    %v3177 = vunpack.c.l.b16 %v1042
    %v3178 = vunpack.c.h.b16 %v1042
    %v3179 = vunpack.c.l.b16 %v1043
    %v3180 = vunpack.c.h.b16 %v1043
    %v3181 = vunpack.c.l.b16 %v1044
    %v3182 = vunpack.c.h.b16 %v1044
    %v3183 = vunpack.c.l.b16 %v1045
    %v3184 = vunpack.c.h.b16 %v1045
    %v3185 = vunpack.c.l.b16 %v1046
    %v3186 = vunpack.c.h.b16 %v1046
    %v3187 = vunpack.c.l.b16 %v1047
    %v3188 = vunpack.c.h.b16 %v1047
    %v3189 = vunpack.c.l.b16 %v1048
    %v3190 = vunpack.c.h.b16 %v1048
    %v3191 = vunpack.c.l.b16 %v1049
    %v3192 = vunpack.c.h.b16 %v1049
    %v3193 = vunpack.c.l.b16 %v1050
    %v3194 = vunpack.c.h.b16 %v1050
    %v3195 = vunpack.c.l.b16 %v1051
    %v3196 = vunpack.c.h.b16 %v1051
    %v3197 = vunpack.c.l.b16 %v1052
    %v3198 = vunpack.c.h.b16 %v1052
    %v3199 = vunpack.c.l.b16 %v1053
    %v3200 = vunpack.c.h.b16 %v1053
    %v3201 = vunpack.c.l.b16 %v1054
    %v3202 = vunpack.c.h.b16 %v1054
    %v3203 = vunpack.c.l.b16 %v1055
    %v3204 = vunpack.c.h.b16 %v1055
    %v3205 = vunpack.c.l.b16 %v1056
    %v3206 = vunpack.c.h.b16 %v1056
    %v3207 = vunpack.c.l.b16 %v1057
    %v3208 = vunpack.c.h.b16 %v1057
    %v3209 = vunpack.c.l.b16 %v1058
    %v3210 = vunpack.c.h.b16 %v1058
    %v3211 = vunpack.c.l.b16 %v1059
    %v3212 = vunpack.c.h.b16 %v1059
    %v3213 = vunpack.c.l.b16 %v1060
    %v3214 = vunpack.c.h.b16 %v1060
    %v3215 = vunpack.c.l.b16 %v1061
    %v3216 = vunpack.c.h.b16 %v1061
    %v3217 = vunpack.c.l.b16 %v1062
    %v3218 = vunpack.c.h.b16 %v1062
    %v3219 = vunpack.c.l.b16 %v1063
    %v3220 = vunpack.c.h.b16 %v1063
    %v3221 = vunpack.c.l.b16 %v1064
    %v3222 = vunpack.c.h.b16 %v1064
    %v3223 = vunpack.c.l.b16 %v1065
    %v3224 = vunpack.c.h.b16 %v1065
    %v3225 = vunpack.c.l.b16 %v1066
    %v3226 = vunpack.c.h.b16 %v1066
    %v3227 = vunpack.c.l.b16 %v1067
    %v3228 = vunpack.c.h.b16 %v1067
    %v3229 = vunpack.c.l.b16 %v1068
    %v3230 = vunpack.c.h.b16 %v1068
    %v3231 = vunpack.c.l.b16 %v1069
    %v3232 = vunpack.c.h.b16 %v1069
    %v3233 = vunpack.c.l.b16 %v1070
    %v3234 = vunpack.c.h.b16 %v1070
    %v3235 = vunpack.c.l.b16 %v1071
    %v3236 = vunpack.c.h.b16 %v1071
    %v3237 = vunpack.c.l.b16 %v1072
    %v3238 = vunpack.c.h.b16 %v1072
    %v3239 = vunpack.c.l.b16 %v1073
    %v3240 = vunpack.c.h.b16 %v1073
    %v3241 = vunpack.c.l.b16 %v1074
    %v3242 = vunpack.c.h.b16 %v1074
    %v3243 = vunpack.c.l.b16 %v1075
    %v3244 = vunpack.c.h.b16 %v1075
    %v3245 = vunpack.c.l.b16 %v1076
    %v3246 = vunpack.c.h.b16 %v1076
    %v3247 = vunpack.c.l.b16 %v1077
    %v3248 = vunpack.c.h.b16 %v1077
    %v3249 = vunpack.c.l.b16 %v1078
    %v3250 = vunpack.c.h.b16 %v1078
    %v3251 = vunpack.c.l.b16 %v1079
    %v3252 = vunpack.c.h.b16 %v1079
    %v3253 = vunpack.c.l.b16 %v1080
    %v3254 = vunpack.c.h.b16 %v1080
    %v3255 = vunpack.c.l.b16 %v1081
    %v3256 = vunpack.c.h.b16 %v1081
    %v3257 = vunpack.c.l.b16 %v1082
    %v3258 = vunpack.c.h.b16 %v1082
    %v3259 = vunpack.c.l.b16 %v1083
    %v3260 = vunpack.c.h.b16 %v1083
    %v3261 = vunpack.c.l.b16 %v1084
    %v3262 = vunpack.c.h.b16 %v1084
    %v3263 = vunpack.c.l.b16 %v1085
    %v3264 = vunpack.c.h.b16 %v1085
    %v3265 = vunpack.c.l.b16 %v1086
    %v3266 = vunpack.c.h.b16 %v1086
    %v3267 = vunpack.c.l.b16 %v1087
    %v3268 = vunpack.c.h.b16 %v1087
    %v3269 = vunpack.c.l.b16 %v1088
    %v3270 = vunpack.c.h.b16 %v1088
    %v3271 = vunpack.c.l.b16 %v1089
    %v3272 = vunpack.c.h.b16 %v1089
    %v3273 = vunpack.c.l.b16 %v1090
    %v3274 = vunpack.c.h.b16 %v1090
    %v3275 = vunpack.c.l.b16 %v1091
    %v3276 = vunpack.c.h.b16 %v1091
    %v3277 = vunpack.c.l.b16 %v1092
    %v3278 = vunpack.c.h.b16 %v1092
    %v3279 = vunpack.c.l.b16 %v1093
    %v3280 = vunpack.c.h.b16 %v1093
    %v3281 = vunpack.c.l.b16 %v1094
    %v3282 = vunpack.c.h.b16 %v1094
    %v3283 = vunpack.c.l.b16 %v1095
    %v3284 = vunpack.c.h.b16 %v1095
    %v3285 = vunpack.c.l.b16 %v1096
    %v3286 = vunpack.c.h.b16 %v1096
    %v3287 = vunpack.c.l.b16 %v1097
    %v3288 = vunpack.c.h.b16 %v1097
    %v3289 = vunpack.c.l.b16 %v1098
    %v3290 = vunpack.c.h.b16 %v1098
    %v3291 = vunpack.c.l.b16 %v1099
    %v3292 = vunpack.c.h.b16 %v1099
    %v3293 = vunpack.c.l.b16 %v1100
    %v3294 = vunpack.c.h.b16 %v1100
    %v3295 = vunpack.c.l.b16 %v1101
    %v3296 = vunpack.c.h.b16 %v1101
    %v3297 = vunpack.c.l.b16 %v1102
    %v3298 = vunpack.c.h.b16 %v1102
    %v3299 = vunpack.c.l.b16 %v1103
    %v3300 = vunpack.c.h.b16 %v1103
    %v3301 = vunpack.c.l.b16 %v1104
    %v3302 = vunpack.c.h.b16 %v1104
    %v3303 = vunpack.c.l.b16 %v1105
    %v3304 = vunpack.c.h.b16 %v1105
    %v3305 = vunpack.c.l.b16 %v1106
    %v3306 = vunpack.c.h.b16 %v1106
    %v3307 = vunpack.c.l.b16 %v1107
    %v3308 = vunpack.c.h.b16 %v1107
    %v3309 = vunpack.c.l.b16 %v1108
    %v3310 = vunpack.c.h.b16 %v1108
    %v3311 = vunpack.c.l.b16 %v1109
    %v3312 = vunpack.c.h.b16 %v1109
    %v3313 = vunpack.c.l.b16 %v1110
    %v3314 = vunpack.c.h.b16 %v1110
    %v3315 = vunpack.c.l.b16 %v1111
    %v3316 = vunpack.c.h.b16 %v1111
    %v3317 = vunpack.c.l.b16 %v1112
    %v3318 = vunpack.c.h.b16 %v1112
    %v3319 = vunpack.c.l.b16 %v1113
    %v3320 = vunpack.c.h.b16 %v1113
    %v3321 = vunpack.c.l.b16 %v1114
    %v3322 = vunpack.c.h.b16 %v1114
    %v3323 = vunpack.c.l.b16 %v1115
    %v3324 = vunpack.c.h.b16 %v1115
    %v3325 = vunpack.c.l.b16 %v1116
    %v3326 = vunpack.c.h.b16 %v1116
    %v3327 = vunpack.c.l.b16 %v1117
    %v3328 = vunpack.c.h.b16 %v1117
    %v3329 = vunpack.c.l.b16 %v1118
    %v3330 = vunpack.c.h.b16 %v1118
    %v3331 = vunpack.c.l.b16 %v1119
    %v3332 = vunpack.c.h.b16 %v1119
    %v3333 = vunpack.c.l.b16 %v1120
    %v3334 = vunpack.c.h.b16 %v1120
    %v3335 = vunpack.c.l.b16 %v1121
    %v3336 = vunpack.c.h.b16 %v1121
    %v3337 = vunpack.c.l.b16 %v1122
    %v3338 = vunpack.c.h.b16 %v1122
    %v3339 = vunpack.c.l.b16 %v1123
    %v3340 = vunpack.c.h.b16 %v1123
    %v3341 = vunpack.c.l.b16 %v1124
    %v3342 = vunpack.c.h.b16 %v1124
    %v3343 = vunpack.c.l.b16 %v1125
    %v3344 = vunpack.c.h.b16 %v1125
    %v3345 = vunpack.c.l.b16 %v1126
    %v3346 = vunpack.c.h.b16 %v1126
    %v3347 = vunpack.c.l.b16 %v1127
    %v3348 = vunpack.c.h.b16 %v1127
    %v3349 = vunpack.c.l.b16 %v1128
    %v3350 = vunpack.c.h.b16 %v1128
    %v3351 = vunpack.c.l.b16 %v1129
    %v3352 = vunpack.c.h.b16 %v1129
    %v3353 = vunpack.c.l.b16 %v1130
    %v3354 = vunpack.c.h.b16 %v1130
    %v3355 = vunpack.c.l.b16 %v1131
    %v3356 = vunpack.c.h.b16 %v1131
    %v3357 = vunpack.c.l.b16 %v1132
    %v3358 = vunpack.c.h.b16 %v1132
    %v3359 = vunpack.c.l.b16 %v1133
    %v3360 = vunpack.c.h.b16 %v1133
    %v3361 = vunpack.c.l.b16 %v1134
    %v3362 = vunpack.c.h.b16 %v1134
    %v3363 = vunpack.c.l.b16 %v1135
    %v3364 = vunpack.c.h.b16 %v1135
    %v3365 = vunpack.c.l.b16 %v1136
    %v3366 = vunpack.c.h.b16 %v1136
    %v3367 = vunpack.c.l.b16 %v1137
    %v3368 = vunpack.c.h.b16 %v1137
    %v3369 = vunpack.c.l.b16 %v1138
    %v3370 = vunpack.c.h.b16 %v1138
    %v3371 = vunpack.c.l.b16 %v1139
    %v3372 = vunpack.c.h.b16 %v1139
    %v3373 = vunpack.c.l.b16 %v1140
    %v3374 = vunpack.c.h.b16 %v1140
    %v3375 = vunpack.c.l.b16 %v1141
    %v3376 = vunpack.c.h.b16 %v1141
    %v3377 = vunpack.c.l.b16 %v1142
    %v3378 = vunpack.c.h.b16 %v1142
    %v3379 = vunpack.c.l.b16 %v1143
    %v3380 = vunpack.c.h.b16 %v1143
    %v3381 = vunpack.c.l.b16 %v1144
    %v3382 = vunpack.c.h.b16 %v1144
    %v3383 = vunpack.c.l.b16 %v1145
    %v3384 = vunpack.c.h.b16 %v1145
    %v3385 = vunpack.c.l.b16 %v1146
    %v3386 = vunpack.c.h.b16 %v1146
    %v3387 = vunpack.c.l.b16 %v1147
    %v3388 = vunpack.c.h.b16 %v1147
    %v3389 = vunpack.c.l.b16 %v1148
    %v3390 = vunpack.c.h.b16 %v1148
    %v3391 = vunpack.c.l.b16 %v1149
    %v3392 = vunpack.c.h.b16 %v1149
    %v3393 = vunpack.c.l.b16 %v1150
    %v3394 = vunpack.c.h.b16 %v1150
    %v3395 = vunpack.c.l.b16 %v1151
    %v3396 = vunpack.c.h.b16 %v1151
    %v3397 = vunpack.c.l.b16 %v1152
    %v3398 = vunpack.c.h.b16 %v1152
    %v3399 = vunpack.c.l.b16 %v1153
    %v3400 = vunpack.c.h.b16 %v1153
    %v3401 = vunpack.c.l.b16 %v1154
    %v3402 = vunpack.c.h.b16 %v1154
    %v3403 = vunpack.c.l.b16 %v1155
    %v3404 = vunpack.c.h.b16 %v1155
    %v3405 = vunpack.c.l.b16 %v1156
    %v3406 = vunpack.c.h.b16 %v1156
    %v3407 = vunpack.c.l.b16 %v1157
    %v3408 = vunpack.c.h.b16 %v1157
    %v3409 = vunpack.c.l.b16 %v1158
    %v3410 = vunpack.c.h.b16 %v1158
    %v3411 = vunpack.c.l.b16 %v1159
    %v3412 = vunpack.c.h.b16 %v1159
    %v3413 = vunpack.c.l.b16 %v1160
    %v3414 = vunpack.c.h.b16 %v1160
    %v3415 = vunpack.c.l.b16 %v1161
    %v3416 = vunpack.c.h.b16 %v1161
    %v3417 = vunpack.c.l.b16 %v1162
    %v3418 = vunpack.c.h.b16 %v1162
    %v3419 = vunpack.c.l.b16 %v1163
    %v3420 = vunpack.c.h.b16 %v1163
    %v3421 = vunpack.c.l.b16 %v1164
    %v3422 = vunpack.c.h.b16 %v1164
    %v3423 = vunpack.c.l.b16 %v1165
    %v3424 = vunpack.c.h.b16 %v1165
    %v3425 = vunpack.c.l.b16 %v1166
    %v3426 = vunpack.c.h.b16 %v1166
    %v3427 = vunpack.c.l.b16 %v1167
    %v3428 = vunpack.c.h.b16 %v1167
    %v3429 = vunpack.c.l.b16 %v1168
    %v3430 = vunpack.c.h.b16 %v1168
    %v3431 = vunpack.c.l.b16 %v1169
    %v3432 = vunpack.c.h.b16 %v1169
    %v3433 = vunpack.c.l.b16 %v1170
    %v3434 = vunpack.c.h.b16 %v1170
    %v3435 = vunpack.c.l.b16 %v1171
    %v3436 = vunpack.c.h.b16 %v1171
    %v3437 = vunpack.c.l.b16 %v1172
    %v3438 = vunpack.c.h.b16 %v1172
    %v3439 = vunpack.c.l.b16 %v1173
    %v3440 = vunpack.c.h.b16 %v1173
    %v3441 = vunpack.c.l.b16 %v1174
    %v3442 = vunpack.c.h.b16 %v1174
    %v3443 = vunpack.c.l.b16 %v1175
    %v3444 = vunpack.c.h.b16 %v1175
    %v3445 = vunpack.c.l.b16 %v1176
    %v3446 = vunpack.c.h.b16 %v1176
    %v3447 = vunpack.c.l.b16 %v1177
    %v3448 = vunpack.c.h.b16 %v1177
    %v3449 = vunpack.c.l.b16 %v1178
    %v3450 = vunpack.c.h.b16 %v1178
    %v3451 = vunpack.c.l.b16 %v1179
    %v3452 = vunpack.c.h.b16 %v1179
    %v3453 = vunpack.c.l.b16 %v1180
    %v3454 = vunpack.c.h.b16 %v1180
    %v3455 = vunpack.c.l.b16 %v1181
    %v3456 = vunpack.c.h.b16 %v1181
    %v3457 = vunpack.c.l.b16 %v1182
    %v3458 = vunpack.c.h.b16 %v1182
    %v3459 = vunpack.c.l.b16 %v1183
    %v3460 = vunpack.c.h.b16 %v1183
    %v3461 = vunpack.c.l.b16 %v1184
    %v3462 = vunpack.c.h.b16 %v1184
    %v3463 = vunpack.c.l.b16 %v1185
    %v3464 = vunpack.c.h.b16 %v1185
    %v3465 = vunpack.c.l.b16 %v1186
    %v3466 = vunpack.c.h.b16 %v1186
    %v3467 = vunpack.c.l.b16 %v1187
    %v3468 = vunpack.c.h.b16 %v1187
    %v3469 = vunpack.c.l.b16 %v1188
    %v3470 = vunpack.c.h.b16 %v1188
    %v3471 = vunpack.c.l.b16 %v1189
    %v3472 = vunpack.c.h.b16 %v1189
    %v3473 = vunpack.c.l.b16 %v1190
    %v3474 = vunpack.c.h.b16 %v1190
    %v3475 = vunpack.c.l.b16 %v1191
    %v3476 = vunpack.c.h.b16 %v1191
    %v3477 = vunpack.c.l.b16 %v1192
    %v3478 = vunpack.c.h.b16 %v1192
    %v3479 = vunpack.c.l.b16 %v1193
    %v3480 = vunpack.c.h.b16 %v1193
    %v3481 = vunpack.c.l.b16 %v1194
    %v3482 = vunpack.c.h.b16 %v1194
    %v3483 = vunpack.c.l.b16 %v1195
    %v3484 = vunpack.c.h.b16 %v1195
    %v3485 = vunpack.c.l.b16 %v1196
    %v3486 = vunpack.c.h.b16 %v1196
    %v3487 = vunpack.c.l.b16 %v1197
    %v3488 = vunpack.c.h.b16 %v1197
    %v3489 = vunpack.c.l.b16 %v1198
    %v3490 = vunpack.c.h.b16 %v1198
    %v3491 = vunpack.c.l.b16 %v1199
    %v3492 = vunpack.c.h.b16 %v1199
    %v3493 = vunpack.c.l.b16 %v1200
    %v3494 = vunpack.c.h.b16 %v1200
    %v3495 = vunpack.c.l.b16 %v1201
    %v3496 = vunpack.c.h.b16 %v1201
    %v3497 = vunpack.c.l.b16 %v1202
    %v3498 = vunpack.c.h.b16 %v1202
    %v3499 = vunpack.c.l.b16 %v1203
    %v3500 = vunpack.c.h.b16 %v1203
    %v3501 = vunpack.c.l.b16 %v1204
    %v3502 = vunpack.c.h.b16 %v1204
    %v3503 = vunpack.c.l.b16 %v1205
    %v3504 = vunpack.c.h.b16 %v1205
    %v3505 = vunpack.c.l.b16 %v1206
    %v3506 = vunpack.c.h.b16 %v1206
    %v3507 = vunpack.c.l.b16 %v1207
    %v3508 = vunpack.c.h.b16 %v1207
    %v3509 = vunpack.c.l.b16 %v1208
    %v3510 = vunpack.c.h.b16 %v1208
    %v3511 = vunpack.c.l.b16 %v1209
    %v3512 = vunpack.c.h.b16 %v1209
    %v3513 = vunpack.c.l.b16 %v1210
    %v3514 = vunpack.c.h.b16 %v1210
    %v3515 = vunpack.c.l.b16 %v1211
    %v3516 = vunpack.c.h.b16 %v1211
    %v3517 = vunpack.c.l.b16 %v1212
    %v3518 = vunpack.c.h.b16 %v1212
    %v3519 = vunpack.c.l.b16 %v1213
    %v3520 = vunpack.c.h.b16 %v1213
    %v3521 = vunpack.c.l.b16 %v1214
    %v3522 = vunpack.c.h.b16 %v1214
    %v3523 = vunpack.c.l.b16 %v1215
    %v3524 = vunpack.c.h.b16 %v1215
    %v3525 = vunpack.c.l.b16 %v1216
    %v3526 = vunpack.c.h.b16 %v1216
    %v3527 = vunpack.c.l.b16 %v1217
    %v3528 = vunpack.c.h.b16 %v1217
    %v3529 = vunpack.c.l.b16 %v1218
    %v3530 = vunpack.c.h.b16 %v1218
    %v3531 = vunpack.c.l.b16 %v1219
    %v3532 = vunpack.c.h.b16 %v1219
    %v3533 = vunpack.c.l.b16 %v1220
    %v3534 = vunpack.c.h.b16 %v1220
    %v3535 = vunpack.c.l.b16 %v1221
    %v3536 = vunpack.c.h.b16 %v1221
    %v3537 = vunpack.c.l.b16 %v1222
    %v3538 = vunpack.c.h.b16 %v1222
    %v3539 = vunpack.c.l.b16 %v1223
    %v3540 = vunpack.c.h.b16 %v1223
    %v3541 = vunpack.c.l.b16 %v1224
    %v3542 = vunpack.c.h.b16 %v1224
    %v3543 = vunpack.c.l.b16 %v1225
    %v3544 = vunpack.c.h.b16 %v1225
    %v3545 = vunpack.c.l.b16 %v1226
    %v3546 = vunpack.c.h.b16 %v1226
    %v3547 = vunpack.c.l.b16 %v1227
    %v3548 = vunpack.c.h.b16 %v1227
    %v3549 = vunpack.c.l.b16 %v1228
    %v3550 = vunpack.c.h.b16 %v1228
    %v3551 = vunpack.c.l.b16 %v1229
    %v3552 = vunpack.c.h.b16 %v1229
    %v3553 = vunpack.c.l.b16 %v1230
    %v3554 = vunpack.c.h.b16 %v1230
    %v3555 = vunpack.c.l.b16 %v1231
    %v3556 = vunpack.c.h.b16 %v1231
    %v3557 = vunpack.c.l.b16 %v1232
    %v3558 = vunpack.c.h.b16 %v1232
    %v3559 = vunpack.c.l.b16 %v1233
    %v3560 = vunpack.c.h.b16 %v1233
    %v3561 = vunpack.c.l.b16 %v1234
    %v3562 = vunpack.c.h.b16 %v1234
    %v3563 = vunpack.c.l.b16 %v1235
    %v3564 = vunpack.c.h.b16 %v1235
    %v3565 = vunpack.c.l.b16 %v1236
    %v3566 = vunpack.c.h.b16 %v1236
    %v3567 = vunpack.c.l.b16 %v1237
    %v3568 = vunpack.c.h.b16 %v1237
    %v3569 = vunpack.c.l.b16 %v1238
    %v3570 = vunpack.c.h.b16 %v1238
    %v3571 = vunpack.c.l.b16 %v1239
    %v3572 = vunpack.c.h.b16 %v1239
    %v3573 = vunpack.c.l.b16 %v1240
    %v3574 = vunpack.c.h.b16 %v1240
    %v3575 = vunpack.c.l.b16 %v1241
    %v3576 = vunpack.c.h.b16 %v1241
    %v3577 = vunpack.c.l.b16 %v1242
    %v3578 = vunpack.c.h.b16 %v1242
    %v3579 = vunpack.c.l.b16 %v1243
    %v3580 = vunpack.c.h.b16 %v1243
    %v3581 = vunpack.c.l.b16 %v1244
    %v3582 = vunpack.c.h.b16 %v1244
    %v3583 = vunpack.c.l.b16 %v1245
    %v3584 = vunpack.c.h.b16 %v1245
    %v3585 = vunpack.c.l.b16 %v1246
    %v3586 = vunpack.c.h.b16 %v1246
    %v3587 = vunpack.c.l.b16 %v1247
    %v3588 = vunpack.c.h.b16 %v1247
    %v3589 = vunpack.c.l.b16 %v1248
    %v3590 = vunpack.c.h.b16 %v1248
    %v3591 = vunpack.c.l.b16 %v1249
    %v3592 = vunpack.c.h.b16 %v1249
    %v3593 = vunpack.c.l.b16 %v1250
    %v3594 = vunpack.c.h.b16 %v1250
    %v3595 = vunpack.c.l.b16 %v1251
    %v3596 = vunpack.c.h.b16 %v1251
    %v3597 = vunpack.c.l.b16 %v1252
    %v3598 = vunpack.c.h.b16 %v1252
    %v3599 = vpack.c.b16 %v2071, %v2063
    %v3600 = vpack.c.b16 %v2072, %v2064
    %v3601 = vpack.c.b16 %v2073, %v2065
    %v3602 = vpack.c.b16 %v2074, %v2066
    %v3603 = vpack.c.b16 %v2075, %v2067
    %v3604 = vpack.c.b16 %v2076, %v2068
    %v3605 = vpack.c.b16 %v2077, %v2069
    %v3606 = vpack.c.b16 %v2078, %v2070
    %v3607 = vpack.c.b16 %v2087, %v2079
    %v3608 = vpack.c.b16 %v2088, %v2080
    %v3609 = vpack.c.b16 %v2089, %v2081
    %v3610 = vpack.c.b16 %v2090, %v2082
    %v3611 = vpack.c.b16 %v2091, %v2083
    %v3612 = vpack.c.b16 %v2092, %v2084
    %v3613 = vpack.c.b16 %v2093, %v2085
    %v3614 = vpack.c.b16 %v2094, %v2086
    %v3615 = vpack.c.b16 %v2103, %v2095
    %v3616 = vpack.c.b16 %v2104, %v2096
    %v3617 = vpack.c.b16 %v2105, %v2097
    %v3618 = vpack.c.b16 %v2106, %v2098
    %v3619 = vpack.c.b16 %v2107, %v2099
    %v3620 = vpack.c.b16 %v2108, %v2100
    %v3621 = vpack.c.b16 %v2109, %v2101
    %v3622 = vpack.c.b16 %v2110, %v2102
    %v3623 = vpack.c.b16 %v2119, %v2111
    %v3624 = vpack.c.b16 %v2120, %v2112
    %v3625 = vpack.c.b16 %v2121, %v2113
    %v3626 = vpack.c.b16 %v2122, %v2114
    %v3627 = vpack.c.b16 %v2123, %v2115
    %v3628 = vpack.c.b16 %v2124, %v2116
    %v3629 = vpack.c.b16 %v2125, %v2117
    %v3630 = vpack.c.b16 %v2126, %v2118
    %v3631 = vpack.c.b16 %v2135, %v2127
    %v3632 = vpack.c.b16 %v2136, %v2128
    %v3633 = vpack.c.b16 %v2137, %v2129
    %v3634 = vpack.c.b16 %v2138, %v2130
    %v3635 = vpack.c.b16 %v2139, %v2131
    %v3636 = vpack.c.b16 %v2140, %v2132
    %v3637 = vpack.c.b16 %v2141, %v2133
    %v3638 = vpack.c.b16 %v2142, %v2134
    %v3639 = vpack.c.b16 %v2151, %v2143
    %v3640 = vpack.c.b16 %v2152, %v2144
    %v3641 = vpack.c.b16 %v2153, %v2145
    %v3642 = vpack.c.b16 %v2154, %v2146
    %v3643 = vpack.c.b16 %v2155, %v2147
    %v3644 = vpack.c.b16 %v2156, %v2148
    %v3645 = vpack.c.b16 %v2157, %v2149
    %v3646 = vpack.c.b16 %v2158, %v2150
    %v3647 = vpack.c.b16 %v2167, %v2159
    %v3648 = vpack.c.b16 %v2168, %v2160
    %v3649 = vpack.c.b16 %v2169, %v2161
    %v3650 = vpack.c.b16 %v2170, %v2162
    %v3651 = vpack.c.b16 %v2171, %v2163
    %v3652 = vpack.c.b16 %v2172, %v2164
    %v3653 = vpack.c.b16 %v2173, %v2165
    %v3654 = vpack.c.b16 %v2174, %v2166
    %v3655 = vpack.c.b16 %v2183, %v2175
    %v3656 = vpack.c.b16 %v2184, %v2176
    %v3657 = vpack.c.b16 %v2185, %v2177
    %v3658 = vpack.c.b16 %v2186, %v2178
    %v3659 = vpack.c.b16 %v2187, %v2179
    %v3660 = vpack.c.b16 %v2188, %v2180
    %v3661 = vpack.c.b16 %v2189, %v2181
    %v3662 = vpack.c.b16 %v2190, %v2182
    %v3663 = vpack.c.b16 %v2199, %v2191
    %v3664 = vpack.c.b16 %v2200, %v2192
    %v3665 = vpack.c.b16 %v2201, %v2193
    %v3666 = vpack.c.b16 %v2202, %v2194
    %v3667 = vpack.c.b16 %v2203, %v2195
    %v3668 = vpack.c.b16 %v2204, %v2196
    %v3669 = vpack.c.b16 %v2205, %v2197
    %v3670 = vpack.c.b16 %v2206, %v2198
    %v3671 = vpack.c.b16 %v2215, %v2207
    %v3672 = vpack.c.b16 %v2216, %v2208
    %v3673 = vpack.c.b16 %v2217, %v2209
    %v3674 = vpack.c.b16 %v2218, %v2210
    %v3675 = vpack.c.b16 %v2219, %v2211
    %v3676 = vpack.c.b16 %v2220, %v2212
    %v3677 = vpack.c.b16 %v2221, %v2213
    %v3678 = vpack.c.b16 %v2222, %v2214
    %v3679 = vpack.c.b16 %v2231, %v2223
    %v3680 = vpack.c.b16 %v2232, %v2224
    %v3681 = vpack.c.b16 %v2233, %v2225
    %v3682 = vpack.c.b16 %v2234, %v2226
    %v3683 = vpack.c.b16 %v2235, %v2227
    %v3684 = vpack.c.b16 %v2236, %v2228
    %v3685 = vpack.c.b16 %v2237, %v2229
    %v3686 = vpack.c.b16 %v2238, %v2230
    %v3687 = vpack.c.b16 %v2247, %v2239
    %v3688 = vpack.c.b16 %v2248, %v2240
    %v3689 = vpack.c.b16 %v2249, %v2241
    %v3690 = vpack.c.b16 %v2250, %v2242
    %v3691 = vpack.c.b16 %v2251, %v2243
    %v3692 = vpack.c.b16 %v2252, %v2244
    %v3693 = vpack.c.b16 %v2253, %v2245
    %v3694 = vpack.c.b16 %v2254, %v2246
    %v3695 = vpack.c.b16 %v2263, %v2255
    %v3696 = vpack.c.b16 %v2264, %v2256
    %v3697 = vpack.c.b16 %v2265, %v2257
    %v3698 = vpack.c.b16 %v2266, %v2258
    %v3699 = vpack.c.b16 %v2267, %v2259
    %v3700 = vpack.c.b16 %v2268, %v2260
    %v3701 = vpack.c.b16 %v2269, %v2261
    %v3702 = vpack.c.b16 %v2270, %v2262
    %v3703 = vpack.c.b16 %v2279, %v2271
    %v3704 = vpack.c.b16 %v2280, %v2272
    %v3705 = vpack.c.b16 %v2281, %v2273
    %v3706 = vpack.c.b16 %v2282, %v2274
    %v3707 = vpack.c.b16 %v2283, %v2275
    %v3708 = vpack.c.b16 %v2284, %v2276
    %v3709 = vpack.c.b16 %v2285, %v2277
    %v3710 = vpack.c.b16 %v2286, %v2278
    %v3711 = vpack.c.b16 %v2295, %v2287
    %v3712 = vpack.c.b16 %v2296, %v2288
    %v3713 = vpack.c.b16 %v2297, %v2289
    %v3714 = vpack.c.b16 %v2298, %v2290
    %v3715 = vpack.c.b16 %v2299, %v2291
    %v3716 = vpack.c.b16 %v2300, %v2292
    %v3717 = vpack.c.b16 %v2301, %v2293
    %v3718 = vpack.c.b16 %v2302, %v2294
    %v3719 = vpack.c.b16 %v2311, %v2303
    %v3720 = vpack.c.b16 %v2312, %v2304
    %v3721 = vpack.c.b16 %v2313, %v2305
    %v3722 = vpack.c.b16 %v2314, %v2306
    %v3723 = vpack.c.b16 %v2315, %v2307
    %v3724 = vpack.c.b16 %v2316, %v2308
    %v3725 = vpack.c.b16 %v2317, %v2309
    %v3726 = vpack.c.b16 %v2318, %v2310
    %v3727 = vpack.c.b16 %v2327, %v2319
    %v3728 = vpack.c.b16 %v2328, %v2320
    %v3729 = vpack.c.b16 %v2329, %v2321
    %v3730 = vpack.c.b16 %v2330, %v2322
    %v3731 = vpack.c.b16 %v2331, %v2323
    %v3732 = vpack.c.b16 %v2332, %v2324
    %v3733 = vpack.c.b16 %v2333, %v2325
    %v3734 = vpack.c.b16 %v2334, %v2326
    %v3735 = vpack.c.b16 %v2343, %v2335
    %v3736 = vpack.c.b16 %v2344, %v2336
    %v3737 = vpack.c.b16 %v2345, %v2337
    %v3738 = vpack.c.b16 %v2346, %v2338
    %v3739 = vpack.c.b16 %v2347, %v2339
    %v3740 = vpack.c.b16 %v2348, %v2340
    %v3741 = vpack.c.b16 %v2349, %v2341
    %v3742 = vpack.c.b16 %v2350, %v2342
    %v3743 = vpack.c.b16 %v2359, %v2351
    %v3744 = vpack.c.b16 %v2360, %v2352
    %v3745 = vpack.c.b16 %v2361, %v2353
    %v3746 = vpack.c.b16 %v2362, %v2354
    %v3747 = vpack.c.b16 %v2363, %v2355
    %v3748 = vpack.c.b16 %v2364, %v2356
    %v3749 = vpack.c.b16 %v2365, %v2357
    %v3750 = vpack.c.b16 %v2366, %v2358
    %v3751 = vpack.c.b16 %v2375, %v2367
    %v3752 = vpack.c.b16 %v2376, %v2368
    %v3753 = vpack.c.b16 %v2377, %v2369
    %v3754 = vpack.c.b16 %v2378, %v2370
    %v3755 = vpack.c.b16 %v2379, %v2371
    %v3756 = vpack.c.b16 %v2380, %v2372
    %v3757 = vpack.c.b16 %v2381, %v2373
    %v3758 = vpack.c.b16 %v2382, %v2374
    %v3759 = vpack.c.b16 %v2391, %v2383
    %v3760 = vpack.c.b16 %v2392, %v2384
    %v3761 = vpack.c.b16 %v2393, %v2385
    %v3762 = vpack.c.b16 %v2394, %v2386
    %v3763 = vpack.c.b16 %v2395, %v2387
    %v3764 = vpack.c.b16 %v2396, %v2388
    %v3765 = vpack.c.b16 %v2397, %v2389
    %v3766 = vpack.c.b16 %v2398, %v2390
    %v3767 = vpack.c.b16 %v2407, %v2399
    %v3768 = vpack.c.b16 %v2408, %v2400
    %v3769 = vpack.c.b16 %v2409, %v2401
    %v3770 = vpack.c.b16 %v2410, %v2402
    %v3771 = vpack.c.b16 %v2411, %v2403
    %v3772 = vpack.c.b16 %v2412, %v2404
    %v3773 = vpack.c.b16 %v2413, %v2405
    %v3774 = vpack.c.b16 %v2414, %v2406
    %v3775 = vpack.c.b16 %v2423, %v2415
    %v3776 = vpack.c.b16 %v2424, %v2416
    %v3777 = vpack.c.b16 %v2425, %v2417
    %v3778 = vpack.c.b16 %v2426, %v2418
    %v3779 = vpack.c.b16 %v2427, %v2419
    %v3780 = vpack.c.b16 %v2428, %v2420
    %v3781 = vpack.c.b16 %v2429, %v2421
    %v3782 = vpack.c.b16 %v2430, %v2422
    %v3783 = vpack.c.b16 %v2439, %v2431
    %v3784 = vpack.c.b16 %v2440, %v2432
    %v3785 = vpack.c.b16 %v2441, %v2433
    %v3786 = vpack.c.b16 %v2442, %v2434
    %v3787 = vpack.c.b16 %v2443, %v2435
    %v3788 = vpack.c.b16 %v2444, %v2436
    %v3789 = vpack.c.b16 %v2445, %v2437
    %v3790 = vpack.c.b16 %v2446, %v2438
    %v3791 = vpack.c.b16 %v2455, %v2447
    %v3792 = vpack.c.b16 %v2456, %v2448
    %v3793 = vpack.c.b16 %v2457, %v2449
    %v3794 = vpack.c.b16 %v2458, %v2450
    %v3795 = vpack.c.b16 %v2459, %v2451
    %v3796 = vpack.c.b16 %v2460, %v2452
    %v3797 = vpack.c.b16 %v2461, %v2453
    %v3798 = vpack.c.b16 %v2462, %v2454
    %v3799 = vpack.c.b16 %v2471, %v2463
    %v3800 = vpack.c.b16 %v2472, %v2464
    %v3801 = vpack.c.b16 %v2473, %v2465
    %v3802 = vpack.c.b16 %v2474, %v2466
    %v3803 = vpack.c.b16 %v2475, %v2467
    %v3804 = vpack.c.b16 %v2476, %v2468
    %v3805 = vpack.c.b16 %v2477, %v2469
    %v3806 = vpack.c.b16 %v2478, %v2470
    %v3807 = vpack.c.b16 %v2487, %v2479
    %v3808 = vpack.c.b16 %v2488, %v2480
    %v3809 = vpack.c.b16 %v2489, %v2481
    %v3810 = vpack.c.b16 %v2490, %v2482
    %v3811 = vpack.c.b16 %v2491, %v2483
    %v3812 = vpack.c.b16 %v2492, %v2484
    %v3813 = vpack.c.b16 %v2493, %v2485
    %v3814 = vpack.c.b16 %v2494, %v2486
    %v3815 = vpack.c.b16 %v2503, %v2495
    %v3816 = vpack.c.b16 %v2504, %v2496
    %v3817 = vpack.c.b16 %v2505, %v2497
    %v3818 = vpack.c.b16 %v2506, %v2498
    %v3819 = vpack.c.b16 %v2507, %v2499
    %v3820 = vpack.c.b16 %v2508, %v2500
    %v3821 = vpack.c.b16 %v2509, %v2501
    %v3822 = vpack.c.b16 %v2510, %v2502
    %v3823 = vpack.c.b16 %v2519, %v2511
    %v3824 = vpack.c.b16 %v2520, %v2512
    %v3825 = vpack.c.b16 %v2521, %v2513
    %v3826 = vpack.c.b16 %v2522, %v2514
    %v3827 = vpack.c.b16 %v2523, %v2515
    %v3828 = vpack.c.b16 %v2524, %v2516
    %v3829 = vpack.c.b16 %v2525, %v2517
    %v3830 = vpack.c.b16 %v2526, %v2518
    %v3831 = vpack.c.b16 %v2535, %v2527
    %v3832 = vpack.c.b16 %v2536, %v2528
    %v3833 = vpack.c.b16 %v2537, %v2529
    %v3834 = vpack.c.b16 %v2538, %v2530
    %v3835 = vpack.c.b16 %v2539, %v2531
    %v3836 = vpack.c.b16 %v2540, %v2532
    %v3837 = vpack.c.b16 %v2541, %v2533
    %v3838 = vpack.c.b16 %v2542, %v2534
    %v3839 = vpack.c.b16 %v2551, %v2543
    %v3840 = vpack.c.b16 %v2552, %v2544
    %v3841 = vpack.c.b16 %v2553, %v2545
    %v3842 = vpack.c.b16 %v2554, %v2546
    %v3843 = vpack.c.b16 %v2555, %v2547
    %v3844 = vpack.c.b16 %v2556, %v2548
    %v3845 = vpack.c.b16 %v2557, %v2549
    %v3846 = vpack.c.b16 %v2558, %v2550
    %v3847 = vpack.c.b16 %v2567, %v2559
    %v3848 = vpack.c.b16 %v2568, %v2560
    %v3849 = vpack.c.b16 %v2569, %v2561
    %v3850 = vpack.c.b16 %v2570, %v2562
    %v3851 = vpack.c.b16 %v2571, %v2563
    %v3852 = vpack.c.b16 %v2572, %v2564
    %v3853 = vpack.c.b16 %v2573, %v2565
    %v3854 = vpack.c.b16 %v2574, %v2566
    %v3855 = vpack.c.b16 %v2583, %v2575
    %v3856 = vpack.c.b16 %v2584, %v2576
    %v3857 = vpack.c.b16 %v2585, %v2577
    %v3858 = vpack.c.b16 %v2586, %v2578
    %v3859 = vpack.c.b16 %v2587, %v2579
    %v3860 = vpack.c.b16 %v2588, %v2580
    %v3861 = vpack.c.b16 %v2589, %v2581
    %v3862 = vpack.c.b16 %v2590, %v2582
    %v3863 = vpack.c.b16 %v2599, %v2591
    %v3864 = vpack.c.b16 %v2600, %v2592
    %v3865 = vpack.c.b16 %v2601, %v2593
    %v3866 = vpack.c.b16 %v2602, %v2594
    %v3867 = vpack.c.b16 %v2603, %v2595
    %v3868 = vpack.c.b16 %v2604, %v2596
    %v3869 = vpack.c.b16 %v2605, %v2597
    %v3870 = vpack.c.b16 %v2606, %v2598
    %v3871 = vpack.c.b16 %v2615, %v2607
    %v3872 = vpack.c.b16 %v2616, %v2608
    %v3873 = vpack.c.b16 %v2617, %v2609
    %v3874 = vpack.c.b16 %v2618, %v2610
    %v3875 = vpack.c.b16 %v2619, %v2611
    %v3876 = vpack.c.b16 %v2620, %v2612
    %v3877 = vpack.c.b16 %v2621, %v2613
    %v3878 = vpack.c.b16 %v2622, %v2614
    %v3879 = vpack.c.b16 %v2631, %v2623
    %v3880 = vpack.c.b16 %v2632, %v2624
    %v3881 = vpack.c.b16 %v2633, %v2625
    %v3882 = vpack.c.b16 %v2634, %v2626
    %v3883 = vpack.c.b16 %v2635, %v2627
    %v3884 = vpack.c.b16 %v2636, %v2628
    %v3885 = vpack.c.b16 %v2637, %v2629
    %v3886 = vpack.c.b16 %v2638, %v2630
    %v3887 = vpack.c.b16 %v2647, %v2639
    %v3888 = vpack.c.b16 %v2648, %v2640
    %v3889 = vpack.c.b16 %v2649, %v2641
    %v3890 = vpack.c.b16 %v2650, %v2642
    %v3891 = vpack.c.b16 %v2651, %v2643
    %v3892 = vpack.c.b16 %v2652, %v2644
    %v3893 = vpack.c.b16 %v2653, %v2645
    %v3894 = vpack.c.b16 %v2654, %v2646
    %v3895 = vpack.c.b16 %v2663, %v2655
    %v3896 = vpack.c.b16 %v2664, %v2656
    %v3897 = vpack.c.b16 %v2665, %v2657
    %v3898 = vpack.c.b16 %v2666, %v2658
    %v3899 = vpack.c.b16 %v2667, %v2659
    %v3900 = vpack.c.b16 %v2668, %v2660
    %v3901 = vpack.c.b16 %v2669, %v2661
    %v3902 = vpack.c.b16 %v2670, %v2662
    %v3903 = vpack.c.b16 %v2679, %v2671
    %v3904 = vpack.c.b16 %v2680, %v2672
    %v3905 = vpack.c.b16 %v2681, %v2673
    %v3906 = vpack.c.b16 %v2682, %v2674
    %v3907 = vpack.c.b16 %v2683, %v2675
    %v3908 = vpack.c.b16 %v2684, %v2676
    %v3909 = vpack.c.b16 %v2685, %v2677
    %v3910 = vpack.c.b16 %v2686, %v2678
    %v3911 = vpack.c.b16 %v2695, %v2687
    %v3912 = vpack.c.b16 %v2696, %v2688
    %v3913 = vpack.c.b16 %v2697, %v2689
    %v3914 = vpack.c.b16 %v2698, %v2690
    %v3915 = vpack.c.b16 %v2699, %v2691
    %v3916 = vpack.c.b16 %v2700, %v2692
    %v3917 = vpack.c.b16 %v2701, %v2693
    %v3918 = vpack.c.b16 %v2702, %v2694
    %v3919 = vpack.c.b16 %v2711, %v2703
    %v3920 = vpack.c.b16 %v2712, %v2704
    %v3921 = vpack.c.b16 %v2713, %v2705
    %v3922 = vpack.c.b16 %v2714, %v2706
    %v3923 = vpack.c.b16 %v2715, %v2707
    %v3924 = vpack.c.b16 %v2716, %v2708
    %v3925 = vpack.c.b16 %v2717, %v2709
    %v3926 = vpack.c.b16 %v2718, %v2710
    %v3927 = vpack.c.b16 %v2727, %v2719
    %v3928 = vpack.c.b16 %v2728, %v2720
    %v3929 = vpack.c.b16 %v2729, %v2721
    %v3930 = vpack.c.b16 %v2730, %v2722
    %v3931 = vpack.c.b16 %v2731, %v2723
    %v3932 = vpack.c.b16 %v2732, %v2724
    %v3933 = vpack.c.b16 %v2733, %v2725
    %v3934 = vpack.c.b16 %v2734, %v2726
    %v3935 = vpack.c.b16 %v2743, %v2735
    %v3936 = vpack.c.b16 %v2744, %v2736
    %v3937 = vpack.c.b16 %v2745, %v2737
    %v3938 = vpack.c.b16 %v2746, %v2738
    %v3939 = vpack.c.b16 %v2747, %v2739
    %v3940 = vpack.c.b16 %v2748, %v2740
    %v3941 = vpack.c.b16 %v2749, %v2741
    %v3942 = vpack.c.b16 %v2750, %v2742
    %v3943 = vpack.c.b16 %v2759, %v2751
    %v3944 = vpack.c.b16 %v2760, %v2752
    %v3945 = vpack.c.b16 %v2761, %v2753
    %v3946 = vpack.c.b16 %v2762, %v2754
    %v3947 = vpack.c.b16 %v2763, %v2755
    %v3948 = vpack.c.b16 %v2764, %v2756
    %v3949 = vpack.c.b16 %v2765, %v2757
    %v3950 = vpack.c.b16 %v2766, %v2758
    %v3951 = vpack.c.b16 %v2775, %v2767
    %v3952 = vpack.c.b16 %v2776, %v2768
    %v3953 = vpack.c.b16 %v2777, %v2769
    %v3954 = vpack.c.b16 %v2778, %v2770
    %v3955 = vpack.c.b16 %v2779, %v2771
    %v3956 = vpack.c.b16 %v2780, %v2772
    %v3957 = vpack.c.b16 %v2781, %v2773
    %v3958 = vpack.c.b16 %v2782, %v2774
    %v3959 = vpack.c.b16 %v2791, %v2783
    %v3960 = vpack.c.b16 %v2792, %v2784
    %v3961 = vpack.c.b16 %v2793, %v2785
    %v3962 = vpack.c.b16 %v2794, %v2786
    %v3963 = vpack.c.b16 %v2795, %v2787
    %v3964 = vpack.c.b16 %v2796, %v2788
    %v3965 = vpack.c.b16 %v2797, %v2789
    %v3966 = vpack.c.b16 %v2798, %v2790
    %v3967 = vpack.c.b16 %v2807, %v2799
    %v3968 = vpack.c.b16 %v2808, %v2800
    %v3969 = vpack.c.b16 %v2809, %v2801
    %v3970 = vpack.c.b16 %v2810, %v2802
    %v3971 = vpack.c.b16 %v2811, %v2803
    %v3972 = vpack.c.b16 %v2812, %v2804
    %v3973 = vpack.c.b16 %v2813, %v2805
    %v3974 = vpack.c.b16 %v2814, %v2806
    %v3975 = vpack.c.b16 %v2823, %v2815
    %v3976 = vpack.c.b16 %v2824, %v2816
    %v3977 = vpack.c.b16 %v2825, %v2817
    %v3978 = vpack.c.b16 %v2826, %v2818
    %v3979 = vpack.c.b16 %v2827, %v2819
    %v3980 = vpack.c.b16 %v2828, %v2820
    %v3981 = vpack.c.b16 %v2829, %v2821
    %v3982 = vpack.c.b16 %v2830, %v2822
    %v3983 = vpack.c.b16 %v2839, %v2831
    %v3984 = vpack.c.b16 %v2840, %v2832
    %v3985 = vpack.c.b16 %v2841, %v2833
    %v3986 = vpack.c.b16 %v2842, %v2834
    %v3987 = vpack.c.b16 %v2843, %v2835
    %v3988 = vpack.c.b16 %v2844, %v2836
    %v3989 = vpack.c.b16 %v2845, %v2837
    %v3990 = vpack.c.b16 %v2846, %v2838
    %v3991 = vpack.c.b16 %v2855, %v2847
    %v3992 = vpack.c.b16 %v2856, %v2848
    %v3993 = vpack.c.b16 %v2857, %v2849
    %v3994 = vpack.c.b16 %v2858, %v2850
    %v3995 = vpack.c.b16 %v2859, %v2851
    %v3996 = vpack.c.b16 %v2860, %v2852
    %v3997 = vpack.c.b16 %v2861, %v2853
    %v3998 = vpack.c.b16 %v2862, %v2854
    %v3999 = vpack.c.b16 %v2871, %v2863
    %v4000 = vpack.c.b16 %v2872, %v2864
    %v4001 = vpack.c.b16 %v2873, %v2865
    %v4002 = vpack.c.b16 %v2874, %v2866
    %v4003 = vpack.c.b16 %v2875, %v2867
    %v4004 = vpack.c.b16 %v2876, %v2868
    %v4005 = vpack.c.b16 %v2877, %v2869
    %v4006 = vpack.c.b16 %v2878, %v2870
    %v4007 = vpack.c.b16 %v2887, %v2879
    %v4008 = vpack.c.b16 %v2888, %v2880
    %v4009 = vpack.c.b16 %v2889, %v2881
    %v4010 = vpack.c.b16 %v2890, %v2882
    %v4011 = vpack.c.b16 %v2891, %v2883
    %v4012 = vpack.c.b16 %v2892, %v2884
    %v4013 = vpack.c.b16 %v2893, %v2885
    %v4014 = vpack.c.b16 %v2894, %v2886
    %v4015 = vpack.c.b16 %v2903, %v2895
    %v4016 = vpack.c.b16 %v2904, %v2896
    %v4017 = vpack.c.b16 %v2905, %v2897
    %v4018 = vpack.c.b16 %v2906, %v2898
    %v4019 = vpack.c.b16 %v2907, %v2899
    %v4020 = vpack.c.b16 %v2908, %v2900
    %v4021 = vpack.c.b16 %v2909, %v2901
    %v4022 = vpack.c.b16 %v2910, %v2902
    %v4023 = vpack.c.b16 %v2919, %v2911
    %v4024 = vpack.c.b16 %v2920, %v2912
    %v4025 = vpack.c.b16 %v2921, %v2913
    %v4026 = vpack.c.b16 %v2922, %v2914
    %v4027 = vpack.c.b16 %v2923, %v2915
    %v4028 = vpack.c.b16 %v2924, %v2916
    %v4029 = vpack.c.b16 %v2925, %v2917
    %v4030 = vpack.c.b16 %v2926, %v2918
    %v4031 = vpack.c.b16 %v2935, %v2927
    %v4032 = vpack.c.b16 %v2936, %v2928
    %v4033 = vpack.c.b16 %v2937, %v2929
    %v4034 = vpack.c.b16 %v2938, %v2930
    %v4035 = vpack.c.b16 %v2939, %v2931
    %v4036 = vpack.c.b16 %v2940, %v2932
    %v4037 = vpack.c.b16 %v2941, %v2933
    %v4038 = vpack.c.b16 %v2942, %v2934
    %v4039 = vpack.c.b16 %v2951, %v2943
    %v4040 = vpack.c.b16 %v2952, %v2944
    %v4041 = vpack.c.b16 %v2953, %v2945
    %v4042 = vpack.c.b16 %v2954, %v2946
    %v4043 = vpack.c.b16 %v2955, %v2947
    %v4044 = vpack.c.b16 %v2956, %v2948
    %v4045 = vpack.c.b16 %v2957, %v2949
    %v4046 = vpack.c.b16 %v2958, %v2950
    %v4047 = vpack.c.b16 %v2967, %v2959
    %v4048 = vpack.c.b16 %v2968, %v2960
    %v4049 = vpack.c.b16 %v2969, %v2961
    %v4050 = vpack.c.b16 %v2970, %v2962
    %v4051 = vpack.c.b16 %v2971, %v2963
    %v4052 = vpack.c.b16 %v2972, %v2964
    %v4053 = vpack.c.b16 %v2973, %v2965
    %v4054 = vpack.c.b16 %v2974, %v2966
    %v4055 = vpack.c.b16 %v2983, %v2975
    %v4056 = vpack.c.b16 %v2984, %v2976
    %v4057 = vpack.c.b16 %v2985, %v2977
    %v4058 = vpack.c.b16 %v2986, %v2978
    %v4059 = vpack.c.b16 %v2987, %v2979
    %v4060 = vpack.c.b16 %v2988, %v2980
    %v4061 = vpack.c.b16 %v2989, %v2981
    %v4062 = vpack.c.b16 %v2990, %v2982
    %v4063 = vpack.c.b16 %v2999, %v2991
    %v4064 = vpack.c.b16 %v3000, %v2992
    %v4065 = vpack.c.b16 %v3001, %v2993
    %v4066 = vpack.c.b16 %v3002, %v2994
    %v4067 = vpack.c.b16 %v3003, %v2995
    %v4068 = vpack.c.b16 %v3004, %v2996
    %v4069 = vpack.c.b16 %v3005, %v2997
    %v4070 = vpack.c.b16 %v3006, %v2998
    %v4071 = vpack.c.b16 %v3015, %v3007
    %v4072 = vpack.c.b16 %v3016, %v3008
    %v4073 = vpack.c.b16 %v3017, %v3009
    %v4074 = vpack.c.b16 %v3018, %v3010
    %v4075 = vpack.c.b16 %v3019, %v3011
    %v4076 = vpack.c.b16 %v3020, %v3012
    %v4077 = vpack.c.b16 %v3021, %v3013
    %v4078 = vpack.c.b16 %v3022, %v3014
    %v4079 = vpack.c.b16 %v3031, %v3023
    %v4080 = vpack.c.b16 %v3032, %v3024
    %v4081 = vpack.c.b16 %v3033, %v3025
    %v4082 = vpack.c.b16 %v3034, %v3026
    %v4083 = vpack.c.b16 %v3035, %v3027
    %v4084 = vpack.c.b16 %v3036, %v3028
    %v4085 = vpack.c.b16 %v3037, %v3029
    %v4086 = vpack.c.b16 %v3038, %v3030
    %v4087 = vpack.c.b16 %v3047, %v3039
    %v4088 = vpack.c.b16 %v3048, %v3040
    %v4089 = vpack.c.b16 %v3049, %v3041
    %v4090 = vpack.c.b16 %v3050, %v3042
    %v4091 = vpack.c.b16 %v3051, %v3043
    %v4092 = vpack.c.b16 %v3052, %v3044
    %v4093 = vpack.c.b16 %v3053, %v3045
    %v4094 = vpack.c.b16 %v3054, %v3046
    %v4095 = vpack.c.b16 %v3063, %v3055
    %v4096 = vpack.c.b16 %v3064, %v3056
    %v4097 = vpack.c.b16 %v3065, %v3057
    %v4098 = vpack.c.b16 %v3066, %v3058
    %v4099 = vpack.c.b16 %v3067, %v3059
    %v4100 = vpack.c.b16 %v3068, %v3060
    %v4101 = vpack.c.b16 %v3069, %v3061
    %v4102 = vpack.c.b16 %v3070, %v3062
    %v4103 = vpack.c.b16 %v3079, %v3071
    %v4104 = vpack.c.b16 %v3080, %v3072
    %v4105 = vpack.c.b16 %v3081, %v3073
    %v4106 = vpack.c.b16 %v3082, %v3074
    %v4107 = vpack.c.b16 %v3083, %v3075
    %v4108 = vpack.c.b16 %v3084, %v3076
    %v4109 = vpack.c.b16 %v3085, %v3077
    %v4110 = vpack.c.b16 %v3086, %v3078
    %v4111 = vpack.c.b16 %v3095, %v3087
    %v4112 = vpack.c.b16 %v3096, %v3088
    %v4113 = vpack.c.b16 %v3097, %v3089
    %v4114 = vpack.c.b16 %v3098, %v3090
    %v4115 = vpack.c.b16 %v3099, %v3091
    %v4116 = vpack.c.b16 %v3100, %v3092
    %v4117 = vpack.c.b16 %v3101, %v3093
    %v4118 = vpack.c.b16 %v3102, %v3094
    %v4119 = vpack.c.b16 %v3111, %v3103
    %v4120 = vpack.c.b16 %v3112, %v3104
    %v4121 = vpack.c.b16 %v3113, %v3105
    %v4122 = vpack.c.b16 %v3114, %v3106
    %v4123 = vpack.c.b16 %v3115, %v3107
    %v4124 = vpack.c.b16 %v3116, %v3108
    %v4125 = vpack.c.b16 %v3117, %v3109
    %v4126 = vpack.c.b16 %v3118, %v3110
    %v4127 = vpack.c.b16 %v3127, %v3119
    %v4128 = vpack.c.b16 %v3128, %v3120
    %v4129 = vpack.c.b16 %v3129, %v3121
    %v4130 = vpack.c.b16 %v3130, %v3122
    %v4131 = vpack.c.b16 %v3131, %v3123
    %v4132 = vpack.c.b16 %v3132, %v3124
    %v4133 = vpack.c.b16 %v3133, %v3125
    %v4134 = vpack.c.b16 %v3134, %v3126
    %v4135 = vpack.c.b16 %v3143, %v3135
    %v4136 = vpack.c.b16 %v3144, %v3136
    %v4137 = vpack.c.b16 %v3145, %v3137
    %v4138 = vpack.c.b16 %v3146, %v3138
    %v4139 = vpack.c.b16 %v3147, %v3139
    %v4140 = vpack.c.b16 %v3148, %v3140
    %v4141 = vpack.c.b16 %v3149, %v3141
    %v4142 = vpack.c.b16 %v3150, %v3142
    %v4143 = vpack.c.b16 %v3159, %v3151
    %v4144 = vpack.c.b16 %v3160, %v3152
    %v4145 = vpack.c.b16 %v3161, %v3153
    %v4146 = vpack.c.b16 %v3162, %v3154
    %v4147 = vpack.c.b16 %v3163, %v3155
    %v4148 = vpack.c.b16 %v3164, %v3156
    %v4149 = vpack.c.b16 %v3165, %v3157
    %v4150 = vpack.c.b16 %v3166, %v3158
    %v4151 = vpack.c.b16 %v3175, %v3167
    %v4152 = vpack.c.b16 %v3176, %v3168
    %v4153 = vpack.c.b16 %v3177, %v3169
    %v4154 = vpack.c.b16 %v3178, %v3170
    %v4155 = vpack.c.b16 %v3179, %v3171
    %v4156 = vpack.c.b16 %v3180, %v3172
    %v4157 = vpack.c.b16 %v3181, %v3173
    %v4158 = vpack.c.b16 %v3182, %v3174
    %v4159 = vpack.c.b16 %v3191, %v3183
    %v4160 = vpack.c.b16 %v3192, %v3184
    %v4161 = vpack.c.b16 %v3193, %v3185
    %v4162 = vpack.c.b16 %v3194, %v3186
    %v4163 = vpack.c.b16 %v3195, %v3187
    %v4164 = vpack.c.b16 %v3196, %v3188
    %v4165 = vpack.c.b16 %v3197, %v3189
    %v4166 = vpack.c.b16 %v3198, %v3190
    %v4167 = vpack.c.b16 %v3207, %v3199
    %v4168 = vpack.c.b16 %v3208, %v3200
    %v4169 = vpack.c.b16 %v3209, %v3201
    %v4170 = vpack.c.b16 %v3210, %v3202
    %v4171 = vpack.c.b16 %v3211, %v3203
    %v4172 = vpack.c.b16 %v3212, %v3204
    %v4173 = vpack.c.b16 %v3213, %v3205
    %v4174 = vpack.c.b16 %v3214, %v3206
    %v4175 = vpack.c.b16 %v3223, %v3215
    %v4176 = vpack.c.b16 %v3224, %v3216
    %v4177 = vpack.c.b16 %v3225, %v3217
    %v4178 = vpack.c.b16 %v3226, %v3218
    %v4179 = vpack.c.b16 %v3227, %v3219
    %v4180 = vpack.c.b16 %v3228, %v3220
    %v4181 = vpack.c.b16 %v3229, %v3221
    %v4182 = vpack.c.b16 %v3230, %v3222
    %v4183 = vpack.c.b16 %v3239, %v3231
    %v4184 = vpack.c.b16 %v3240, %v3232
    %v4185 = vpack.c.b16 %v3241, %v3233
    %v4186 = vpack.c.b16 %v3242, %v3234
    %v4187 = vpack.c.b16 %v3243, %v3235
    %v4188 = vpack.c.b16 %v3244, %v3236
    %v4189 = vpack.c.b16 %v3245, %v3237
    %v4190 = vpack.c.b16 %v3246, %v3238
    %v4191 = vpack.c.b16 %v3255, %v3247
    %v4192 = vpack.c.b16 %v3256, %v3248
    %v4193 = vpack.c.b16 %v3257, %v3249
    %v4194 = vpack.c.b16 %v3258, %v3250
    %v4195 = vpack.c.b16 %v3259, %v3251
    %v4196 = vpack.c.b16 %v3260, %v3252
    %v4197 = vpack.c.b16 %v3261, %v3253
    %v4198 = vpack.c.b16 %v3262, %v3254
    %v4199 = vpack.c.b16 %v3271, %v3263
    %v4200 = vpack.c.b16 %v3272, %v3264
    %v4201 = vpack.c.b16 %v3273, %v3265
    %v4202 = vpack.c.b16 %v3274, %v3266
    %v4203 = vpack.c.b16 %v3275, %v3267
    %v4204 = vpack.c.b16 %v3276, %v3268
    %v4205 = vpack.c.b16 %v3277, %v3269
    %v4206 = vpack.c.b16 %v3278, %v3270
    %v4207 = vpack.c.b16 %v3287, %v3279
    %v4208 = vpack.c.b16 %v3288, %v3280
    %v4209 = vpack.c.b16 %v3289, %v3281
    %v4210 = vpack.c.b16 %v3290, %v3282
    %v4211 = vpack.c.b16 %v3291, %v3283
    %v4212 = vpack.c.b16 %v3292, %v3284
    %v4213 = vpack.c.b16 %v3293, %v3285
    %v4214 = vpack.c.b16 %v3294, %v3286
    %v4215 = vpack.c.b16 %v3303, %v3295
    %v4216 = vpack.c.b16 %v3304, %v3296
    %v4217 = vpack.c.b16 %v3305, %v3297
    %v4218 = vpack.c.b16 %v3306, %v3298
    %v4219 = vpack.c.b16 %v3307, %v3299
    %v4220 = vpack.c.b16 %v3308, %v3300
    %v4221 = vpack.c.b16 %v3309, %v3301
    %v4222 = vpack.c.b16 %v3310, %v3302
    %v4223 = vpack.c.b16 %v3319, %v3311
    %v4224 = vpack.c.b16 %v3320, %v3312
    %v4225 = vpack.c.b16 %v3321, %v3313
    %v4226 = vpack.c.b16 %v3322, %v3314
    %v4227 = vpack.c.b16 %v3323, %v3315
    %v4228 = vpack.c.b16 %v3324, %v3316
    %v4229 = vpack.c.b16 %v3325, %v3317
    %v4230 = vpack.c.b16 %v3326, %v3318
    %v4231 = vpack.c.b16 %v3335, %v3327
    %v4232 = vpack.c.b16 %v3336, %v3328
    %v4233 = vpack.c.b16 %v3337, %v3329
    %v4234 = vpack.c.b16 %v3338, %v3330
    %v4235 = vpack.c.b16 %v3339, %v3331
    %v4236 = vpack.c.b16 %v3340, %v3332
    %v4237 = vpack.c.b16 %v3341, %v3333
    %v4238 = vpack.c.b16 %v3342, %v3334
    %v4239 = vpack.c.b16 %v3351, %v3343
    %v4240 = vpack.c.b16 %v3352, %v3344
    %v4241 = vpack.c.b16 %v3353, %v3345
    %v4242 = vpack.c.b16 %v3354, %v3346
    %v4243 = vpack.c.b16 %v3355, %v3347
    %v4244 = vpack.c.b16 %v3356, %v3348
    %v4245 = vpack.c.b16 %v3357, %v3349
    %v4246 = vpack.c.b16 %v3358, %v3350
    %v4247 = vpack.c.b16 %v3367, %v3359
    %v4248 = vpack.c.b16 %v3368, %v3360
    %v4249 = vpack.c.b16 %v3369, %v3361
    %v4250 = vpack.c.b16 %v3370, %v3362
    %v4251 = vpack.c.b16 %v3371, %v3363
    %v4252 = vpack.c.b16 %v3372, %v3364
    %v4253 = vpack.c.b16 %v3373, %v3365
    %v4254 = vpack.c.b16 %v3374, %v3366
    %v4255 = vpack.c.b16 %v3383, %v3375
    %v4256 = vpack.c.b16 %v3384, %v3376
    %v4257 = vpack.c.b16 %v3385, %v3377
    %v4258 = vpack.c.b16 %v3386, %v3378
    %v4259 = vpack.c.b16 %v3387, %v3379
    %v4260 = vpack.c.b16 %v3388, %v3380
    %v4261 = vpack.c.b16 %v3389, %v3381
    %v4262 = vpack.c.b16 %v3390, %v3382
    %v4263 = vpack.c.b16 %v3399, %v3391
    %v4264 = vpack.c.b16 %v3400, %v3392
    %v4265 = vpack.c.b16 %v3401, %v3393
    %v4266 = vpack.c.b16 %v3402, %v3394
    %v4267 = vpack.c.b16 %v3403, %v3395
    %v4268 = vpack.c.b16 %v3404, %v3396
    %v4269 = vpack.c.b16 %v3405, %v3397
    %v4270 = vpack.c.b16 %v3406, %v3398
    %v4271 = vpack.c.b16 %v3415, %v3407
    %v4272 = vpack.c.b16 %v3416, %v3408
    %v4273 = vpack.c.b16 %v3417, %v3409
    %v4274 = vpack.c.b16 %v3418, %v3410
    %v4275 = vpack.c.b16 %v3419, %v3411
    %v4276 = vpack.c.b16 %v3420, %v3412
    %v4277 = vpack.c.b16 %v3421, %v3413
    %v4278 = vpack.c.b16 %v3422, %v3414
    %v4279 = vpack.c.b16 %v3431, %v3423
    %v4280 = vpack.c.b16 %v3432, %v3424
    %v4281 = vpack.c.b16 %v3433, %v3425
    %v4282 = vpack.c.b16 %v3434, %v3426
    %v4283 = vpack.c.b16 %v3435, %v3427
    %v4284 = vpack.c.b16 %v3436, %v3428
    %v4285 = vpack.c.b16 %v3437, %v3429
    %v4286 = vpack.c.b16 %v3438, %v3430
    %v4287 = vpack.c.b16 %v3447, %v3439
    %v4288 = vpack.c.b16 %v3448, %v3440
    %v4289 = vpack.c.b16 %v3449, %v3441
    %v4290 = vpack.c.b16 %v3450, %v3442
    %v4291 = vpack.c.b16 %v3451, %v3443
    %v4292 = vpack.c.b16 %v3452, %v3444
    %v4293 = vpack.c.b16 %v3453, %v3445
    %v4294 = vpack.c.b16 %v3454, %v3446
    %v4295 = vpack.c.b16 %v3463, %v3455
    %v4296 = vpack.c.b16 %v3464, %v3456
    %v4297 = vpack.c.b16 %v3465, %v3457
    %v4298 = vpack.c.b16 %v3466, %v3458
    %v4299 = vpack.c.b16 %v3467, %v3459
    %v4300 = vpack.c.b16 %v3468, %v3460
    %v4301 = vpack.c.b16 %v3469, %v3461
    %v4302 = vpack.c.b16 %v3470, %v3462
    %v4303 = vpack.c.b16 %v3479, %v3471
    %v4304 = vpack.c.b16 %v3480, %v3472
    %v4305 = vpack.c.b16 %v3481, %v3473
    %v4306 = vpack.c.b16 %v3482, %v3474
    %v4307 = vpack.c.b16 %v3483, %v3475
    %v4308 = vpack.c.b16 %v3484, %v3476
    %v4309 = vpack.c.b16 %v3485, %v3477
    %v4310 = vpack.c.b16 %v3486, %v3478
    %v4311 = vpack.c.b16 %v3495, %v3487
    %v4312 = vpack.c.b16 %v3496, %v3488
    %v4313 = vpack.c.b16 %v3497, %v3489
    %v4314 = vpack.c.b16 %v3498, %v3490
    %v4315 = vpack.c.b16 %v3499, %v3491
    %v4316 = vpack.c.b16 %v3500, %v3492
    %v4317 = vpack.c.b16 %v3501, %v3493
    %v4318 = vpack.c.b16 %v3502, %v3494
    %v4319 = vpack.c.b16 %v3511, %v3503
    %v4320 = vpack.c.b16 %v3512, %v3504
    %v4321 = vpack.c.b16 %v3513, %v3505
    %v4322 = vpack.c.b16 %v3514, %v3506
    %v4323 = vpack.c.b16 %v3515, %v3507
    %v4324 = vpack.c.b16 %v3516, %v3508
    %v4325 = vpack.c.b16 %v3517, %v3509
    %v4326 = vpack.c.b16 %v3518, %v3510
    %v4327 = vpack.c.b16 %v3527, %v3519
    %v4328 = vpack.c.b16 %v3528, %v3520
    %v4329 = vpack.c.b16 %v3529, %v3521
    %v4330 = vpack.c.b16 %v3530, %v3522
    %v4331 = vpack.c.b16 %v3531, %v3523
    %v4332 = vpack.c.b16 %v3532, %v3524
    %v4333 = vpack.c.b16 %v3533, %v3525
    %v4334 = vpack.c.b16 %v3534, %v3526
    %v4335 = vpack.c.b16 %v3543, %v3535
    %v4336 = vpack.c.b16 %v3544, %v3536
    %v4337 = vpack.c.b16 %v3545, %v3537
    %v4338 = vpack.c.b16 %v3546, %v3538
    %v4339 = vpack.c.b16 %v3547, %v3539
    %v4340 = vpack.c.b16 %v3548, %v3540
    %v4341 = vpack.c.b16 %v3549, %v3541
    %v4342 = vpack.c.b16 %v3550, %v3542
    %v4343 = vpack.c.b16 %v3559, %v3551
    %v4344 = vpack.c.b16 %v3560, %v3552
    %v4345 = vpack.c.b16 %v3561, %v3553
    %v4346 = vpack.c.b16 %v3562, %v3554
    %v4347 = vpack.c.b16 %v3563, %v3555
    %v4348 = vpack.c.b16 %v3564, %v3556
    %v4349 = vpack.c.b16 %v3565, %v3557
    %v4350 = vpack.c.b16 %v3566, %v3558
    %v4351 = vpack.c.b16 %v3575, %v3567
    %v4352 = vpack.c.b16 %v3576, %v3568
    %v4353 = vpack.c.b16 %v3577, %v3569
    %v4354 = vpack.c.b16 %v3578, %v3570
    %v4355 = vpack.c.b16 %v3579, %v3571
    %v4356 = vpack.c.b16 %v3580, %v3572
    %v4357 = vpack.c.b16 %v3581, %v3573
    %v4358 = vpack.c.b16 %v3582, %v3574
    %v4359 = vpack.c.b16 %v3591, %v3583
    %v4360 = vpack.c.b16 %v3592, %v3584
    %v4361 = vpack.c.b16 %v3593, %v3585
    %v4362 = vpack.c.b16 %v3594, %v3586
    %v4363 = vpack.c.b16 %v3595, %v3587
    %v4364 = vpack.c.b16 %v3596, %v3588
    %v4365 = vpack.c.b16 %v3597, %v3589
    %v4366 = vpack.c.b16 %v3598, %v3590
    %5135 = vmatprep.subr.bf16.mxu0 %v3600
    %5136 = vmatpush1.bf16.msra.mxu0 %v3599
    %5137 = vmatprep.subr.bf16.mxu0 %v3608
    %5138 = vmatpush1.bf16.msra.mxu0 %v3607
    %5139 = vmatprep.subr.bf16.mxu0 %v3616
    %5140 = vmatpush1.bf16.msra.mxu0 %v3615
    %5141 = vmatprep.subr.bf16.mxu0 %v3624
    %5142 = vmatpush1.bf16.msra.mxu0 %v3623
    %5143 = vmatprep.subr.bf16.mxu0 %v3632
    %5144 = vmatpush1.bf16.msra.mxu0 %v3631
    %5145 = vmatprep.subr.bf16.mxu0 %v3640
    %5146 = vmatpush1.bf16.msra.mxu0 %v3639
    %5147 = vmatprep.subr.bf16.mxu0 %v3648
    %5148 = vmatpush1.bf16.msra.mxu0 %v3647
    %5149 = vmatprep.subr.bf16.mxu0 %v3656
    %5150 = vmatpush1.bf16.msra.mxu0 %v3655
    %5151 = vmatprep.subr.bf16.mxu0 %v3664
    %5152 = vmatpush1.bf16.msra.mxu0 %v3663
    %5153 = vmatprep.subr.bf16.mxu0 %v3672
    %5154 = vmatpush1.bf16.msra.mxu0 %v3671
    %5155 = vmatprep.subr.bf16.mxu0 %v3680
    %5156 = vmatpush1.bf16.msra.mxu0 %v3679
    %5157 = vmatprep.subr.bf16.mxu0 %v3688
    %5158 = vmatpush1.bf16.msra.mxu0 %v3687
    %5159 = vmatprep.subr.bf16.mxu0 %v3696
    %5160 = vmatpush1.bf16.msra.mxu0 %v3695
    %5161 = vmatprep.subr.bf16.mxu0 %v3704
    %5162 = vmatpush1.bf16.msra.mxu0 %v3703
    %5163 = vmatprep.subr.bf16.mxu0 %v3712
    %5164 = vmatpush1.bf16.msra.mxu0 %v3711
    %5165 = vmatprep.subr.bf16.mxu0 %v3720
    %5166 = vmatpush1.bf16.msra.mxu0 %v3719
    %5167 = vmatprep.mubr.bf16.mxu0 %v390
    %5168 = vmatmul.mubr.bf16.gmra.mrb[0].mxu0 %v389
    %v5169 = vpop.f32.mrb[0].mxu0
    %v5170 = vadd.f32 %v1258, %v5169
    %v5171 = vpop.f32.mrb[0].mxu0
    %v5172 = vadd.f32 %v1262, %v5171
    %v5173 = vpop.f32.mrb[0].mxu0
    %v5174 = vadd.f32 %v1258, %v5173
    %v5175 = vpop.f32.mrb[0].mxu0
    %v5176 = vadd.f32 %v1262, %v5175
    %5177 = vmatprep.mubr.bf16.mxu0 %v402
    %5178 = vmatmul.mubr.bf16.gmra.mrb[0].mxu0 %v401
    %v5179 = vpop.f32.mrb[0].mxu0
    %v5180 = vadd.f32 %v1258, %v5179
    %v5181 = vpop.f32.mrb[0].mxu0
    %v5182 = vadd.f32 %v1262, %v5181
    %v5183 = vpop.f32.mrb[0].mxu0
    %v5184 = vadd.f32 %v1258, %v5183
    %v5185 = vpop.f32.mrb[0].mxu0
    %v5186 = vadd.f32 %v1262, %v5185
    %5187 = vmatprep.mubr.bf16.mxu0 %v414
    %5188 = vmatmul.mubr.bf16.gmra.mrb[0].mxu0 %v413
    %v5189 = vpop.f32.mrb[0].mxu0
    %v5190 = vadd.f32 %v1258, %v5189
    %v5191 = vpop.f32.mrb[0].mxu0
    %v5192 = vadd.f32 %v1262, %v5191
    %v5193 = vpop.f32.mrb[0].mxu0
    %v5194 = vadd.f32 %v1258, %v5193
    %v5195 = vpop.f32.mrb[0].mxu0
    %v5196 = vadd.f32 %v1262, %v5195
    %5197 = vmatprep.mubr.bf16.mxu0 %v426
    %5198 = vmatmul.mubr.bf16.gmra.mrb[0].mxu0 %v425
    %v5199 = vpop.f32.mrb[0].mxu0
    %v5200 = vadd.f32 %v1258, %v5199
    %v5201 = vpop.f32.mrb[0].mxu0
    %v5202 = vadd.f32 %v1262, %v5201
    %v5203 = vpop.f32.mrb[0].mxu0
    %v5204 = vadd.f32 %v1258, %v5203
    %v5205 = vpop.f32.mrb[0].mxu0
    %v5206 = vadd.f32 %v1262, %v5205
    %5207 = vmatprep.mubr.bf16.mxu0 %v438
    %5208 = vmatmul.mubr.bf16.gmra.mrb[0].mxu0 %v437
    %v5209 = vpop.f32.mrb[0].mxu0
    %v5210 = vadd.f32 %v1258, %v5209
    %v5211 = vpop.f32.mrb[0].mxu0
    %v5212 = vadd.f32 %v1262, %v5211
    %v5213 = vpop.f32.mrb[0].mxu0
    %v5214 = vadd.f32 %v1258, %v5213
    %v5215 = vpop.f32.mrb[0].mxu0
    %v5216 = vadd.f32 %v1262, %v5215
    %5217 = vmatprep.mubr.bf16.mxu0 %v450
    %5218 = vmatmul.mubr.bf16.gmra.mrb[0].mxu0 %v449
    %v5219 = vpop.f32.mrb[0].mxu0
    %v5220 = vadd.f32 %v1258, %v5219
    %v5221 = vpop.f32.mrb[0].mxu0
    %v5222 = vadd.f32 %v1262, %v5221
    %v5223 = vpop.f32.mrb[0].mxu0
    %v5224 = vadd.f32 %v1258, %v5223
    %v5225 = vpop.f32.mrb[0].mxu0
    %v5226 = vadd.f32 %v1262, %v5225
    %5227 = vmatprep.mubr.bf16.mxu0 %v462
    %5228 = vmatmul.mubr.bf16.gmra.mrb[0].mxu0 %v461
    %v5229 = vpop.f32.mrb[0].mxu0
    %v5230 = vadd.f32 %v1258, %v5229
    %v5231 = vpop.f32.mrb[0].mxu0
    %v5232 = vadd.f32 %v1262, %v5231
    %v5233 = vpop.f32.mrb[0].mxu0
    %v5234 = vadd.f32 %v1258, %v5233
    %v5235 = vpop.f32.mrb[0].mxu0
    %v5236 = vadd.f32 %v1262, %v5235
    %5237 = vmatprep.mubr.bf16.mxu0 %v474
    %5238 = vmatmul.mubr.bf16.gmra.mrb[0].mxu0 %v473
    %v5239 = vpop.f32.mrb[0].mxu0
    %v5240 = vadd.f32 %v1258, %v5239
    %v5241 = vpop.f32.mrb[0].mxu0
    %v5242 = vadd.f32 %v1262, %v5241
    %v5243 = vpop.f32.mrb[0].mxu0
    %v5244 = vadd.f32 %v1258, %v5243
    %v5245 = vpop.f32.mrb[0].mxu0
    %v5246 = vadd.f32 %v1262, %v5245
    %5247 = vdwg.mxu0
    %5248 = vmatprep.subr.bf16.mxu0 %v3728
    %5249 = vmatpush1.bf16.msra.mxu0 %v3727
    %5250 = vmatprep.subr.bf16.mxu0 %v3736
    %5251 = vmatpush1.bf16.msra.mxu0 %v3735
    %5252 = vmatprep.subr.bf16.mxu0 %v3744
    %5253 = vmatpush1.bf16.msra.mxu0 %v3743
    %5254 = vmatprep.subr.bf16.mxu0 %v3752
    %5255 = vmatpush1.bf16.msra.mxu0 %v3751
    %5256 = vmatprep.subr.bf16.mxu0 %v3760
    %5257 = vmatpush1.bf16.msra.mxu0 %v3759
    %5258 = vmatprep.subr.bf16.mxu0 %v3768
    %5259 = vmatpush1.bf16.msra.mxu0 %v3767
    %5260 = vmatprep.subr.bf16.mxu0 %v3776
    %5261 = vmatpush1.bf16.msra.mxu0 %v3775
    %5262 = vmatprep.subr.bf16.mxu0 %v3784
    %5263 = vmatpush1.bf16.msra.mxu0 %v3783
    %5264 = vmatprep.subr.bf16.mxu0 %v3792
    %5265 = vmatpush1.bf16.msra.mxu0 %v3791
    %5266 = vmatprep.subr.bf16.mxu0 %v3800
    %5267 = vmatpush1.bf16.msra.mxu0 %v3799
    %5268 = vmatprep.subr.bf16.mxu0 %v3808
    %5269 = vmatpush1.bf16.msra.mxu0 %v3807
    %5270 = vmatprep.subr.bf16.mxu0 %v3816
    %5271 = vmatpush1.bf16.msra.mxu0 %v3815
    %5272 = vmatprep.subr.bf16.mxu0 %v3824
    %5273 = vmatpush1.bf16.msra.mxu0 %v3823
    %5274 = vmatprep.subr.bf16.mxu0 %v3832
    %5275 = vmatpush1.bf16.msra.mxu0 %v3831
    %5276 = vmatprep.subr.bf16.mxu0 %v3840
    %5277 = vmatpush1.bf16.msra.mxu0 %v3839
    %5278 = vmatprep.subr.bf16.mxu0 %v3848
    %5279 = vmatpush1.bf16.msra.mxu0 %v3847
    %5280 = vmatprep.mubr.bf16.mxu0 %v392
    %5281 = vmatmul.mubr.bf16.gmra.mrb[0].mxu0 %v391
    %v5282 = vpop.f32.mrb[0].mxu0
    %v5283 = vadd.f32 %v5170, %v5282
    %v5284 = vpop.f32.mrb[0].mxu0
    %v5285 = vadd.f32 %v5172, %v5284
    %v5286 = vpop.f32.mrb[0].mxu0
    %v5287 = vadd.f32 %v5174, %v5286
    %v5288 = vpop.f32.mrb[0].mxu0
    %v5289 = vadd.f32 %v5176, %v5288
    %5290 = vmatprep.mubr.bf16.mxu0 %v404
    %5291 = vmatmul.mubr.bf16.gmra.mrb[0].mxu0 %v403
    %v5292 = vpop.f32.mrb[0].mxu0
    %v5293 = vadd.f32 %v5180, %v5292
    %v5294 = vpop.f32.mrb[0].mxu0
    %v5295 = vadd.f32 %v5182, %v5294
    %v5296 = vpop.f32.mrb[0].mxu0
    %v5297 = vadd.f32 %v5184, %v5296
    %v5298 = vpop.f32.mrb[0].mxu0
    %v5299 = vadd.f32 %v5186, %v5298
    %5300 = vmatprep.mubr.bf16.mxu0 %v416
    %5301 = vmatmul.mubr.bf16.gmra.mrb[0].mxu0 %v415
    %v5302 = vpop.f32.mrb[0].mxu0
    %v5303 = vadd.f32 %v5190, %v5302
    %v5304 = vpop.f32.mrb[0].mxu0
    %v5305 = vadd.f32 %v5192, %v5304
    %v5306 = vpop.f32.mrb[0].mxu0
    %v5307 = vadd.f32 %v5194, %v5306
    %v5308 = vpop.f32.mrb[0].mxu0
    %v5309 = vadd.f32 %v5196, %v5308
    %5310 = vmatprep.mubr.bf16.mxu0 %v428
    %5311 = vmatmul.mubr.bf16.gmra.mrb[0].mxu0 %v427
    %v5312 = vpop.f32.mrb[0].mxu0
    %v5313 = vadd.f32 %v5200, %v5312
    %v5314 = vpop.f32.mrb[0].mxu0
    %v5315 = vadd.f32 %v5202, %v5314
    %v5316 = vpop.f32.mrb[0].mxu0
    %v5317 = vadd.f32 %v5204, %v5316
    %v5318 = vpop.f32.mrb[0].mxu0
    %v5319 = vadd.f32 %v5206, %v5318
    %5320 = vmatprep.mubr.bf16.mxu0 %v440
    %5321 = vmatmul.mubr.bf16.gmra.mrb[0].mxu0 %v439
    %v5322 = vpop.f32.mrb[0].mxu0
    %v5323 = vadd.f32 %v5210, %v5322
    %v5324 = vpop.f32.mrb[0].mxu0
    %v5325 = vadd.f32 %v5212, %v5324
    %v5326 = vpop.f32.mrb[0].mxu0
    %v5327 = vadd.f32 %v5214, %v5326
    %v5328 = vpop.f32.mrb[0].mxu0
    %v5329 = vadd.f32 %v5216, %v5328
    %5330 = vmatprep.mubr.bf16.mxu0 %v452
    %5331 = vmatmul.mubr.bf16.gmra.mrb[0].mxu0 %v451
    %v5332 = vpop.f32.mrb[0].mxu0
    %v5333 = vadd.f32 %v5220, %v5332
    %v5334 = vpop.f32.mrb[0].mxu0
    %v5335 = vadd.f32 %v5222, %v5334
    %v5336 = vpop.f32.mrb[0].mxu0
    %v5337 = vadd.f32 %v5224, %v5336
    %v5338 = vpop.f32.mrb[0].mxu0
    %v5339 = vadd.f32 %v5226, %v5338
    %5340 = vmatprep.mubr.bf16.mxu0 %v464
    %5341 = vmatmul.mubr.bf16.gmra.mrb[0].mxu0 %v463
    %v5342 = vpop.f32.mrb[0].mxu0
    %v5343 = vadd.f32 %v5230, %v5342
    %v5344 = vpop.f32.mrb[0].mxu0
    %v5345 = vadd.f32 %v5232, %v5344
    %v5346 = vpop.f32.mrb[0].mxu0
    %v5347 = vadd.f32 %v5234, %v5346
    %v5348 = vpop.f32.mrb[0].mxu0
    %v5349 = vadd.f32 %v5236, %v5348
    %5350 = vmatprep.mubr.bf16.mxu0 %v476
    %5351 = vmatmul.mubr.bf16.gmra.mrb[0].mxu0 %v475
    %v5352 = vpop.f32.mrb[0].mxu0
    %v5353 = vadd.f32 %v5240, %v5352
    %v5354 = vpop.f32.mrb[0].mxu0
    %v5355 = vadd.f32 %v5242, %v5354
    %v5356 = vpop.f32.mrb[0].mxu0
    %v5357 = vadd.f32 %v5244, %v5356
    %v5358 = vpop.f32.mrb[0].mxu0
    %v5359 = vadd.f32 %v5246, %v5358
    %5360 = vdwg.mxu0
    %5361 = vmatprep.subr.bf16.mxu0 %v3856
    %5362 = vmatpush1.bf16.msra.mxu0 %v3855
    %5363 = vmatprep.subr.bf16.mxu0 %v3864
    %5364 = vmatpush1.bf16.msra.mxu0 %v3863
    %5365 = vmatprep.subr.bf16.mxu0 %v3872
    %5366 = vmatpush1.bf16.msra.mxu0 %v3871
    %5367 = vmatprep.subr.bf16.mxu0 %v3880
    %5368 = vmatpush1.bf16.msra.mxu0 %v3879
    %5369 = vmatprep.subr.bf16.mxu0 %v3888
    %5370 = vmatpush1.bf16.msra.mxu0 %v3887
    %5371 = vmatprep.subr.bf16.mxu0 %v3896
    %5372 = vmatpush1.bf16.msra.mxu0 %v3895
    %5373 = vmatprep.subr.bf16.mxu0 %v3904
    %5374 = vmatpush1.bf16.msra.mxu0 %v3903
    %5375 = vmatprep.subr.bf16.mxu0 %v3912
    %5376 = vmatpush1.bf16.msra.mxu0 %v3911
    %5377 = vmatprep.subr.bf16.mxu0 %v3920
    %5378 = vmatpush1.bf16.msra.mxu0 %v3919
    %5379 = vmatprep.subr.bf16.mxu0 %v3928
    %5380 = vmatpush1.bf16.msra.mxu0 %v3927
    %5381 = vmatprep.subr.bf16.mxu0 %v3936
    %5382 = vmatpush1.bf16.msra.mxu0 %v3935
    %5383 = vmatprep.subr.bf16.mxu0 %v3944
    %5384 = vmatpush1.bf16.msra.mxu0 %v3943
    %5385 = vmatprep.subr.bf16.mxu0 %v3952
    %5386 = vmatpush1.bf16.msra.mxu0 %v3951
    %5387 = vmatprep.subr.bf16.mxu0 %v3960
    %5388 = vmatpush1.bf16.msra.mxu0 %v3959
    %5389 = vmatprep.subr.bf16.mxu0 %v3968
    %5390 = vmatpush1.bf16.msra.mxu0 %v3967
    %5391 = vmatprep.subr.bf16.mxu0 %v3976
    %5392 = vmatpush1.bf16.msra.mxu0 %v3975
    %5393 = vmatprep.mubr.bf16.mxu0 %v394
    %5394 = vmatmul.mubr.bf16.gmra.mrb[0].mxu0 %v393
    %v5395 = vpop.f32.mrb[0].mxu0
    %v5396 = vadd.f32 %v5283, %v5395
    %v5397 = vpop.f32.mrb[0].mxu0
    %v5398 = vadd.f32 %v5285, %v5397
    %v5399 = vpop.f32.mrb[0].mxu0
    %v5400 = vadd.f32 %v5287, %v5399
    %v5401 = vpop.f32.mrb[0].mxu0
    %v5402 = vadd.f32 %v5289, %v5401
    %5403 = vmatprep.mubr.bf16.mxu0 %v406
    %5404 = vmatmul.mubr.bf16.gmra.mrb[0].mxu0 %v405
    %v5405 = vpop.f32.mrb[0].mxu0
    %v5406 = vadd.f32 %v5293, %v5405
    %v5407 = vpop.f32.mrb[0].mxu0
    %v5408 = vadd.f32 %v5295, %v5407
    %v5409 = vpop.f32.mrb[0].mxu0
    %v5410 = vadd.f32 %v5297, %v5409
    %v5411 = vpop.f32.mrb[0].mxu0
    %v5412 = vadd.f32 %v5299, %v5411
    %5413 = vmatprep.mubr.bf16.mxu0 %v418
    %5414 = vmatmul.mubr.bf16.gmra.mrb[0].mxu0 %v417
    %v5415 = vpop.f32.mrb[0].mxu0
    %v5416 = vadd.f32 %v5303, %v5415
    %v5417 = vpop.f32.mrb[0].mxu0
    %v5418 = vadd.f32 %v5305, %v5417
    %v5419 = vpop.f32.mrb[0].mxu0
    %v5420 = vadd.f32 %v5307, %v5419
    %v5421 = vpop.f32.mrb[0].mxu0
    %v5422 = vadd.f32 %v5309, %v5421
    %5423 = vmatprep.mubr.bf16.mxu0 %v430
    %5424 = vmatmul.mubr.bf16.gmra.mrb[0].mxu0 %v429
    %v5425 = vpop.f32.mrb[0].mxu0
    %v5426 = vadd.f32 %v5313, %v5425
    %v5427 = vpop.f32.mrb[0].mxu0
    %v5428 = vadd.f32 %v5315, %v5427
    %v5429 = vpop.f32.mrb[0].mxu0
    %v5430 = vadd.f32 %v5317, %v5429
    %v5431 = vpop.f32.mrb[0].mxu0
    %v5432 = vadd.f32 %v5319, %v5431
    %5433 = vmatprep.mubr.bf16.mxu0 %v442
    %5434 = vmatmul.mubr.bf16.gmra.mrb[0].mxu0 %v441
    %v5435 = vpop.f32.mrb[0].mxu0
    %v5436 = vadd.f32 %v5323, %v5435
    %v5437 = vpop.f32.mrb[0].mxu0
    %v5438 = vadd.f32 %v5325, %v5437
    %v5439 = vpop.f32.mrb[0].mxu0
    %v5440 = vadd.f32 %v5327, %v5439
    %v5441 = vpop.f32.mrb[0].mxu0
    %v5442 = vadd.f32 %v5329, %v5441
    %5443 = vmatprep.mubr.bf16.mxu0 %v454
    %5444 = vmatmul.mubr.bf16.gmra.mrb[0].mxu0 %v453
    %v5445 = vpop.f32.mrb[0].mxu0
    %v5446 = vadd.f32 %v5333, %v5445
    %v5447 = vpop.f32.mrb[0].mxu0
    %v5448 = vadd.f32 %v5335, %v5447
    %v5449 = vpop.f32.mrb[0].mxu0
    %v5450 = vadd.f32 %v5337, %v5449
    %v5451 = vpop.f32.mrb[0].mxu0
    %v5452 = vadd.f32 %v5339, %v5451
    %5453 = vmatprep.mubr.bf16.mxu0 %v466
    %5454 = vmatmul.mubr.bf16.gmra.mrb[0].mxu0 %v465
    %v5455 = vpop.f32.mrb[0].mxu0
    %v5456 = vadd.f32 %v5343, %v5455
    %v5457 = vpop.f32.mrb[0].mxu0
    %v5458 = vadd.f32 %v5345, %v5457
    %v5459 = vpop.f32.mrb[0].mxu0
    %v5460 = vadd.f32 %v5347, %v5459
    %v5461 = vpop.f32.mrb[0].mxu0
    %v5462 = vadd.f32 %v5349, %v5461
    %5463 = vmatprep.mubr.bf16.mxu0 %v478
    %5464 = vmatmul.mubr.bf16.gmra.mrb[0].mxu0 %v477
    %v5465 = vpop.f32.mrb[0].mxu0
    %v5466 = vadd.f32 %v5353, %v5465
    %v5467 = vpop.f32.mrb[0].mxu0
    %v5468 = vadd.f32 %v5355, %v5467
    %v5469 = vpop.f32.mrb[0].mxu0
    %v5470 = vadd.f32 %v5357, %v5469
    %v5471 = vpop.f32.mrb[0].mxu0
    %v5472 = vadd.f32 %v5359, %v5471
    %5473 = vdwg.mxu0
    %5474 = vmatprep.subr.bf16.mxu0 %v3984
    %5475 = vmatpush1.bf16.msra.mxu0 %v3983
    %5476 = vmatprep.subr.bf16.mxu0 %v3992
    %5477 = vmatpush1.bf16.msra.mxu0 %v3991
    %5478 = vmatprep.subr.bf16.mxu0 %v4000
    %5479 = vmatpush1.bf16.msra.mxu0 %v3999
    %5480 = vmatprep.subr.bf16.mxu0 %v4008
    %5481 = vmatpush1.bf16.msra.mxu0 %v4007
    %5482 = vmatprep.subr.bf16.mxu0 %v4016
    %5483 = vmatpush1.bf16.msra.mxu0 %v4015
    %5484 = vmatprep.subr.bf16.mxu0 %v4024
    %5485 = vmatpush1.bf16.msra.mxu0 %v4023
    %5486 = vmatprep.subr.bf16.mxu0 %v4032
    %5487 = vmatpush1.bf16.msra.mxu0 %v4031
    %5488 = vmatprep.subr.bf16.mxu0 %v4040
    %5489 = vmatpush1.bf16.msra.mxu0 %v4039
    %5490 = vmatprep.subr.bf16.mxu0 %v4048
    %5491 = vmatpush1.bf16.msra.mxu0 %v4047
    %5492 = vmatprep.subr.bf16.mxu0 %v4056
    %5493 = vmatpush1.bf16.msra.mxu0 %v4055
    %5494 = vmatprep.subr.bf16.mxu0 %v4064
    %5495 = vmatpush1.bf16.msra.mxu0 %v4063
    %5496 = vmatprep.subr.bf16.mxu0 %v4072
    %5497 = vmatpush1.bf16.msra.mxu0 %v4071
    %5498 = vmatprep.subr.bf16.mxu0 %v4080
    %5499 = vmatpush1.bf16.msra.mxu0 %v4079
    %5500 = vmatprep.subr.bf16.mxu0 %v4088
    %5501 = vmatpush1.bf16.msra.mxu0 %v4087
    %5502 = vmatprep.subr.bf16.mxu0 %v4096
    %5503 = vmatpush1.bf16.msra.mxu0 %v4095
    %5504 = vmatprep.subr.bf16.mxu0 %v4104
    %5505 = vmatpush1.bf16.msra.mxu0 %v4103
    %5506 = vmatprep.mubr.bf16.mxu0 %v396
    %5507 = vmatmul.mubr.bf16.gmra.mrb[0].mxu0 %v395
    %v5508 = vpop.f32.mrb[0].mxu0
    %v5509 = vadd.f32 %v5396, %v5508
    %v5510 = vpop.f32.mrb[0].mxu0
    %v5511 = vadd.f32 %v5398, %v5510
    %v5512 = vpop.f32.mrb[0].mxu0
    %v5513 = vadd.f32 %v5400, %v5512
    %v5514 = vpop.f32.mrb[0].mxu0
    %v5515 = vadd.f32 %v5402, %v5514
    %5516 = vmatprep.mubr.bf16.mxu0 %v408
    %5517 = vmatmul.mubr.bf16.gmra.mrb[0].mxu0 %v407
    %v5518 = vpop.f32.mrb[0].mxu0
    %v5519 = vadd.f32 %v5406, %v5518
    %v5520 = vpop.f32.mrb[0].mxu0
    %v5521 = vadd.f32 %v5408, %v5520
    %v5522 = vpop.f32.mrb[0].mxu0
    %v5523 = vadd.f32 %v5410, %v5522
    %v5524 = vpop.f32.mrb[0].mxu0
    %v5525 = vadd.f32 %v5412, %v5524
    %5526 = vmatprep.mubr.bf16.mxu0 %v420
    %5527 = vmatmul.mubr.bf16.gmra.mrb[0].mxu0 %v419
    %v5528 = vpop.f32.mrb[0].mxu0
    %v5529 = vadd.f32 %v5416, %v5528
    %v5530 = vpop.f32.mrb[0].mxu0
    %v5531 = vadd.f32 %v5418, %v5530
    %v5532 = vpop.f32.mrb[0].mxu0
    %v5533 = vadd.f32 %v5420, %v5532
    %v5534 = vpop.f32.mrb[0].mxu0
    %v5535 = vadd.f32 %v5422, %v5534
    %5536 = vmatprep.mubr.bf16.mxu0 %v432
    %5537 = vmatmul.mubr.bf16.gmra.mrb[0].mxu0 %v431
    %v5538 = vpop.f32.mrb[0].mxu0
    %v5539 = vadd.f32 %v5426, %v5538
    %v5540 = vpop.f32.mrb[0].mxu0
    %v5541 = vadd.f32 %v5428, %v5540
    %v5542 = vpop.f32.mrb[0].mxu0
    %v5543 = vadd.f32 %v5430, %v5542
    %v5544 = vpop.f32.mrb[0].mxu0
    %v5545 = vadd.f32 %v5432, %v5544
    %5546 = vmatprep.mubr.bf16.mxu0 %v444
    %5547 = vmatmul.mubr.bf16.gmra.mrb[0].mxu0 %v443
    %v5548 = vpop.f32.mrb[0].mxu0
    %v5549 = vadd.f32 %v5436, %v5548
    %v5550 = vpop.f32.mrb[0].mxu0
    %v5551 = vadd.f32 %v5438, %v5550
    %v5552 = vpop.f32.mrb[0].mxu0
    %v5553 = vadd.f32 %v5440, %v5552
    %v5554 = vpop.f32.mrb[0].mxu0
    %v5555 = vadd.f32 %v5442, %v5554
    %5556 = vmatprep.mubr.bf16.mxu0 %v456
    %5557 = vmatmul.mubr.bf16.gmra.mrb[0].mxu0 %v455
    %v5558 = vpop.f32.mrb[0].mxu0
    %v5559 = vadd.f32 %v5446, %v5558
    %v5560 = vpop.f32.mrb[0].mxu0
    %v5561 = vadd.f32 %v5448, %v5560
    %v5562 = vpop.f32.mrb[0].mxu0
    %v5563 = vadd.f32 %v5450, %v5562
    %v5564 = vpop.f32.mrb[0].mxu0
    %v5565 = vadd.f32 %v5452, %v5564
    %5566 = vmatprep.mubr.bf16.mxu0 %v468
    %5567 = vmatmul.mubr.bf16.gmra.mrb[0].mxu0 %v467
    %v5568 = vpop.f32.mrb[0].mxu0
    %v5569 = vadd.f32 %v5456, %v5568
    %v5570 = vpop.f32.mrb[0].mxu0
    %v5571 = vadd.f32 %v5458, %v5570
    %v5572 = vpop.f32.mrb[0].mxu0
    %v5573 = vadd.f32 %v5460, %v5572
    %v5574 = vpop.f32.mrb[0].mxu0
    %v5575 = vadd.f32 %v5462, %v5574
    %5576 = vmatprep.mubr.bf16.mxu0 %v480
    %5577 = vmatmul.mubr.bf16.gmra.mrb[0].mxu0 %v479
    %v5578 = vpop.f32.mrb[0].mxu0
    %v5579 = vadd.f32 %v5466, %v5578
    %v5580 = vpop.f32.mrb[0].mxu0
    %v5581 = vadd.f32 %v5468, %v5580
    %v5582 = vpop.f32.mrb[0].mxu0
    %v5583 = vadd.f32 %v5470, %v5582
    %v5584 = vpop.f32.mrb[0].mxu0
    %v5585 = vadd.f32 %v5472, %v5584
    %5586 = vdwg.mxu0
    %5587 = vmatprep.subr.bf16.mxu0 %v4112
    %5588 = vmatpush1.bf16.msra.mxu0 %v4111
    %5589 = vmatprep.subr.bf16.mxu0 %v4120
    %5590 = vmatpush1.bf16.msra.mxu0 %v4119
    %5591 = vmatprep.subr.bf16.mxu0 %v4128
    %5592 = vmatpush1.bf16.msra.mxu0 %v4127
    %5593 = vmatprep.subr.bf16.mxu0 %v4136
    %5594 = vmatpush1.bf16.msra.mxu0 %v4135
    %5595 = vmatprep.subr.bf16.mxu0 %v4144
    %5596 = vmatpush1.bf16.msra.mxu0 %v4143
    %5597 = vmatprep.subr.bf16.mxu0 %v4152
    %5598 = vmatpush1.bf16.msra.mxu0 %v4151
    %5599 = vmatprep.subr.bf16.mxu0 %v4160
    %5600 = vmatpush1.bf16.msra.mxu0 %v4159
    %5601 = vmatprep.subr.bf16.mxu0 %v4168
    %5602 = vmatpush1.bf16.msra.mxu0 %v4167
    %5603 = vmatprep.subr.bf16.mxu0 %v4176
    %5604 = vmatpush1.bf16.msra.mxu0 %v4175
    %5605 = vmatprep.subr.bf16.mxu0 %v4184
    %5606 = vmatpush1.bf16.msra.mxu0 %v4183
    %5607 = vmatprep.subr.bf16.mxu0 %v4192
    %5608 = vmatpush1.bf16.msra.mxu0 %v4191
    %5609 = vmatprep.subr.bf16.mxu0 %v4200
    %5610 = vmatpush1.bf16.msra.mxu0 %v4199
    %5611 = vmatprep.subr.bf16.mxu0 %v4208
    %5612 = vmatpush1.bf16.msra.mxu0 %v4207
    %5613 = vmatprep.subr.bf16.mxu0 %v4216
    %5614 = vmatpush1.bf16.msra.mxu0 %v4215
    %5615 = vmatprep.subr.bf16.mxu0 %v4224
    %5616 = vmatpush1.bf16.msra.mxu0 %v4223
    %5617 = vmatprep.subr.bf16.mxu0 %v4232
    %5618 = vmatpush1.bf16.msra.mxu0 %v4231
    %5619 = vmatprep.mubr.bf16.mxu0 %v398
    %5620 = vmatmul.mubr.bf16.gmra.mrb[0].mxu0 %v397
    %v5621 = vpop.f32.mrb[0].mxu0
    %v5622 = vadd.f32 %v5509, %v5621
    %v5623 = vpop.f32.mrb[0].mxu0
    %v5624 = vadd.f32 %v5511, %v5623
    %v5625 = vpop.f32.mrb[0].mxu0
    %v5626 = vadd.f32 %v5513, %v5625
    %v5627 = vpop.f32.mrb[0].mxu0
    %v5628 = vadd.f32 %v5515, %v5627
    %5629 = vmatprep.mubr.bf16.mxu0 %v410
    %5630 = vmatmul.mubr.bf16.gmra.mrb[0].mxu0 %v409
    %v5631 = vpop.f32.mrb[0].mxu0
    %v5632 = vadd.f32 %v5519, %v5631
    %v5633 = vpop.f32.mrb[0].mxu0
    %v5634 = vadd.f32 %v5521, %v5633
    %v5635 = vpop.f32.mrb[0].mxu0
    %v5636 = vadd.f32 %v5523, %v5635
    %v5637 = vpop.f32.mrb[0].mxu0
    %v5638 = vadd.f32 %v5525, %v5637
    %5639 = vmatprep.mubr.bf16.mxu0 %v422
    %5640 = vmatmul.mubr.bf16.gmra.mrb[0].mxu0 %v421
    %v5641 = vpop.f32.mrb[0].mxu0
    %v5642 = vadd.f32 %v5529, %v5641
    %v5643 = vpop.f32.mrb[0].mxu0
    %v5644 = vadd.f32 %v5531, %v5643
    %v5645 = vpop.f32.mrb[0].mxu0
    %v5646 = vadd.f32 %v5533, %v5645
    %v5647 = vpop.f32.mrb[0].mxu0
    %v5648 = vadd.f32 %v5535, %v5647
    %5649 = vmatprep.mubr.bf16.mxu0 %v434
    %5650 = vmatmul.mubr.bf16.gmra.mrb[0].mxu0 %v433
    %v5651 = vpop.f32.mrb[0].mxu0
    %v5652 = vadd.f32 %v5539, %v5651
    %v5653 = vpop.f32.mrb[0].mxu0
    %v5654 = vadd.f32 %v5541, %v5653
    %v5655 = vpop.f32.mrb[0].mxu0
    %v5656 = vadd.f32 %v5543, %v5655
    %v5657 = vpop.f32.mrb[0].mxu0
    %v5658 = vadd.f32 %v5545, %v5657
    %5659 = vmatprep.mubr.bf16.mxu0 %v446
    %5660 = vmatmul.mubr.bf16.gmra.mrb[0].mxu0 %v445
    %v5661 = vpop.f32.mrb[0].mxu0
    %v5662 = vadd.f32 %v5549, %v5661
    %v5663 = vpop.f32.mrb[0].mxu0
    %v5664 = vadd.f32 %v5551, %v5663
    %v5665 = vpop.f32.mrb[0].mxu0
    %v5666 = vadd.f32 %v5553, %v5665
    %v5667 = vpop.f32.mrb[0].mxu0
    %v5668 = vadd.f32 %v5555, %v5667
    %5669 = vmatprep.mubr.bf16.mxu0 %v458
    %5670 = vmatmul.mubr.bf16.gmra.mrb[0].mxu0 %v457
    %v5671 = vpop.f32.mrb[0].mxu0
    %v5672 = vadd.f32 %v5559, %v5671
    %v5673 = vpop.f32.mrb[0].mxu0
    %v5674 = vadd.f32 %v5561, %v5673
    %v5675 = vpop.f32.mrb[0].mxu0
    %v5676 = vadd.f32 %v5563, %v5675
    %v5677 = vpop.f32.mrb[0].mxu0
    %v5678 = vadd.f32 %v5565, %v5677
    %5679 = vmatprep.mubr.bf16.mxu0 %v470
    %5680 = vmatmul.mubr.bf16.gmra.mrb[0].mxu0 %v469
    %v5681 = vpop.f32.mrb[0].mxu0
    %v5682 = vadd.f32 %v5569, %v5681
    %v5683 = vpop.f32.mrb[0].mxu0
    %v5684 = vadd.f32 %v5571, %v5683
    %v5685 = vpop.f32.mrb[0].mxu0
    %v5686 = vadd.f32 %v5573, %v5685
    %v5687 = vpop.f32.mrb[0].mxu0
    %v5688 = vadd.f32 %v5575, %v5687
    %5689 = vmatprep.mubr.bf16.mxu0 %v482
    %5690 = vmatmul.mubr.bf16.gmra.mrb[0].mxu0 %v481
    %v5691 = vpop.f32.mrb[0].mxu0
    %v5692 = vadd.f32 %v5579, %v5691
    %v5693 = vpop.f32.mrb[0].mxu0
    %v5694 = vadd.f32 %v5581, %v5693
    %v5695 = vpop.f32.mrb[0].mxu0
    %v5696 = vadd.f32 %v5583, %v5695
    %v5697 = vpop.f32.mrb[0].mxu0
    %v5698 = vadd.f32 %v5585, %v5697
    %5699 = vdwg.mxu0
    %5700 = vmatprep.subr.bf16.mxu0 %v4240
    %5701 = vmatpush1.bf16.msra.mxu0 %v4239
    %5702 = vmatprep.subr.bf16.mxu0 %v4248
    %5703 = vmatpush1.bf16.msra.mxu0 %v4247
    %5704 = vmatprep.subr.bf16.mxu0 %v4256
    %5705 = vmatpush1.bf16.msra.mxu0 %v4255
    %5706 = vmatprep.subr.bf16.mxu0 %v4264
    %5707 = vmatpush1.bf16.msra.mxu0 %v4263
    %5708 = vmatprep.subr.bf16.mxu0 %v4272
    %5709 = vmatpush1.bf16.msra.mxu0 %v4271
    %5710 = vmatprep.subr.bf16.mxu0 %v4280
    %5711 = vmatpush1.bf16.msra.mxu0 %v4279
    %5712 = vmatprep.subr.bf16.mxu0 %v4288
    %5713 = vmatpush1.bf16.msra.mxu0 %v4287
    %5714 = vmatprep.subr.bf16.mxu0 %v4296
    %5715 = vmatpush1.bf16.msra.mxu0 %v4295
    %5716 = vmatprep.subr.bf16.mxu0 %v4304
    %5717 = vmatpush1.bf16.msra.mxu0 %v4303
    %5718 = vmatprep.subr.bf16.mxu0 %v4312
    %5719 = vmatpush1.bf16.msra.mxu0 %v4311
    %5720 = vmatprep.subr.bf16.mxu0 %v4320
    %5721 = vmatpush1.bf16.msra.mxu0 %v4319
    %5722 = vmatprep.subr.bf16.mxu0 %v4328
    %5723 = vmatpush1.bf16.msra.mxu0 %v4327
    %5724 = vmatprep.subr.bf16.mxu0 %v4336
    %5725 = vmatpush1.bf16.msra.mxu0 %v4335
    %5726 = vmatprep.subr.bf16.mxu0 %v4344
    %5727 = vmatpush1.bf16.msra.mxu0 %v4343
    %5728 = vmatprep.subr.bf16.mxu0 %v4352
    %5729 = vmatpush1.bf16.msra.mxu0 %v4351
    %5730 = vmatprep.subr.bf16.mxu0 %v4360
    %5731 = vmatpush1.bf16.msra.mxu0 %v4359
    %5732 = vmatprep.mubr.bf16.mxu0 %v400
    %5733 = vmatmul.mubr.bf16.gmra.mrb[0].mxu0 %v399
    %v5734 = vpop.f32.mrb[0].mxu0
    %v5735 = vadd.f32 %v5622, %v5734
    %v5736 = vpop.f32.mrb[0].mxu0
    %v5737 = vadd.f32 %v5624, %v5736
    %v5738 = vpop.f32.mrb[0].mxu0
    %v5739 = vadd.f32 %v5626, %v5738
    %v5740 = vpop.f32.mrb[0].mxu0
    %v5741 = vadd.f32 %v5628, %v5740
    %5742 = vmatprep.mubr.bf16.mxu0 %v412
    %5743 = vmatmul.mubr.bf16.gmra.mrb[0].mxu0 %v411
    %v5744 = vpop.f32.mrb[0].mxu0
    %v5745 = vadd.f32 %v5632, %v5744
    %v5746 = vpop.f32.mrb[0].mxu0
    %v5747 = vadd.f32 %v5634, %v5746
    %v5748 = vpop.f32.mrb[0].mxu0
    %v5749 = vadd.f32 %v5636, %v5748
    %v5750 = vpop.f32.mrb[0].mxu0
    %v5751 = vadd.f32 %v5638, %v5750
    %5752 = vmatprep.mubr.bf16.mxu0 %v424
    %5753 = vmatmul.mubr.bf16.gmra.mrb[0].mxu0 %v423
    %v5754 = vpop.f32.mrb[0].mxu0
    %v5755 = vadd.f32 %v5642, %v5754
    %v5756 = vpop.f32.mrb[0].mxu0
    %v5757 = vadd.f32 %v5644, %v5756
    %v5758 = vpop.f32.mrb[0].mxu0
    %v5759 = vadd.f32 %v5646, %v5758
    %v5760 = vpop.f32.mrb[0].mxu0
    %v5761 = vadd.f32 %v5648, %v5760
    %5762 = vmatprep.mubr.bf16.mxu0 %v436
    %5763 = vmatmul.mubr.bf16.gmra.mrb[0].mxu0 %v435
    %v5764 = vpop.f32.mrb[0].mxu0
    %v5765 = vadd.f32 %v5652, %v5764
    %v5766 = vpop.f32.mrb[0].mxu0
    %v5767 = vadd.f32 %v5654, %v5766
    %v5768 = vpop.f32.mrb[0].mxu0
    %v5769 = vadd.f32 %v5656, %v5768
    %v5770 = vpop.f32.mrb[0].mxu0
    %v5771 = vadd.f32 %v5658, %v5770
    %5772 = vmatprep.mubr.bf16.mxu0 %v448
    %5773 = vmatmul.mubr.bf16.gmra.mrb[0].mxu0 %v447
    %v5774 = vpop.f32.mrb[0].mxu0
    %v5775 = vadd.f32 %v5662, %v5774
    %v5776 = vpop.f32.mrb[0].mxu0
    %v5777 = vadd.f32 %v5664, %v5776
    %v5778 = vpop.f32.mrb[0].mxu0
    %v5779 = vadd.f32 %v5666, %v5778
    %v5780 = vpop.f32.mrb[0].mxu0
    %v5781 = vadd.f32 %v5668, %v5780
    %5782 = vmatprep.mubr.bf16.mxu0 %v460
    %5783 = vmatmul.mubr.bf16.gmra.mrb[0].mxu0 %v459
    %v5784 = vpop.f32.mrb[0].mxu0
    %v5785 = vadd.f32 %v5672, %v5784
    %v5786 = vpop.f32.mrb[0].mxu0
    %v5787 = vadd.f32 %v5674, %v5786
    %v5788 = vpop.f32.mrb[0].mxu0
    %v5789 = vadd.f32 %v5676, %v5788
    %v5790 = vpop.f32.mrb[0].mxu0
    %v5791 = vadd.f32 %v5678, %v5790
    %5792 = vmatprep.mubr.bf16.mxu0 %v472
    %5793 = vmatmul.mubr.bf16.gmra.mrb[0].mxu0 %v471
    %v5794 = vpop.f32.mrb[0].mxu0
    %v5795 = vadd.f32 %v5682, %v5794
    %v5796 = vpop.f32.mrb[0].mxu0
    %v5797 = vadd.f32 %v5684, %v5796
    %v5798 = vpop.f32.mrb[0].mxu0
    %v5799 = vadd.f32 %v5686, %v5798
    %v5800 = vpop.f32.mrb[0].mxu0
    %v5801 = vadd.f32 %v5688, %v5800
    %5802 = vmatprep.mubr.bf16.mxu0 %v484
    %5803 = vmatmul.mubr.bf16.gmra.mrb[0].mxu0 %v483
    %v5804 = vpop.f32.mrb[0].mxu0
    %v5805 = vadd.f32 %v5692, %v5804
    %v5806 = vpop.f32.mrb[0].mxu0
    %v5807 = vadd.f32 %v5694, %v5806
    %v5808 = vpop.f32.mrb[0].mxu0
    %v5809 = vadd.f32 %v5696, %v5808
    %v5810 = vpop.f32.mrb[0].mxu0
    %v5811 = vadd.f32 %v5698, %v5810
    %5812 = vdwg.mxu0
    %5813 = vmatprep.subr.bf16.mxu0 %v3602
    %5814 = vmatpush1.bf16.msra.mxu0 %v3601
    %5815 = vmatprep.subr.bf16.mxu0 %v3610
    %5816 = vmatpush1.bf16.msra.mxu0 %v3609
    %5817 = vmatprep.subr.bf16.mxu0 %v3618
    %5818 = vmatpush1.bf16.msra.mxu0 %v3617
    %5819 = vmatprep.subr.bf16.mxu0 %v3626
    %5820 = vmatpush1.bf16.msra.mxu0 %v3625
    %5821 = vmatprep.subr.bf16.mxu0 %v3634
    %5822 = vmatpush1.bf16.msra.mxu0 %v3633
    %5823 = vmatprep.subr.bf16.mxu0 %v3642
    %5824 = vmatpush1.bf16.msra.mxu0 %v3641
    %5825 = vmatprep.subr.bf16.mxu0 %v3650
    %5826 = vmatpush1.bf16.msra.mxu0 %v3649
    %5827 = vmatprep.subr.bf16.mxu0 %v3658
    %5828 = vmatpush1.bf16.msra.mxu0 %v3657
    %5829 = vmatprep.subr.bf16.mxu0 %v3666
    %5830 = vmatpush1.bf16.msra.mxu0 %v3665
    %5831 = vmatprep.subr.bf16.mxu0 %v3674
    %5832 = vmatpush1.bf16.msra.mxu0 %v3673
    %5833 = vmatprep.subr.bf16.mxu0 %v3682
    %5834 = vmatpush1.bf16.msra.mxu0 %v3681
    %5835 = vmatprep.subr.bf16.mxu0 %v3690
    %5836 = vmatpush1.bf16.msra.mxu0 %v3689
    %5837 = vmatprep.subr.bf16.mxu0 %v3698
    %5838 = vmatpush1.bf16.msra.mxu0 %v3697
    %5839 = vmatprep.subr.bf16.mxu0 %v3706
    %5840 = vmatpush1.bf16.msra.mxu0 %v3705
    %5841 = vmatprep.subr.bf16.mxu0 %v3714
    %5842 = vmatpush1.bf16.msra.mxu0 %v3713
    %5843 = vmatprep.subr.bf16.mxu0 %v3722
    %5844 = vmatpush1.bf16.msra.mxu0 %v3721
    %5845 = vmatprep.mubr.bf16.mxu0 %v390
    %5846 = vmatmul.mubr.bf16.gmra.mrb[0].mxu0 %v389
    %v5847 = vpop.f32.mrb[0].mxu0
    %v5848 = vadd.f32 %v1266, %v5847
    %v5849 = vpop.f32.mrb[0].mxu0
    %v5850 = vadd.f32 %v1270, %v5849
    %v5851 = vpop.f32.mrb[0].mxu0
    %v5852 = vadd.f32 %v1266, %v5851
    %v5853 = vpop.f32.mrb[0].mxu0
    %v5854 = vadd.f32 %v1270, %v5853
    %5855 = vmatprep.mubr.bf16.mxu0 %v402
    %5856 = vmatmul.mubr.bf16.gmra.mrb[0].mxu0 %v401
    %v5857 = vpop.f32.mrb[0].mxu0
    %v5858 = vadd.f32 %v1266, %v5857
    %v5859 = vpop.f32.mrb[0].mxu0
    %v5860 = vadd.f32 %v1270, %v5859
    %v5861 = vpop.f32.mrb[0].mxu0
    %v5862 = vadd.f32 %v1266, %v5861
    %v5863 = vpop.f32.mrb[0].mxu0
    %v5864 = vadd.f32 %v1270, %v5863
    %5865 = vmatprep.mubr.bf16.mxu0 %v414
    %5866 = vmatmul.mubr.bf16.gmra.mrb[0].mxu0 %v413
    %v5867 = vpop.f32.mrb[0].mxu0
    %v5868 = vadd.f32 %v1266, %v5867
    %v5869 = vpop.f32.mrb[0].mxu0
    %v5870 = vadd.f32 %v1270, %v5869
    %v5871 = vpop.f32.mrb[0].mxu0
    %v5872 = vadd.f32 %v1266, %v5871
    %v5873 = vpop.f32.mrb[0].mxu0
    %v5874 = vadd.f32 %v1270, %v5873
    %5875 = vmatprep.mubr.bf16.mxu0 %v426
    %5876 = vmatmul.mubr.bf16.gmra.mrb[0].mxu0 %v425
    %v5877 = vpop.f32.mrb[0].mxu0
    %v5878 = vadd.f32 %v1266, %v5877
    %v5879 = vpop.f32.mrb[0].mxu0
    %v5880 = vadd.f32 %v1270, %v5879
    %v5881 = vpop.f32.mrb[0].mxu0
    %v5882 = vadd.f32 %v1266, %v5881
    %v5883 = vpop.f32.mrb[0].mxu0
    %v5884 = vadd.f32 %v1270, %v5883
    %5885 = vmatprep.mubr.bf16.mxu0 %v438
    %5886 = vmatmul.mubr.bf16.gmra.mrb[0].mxu0 %v437
    %v5887 = vpop.f32.mrb[0].mxu0
    %v5888 = vadd.f32 %v1266, %v5887
    %v5889 = vpop.f32.mrb[0].mxu0
    %v5890 = vadd.f32 %v1270, %v5889
    %v5891 = vpop.f32.mrb[0].mxu0
    %v5892 = vadd.f32 %v1266, %v5891
    %v5893 = vpop.f32.mrb[0].mxu0
    %v5894 = vadd.f32 %v1270, %v5893
    %5895 = vmatprep.mubr.bf16.mxu0 %v450
    %5896 = vmatmul.mubr.bf16.gmra.mrb[0].mxu0 %v449
    %v5897 = vpop.f32.mrb[0].mxu0
    %v5898 = vadd.f32 %v1266, %v5897
    %v5899 = vpop.f32.mrb[0].mxu0
    %v5900 = vadd.f32 %v1270, %v5899
    %v5901 = vpop.f32.mrb[0].mxu0
    %v5902 = vadd.f32 %v1266, %v5901
    %v5903 = vpop.f32.mrb[0].mxu0
    %v5904 = vadd.f32 %v1270, %v5903
    %5905 = vmatprep.mubr.bf16.mxu0 %v462
    %5906 = vmatmul.mubr.bf16.gmra.mrb[0].mxu0 %v461
    %v5907 = vpop.f32.mrb[0].mxu0
    %v5908 = vadd.f32 %v1266, %v5907
    %v5909 = vpop.f32.mrb[0].mxu0
    %v5910 = vadd.f32 %v1270, %v5909
    %v5911 = vpop.f32.mrb[0].mxu0
    %v5912 = vadd.f32 %v1266, %v5911
    %v5913 = vpop.f32.mrb[0].mxu0
    %v5914 = vadd.f32 %v1270, %v5913
    %5915 = vmatprep.mubr.bf16.mxu0 %v474
    %5916 = vmatmul.mubr.bf16.gmra.mrb[0].mxu0 %v473
    %v5917 = vpop.f32.mrb[0].mxu0
    %v5918 = vadd.f32 %v1266, %v5917
    %v5919 = vpop.f32.mrb[0].mxu0
    %v5920 = vadd.f32 %v1270, %v5919
    %v5921 = vpop.f32.mrb[0].mxu0
    %v5922 = vadd.f32 %v1266, %v5921
    %v5923 = vpop.f32.mrb[0].mxu0
    %v5924 = vadd.f32 %v1270, %v5923
    %5925 = vdwg.mxu0
    %5926 = vmatprep.subr.bf16.mxu0 %v3730
    %5927 = vmatpush1.bf16.msra.mxu0 %v3729
    %5928 = vmatprep.subr.bf16.mxu0 %v3738
    %5929 = vmatpush1.bf16.msra.mxu0 %v3737
    %5930 = vmatprep.subr.bf16.mxu0 %v3746
    %5931 = vmatpush1.bf16.msra.mxu0 %v3745
    %5932 = vmatprep.subr.bf16.mxu0 %v3754
    %5933 = vmatpush1.bf16.msra.mxu0 %v3753
    %5934 = vmatprep.subr.bf16.mxu0 %v3762
    %5935 = vmatpush1.bf16.msra.mxu0 %v3761
    %5936 = vmatprep.subr.bf16.mxu0 %v3770
    %5937 = vmatpush1.bf16.msra.mxu0 %v3769
    %5938 = vmatprep.subr.bf16.mxu0 %v3778
    %5939 = vmatpush1.bf16.msra.mxu0 %v3777
    %5940 = vmatprep.subr.bf16.mxu0 %v3786
    %5941 = vmatpush1.bf16.msra.mxu0 %v3785
    %5942 = vmatprep.subr.bf16.mxu0 %v3794
    %5943 = vmatpush1.bf16.msra.mxu0 %v3793
    %5944 = vmatprep.subr.bf16.mxu0 %v3802
    %5945 = vmatpush1.bf16.msra.mxu0 %v3801
    %5946 = vmatprep.subr.bf16.mxu0 %v3810
    %5947 = vmatpush1.bf16.msra.mxu0 %v3809
    %5948 = vmatprep.subr.bf16.mxu0 %v3818
    %5949 = vmatpush1.bf16.msra.mxu0 %v3817
    %5950 = vmatprep.subr.bf16.mxu0 %v3826
    %5951 = vmatpush1.bf16.msra.mxu0 %v3825
    %5952 = vmatprep.subr.bf16.mxu0 %v3834
    %5953 = vmatpush1.bf16.msra.mxu0 %v3833
    %5954 = vmatprep.subr.bf16.mxu0 %v3842
    %5955 = vmatpush1.bf16.msra.mxu0 %v3841
    %5956 = vmatprep.subr.bf16.mxu0 %v3850
    %5957 = vmatpush1.bf16.msra.mxu0 %v3849
    %5958 = vmatprep.mubr.bf16.mxu0 %v392
    %5959 = vmatmul.mubr.bf16.gmra.mrb[0].mxu0 %v391
    %v5960 = vpop.f32.mrb[0].mxu0
    %v5961 = vadd.f32 %v5848, %v5960
    %v5962 = vpop.f32.mrb[0].mxu0
    %v5963 = vadd.f32 %v5850, %v5962
    %v5964 = vpop.f32.mrb[0].mxu0
    %v5965 = vadd.f32 %v5852, %v5964
    %v5966 = vpop.f32.mrb[0].mxu0
    %v5967 = vadd.f32 %v5854, %v5966
    %5968 = vmatprep.mubr.bf16.mxu0 %v404
    %5969 = vmatmul.mubr.bf16.gmra.mrb[0].mxu0 %v403
    %v5970 = vpop.f32.mrb[0].mxu0
    %v5971 = vadd.f32 %v5858, %v5970
    %v5972 = vpop.f32.mrb[0].mxu0
    %v5973 = vadd.f32 %v5860, %v5972
    %v5974 = vpop.f32.mrb[0].mxu0
    %v5975 = vadd.f32 %v5862, %v5974
    %v5976 = vpop.f32.mrb[0].mxu0
    %v5977 = vadd.f32 %v5864, %v5976
    %5978 = vmatprep.mubr.bf16.mxu0 %v416
    %5979 = vmatmul.mubr.bf16.gmra.mrb[0].mxu0 %v415
    %v5980 = vpop.f32.mrb[0].mxu0
    %v5981 = vadd.f32 %v5868, %v5980
    %v5982 = vpop.f32.mrb[0].mxu0
    %v5983 = vadd.f32 %v5870, %v5982
    %v5984 = vpop.f32.mrb[0].mxu0
    %v5985 = vadd.f32 %v5872, %v5984
    %v5986 = vpop.f32.mrb[0].mxu0
    %v5987 = vadd.f32 %v5874, %v5986
    %5988 = vmatprep.mubr.bf16.mxu0 %v428
    %5989 = vmatmul.mubr.bf16.gmra.mrb[0].mxu0 %v427
    %v5990 = vpop.f32.mrb[0].mxu0
    %v5991 = vadd.f32 %v5878, %v5990
    %v5992 = vpop.f32.mrb[0].mxu0
    %v5993 = vadd.f32 %v5880, %v5992
    %v5994 = vpop.f32.mrb[0].mxu0
    %v5995 = vadd.f32 %v5882, %v5994
    %v5996 = vpop.f32.mrb[0].mxu0
    %v5997 = vadd.f32 %v5884, %v5996
    %5998 = vmatprep.mubr.bf16.mxu0 %v440
    %5999 = vmatmul.mubr.bf16.gmra.mrb[0].mxu0 %v439
    %v6000 = vpop.f32.mrb[0].mxu0
    %v6001 = vadd.f32 %v5888, %v6000
    %v6002 = vpop.f32.mrb[0].mxu0
    %v6003 = vadd.f32 %v5890, %v6002
    %v6004 = vpop.f32.mrb[0].mxu0
    %v6005 = vadd.f32 %v5892, %v6004
    %v6006 = vpop.f32.mrb[0].mxu0
    %v6007 = vadd.f32 %v5894, %v6006
    %6008 = vmatprep.mubr.bf16.mxu0 %v452
    %6009 = vmatmul.mubr.bf16.gmra.mrb[0].mxu0 %v451
    %v6010 = vpop.f32.mrb[0].mxu0
    %v6011 = vadd.f32 %v5898, %v6010
    %v6012 = vpop.f32.mrb[0].mxu0
    %v6013 = vadd.f32 %v5900, %v6012
    %v6014 = vpop.f32.mrb[0].mxu0
    %v6015 = vadd.f32 %v5902, %v6014
    %v6016 = vpop.f32.mrb[0].mxu0
    %v6017 = vadd.f32 %v5904, %v6016
    %6018 = vmatprep.mubr.bf16.mxu0 %v464
    %6019 = vmatmul.mubr.bf16.gmra.mrb[0].mxu0 %v463
    %v6020 = vpop.f32.mrb[0].mxu0
    %v6021 = vadd.f32 %v5908, %v6020
    %v6022 = vpop.f32.mrb[0].mxu0
    %v6023 = vadd.f32 %v5910, %v6022
    %v6024 = vpop.f32.mrb[0].mxu0
    %v6025 = vadd.f32 %v5912, %v6024
    %v6026 = vpop.f32.mrb[0].mxu0
    %v6027 = vadd.f32 %v5914, %v6026
    %6028 = vmatprep.mubr.bf16.mxu0 %v476
    %6029 = vmatmul.mubr.bf16.gmra.mrb[0].mxu0 %v475
    %v6030 = vpop.f32.mrb[0].mxu0
    %v6031 = vadd.f32 %v5918, %v6030
    %v6032 = vpop.f32.mrb[0].mxu0
    %v6033 = vadd.f32 %v5920, %v6032
    %v6034 = vpop.f32.mrb[0].mxu0
    %v6035 = vadd.f32 %v5922, %v6034
    %v6036 = vpop.f32.mrb[0].mxu0
    %v6037 = vadd.f32 %v5924, %v6036
    %6038 = vdwg.mxu0
    %6039 = vmatprep.subr.bf16.mxu0 %v3858
    %6040 = vmatpush1.bf16.msra.mxu0 %v3857
    %6041 = vmatprep.subr.bf16.mxu0 %v3866
    %6042 = vmatpush1.bf16.msra.mxu0 %v3865
    %6043 = vmatprep.subr.bf16.mxu0 %v3874
    %6044 = vmatpush1.bf16.msra.mxu0 %v3873
    %6045 = vmatprep.subr.bf16.mxu0 %v3882
    %6046 = vmatpush1.bf16.msra.mxu0 %v3881
    %6047 = vmatprep.subr.bf16.mxu0 %v3890
    %6048 = vmatpush1.bf16.msra.mxu0 %v3889
    %6049 = vmatprep.subr.bf16.mxu0 %v3898
    %6050 = vmatpush1.bf16.msra.mxu0 %v3897
    %6051 = vmatprep.subr.bf16.mxu0 %v3906
    %6052 = vmatpush1.bf16.msra.mxu0 %v3905
    %6053 = vmatprep.subr.bf16.mxu0 %v3914
    %6054 = vmatpush1.bf16.msra.mxu0 %v3913
    %6055 = vmatprep.subr.bf16.mxu0 %v3922
    %6056 = vmatpush1.bf16.msra.mxu0 %v3921
    %6057 = vmatprep.subr.bf16.mxu0 %v3930
    %6058 = vmatpush1.bf16.msra.mxu0 %v3929
    %6059 = vmatprep.subr.bf16.mxu0 %v3938
    %6060 = vmatpush1.bf16.msra.mxu0 %v3937
    %6061 = vmatprep.subr.bf16.mxu0 %v3946
    %6062 = vmatpush1.bf16.msra.mxu0 %v3945
    %6063 = vmatprep.subr.bf16.mxu0 %v3954
    %6064 = vmatpush1.bf16.msra.mxu0 %v3953
    %6065 = vmatprep.subr.bf16.mxu0 %v3962
    %6066 = vmatpush1.bf16.msra.mxu0 %v3961
    %6067 = vmatprep.subr.bf16.mxu0 %v3970
    %6068 = vmatpush1.bf16.msra.mxu0 %v3969
    %6069 = vmatprep.subr.bf16.mxu0 %v3978
    %6070 = vmatpush1.bf16.msra.mxu0 %v3977
    %6071 = vmatprep.mubr.bf16.mxu0 %v394
    %6072 = vmatmul.mubr.bf16.gmra.mrb[0].mxu0 %v393
    %v6073 = vpop.f32.mrb[0].mxu0
    %v6074 = vadd.f32 %v5961, %v6073
    %v6075 = vpop.f32.mrb[0].mxu0
    %v6076 = vadd.f32 %v5963, %v6075
    %v6077 = vpop.f32.mrb[0].mxu0
    %v6078 = vadd.f32 %v5965, %v6077
    %v6079 = vpop.f32.mrb[0].mxu0
    %v6080 = vadd.f32 %v5967, %v6079
    %6081 = vmatprep.mubr.bf16.mxu0 %v406
    %6082 = vmatmul.mubr.bf16.gmra.mrb[0].mxu0 %v405
    %v6083 = vpop.f32.mrb[0].mxu0
    %v6084 = vadd.f32 %v5971, %v6083
    %v6085 = vpop.f32.mrb[0].mxu0
    %v6086 = vadd.f32 %v5973, %v6085
    %v6087 = vpop.f32.mrb[0].mxu0
    %v6088 = vadd.f32 %v5975, %v6087
    %v6089 = vpop.f32.mrb[0].mxu0
    %v6090 = vadd.f32 %v5977, %v6089
    %6091 = vmatprep.mubr.bf16.mxu0 %v418
    %6092 = vmatmul.mubr.bf16.gmra.mrb[0].mxu0 %v417
    %v6093 = vpop.f32.mrb[0].mxu0
    %v6094 = vadd.f32 %v5981, %v6093
    %v6095 = vpop.f32.mrb[0].mxu0
    %v6096 = vadd.f32 %v5983, %v6095
    %v6097 = vpop.f32.mrb[0].mxu0
    %v6098 = vadd.f32 %v5985, %v6097
    %v6099 = vpop.f32.mrb[0].mxu0
    %v6100 = vadd.f32 %v5987, %v6099
    %6101 = vmatprep.mubr.bf16.mxu0 %v430
    %6102 = vmatmul.mubr.bf16.gmra.mrb[0].mxu0 %v429
    %v6103 = vpop.f32.mrb[0].mxu0
    %v6104 = vadd.f32 %v5991, %v6103
    %v6105 = vpop.f32.mrb[0].mxu0
    %v6106 = vadd.f32 %v5993, %v6105
    %v6107 = vpop.f32.mrb[0].mxu0
    %v6108 = vadd.f32 %v5995, %v6107
    %v6109 = vpop.f32.mrb[0].mxu0
    %v6110 = vadd.f32 %v5997, %v6109
    %6111 = vmatprep.mubr.bf16.mxu0 %v442
    %6112 = vmatmul.mubr.bf16.gmra.mrb[0].mxu0 %v441
    %v6113 = vpop.f32.mrb[0].mxu0
    %v6114 = vadd.f32 %v6001, %v6113
    %v6115 = vpop.f32.mrb[0].mxu0
    %v6116 = vadd.f32 %v6003, %v6115
    %v6117 = vpop.f32.mrb[0].mxu0
    %v6118 = vadd.f32 %v6005, %v6117
    %v6119 = vpop.f32.mrb[0].mxu0
    %v6120 = vadd.f32 %v6007, %v6119
    %6121 = vmatprep.mubr.bf16.mxu0 %v454
    %6122 = vmatmul.mubr.bf16.gmra.mrb[0].mxu0 %v453
    %v6123 = vpop.f32.mrb[0].mxu0
    %v6124 = vadd.f32 %v6011, %v6123
    %v6125 = vpop.f32.mrb[0].mxu0
    %v6126 = vadd.f32 %v6013, %v6125
    %v6127 = vpop.f32.mrb[0].mxu0
    %v6128 = vadd.f32 %v6015, %v6127
    %v6129 = vpop.f32.mrb[0].mxu0
    %v6130 = vadd.f32 %v6017, %v6129
    %6131 = vmatprep.mubr.bf16.mxu0 %v466
    %6132 = vmatmul.mubr.bf16.gmra.mrb[0].mxu0 %v465
    %v6133 = vpop.f32.mrb[0].mxu0
    %v6134 = vadd.f32 %v6021, %v6133
    %v6135 = vpop.f32.mrb[0].mxu0
    %v6136 = vadd.f32 %v6023, %v6135
    %v6137 = vpop.f32.mrb[0].mxu0
    %v6138 = vadd.f32 %v6025, %v6137
    %v6139 = vpop.f32.mrb[0].mxu0
    %v6140 = vadd.f32 %v6027, %v6139
    %6141 = vmatprep.mubr.bf16.mxu0 %v478
    %6142 = vmatmul.mubr.bf16.gmra.mrb[0].mxu0 %v477
    %v6143 = vpop.f32.mrb[0].mxu0
    %v6144 = vadd.f32 %v6031, %v6143
    %v6145 = vpop.f32.mrb[0].mxu0
    %v6146 = vadd.f32 %v6033, %v6145
    %v6147 = vpop.f32.mrb[0].mxu0
    %v6148 = vadd.f32 %v6035, %v6147
    %v6149 = vpop.f32.mrb[0].mxu0
    %v6150 = vadd.f32 %v6037, %v6149
    %6151 = vdwg.mxu0
    %6152 = vmatprep.subr.bf16.mxu0 %v3986
    %6153 = vmatpush1.bf16.msra.mxu0 %v3985
    %6154 = vmatprep.subr.bf16.mxu0 %v3994
    %6155 = vmatpush1.bf16.msra.mxu0 %v3993
    %6156 = vmatprep.subr.bf16.mxu0 %v4002
    %6157 = vmatpush1.bf16.msra.mxu0 %v4001
    %6158 = vmatprep.subr.bf16.mxu0 %v4010
    %6159 = vmatpush1.bf16.msra.mxu0 %v4009
    %6160 = vmatprep.subr.bf16.mxu0 %v4018
    %6161 = vmatpush1.bf16.msra.mxu0 %v4017
    %6162 = vmatprep.subr.bf16.mxu0 %v4026
    %6163 = vmatpush1.bf16.msra.mxu0 %v4025
    %6164 = vmatprep.subr.bf16.mxu0 %v4034
    %6165 = vmatpush1.bf16.msra.mxu0 %v4033
    %6166 = vmatprep.subr.bf16.mxu0 %v4042
    %6167 = vmatpush1.bf16.msra.mxu0 %v4041
    %6168 = vmatprep.subr.bf16.mxu0 %v4050
    %6169 = vmatpush1.bf16.msra.mxu0 %v4049
    %6170 = vmatprep.subr.bf16.mxu0 %v4058
    %6171 = vmatpush1.bf16.msra.mxu0 %v4057
    %6172 = vmatprep.subr.bf16.mxu0 %v4066
    %6173 = vmatpush1.bf16.msra.mxu0 %v4065
    %6174 = vmatprep.subr.bf16.mxu0 %v4074
    %6175 = vmatpush1.bf16.msra.mxu0 %v4073
    %6176 = vmatprep.subr.bf16.mxu0 %v4082
    %6177 = vmatpush1.bf16.msra.mxu0 %v4081
    %6178 = vmatprep.subr.bf16.mxu0 %v4090
    %6179 = vmatpush1.bf16.msra.mxu0 %v4089
    %6180 = vmatprep.subr.bf16.mxu0 %v4098
    %6181 = vmatpush1.bf16.msra.mxu0 %v4097
    %6182 = vmatprep.subr.bf16.mxu0 %v4106
    %6183 = vmatpush1.bf16.msra.mxu0 %v4105
    %6184 = vmatprep.mubr.bf16.mxu0 %v396
    %6185 = vmatmul.mubr.bf16.gmra.mrb[0].mxu0 %v395
    %v6186 = vpop.f32.mrb[0].mxu0
    %v6187 = vadd.f32 %v6074, %v6186
    %v6188 = vpop.f32.mrb[0].mxu0
    %v6189 = vadd.f32 %v6076, %v6188
    %v6190 = vpop.f32.mrb[0].mxu0
    %v6191 = vadd.f32 %v6078, %v6190
    %v6192 = vpop.f32.mrb[0].mxu0
    %v6193 = vadd.f32 %v6080, %v6192
    %6194 = vmatprep.mubr.bf16.mxu0 %v408
    %6195 = vmatmul.mubr.bf16.gmra.mrb[0].mxu0 %v407
    %v6196 = vpop.f32.mrb[0].mxu0
    %v6197 = vadd.f32 %v6084, %v6196
    %v6198 = vpop.f32.mrb[0].mxu0
    %v6199 = vadd.f32 %v6086, %v6198
    %v6200 = vpop.f32.mrb[0].mxu0
    %v6201 = vadd.f32 %v6088, %v6200
    %v6202 = vpop.f32.mrb[0].mxu0
    %v6203 = vadd.f32 %v6090, %v6202
    %6204 = vmatprep.mubr.bf16.mxu0 %v420
    %6205 = vmatmul.mubr.bf16.gmra.mrb[0].mxu0 %v419
    %v6206 = vpop.f32.mrb[0].mxu0
    %v6207 = vadd.f32 %v6094, %v6206
    %v6208 = vpop.f32.mrb[0].mxu0
    %v6209 = vadd.f32 %v6096, %v6208
    %v6210 = vpop.f32.mrb[0].mxu0
    %v6211 = vadd.f32 %v6098, %v6210
    %v6212 = vpop.f32.mrb[0].mxu0
    %v6213 = vadd.f32 %v6100, %v6212
    %6214 = vmatprep.mubr.bf16.mxu0 %v432
    %6215 = vmatmul.mubr.bf16.gmra.mrb[0].mxu0 %v431
    %v6216 = vpop.f32.mrb[0].mxu0
    %v6217 = vadd.f32 %v6104, %v6216
    %v6218 = vpop.f32.mrb[0].mxu0
    %v6219 = vadd.f32 %v6106, %v6218
    %v6220 = vpop.f32.mrb[0].mxu0
    %v6221 = vadd.f32 %v6108, %v6220
    %v6222 = vpop.f32.mrb[0].mxu0
    %v6223 = vadd.f32 %v6110, %v6222
    %6224 = vmatprep.mubr.bf16.mxu0 %v444
    %6225 = vmatmul.mubr.bf16.gmra.mrb[0].mxu0 %v443
    %v6226 = vpop.f32.mrb[0].mxu0
    %v6227 = vadd.f32 %v6114, %v6226
    %v6228 = vpop.f32.mrb[0].mxu0
    %v6229 = vadd.f32 %v6116, %v6228
    %v6230 = vpop.f32.mrb[0].mxu0
    %v6231 = vadd.f32 %v6118, %v6230
    %v6232 = vpop.f32.mrb[0].mxu0
    %v6233 = vadd.f32 %v6120, %v6232
    %6234 = vmatprep.mubr.bf16.mxu0 %v456
    %6235 = vmatmul.mubr.bf16.gmra.mrb[0].mxu0 %v455
    %v6236 = vpop.f32.mrb[0].mxu0
    %v6237 = vadd.f32 %v6124, %v6236
    %v6238 = vpop.f32.mrb[0].mxu0
    %v6239 = vadd.f32 %v6126, %v6238
    %v6240 = vpop.f32.mrb[0].mxu0
    %v6241 = vadd.f32 %v6128, %v6240
    %v6242 = vpop.f32.mrb[0].mxu0
    %v6243 = vadd.f32 %v6130, %v6242
    %6244 = vmatprep.mubr.bf16.mxu0 %v468
    %6245 = vmatmul.mubr.bf16.gmra.mrb[0].mxu0 %v467
    %v6246 = vpop.f32.mrb[0].mxu0
    %v6247 = vadd.f32 %v6134, %v6246
    %v6248 = vpop.f32.mrb[0].mxu0
    %v6249 = vadd.f32 %v6136, %v6248
    %v6250 = vpop.f32.mrb[0].mxu0
    %v6251 = vadd.f32 %v6138, %v6250
    %v6252 = vpop.f32.mrb[0].mxu0
    %v6253 = vadd.f32 %v6140, %v6252
    %6254 = vmatprep.mubr.bf16.mxu0 %v480
    %6255 = vmatmul.mubr.bf16.gmra.mrb[0].mxu0 %v479
    %v6256 = vpop.f32.mrb[0].mxu0
    %v6257 = vadd.f32 %v6144, %v6256
    %v6258 = vpop.f32.mrb[0].mxu0
    %v6259 = vadd.f32 %v6146, %v6258
    %v6260 = vpop.f32.mrb[0].mxu0
    %v6261 = vadd.f32 %v6148, %v6260
    %v6262 = vpop.f32.mrb[0].mxu0
    %v6263 = vadd.f32 %v6150, %v6262
    %6264 = vdwg.mxu0
    %6265 = vmatprep.subr.bf16.mxu0 %v4114
    %6266 = vmatpush1.bf16.msra.mxu0 %v4113
    %6267 = vmatprep.subr.bf16.mxu0 %v4122
    %6268 = vmatpush1.bf16.msra.mxu0 %v4121
    %6269 = vmatprep.subr.bf16.mxu0 %v4130
    %6270 = vmatpush1.bf16.msra.mxu0 %v4129
    %6271 = vmatprep.subr.bf16.mxu0 %v4138
    %6272 = vmatpush1.bf16.msra.mxu0 %v4137
    %6273 = vmatprep.subr.bf16.mxu0 %v4146
    %6274 = vmatpush1.bf16.msra.mxu0 %v4145
    %6275 = vmatprep.subr.bf16.mxu0 %v4154
    %6276 = vmatpush1.bf16.msra.mxu0 %v4153
    %6277 = vmatprep.subr.bf16.mxu0 %v4162
    %6278 = vmatpush1.bf16.msra.mxu0 %v4161
    %6279 = vmatprep.subr.bf16.mxu0 %v4170
    %6280 = vmatpush1.bf16.msra.mxu0 %v4169
    %6281 = vmatprep.subr.bf16.mxu0 %v4178
    %6282 = vmatpush1.bf16.msra.mxu0 %v4177
    %6283 = vmatprep.subr.bf16.mxu0 %v4186
    %6284 = vmatpush1.bf16.msra.mxu0 %v4185
    %6285 = vmatprep.subr.bf16.mxu0 %v4194
    %6286 = vmatpush1.bf16.msra.mxu0 %v4193
    %6287 = vmatprep.subr.bf16.mxu0 %v4202
    %6288 = vmatpush1.bf16.msra.mxu0 %v4201
    %6289 = vmatprep.subr.bf16.mxu0 %v4210
    %6290 = vmatpush1.bf16.msra.mxu0 %v4209
    %6291 = vmatprep.subr.bf16.mxu0 %v4218
    %6292 = vmatpush1.bf16.msra.mxu0 %v4217
    %6293 = vmatprep.subr.bf16.mxu0 %v4226
    %6294 = vmatpush1.bf16.msra.mxu0 %v4225
    %6295 = vmatprep.subr.bf16.mxu0 %v4234
    %6296 = vmatpush1.bf16.msra.mxu0 %v4233
    %6297 = vmatprep.mubr.bf16.mxu0 %v398
    %6298 = vmatmul.mubr.bf16.gmra.mrb[0].mxu0 %v397
    %v6299 = vpop.f32.mrb[0].mxu0
    %v6300 = vadd.f32 %v6187, %v6299
    %v6301 = vpop.f32.mrb[0].mxu0
    %v6302 = vadd.f32 %v6189, %v6301
    %v6303 = vpop.f32.mrb[0].mxu0
    %v6304 = vadd.f32 %v6191, %v6303
    %v6305 = vpop.f32.mrb[0].mxu0
    %v6306 = vadd.f32 %v6193, %v6305
    %6307 = vmatprep.mubr.bf16.mxu0 %v410
    %6308 = vmatmul.mubr.bf16.gmra.mrb[0].mxu0 %v409
    %v6309 = vpop.f32.mrb[0].mxu0
    %v6310 = vadd.f32 %v6197, %v6309
    %v6311 = vpop.f32.mrb[0].mxu0
    %v6312 = vadd.f32 %v6199, %v6311
    %v6313 = vpop.f32.mrb[0].mxu0
    %v6314 = vadd.f32 %v6201, %v6313
    %v6315 = vpop.f32.mrb[0].mxu0
    %v6316 = vadd.f32 %v6203, %v6315
    %6317 = vmatprep.mubr.bf16.mxu0 %v422
    %6318 = vmatmul.mubr.bf16.gmra.mrb[0].mxu0 %v421
    %v6319 = vpop.f32.mrb[0].mxu0
    %v6320 = vadd.f32 %v6207, %v6319
    %v6321 = vpop.f32.mrb[0].mxu0
    %v6322 = vadd.f32 %v6209, %v6321
    %v6323 = vpop.f32.mrb[0].mxu0
    %v6324 = vadd.f32 %v6211, %v6323
    %v6325 = vpop.f32.mrb[0].mxu0
    %v6326 = vadd.f32 %v6213, %v6325
    %6327 = vmatprep.mubr.bf16.mxu0 %v434
    %6328 = vmatmul.mubr.bf16.gmra.mrb[0].mxu0 %v433
    %v6329 = vpop.f32.mrb[0].mxu0
    %v6330 = vadd.f32 %v6217, %v6329
    %v6331 = vpop.f32.mrb[0].mxu0
    %v6332 = vadd.f32 %v6219, %v6331
    %v6333 = vpop.f32.mrb[0].mxu0
    %v6334 = vadd.f32 %v6221, %v6333
    %v6335 = vpop.f32.mrb[0].mxu0
    %v6336 = vadd.f32 %v6223, %v6335
    %6337 = vmatprep.mubr.bf16.mxu0 %v446
    %6338 = vmatmul.mubr.bf16.gmra.mrb[0].mxu0 %v445
    %v6339 = vpop.f32.mrb[0].mxu0
    %v6340 = vadd.f32 %v6227, %v6339
    %v6341 = vpop.f32.mrb[0].mxu0
    %v6342 = vadd.f32 %v6229, %v6341
    %v6343 = vpop.f32.mrb[0].mxu0
    %v6344 = vadd.f32 %v6231, %v6343
    %v6345 = vpop.f32.mrb[0].mxu0
    %v6346 = vadd.f32 %v6233, %v6345
    %6347 = vmatprep.mubr.bf16.mxu0 %v458
    %6348 = vmatmul.mubr.bf16.gmra.mrb[0].mxu0 %v457
    %v6349 = vpop.f32.mrb[0].mxu0
    %v6350 = vadd.f32 %v6237, %v6349
    %v6351 = vpop.f32.mrb[0].mxu0
    %v6352 = vadd.f32 %v6239, %v6351
    %v6353 = vpop.f32.mrb[0].mxu0
    %v6354 = vadd.f32 %v6241, %v6353
    %v6355 = vpop.f32.mrb[0].mxu0
    %v6356 = vadd.f32 %v6243, %v6355
    %6357 = vmatprep.mubr.bf16.mxu0 %v470
    %6358 = vmatmul.mubr.bf16.gmra.mrb[0].mxu0 %v469
    %v6359 = vpop.f32.mrb[0].mxu0
    %v6360 = vadd.f32 %v6247, %v6359
    %v6361 = vpop.f32.mrb[0].mxu0
    %v6362 = vadd.f32 %v6249, %v6361
    %v6363 = vpop.f32.mrb[0].mxu0
    %v6364 = vadd.f32 %v6251, %v6363
    %v6365 = vpop.f32.mrb[0].mxu0
    %v6366 = vadd.f32 %v6253, %v6365
    %6367 = vmatprep.mubr.bf16.mxu0 %v482
    %6368 = vmatmul.mubr.bf16.gmra.mrb[0].mxu0 %v481
    %v6369 = vpop.f32.mrb[0].mxu0
    %v6370 = vadd.f32 %v6257, %v6369
    %v6371 = vpop.f32.mrb[0].mxu0
    %v6372 = vadd.f32 %v6259, %v6371
    %v6373 = vpop.f32.mrb[0].mxu0
    %v6374 = vadd.f32 %v6261, %v6373
    %v6375 = vpop.f32.mrb[0].mxu0
    %v6376 = vadd.f32 %v6263, %v6375
    %6377 = vdwg.mxu0
    %6378 = vmatprep.subr.bf16.mxu0 %v4242
    %6379 = vmatpush1.bf16.msra.mxu0 %v4241
    %6380 = vmatprep.subr.bf16.mxu0 %v4250
    %6381 = vmatpush1.bf16.msra.mxu0 %v4249
    %6382 = vmatprep.subr.bf16.mxu0 %v4258
    %6383 = vmatpush1.bf16.msra.mxu0 %v4257
    %6384 = vmatprep.subr.bf16.mxu0 %v4266
    %6385 = vmatpush1.bf16.msra.mxu0 %v4265
    %6386 = vmatprep.subr.bf16.mxu0 %v4274
    %6387 = vmatpush1.bf16.msra.mxu0 %v4273
    %6388 = vmatprep.subr.bf16.mxu0 %v4282
    %6389 = vmatpush1.bf16.msra.mxu0 %v4281
    %6390 = vmatprep.subr.bf16.mxu0 %v4290
    %6391 = vmatpush1.bf16.msra.mxu0 %v4289
    %6392 = vmatprep.subr.bf16.mxu0 %v4298
    %6393 = vmatpush1.bf16.msra.mxu0 %v4297
    %6394 = vmatprep.subr.bf16.mxu0 %v4306
    %6395 = vmatpush1.bf16.msra.mxu0 %v4305
    %6396 = vmatprep.subr.bf16.mxu0 %v4314
    %6397 = vmatpush1.bf16.msra.mxu0 %v4313
    %6398 = vmatprep.subr.bf16.mxu0 %v4322
    %6399 = vmatpush1.bf16.msra.mxu0 %v4321
    %6400 = vmatprep.subr.bf16.mxu0 %v4330
    %6401 = vmatpush1.bf16.msra.mxu0 %v4329
    %6402 = vmatprep.subr.bf16.mxu0 %v4338
    %6403 = vmatpush1.bf16.msra.mxu0 %v4337
    %6404 = vmatprep.subr.bf16.mxu0 %v4346
    %6405 = vmatpush1.bf16.msra.mxu0 %v4345
    %6406 = vmatprep.subr.bf16.mxu0 %v4354
    %6407 = vmatpush1.bf16.msra.mxu0 %v4353
    %6408 = vmatprep.subr.bf16.mxu0 %v4362
    %6409 = vmatpush1.bf16.msra.mxu0 %v4361
    %6410 = vmatprep.mubr.bf16.mxu0 %v400
    %6411 = vmatmul.mubr.bf16.gmra.mrb[0].mxu0 %v399
    %v6412 = vpop.f32.mrb[0].mxu0
    %v6413 = vadd.f32 %v6300, %v6412
    %v6414 = vpop.f32.mrb[0].mxu0
    %v6415 = vadd.f32 %v6302, %v6414
    %v6416 = vpop.f32.mrb[0].mxu0
    %v6417 = vadd.f32 %v6304, %v6416
    %v6418 = vpop.f32.mrb[0].mxu0
    %v6419 = vadd.f32 %v6306, %v6418
    %6420 = vmatprep.mubr.bf16.mxu0 %v412
    %6421 = vmatmul.mubr.bf16.gmra.mrb[0].mxu0 %v411
    %v6422 = vpop.f32.mrb[0].mxu0
    %v6423 = vadd.f32 %v6310, %v6422
    %v6424 = vpop.f32.mrb[0].mxu0
    %v6425 = vadd.f32 %v6312, %v6424
    %v6426 = vpop.f32.mrb[0].mxu0
    %v6427 = vadd.f32 %v6314, %v6426
    %v6428 = vpop.f32.mrb[0].mxu0
    %v6429 = vadd.f32 %v6316, %v6428
    %6430 = vmatprep.mubr.bf16.mxu0 %v424
    %6431 = vmatmul.mubr.bf16.gmra.mrb[0].mxu0 %v423
    %v6432 = vpop.f32.mrb[0].mxu0
    %v6433 = vadd.f32 %v6320, %v6432
    %v6434 = vpop.f32.mrb[0].mxu0
    %v6435 = vadd.f32 %v6322, %v6434
    %v6436 = vpop.f32.mrb[0].mxu0
    %v6437 = vadd.f32 %v6324, %v6436
    %v6438 = vpop.f32.mrb[0].mxu0
    %v6439 = vadd.f32 %v6326, %v6438
    %6440 = vmatprep.mubr.bf16.mxu0 %v436
    %6441 = vmatmul.mubr.bf16.gmra.mrb[0].mxu0 %v435
    %v6442 = vpop.f32.mrb[0].mxu0
    %v6443 = vadd.f32 %v6330, %v6442
    %v6444 = vpop.f32.mrb[0].mxu0
    %v6445 = vadd.f32 %v6332, %v6444
    %v6446 = vpop.f32.mrb[0].mxu0
    %v6447 = vadd.f32 %v6334, %v6446
    %v6448 = vpop.f32.mrb[0].mxu0
    %v6449 = vadd.f32 %v6336, %v6448
    %6450 = vmatprep.mubr.bf16.mxu0 %v448
    %6451 = vmatmul.mubr.bf16.gmra.mrb[0].mxu0 %v447
    %v6452 = vpop.f32.mrb[0].mxu0
    %v6453 = vadd.f32 %v6340, %v6452
    %v6454 = vpop.f32.mrb[0].mxu0
    %v6455 = vadd.f32 %v6342, %v6454
    %v6456 = vpop.f32.mrb[0].mxu0
    %v6457 = vadd.f32 %v6344, %v6456
    %v6458 = vpop.f32.mrb[0].mxu0
    %v6459 = vadd.f32 %v6346, %v6458
    %6460 = vmatprep.mubr.bf16.mxu0 %v460
    %6461 = vmatmul.mubr.bf16.gmra.mrb[0].mxu0 %v459
    %v6462 = vpop.f32.mrb[0].mxu0
    %v6463 = vadd.f32 %v6350, %v6462
    %v6464 = vpop.f32.mrb[0].mxu0
    %v6465 = vadd.f32 %v6352, %v6464
    %v6466 = vpop.f32.mrb[0].mxu0
    %v6467 = vadd.f32 %v6354, %v6466
    %v6468 = vpop.f32.mrb[0].mxu0
    %v6469 = vadd.f32 %v6356, %v6468
    %6470 = vmatprep.mubr.bf16.mxu0 %v472
    %6471 = vmatmul.mubr.bf16.gmra.mrb[0].mxu0 %v471
    %v6472 = vpop.f32.mrb[0].mxu0
    %v6473 = vadd.f32 %v6360, %v6472
    %v6474 = vpop.f32.mrb[0].mxu0
    %v6475 = vadd.f32 %v6362, %v6474
    %v6476 = vpop.f32.mrb[0].mxu0
    %v6477 = vadd.f32 %v6364, %v6476
    %v6478 = vpop.f32.mrb[0].mxu0
    %v6479 = vadd.f32 %v6366, %v6478
    %6480 = vmatprep.mubr.bf16.mxu0 %v484
    %6481 = vmatmul.mubr.bf16.gmra.mrb[0].mxu0 %v483
    %v6482 = vpop.f32.mrb[0].mxu0
    %v6483 = vadd.f32 %v6370, %v6482
    %v6484 = vpop.f32.mrb[0].mxu0
    %v6485 = vadd.f32 %v6372, %v6484
    %v6486 = vpop.f32.mrb[0].mxu0
    %v6487 = vadd.f32 %v6374, %v6486
    %v6488 = vpop.f32.mrb[0].mxu0
    %v6489 = vadd.f32 %v6376, %v6488
    %6490 = vdwg.mxu0
    %6491 = vmatprep.subr.bf16.mxu0 %v3604
    %6492 = vmatpush1.bf16.msra.mxu0 %v3603
    %6493 = vmatprep.subr.bf16.mxu0 %v3612
    %6494 = vmatpush1.bf16.msra.mxu0 %v3611
    %6495 = vmatprep.subr.bf16.mxu0 %v3620
    %6496 = vmatpush1.bf16.msra.mxu0 %v3619
    %6497 = vmatprep.subr.bf16.mxu0 %v3628
    %6498 = vmatpush1.bf16.msra.mxu0 %v3627
    %6499 = vmatprep.subr.bf16.mxu0 %v3636
    %6500 = vmatpush1.bf16.msra.mxu0 %v3635
    %6501 = vmatprep.subr.bf16.mxu0 %v3644
    %6502 = vmatpush1.bf16.msra.mxu0 %v3643
    %6503 = vmatprep.subr.bf16.mxu0 %v3652
    %6504 = vmatpush1.bf16.msra.mxu0 %v3651
    %6505 = vmatprep.subr.bf16.mxu0 %v3660
    %6506 = vmatpush1.bf16.msra.mxu0 %v3659
    %6507 = vmatprep.subr.bf16.mxu0 %v3668
    %6508 = vmatpush1.bf16.msra.mxu0 %v3667
    %6509 = vmatprep.subr.bf16.mxu0 %v3676
    %6510 = vmatpush1.bf16.msra.mxu0 %v3675
    %6511 = vmatprep.subr.bf16.mxu0 %v3684
    %6512 = vmatpush1.bf16.msra.mxu0 %v3683
    %6513 = vmatprep.subr.bf16.mxu0 %v3692
    %6514 = vmatpush1.bf16.msra.mxu0 %v3691
    %6515 = vmatprep.subr.bf16.mxu0 %v3700
    %6516 = vmatpush1.bf16.msra.mxu0 %v3699
    %6517 = vmatprep.subr.bf16.mxu0 %v3708
    %6518 = vmatpush1.bf16.msra.mxu0 %v3707
    %6519 = vmatprep.subr.bf16.mxu0 %v3716
    %6520 = vmatpush1.bf16.msra.mxu0 %v3715
    %6521 = vmatprep.subr.bf16.mxu0 %v3724
    %6522 = vmatpush1.bf16.msra.mxu0 %v3723
    %6523 = vmatprep.mubr.bf16.mxu0 %v390
    %6524 = vmatmul.mubr.bf16.gmra.mrb[0].mxu0 %v389
    %v6525 = vpop.f32.mrb[0].mxu0
    %v6526 = vadd.f32 %v1274, %v6525
    %v6527 = vpop.f32.mrb[0].mxu0
    %v6528 = vadd.f32 %v1278, %v6527
    %v6529 = vpop.f32.mrb[0].mxu0
    %v6530 = vadd.f32 %v1274, %v6529
    %v6531 = vpop.f32.mrb[0].mxu0
    %v6532 = vadd.f32 %v1278, %v6531
    %6533 = vmatprep.mubr.bf16.mxu0 %v402
    %6534 = vmatmul.mubr.bf16.gmra.mrb[0].mxu0 %v401
    %v6535 = vpop.f32.mrb[0].mxu0
    %v6536 = vadd.f32 %v1274, %v6535
    %v6537 = vpop.f32.mrb[0].mxu0
    %v6538 = vadd.f32 %v1278, %v6537
    %v6539 = vpop.f32.mrb[0].mxu0
    %v6540 = vadd.f32 %v1274, %v6539
    %v6541 = vpop.f32.mrb[0].mxu0
    %v6542 = vadd.f32 %v1278, %v6541
    %6543 = vmatprep.mubr.bf16.mxu0 %v414
    %6544 = vmatmul.mubr.bf16.gmra.mrb[0].mxu0 %v413
    %v6545 = vpop.f32.mrb[0].mxu0
    %v6546 = vadd.f32 %v1274, %v6545
    %v6547 = vpop.f32.mrb[0].mxu0
    %v6548 = vadd.f32 %v1278, %v6547
    %v6549 = vpop.f32.mrb[0].mxu0
    %v6550 = vadd.f32 %v1274, %v6549
    %v6551 = vpop.f32.mrb[0].mxu0
    %v6552 = vadd.f32 %v1278, %v6551
    %6553 = vmatprep.mubr.bf16.mxu0 %v426
    %6554 = vmatmul.mubr.bf16.gmra.mrb[0].mxu0 %v425
    %v6555 = vpop.f32.mrb[0].mxu0
    %v6556 = vadd.f32 %v1274, %v6555
    %v6557 = vpop.f32.mrb[0].mxu0
    %v6558 = vadd.f32 %v1278, %v6557
    %v6559 = vpop.f32.mrb[0].mxu0
    %v6560 = vadd.f32 %v1274, %v6559
    %v6561 = vpop.f32.mrb[0].mxu0
    %v6562 = vadd.f32 %v1278, %v6561
    %6563 = vmatprep.mubr.bf16.mxu0 %v438
    %6564 = vmatmul.mubr.bf16.gmra.mrb[0].mxu0 %v437
    %v6565 = vpop.f32.mrb[0].mxu0
    %v6566 = vadd.f32 %v1274, %v6565
    %v6567 = vpop.f32.mrb[0].mxu0
    %v6568 = vadd.f32 %v1278, %v6567
    %v6569 = vpop.f32.mrb[0].mxu0
    %v6570 = vadd.f32 %v1274, %v6569
    %v6571 = vpop.f32.mrb[0].mxu0
    %v6572 = vadd.f32 %v1278, %v6571
    %6573 = vmatprep.mubr.bf16.mxu0 %v450
    %6574 = vmatmul.mubr.bf16.gmra.mrb[0].mxu0 %v449
    %v6575 = vpop.f32.mrb[0].mxu0
    %v6576 = vadd.f32 %v1274, %v6575
    %v6577 = vpop.f32.mrb[0].mxu0
    %v6578 = vadd.f32 %v1278, %v6577
    %v6579 = vpop.f32.mrb[0].mxu0
    %v6580 = vadd.f32 %v1274, %v6579
    %v6581 = vpop.f32.mrb[0].mxu0
    %v6582 = vadd.f32 %v1278, %v6581
    %6583 = vmatprep.mubr.bf16.mxu0 %v462
    %6584 = vmatmul.mubr.bf16.gmra.mrb[0].mxu0 %v461
    %v6585 = vpop.f32.mrb[0].mxu0
    %v6586 = vadd.f32 %v1274, %v6585
    %v6587 = vpop.f32.mrb[0].mxu0
    %v6588 = vadd.f32 %v1278, %v6587
    %v6589 = vpop.f32.mrb[0].mxu0
    %v6590 = vadd.f32 %v1274, %v6589
    %v6591 = vpop.f32.mrb[0].mxu0
    %v6592 = vadd.f32 %v1278, %v6591
    %6593 = vmatprep.mubr.bf16.mxu0 %v474
    %6594 = vmatmul.mubr.bf16.gmra.mrb[0].mxu0 %v473
    %v6595 = vpop.f32.mrb[0].mxu0
    %v6596 = vadd.f32 %v1274, %v6595
    %v6597 = vpop.f32.mrb[0].mxu0
    %v6598 = vadd.f32 %v1278, %v6597
    %v6599 = vpop.f32.mrb[0].mxu0
    %v6600 = vadd.f32 %v1274, %v6599
    %v6601 = vpop.f32.mrb[0].mxu0
    %v6602 = vadd.f32 %v1278, %v6601
    %6603 = vdwg.mxu0
    %6604 = vmatprep.subr.bf16.mxu0 %v3732
    %6605 = vmatpush1.bf16.msra.mxu0 %v3731
    %6606 = vmatprep.subr.bf16.mxu0 %v3740
    %6607 = vmatpush1.bf16.msra.mxu0 %v3739
    %6608 = vmatprep.subr.bf16.mxu0 %v3748
    %6609 = vmatpush1.bf16.msra.mxu0 %v3747
    %6610 = vmatprep.subr.bf16.mxu0 %v3756
    %6611 = vmatpush1.bf16.msra.mxu0 %v3755
    %6612 = vmatprep.subr.bf16.mxu0 %v3764
    %6613 = vmatpush1.bf16.msra.mxu0 %v3763
    %6614 = vmatprep.subr.bf16.mxu0 %v3772
    %6615 = vmatpush1.bf16.msra.mxu0 %v3771
    %6616 = vmatprep.subr.bf16.mxu0 %v3780
    %6617 = vmatpush1.bf16.msra.mxu0 %v3779
    %6618 = vmatprep.subr.bf16.mxu0 %v3788
    %6619 = vmatpush1.bf16.msra.mxu0 %v3787
    %6620 = vmatprep.subr.bf16.mxu0 %v3796
    %6621 = vmatpush1.bf16.msra.mxu0 %v3795
    %6622 = vmatprep.subr.bf16.mxu0 %v3804
    %6623 = vmatpush1.bf16.msra.mxu0 %v3803
    %6624 = vmatprep.subr.bf16.mxu0 %v3812
    %6625 = vmatpush1.bf16.msra.mxu0 %v3811
    %6626 = vmatprep.subr.bf16.mxu0 %v3820
    %6627 = vmatpush1.bf16.msra.mxu0 %v3819
    %6628 = vmatprep.subr.bf16.mxu0 %v3828
    %6629 = vmatpush1.bf16.msra.mxu0 %v3827
    %6630 = vmatprep.subr.bf16.mxu0 %v3836
    %6631 = vmatpush1.bf16.msra.mxu0 %v3835
    %6632 = vmatprep.subr.bf16.mxu0 %v3844
    %6633 = vmatpush1.bf16.msra.mxu0 %v3843
    %6634 = vmatprep.subr.bf16.mxu0 %v3852
    %6635 = vmatpush1.bf16.msra.mxu0 %v3851
    %6636 = vmatprep.mubr.bf16.mxu0 %v392
    %6637 = vmatmul.mubr.bf16.gmra.mrb[0].mxu0 %v391
    %v6638 = vpop.f32.mrb[0].mxu0
    %v6639 = vadd.f32 %v6526, %v6638
    %v6640 = vpop.f32.mrb[0].mxu0
    %v6641 = vadd.f32 %v6528, %v6640
    %v6642 = vpop.f32.mrb[0].mxu0
    %v6643 = vadd.f32 %v6530, %v6642
    %v6644 = vpop.f32.mrb[0].mxu0
    %v6645 = vadd.f32 %v6532, %v6644
    %6646 = vmatprep.mubr.bf16.mxu0 %v404
    %6647 = vmatmul.mubr.bf16.gmra.mrb[0].mxu0 %v403
    %v6648 = vpop.f32.mrb[0].mxu0
    %v6649 = vadd.f32 %v6536, %v6648
    %v6650 = vpop.f32.mrb[0].mxu0
    %v6651 = vadd.f32 %v6538, %v6650
    %v6652 = vpop.f32.mrb[0].mxu0
    %v6653 = vadd.f32 %v6540, %v6652
    %v6654 = vpop.f32.mrb[0].mxu0
    %v6655 = vadd.f32 %v6542, %v6654
    %6656 = vmatprep.mubr.bf16.mxu0 %v416
    %6657 = vmatmul.mubr.bf16.gmra.mrb[0].mxu0 %v415
    %v6658 = vpop.f32.mrb[0].mxu0
    %v6659 = vadd.f32 %v6546, %v6658
    %v6660 = vpop.f32.mrb[0].mxu0
    %v6661 = vadd.f32 %v6548, %v6660
    %v6662 = vpop.f32.mrb[0].mxu0
    %v6663 = vadd.f32 %v6550, %v6662
    %v6664 = vpop.f32.mrb[0].mxu0
    %v6665 = vadd.f32 %v6552, %v6664
    %6666 = vmatprep.mubr.bf16.mxu0 %v428
    %6667 = vmatmul.mubr.bf16.gmra.mrb[0].mxu0 %v427
    %v6668 = vpop.f32.mrb[0].mxu0
    %v6669 = vadd.f32 %v6556, %v6668
    %v6670 = vpop.f32.mrb[0].mxu0
    %v6671 = vadd.f32 %v6558, %v6670
    %v6672 = vpop.f32.mrb[0].mxu0
    %v6673 = vadd.f32 %v6560, %v6672
    %v6674 = vpop.f32.mrb[0].mxu0
    %v6675 = vadd.f32 %v6562, %v6674
    %6676 = vmatprep.mubr.bf16.mxu0 %v440
    %6677 = vmatmul.mubr.bf16.gmra.mrb[0].mxu0 %v439
    %v6678 = vpop.f32.mrb[0].mxu0
    %v6679 = vadd.f32 %v6566, %v6678
    %v6680 = vpop.f32.mrb[0].mxu0
    %v6681 = vadd.f32 %v6568, %v6680
    %v6682 = vpop.f32.mrb[0].mxu0
    %v6683 = vadd.f32 %v6570, %v6682
    %v6684 = vpop.f32.mrb[0].mxu0
    %v6685 = vadd.f32 %v6572, %v6684
    %6686 = vmatprep.mubr.bf16.mxu0 %v452
    %6687 = vmatmul.mubr.bf16.gmra.mrb[0].mxu0 %v451
    %v6688 = vpop.f32.mrb[0].mxu0
    %v6689 = vadd.f32 %v6576, %v6688
    %v6690 = vpop.f32.mrb[0].mxu0
    %v6691 = vadd.f32 %v6578, %v6690
    %v6692 = vpop.f32.mrb[0].mxu0
    %v6693 = vadd.f32 %v6580, %v6692
    %v6694 = vpop.f32.mrb[0].mxu0
    %v6695 = vadd.f32 %v6582, %v6694
    %6696 = vmatprep.mubr.bf16.mxu0 %v464
    %6697 = vmatmul.mubr.bf16.gmra.mrb[0].mxu0 %v463
    %v6698 = vpop.f32.mrb[0].mxu0
    %v6699 = vadd.f32 %v6586, %v6698
    %v6700 = vpop.f32.mrb[0].mxu0
    %v6701 = vadd.f32 %v6588, %v6700
    %v6702 = vpop.f32.mrb[0].mxu0
    %v6703 = vadd.f32 %v6590, %v6702
    %v6704 = vpop.f32.mrb[0].mxu0
    %v6705 = vadd.f32 %v6592, %v6704
    %6706 = vmatprep.mubr.bf16.mxu0 %v476
    %6707 = vmatmul.mubr.bf16.gmra.mrb[0].mxu0 %v475
    %v6708 = vpop.f32.mrb[0].mxu0
    %v6709 = vadd.f32 %v6596, %v6708
    %v6710 = vpop.f32.mrb[0].mxu0
    %v6711 = vadd.f32 %v6598, %v6710
    %v6712 = vpop.f32.mrb[0].mxu0
    %v6713 = vadd.f32 %v6600, %v6712
    %v6714 = vpop.f32.mrb[0].mxu0
    %v6715 = vadd.f32 %v6602, %v6714
    %6716 = vdwg.mxu0
    %6717 = vmatprep.subr.bf16.mxu0 %v3860
    %6718 = vmatpush1.bf16.msra.mxu0 %v3859
    %6719 = vmatprep.subr.bf16.mxu0 %v3868
    %6720 = vmatpush1.bf16.msra.mxu0 %v3867
    %6721 = vmatprep.subr.bf16.mxu0 %v3876
    %6722 = vmatpush1.bf16.msra.mxu0 %v3875
    %6723 = vmatprep.subr.bf16.mxu0 %v3884
    %6724 = vmatpush1.bf16.msra.mxu0 %v3883
    %6725 = vmatprep.subr.bf16.mxu0 %v3892
    %6726 = vmatpush1.bf16.msra.mxu0 %v3891
    %6727 = vmatprep.subr.bf16.mxu0 %v3900
    %6728 = vmatpush1.bf16.msra.mxu0 %v3899
    %6729 = vmatprep.subr.bf16.mxu0 %v3908
    %6730 = vmatpush1.bf16.msra.mxu0 %v3907
    %6731 = vmatprep.subr.bf16.mxu0 %v3916
    %6732 = vmatpush1.bf16.msra.mxu0 %v3915
    %6733 = vmatprep.subr.bf16.mxu0 %v3924
    %6734 = vmatpush1.bf16.msra.mxu0 %v3923
    %6735 = vmatprep.subr.bf16.mxu0 %v3932
    %6736 = vmatpush1.bf16.msra.mxu0 %v3931
    %6737 = vmatprep.subr.bf16.mxu0 %v3940
    %6738 = vmatpush1.bf16.msra.mxu0 %v3939
    %6739 = vmatprep.subr.bf16.mxu0 %v3948
    %6740 = vmatpush1.bf16.msra.mxu0 %v3947
    %6741 = vmatprep.subr.bf16.mxu0 %v3956
    %6742 = vmatpush1.bf16.msra.mxu0 %v3955
    %6743 = vmatprep.subr.bf16.mxu0 %v3964
    %6744 = vmatpush1.bf16.msra.mxu0 %v3963
    %6745 = vmatprep.subr.bf16.mxu0 %v3972
    %6746 = vmatpush1.bf16.msra.mxu0 %v3971
    %6747 = vmatprep.subr.bf16.mxu0 %v3980
    %6748 = vmatpush1.bf16.msra.mxu0 %v3979
    %6749 = vmatprep.mubr.bf16.mxu0 %v394
    %6750 = vmatmul.mubr.bf16.gmra.mrb[0].mxu0 %v393
    %v6751 = vpop.f32.mrb[0].mxu0
    %v6752 = vadd.f32 %v6639, %v6751
    %v6753 = vpop.f32.mrb[0].mxu0
    %v6754 = vadd.f32 %v6641, %v6753
    %v6755 = vpop.f32.mrb[0].mxu0
    %v6756 = vadd.f32 %v6643, %v6755
    %v6757 = vpop.f32.mrb[0].mxu0
    %v6758 = vadd.f32 %v6645, %v6757
    %6759 = vmatprep.mubr.bf16.mxu0 %v406
    %6760 = vmatmul.mubr.bf16.gmra.mrb[0].mxu0 %v405
    %v6761 = vpop.f32.mrb[0].mxu0
    %v6762 = vadd.f32 %v6649, %v6761
    %v6763 = vpop.f32.mrb[0].mxu0
    %v6764 = vadd.f32 %v6651, %v6763
    %v6765 = vpop.f32.mrb[0].mxu0
    %v6766 = vadd.f32 %v6653, %v6765
    %v6767 = vpop.f32.mrb[0].mxu0
    %v6768 = vadd.f32 %v6655, %v6767
    %6769 = vmatprep.mubr.bf16.mxu0 %v418
    %6770 = vmatmul.mubr.bf16.gmra.mrb[0].mxu0 %v417
    %v6771 = vpop.f32.mrb[0].mxu0
    %v6772 = vadd.f32 %v6659, %v6771
    %v6773 = vpop.f32.mrb[0].mxu0
    %v6774 = vadd.f32 %v6661, %v6773
    %v6775 = vpop.f32.mrb[0].mxu0
    %v6776 = vadd.f32 %v6663, %v6775
    %v6777 = vpop.f32.mrb[0].mxu0
    %v6778 = vadd.f32 %v6665, %v6777
    %6779 = vmatprep.mubr.bf16.mxu0 %v430
    %6780 = vmatmul.mubr.bf16.gmra.mrb[0].mxu0 %v429
    %v6781 = vpop.f32.mrb[0].mxu0
    %v6782 = vadd.f32 %v6669, %v6781
    %v6783 = vpop.f32.mrb[0].mxu0
    %v6784 = vadd.f32 %v6671, %v6783
    %v6785 = vpop.f32.mrb[0].mxu0
    %v6786 = vadd.f32 %v6673, %v6785
    %v6787 = vpop.f32.mrb[0].mxu0
    %v6788 = vadd.f32 %v6675, %v6787
    %6789 = vmatprep.mubr.bf16.mxu0 %v442
    %6790 = vmatmul.mubr.bf16.gmra.mrb[0].mxu0 %v441
    %v6791 = vpop.f32.mrb[0].mxu0
    %v6792 = vadd.f32 %v6679, %v6791
    %v6793 = vpop.f32.mrb[0].mxu0
    %v6794 = vadd.f32 %v6681, %v6793
    %v6795 = vpop.f32.mrb[0].mxu0
    %v6796 = vadd.f32 %v6683, %v6795
    %v6797 = vpop.f32.mrb[0].mxu0
    %v6798 = vadd.f32 %v6685, %v6797
    %6799 = vmatprep.mubr.bf16.mxu0 %v454
    %6800 = vmatmul.mubr.bf16.gmra.mrb[0].mxu0 %v453
    %v6801 = vpop.f32.mrb[0].mxu0
    %v6802 = vadd.f32 %v6689, %v6801
    %v6803 = vpop.f32.mrb[0].mxu0
    %v6804 = vadd.f32 %v6691, %v6803
    %v6805 = vpop.f32.mrb[0].mxu0
    %v6806 = vadd.f32 %v6693, %v6805
    %v6807 = vpop.f32.mrb[0].mxu0
    %v6808 = vadd.f32 %v6695, %v6807
    %6809 = vmatprep.mubr.bf16.mxu0 %v466
    %6810 = vmatmul.mubr.bf16.gmra.mrb[0].mxu0 %v465
    %v6811 = vpop.f32.mrb[0].mxu0
    %v6812 = vadd.f32 %v6699, %v6811
    %v6813 = vpop.f32.mrb[0].mxu0
    %v6814 = vadd.f32 %v6701, %v6813
    %v6815 = vpop.f32.mrb[0].mxu0
    %v6816 = vadd.f32 %v6703, %v6815
    %v6817 = vpop.f32.mrb[0].mxu0
    %v6818 = vadd.f32 %v6705, %v6817
    %6819 = vmatprep.mubr.bf16.mxu0 %v478
    %6820 = vmatmul.mubr.bf16.gmra.mrb[0].mxu0 %v477
    %v6821 = vpop.f32.mrb[0].mxu0
    %v6822 = vadd.f32 %v6709, %v6821
    %v6823 = vpop.f32.mrb[0].mxu0
    %v6824 = vadd.f32 %v6711, %v6823
    %v6825 = vpop.f32.mrb[0].mxu0
    %v6826 = vadd.f32 %v6713, %v6825
    %v6827 = vpop.f32.mrb[0].mxu0
    %v6828 = vadd.f32 %v6715, %v6827
    %6829 = vdwg.mxu0
    %6830 = vmatprep.subr.bf16.mxu0 %v3988
    %6831 = vmatpush1.bf16.msra.mxu0 %v3987
    %6832 = vmatprep.subr.bf16.mxu0 %v3996
    %6833 = vmatpush1.bf16.msra.mxu0 %v3995
    %6834 = vmatprep.subr.bf16.mxu0 %v4004
    %6835 = vmatpush1.bf16.msra.mxu0 %v4003
    %6836 = vmatprep.subr.bf16.mxu0 %v4012
    %6837 = vmatpush1.bf16.msra.mxu0 %v4011
    %6838 = vmatprep.subr.bf16.mxu0 %v4020
    %6839 = vmatpush1.bf16.msra.mxu0 %v4019
    %6840 = vmatprep.subr.bf16.mxu0 %v4028
    %6841 = vmatpush1.bf16.msra.mxu0 %v4027
    %6842 = vmatprep.subr.bf16.mxu0 %v4036
    %6843 = vmatpush1.bf16.msra.mxu0 %v4035
    %6844 = vmatprep.subr.bf16.mxu0 %v4044
    %6845 = vmatpush1.bf16.msra.mxu0 %v4043
    %6846 = vmatprep.subr.bf16.mxu0 %v4052
    %6847 = vmatpush1.bf16.msra.mxu0 %v4051
    %6848 = vmatprep.subr.bf16.mxu0 %v4060
    %6849 = vmatpush1.bf16.msra.mxu0 %v4059
    %6850 = vmatprep.subr.bf16.mxu0 %v4068
    %6851 = vmatpush1.bf16.msra.mxu0 %v4067
    %6852 = vmatprep.subr.bf16.mxu0 %v4076
    %6853 = vmatpush1.bf16.msra.mxu0 %v4075
    %6854 = vmatprep.subr.bf16.mxu0 %v4084
    %6855 = vmatpush1.bf16.msra.mxu0 %v4083
    %6856 = vmatprep.subr.bf16.mxu0 %v4092
    %6857 = vmatpush1.bf16.msra.mxu0 %v4091
    %6858 = vmatprep.subr.bf16.mxu0 %v4100
    %6859 = vmatpush1.bf16.msra.mxu0 %v4099
    %6860 = vmatprep.subr.bf16.mxu0 %v4108
    %6861 = vmatpush1.bf16.msra.mxu0 %v4107
    %6862 = vmatprep.mubr.bf16.mxu0 %v396
    %6863 = vmatmul.mubr.bf16.gmra.mrb[0].mxu0 %v395
    %v6864 = vpop.f32.mrb[0].mxu0
    %v6865 = vadd.f32 %v6752, %v6864
    %v6866 = vpop.f32.mrb[0].mxu0
    %v6867 = vadd.f32 %v6754, %v6866
    %v6868 = vpop.f32.mrb[0].mxu0
    %v6869 = vadd.f32 %v6756, %v6868
    %v6870 = vpop.f32.mrb[0].mxu0
    %v6871 = vadd.f32 %v6758, %v6870
    %6872 = vmatprep.mubr.bf16.mxu0 %v408
    %6873 = vmatmul.mubr.bf16.gmra.mrb[0].mxu0 %v407
    %v6874 = vpop.f32.mrb[0].mxu0
    %v6875 = vadd.f32 %v6762, %v6874
    %v6876 = vpop.f32.mrb[0].mxu0
    %v6877 = vadd.f32 %v6764, %v6876
    %v6878 = vpop.f32.mrb[0].mxu0
    %v6879 = vadd.f32 %v6766, %v6878
    %v6880 = vpop.f32.mrb[0].mxu0
    %v6881 = vadd.f32 %v6768, %v6880
    %6882 = vmatprep.mubr.bf16.mxu0 %v420
    %6883 = vmatmul.mubr.bf16.gmra.mrb[0].mxu0 %v419
    %v6884 = vpop.f32.mrb[0].mxu0
    %v6885 = vadd.f32 %v6772, %v6884
    %v6886 = vpop.f32.mrb[0].mxu0
    %v6887 = vadd.f32 %v6774, %v6886
    %v6888 = vpop.f32.mrb[0].mxu0
    %v6889 = vadd.f32 %v6776, %v6888
    %v6890 = vpop.f32.mrb[0].mxu0
    %v6891 = vadd.f32 %v6778, %v6890
    %6892 = vmatprep.mubr.bf16.mxu0 %v432
    %6893 = vmatmul.mubr.bf16.gmra.mrb[0].mxu0 %v431
    %v6894 = vpop.f32.mrb[0].mxu0
    %v6895 = vadd.f32 %v6782, %v6894
    %v6896 = vpop.f32.mrb[0].mxu0
    %v6897 = vadd.f32 %v6784, %v6896
    %v6898 = vpop.f32.mrb[0].mxu0
    %v6899 = vadd.f32 %v6786, %v6898
    %v6900 = vpop.f32.mrb[0].mxu0
    %v6901 = vadd.f32 %v6788, %v6900
    %6902 = vmatprep.mubr.bf16.mxu0 %v444
    %6903 = vmatmul.mubr.bf16.gmra.mrb[0].mxu0 %v443
    %v6904 = vpop.f32.mrb[0].mxu0
    %v6905 = vadd.f32 %v6792, %v6904
    %v6906 = vpop.f32.mrb[0].mxu0
    %v6907 = vadd.f32 %v6794, %v6906
    %v6908 = vpop.f32.mrb[0].mxu0
    %v6909 = vadd.f32 %v6796, %v6908
    %v6910 = vpop.f32.mrb[0].mxu0
    %v6911 = vadd.f32 %v6798, %v6910
    %6912 = vmatprep.mubr.bf16.mxu0 %v456
    %6913 = vmatmul.mubr.bf16.gmra.mrb[0].mxu0 %v455
    %v6914 = vpop.f32.mrb[0].mxu0
    %v6915 = vadd.f32 %v6802, %v6914
    %v6916 = vpop.f32.mrb[0].mxu0
    %v6917 = vadd.f32 %v6804, %v6916
    %v6918 = vpop.f32.mrb[0].mxu0
    %v6919 = vadd.f32 %v6806, %v6918
    %v6920 = vpop.f32.mrb[0].mxu0
    %v6921 = vadd.f32 %v6808, %v6920
    %6922 = vmatprep.mubr.bf16.mxu0 %v468
    %6923 = vmatmul.mubr.bf16.gmra.mrb[0].mxu0 %v467
    %v6924 = vpop.f32.mrb[0].mxu0
    %v6925 = vadd.f32 %v6812, %v6924
    %v6926 = vpop.f32.mrb[0].mxu0
    %v6927 = vadd.f32 %v6814, %v6926
    %v6928 = vpop.f32.mrb[0].mxu0
    %v6929 = vadd.f32 %v6816, %v6928
    %v6930 = vpop.f32.mrb[0].mxu0
    %v6931 = vadd.f32 %v6818, %v6930
    %6932 = vmatprep.mubr.bf16.mxu0 %v480
    %6933 = vmatmul.mubr.bf16.gmra.mrb[0].mxu0 %v479
    %v6934 = vpop.f32.mrb[0].mxu0
    %v6935 = vadd.f32 %v6822, %v6934
    %v6936 = vpop.f32.mrb[0].mxu0
    %v6937 = vadd.f32 %v6824, %v6936
    %v6938 = vpop.f32.mrb[0].mxu0
    %v6939 = vadd.f32 %v6826, %v6938
    %v6940 = vpop.f32.mrb[0].mxu0
    %v6941 = vadd.f32 %v6828, %v6940
    %6942 = vdwg.mxu0
    %6943 = vmatprep.subr.bf16.mxu0 %v4116
    %6944 = vmatpush1.bf16.msra.mxu0 %v4115
    %6945 = vmatprep.subr.bf16.mxu0 %v4124
    %6946 = vmatpush1.bf16.msra.mxu0 %v4123
    %6947 = vmatprep.subr.bf16.mxu0 %v4132
    %6948 = vmatpush1.bf16.msra.mxu0 %v4131
    %6949 = vmatprep.subr.bf16.mxu0 %v4140
    %6950 = vmatpush1.bf16.msra.mxu0 %v4139
    %6951 = vmatprep.subr.bf16.mxu0 %v4148
    %6952 = vmatpush1.bf16.msra.mxu0 %v4147
    %6953 = vmatprep.subr.bf16.mxu0 %v4156
    %6954 = vmatpush1.bf16.msra.mxu0 %v4155
    %6955 = vmatprep.subr.bf16.mxu0 %v4164
    %6956 = vmatpush1.bf16.msra.mxu0 %v4163
    %6957 = vmatprep.subr.bf16.mxu0 %v4172
    %6958 = vmatpush1.bf16.msra.mxu0 %v4171
    %6959 = vmatprep.subr.bf16.mxu0 %v4180
    %6960 = vmatpush1.bf16.msra.mxu0 %v4179
    %6961 = vmatprep.subr.bf16.mxu0 %v4188
    %6962 = vmatpush1.bf16.msra.mxu0 %v4187
    %6963 = vmatprep.subr.bf16.mxu0 %v4196
    %6964 = vmatpush1.bf16.msra.mxu0 %v4195
    %6965 = vmatprep.subr.bf16.mxu0 %v4204
    %6966 = vmatpush1.bf16.msra.mxu0 %v4203
    %6967 = vmatprep.subr.bf16.mxu0 %v4212
    %6968 = vmatpush1.bf16.msra.mxu0 %v4211
    %6969 = vmatprep.subr.bf16.mxu0 %v4220
    %6970 = vmatpush1.bf16.msra.mxu0 %v4219
    %6971 = vmatprep.subr.bf16.mxu0 %v4228
    %6972 = vmatpush1.bf16.msra.mxu0 %v4227
    %6973 = vmatprep.subr.bf16.mxu0 %v4236
    %6974 = vmatpush1.bf16.msra.mxu0 %v4235
    %6975 = vmatprep.mubr.bf16.mxu0 %v398
    %6976 = vmatmul.mubr.bf16.gmra.mrb[0].mxu0 %v397
    %v6977 = vpop.f32.mrb[0].mxu0
    %v6978 = vadd.f32 %v6865, %v6977
    %v6979 = vpop.f32.mrb[0].mxu0
    %v6980 = vadd.f32 %v6867, %v6979
    %v6981 = vpop.f32.mrb[0].mxu0
    %v6982 = vadd.f32 %v6869, %v6981
    %v6983 = vpop.f32.mrb[0].mxu0
    %v6984 = vadd.f32 %v6871, %v6983
    %6985 = vmatprep.mubr.bf16.mxu0 %v410
    %6986 = vmatmul.mubr.bf16.gmra.mrb[0].mxu0 %v409
    %v6987 = vpop.f32.mrb[0].mxu0
    %v6988 = vadd.f32 %v6875, %v6987
    %v6989 = vpop.f32.mrb[0].mxu0
    %v6990 = vadd.f32 %v6877, %v6989
    %v6991 = vpop.f32.mrb[0].mxu0
    %v6992 = vadd.f32 %v6879, %v6991
    %v6993 = vpop.f32.mrb[0].mxu0
    %v6994 = vadd.f32 %v6881, %v6993
    %6995 = vmatprep.mubr.bf16.mxu0 %v422
    %6996 = vmatmul.mubr.bf16.gmra.mrb[0].mxu0 %v421
    %v6997 = vpop.f32.mrb[0].mxu0
    %v6998 = vadd.f32 %v6885, %v6997
    %v6999 = vpop.f32.mrb[0].mxu0
    %v7000 = vadd.f32 %v6887, %v6999
    %v7001 = vpop.f32.mrb[0].mxu0
    %v7002 = vadd.f32 %v6889, %v7001
    %v7003 = vpop.f32.mrb[0].mxu0
    %v7004 = vadd.f32 %v6891, %v7003
    %7005 = vmatprep.mubr.bf16.mxu0 %v434
    %7006 = vmatmul.mubr.bf16.gmra.mrb[0].mxu0 %v433
    %v7007 = vpop.f32.mrb[0].mxu0
    %v7008 = vadd.f32 %v6895, %v7007
    %v7009 = vpop.f32.mrb[0].mxu0
    %v7010 = vadd.f32 %v6897, %v7009
    %v7011 = vpop.f32.mrb[0].mxu0
    %v7012 = vadd.f32 %v6899, %v7011
    %v7013 = vpop.f32.mrb[0].mxu0
    %v7014 = vadd.f32 %v6901, %v7013
    %7015 = vmatprep.mubr.bf16.mxu0 %v446
    %7016 = vmatmul.mubr.bf16.gmra.mrb[0].mxu0 %v445
    %v7017 = vpop.f32.mrb[0].mxu0
    %v7018 = vadd.f32 %v6905, %v7017
    %v7019 = vpop.f32.mrb[0].mxu0
    %v7020 = vadd.f32 %v6907, %v7019
    %v7021 = vpop.f32.mrb[0].mxu0
    %v7022 = vadd.f32 %v6909, %v7021
    %v7023 = vpop.f32.mrb[0].mxu0
    %v7024 = vadd.f32 %v6911, %v7023
    %7025 = vmatprep.mubr.bf16.mxu0 %v458
    %7026 = vmatmul.mubr.bf16.gmra.mrb[0].mxu0 %v457
    %v7027 = vpop.f32.mrb[0].mxu0
    %v7028 = vadd.f32 %v6915, %v7027
    %v7029 = vpop.f32.mrb[0].mxu0
    %v7030 = vadd.f32 %v6917, %v7029
    %v7031 = vpop.f32.mrb[0].mxu0
    %v7032 = vadd.f32 %v6919, %v7031
    %v7033 = vpop.f32.mrb[0].mxu0
    %v7034 = vadd.f32 %v6921, %v7033
    %7035 = vmatprep.mubr.bf16.mxu0 %v470
    %7036 = vmatmul.mubr.bf16.gmra.mrb[0].mxu0 %v469
    %v7037 = vpop.f32.mrb[0].mxu0
    %v7038 = vadd.f32 %v6925, %v7037
    %v7039 = vpop.f32.mrb[0].mxu0
    %v7040 = vadd.f32 %v6927, %v7039
    %v7041 = vpop.f32.mrb[0].mxu0
    %v7042 = vadd.f32 %v6929, %v7041
    %v7043 = vpop.f32.mrb[0].mxu0
    %v7044 = vadd.f32 %v6931, %v7043
    %7045 = vmatprep.mubr.bf16.mxu0 %v482
    %7046 = vmatmul.mubr.bf16.gmra.mrb[0].mxu0 %v481
    %v7047 = vpop.f32.mrb[0].mxu0
    %v7048 = vadd.f32 %v6935, %v7047
    %v7049 = vpop.f32.mrb[0].mxu0
    %v7050 = vadd.f32 %v6937, %v7049
    %v7051 = vpop.f32.mrb[0].mxu0
    %v7052 = vadd.f32 %v6939, %v7051
    %v7053 = vpop.f32.mrb[0].mxu0
    %v7054 = vadd.f32 %v6941, %v7053
    %7055 = vdwg.mxu0
    %7056 = vmatprep.subr.bf16.mxu0 %v4244
    %7057 = vmatpush1.bf16.msra.mxu0 %v4243
    %7058 = vmatprep.subr.bf16.mxu0 %v4252
    %7059 = vmatpush1.bf16.msra.mxu0 %v4251
    %7060 = vmatprep.subr.bf16.mxu0 %v4260
    %7061 = vmatpush1.bf16.msra.mxu0 %v4259
    %7062 = vmatprep.subr.bf16.mxu0 %v4268
    %7063 = vmatpush1.bf16.msra.mxu0 %v4267
    %7064 = vmatprep.subr.bf16.mxu0 %v4276
    %7065 = vmatpush1.bf16.msra.mxu0 %v4275
    %7066 = vmatprep.subr.bf16.mxu0 %v4284
    %7067 = vmatpush1.bf16.msra.mxu0 %v4283
    %7068 = vmatprep.subr.bf16.mxu0 %v4292
    %7069 = vmatpush1.bf16.msra.mxu0 %v4291
    %7070 = vmatprep.subr.bf16.mxu0 %v4300
    %7071 = vmatpush1.bf16.msra.mxu0 %v4299
    %7072 = vmatprep.subr.bf16.mxu0 %v4308
    %7073 = vmatpush1.bf16.msra.mxu0 %v4307
    %7074 = vmatprep.subr.bf16.mxu0 %v4316
    %7075 = vmatpush1.bf16.msra.mxu0 %v4315
    %7076 = vmatprep.subr.bf16.mxu0 %v4324
    %7077 = vmatpush1.bf16.msra.mxu0 %v4323
    %7078 = vmatprep.subr.bf16.mxu0 %v4332
    %7079 = vmatpush1.bf16.msra.mxu0 %v4331
    %7080 = vmatprep.subr.bf16.mxu0 %v4340
    %7081 = vmatpush1.bf16.msra.mxu0 %v4339
    %7082 = vmatprep.subr.bf16.mxu0 %v4348
    %7083 = vmatpush1.bf16.msra.mxu0 %v4347
    %7084 = vmatprep.subr.bf16.mxu0 %v4356
    %7085 = vmatpush1.bf16.msra.mxu0 %v4355
    %7086 = vmatprep.subr.bf16.mxu0 %v4364
    %7087 = vmatpush1.bf16.msra.mxu0 %v4363
    %7088 = vmatprep.mubr.bf16.mxu0 %v400
    %7089 = vmatmul.mubr.bf16.gmra.mrb[0].mxu0 %v399
    %v7090 = vpop.f32.mrb[0].mxu0
    %v7091 = vadd.f32 %v6978, %v7090
    %v7092 = vpop.f32.mrb[0].mxu0
    %v7093 = vadd.f32 %v6980, %v7092
    %v7094 = vpop.f32.mrb[0].mxu0
    %v7095 = vadd.f32 %v6982, %v7094
    %v7096 = vpop.f32.mrb[0].mxu0
    %v7097 = vadd.f32 %v6984, %v7096
    %7098 = vmatprep.mubr.bf16.mxu0 %v412
    %7099 = vmatmul.mubr.bf16.gmra.mrb[0].mxu0 %v411
    %v7100 = vpop.f32.mrb[0].mxu0
    %v7101 = vadd.f32 %v6988, %v7100
    %v7102 = vpop.f32.mrb[0].mxu0
    %v7103 = vadd.f32 %v6990, %v7102
    %v7104 = vpop.f32.mrb[0].mxu0
    %v7105 = vadd.f32 %v6992, %v7104
    %v7106 = vpop.f32.mrb[0].mxu0
    %v7107 = vadd.f32 %v6994, %v7106
    %7108 = vmatprep.mubr.bf16.mxu0 %v424
    %7109 = vmatmul.mubr.bf16.gmra.mrb[0].mxu0 %v423
    %v7110 = vpop.f32.mrb[0].mxu0
    %v7111 = vadd.f32 %v6998, %v7110
    %v7112 = vpop.f32.mrb[0].mxu0
    %v7113 = vadd.f32 %v7000, %v7112
    %v7114 = vpop.f32.mrb[0].mxu0
    %v7115 = vadd.f32 %v7002, %v7114
    %v7116 = vpop.f32.mrb[0].mxu0
    %v7117 = vadd.f32 %v7004, %v7116
    %7118 = vmatprep.mubr.bf16.mxu0 %v436
    %7119 = vmatmul.mubr.bf16.gmra.mrb[0].mxu0 %v435
    %v7120 = vpop.f32.mrb[0].mxu0
    %v7121 = vadd.f32 %v7008, %v7120
    %v7122 = vpop.f32.mrb[0].mxu0
    %v7123 = vadd.f32 %v7010, %v7122
    %v7124 = vpop.f32.mrb[0].mxu0
    %v7125 = vadd.f32 %v7012, %v7124
    %v7126 = vpop.f32.mrb[0].mxu0
    %v7127 = vadd.f32 %v7014, %v7126
    %7128 = vmatprep.mubr.bf16.mxu0 %v448
    %7129 = vmatmul.mubr.bf16.gmra.mrb[0].mxu0 %v447
    %v7130 = vpop.f32.mrb[0].mxu0
    %v7131 = vadd.f32 %v7018, %v7130
    %v7132 = vpop.f32.mrb[0].mxu0
    %v7133 = vadd.f32 %v7020, %v7132
    %v7134 = vpop.f32.mrb[0].mxu0
    %v7135 = vadd.f32 %v7022, %v7134
    %v7136 = vpop.f32.mrb[0].mxu0
    %v7137 = vadd.f32 %v7024, %v7136
    %7138 = vmatprep.mubr.bf16.mxu0 %v460
    %7139 = vmatmul.mubr.bf16.gmra.mrb[0].mxu0 %v459
    %v7140 = vpop.f32.mrb[0].mxu0
    %v7141 = vadd.f32 %v7028, %v7140
    %v7142 = vpop.f32.mrb[0].mxu0
    %v7143 = vadd.f32 %v7030, %v7142
    %v7144 = vpop.f32.mrb[0].mxu0
    %v7145 = vadd.f32 %v7032, %v7144
    %v7146 = vpop.f32.mrb[0].mxu0
    %v7147 = vadd.f32 %v7034, %v7146
    %7148 = vmatprep.mubr.bf16.mxu0 %v472
    %7149 = vmatmul.mubr.bf16.gmra.mrb[0].mxu0 %v471
    %v7150 = vpop.f32.mrb[0].mxu0
    %v7151 = vadd.f32 %v7038, %v7150
    %v7152 = vpop.f32.mrb[0].mxu0
    %v7153 = vadd.f32 %v7040, %v7152
    %v7154 = vpop.f32.mrb[0].mxu0
    %v7155 = vadd.f32 %v7042, %v7154
    %v7156 = vpop.f32.mrb[0].mxu0
    %v7157 = vadd.f32 %v7044, %v7156
    %7158 = vmatprep.mubr.bf16.mxu0 %v484
    %7159 = vmatmul.mubr.bf16.gmra.mrb[0].mxu0 %v483
    %v7160 = vpop.f32.mrb[0].mxu0
    %v7161 = vadd.f32 %v7048, %v7160
    %v7162 = vpop.f32.mrb[0].mxu0
    %v7163 = vadd.f32 %v7050, %v7162
    %v7164 = vpop.f32.mrb[0].mxu0
    %v7165 = vadd.f32 %v7052, %v7164
    %v7166 = vpop.f32.mrb[0].mxu0
    %v7167 = vadd.f32 %v7054, %v7166
    %7168 = vdwg.mxu0
    %7169 = vmatprep.subr.bf16.mxu0 %v3606
    %7170 = vmatpush1.bf16.msra.mxu0 %v3605
    %7171 = vmatprep.subr.bf16.mxu0 %v3614
    %7172 = vmatpush1.bf16.msra.mxu0 %v3613
    %7173 = vmatprep.subr.bf16.mxu0 %v3622
    %7174 = vmatpush1.bf16.msra.mxu0 %v3621
    %7175 = vmatprep.subr.bf16.mxu0 %v3630
    %7176 = vmatpush1.bf16.msra.mxu0 %v3629
    %7177 = vmatprep.subr.bf16.mxu0 %v3638
    %7178 = vmatpush1.bf16.msra.mxu0 %v3637
    %7179 = vmatprep.subr.bf16.mxu0 %v3646
    %7180 = vmatpush1.bf16.msra.mxu0 %v3645
    %7181 = vmatprep.subr.bf16.mxu0 %v3654
    %7182 = vmatpush1.bf16.msra.mxu0 %v3653
    %7183 = vmatprep.subr.bf16.mxu0 %v3662
    %7184 = vmatpush1.bf16.msra.mxu0 %v3661
    %7185 = vmatprep.subr.bf16.mxu0 %v3670
    %7186 = vmatpush1.bf16.msra.mxu0 %v3669
    %7187 = vmatprep.subr.bf16.mxu0 %v3678
    %7188 = vmatpush1.bf16.msra.mxu0 %v3677
    %7189 = vmatprep.subr.bf16.mxu0 %v3686
    %7190 = vmatpush1.bf16.msra.mxu0 %v3685
    %7191 = vmatprep.subr.bf16.mxu0 %v3694
    %7192 = vmatpush1.bf16.msra.mxu0 %v3693
    %7193 = vmatprep.subr.bf16.mxu0 %v3702
    %7194 = vmatpush1.bf16.msra.mxu0 %v3701
    %7195 = vmatprep.subr.bf16.mxu0 %v3710
    %7196 = vmatpush1.bf16.msra.mxu0 %v3709
    %7197 = vmatprep.subr.bf16.mxu0 %v3718
    %7198 = vmatpush1.bf16.msra.mxu0 %v3717
    %7199 = vmatprep.subr.bf16.mxu0 %v3726
    %7200 = vmatpush1.bf16.msra.mxu0 %v3725
    %7201 = vmatprep.mubr.bf16.mxu0 %v390
    %7202 = vmatmul.mubr.bf16.gmra.mrb[0].mxu0 %v389
    %v7203 = vpop.f32.mrb[0].mxu0
    %v7204 = vadd.f32 %v1282, %v7203
    %v7205 = vpop.f32.mrb[0].mxu0
    %v7206 = vadd.f32 %v1286, %v7205
    %v7207 = vpop.f32.mrb[0].mxu0
    %v7208 = vadd.f32 %v1282, %v7207
    %v7209 = vpop.f32.mrb[0].mxu0
    %v7210 = vadd.f32 %v1286, %v7209
    %7211 = vmatprep.mubr.bf16.mxu0 %v402
    %7212 = vmatmul.mubr.bf16.gmra.mrb[0].mxu0 %v401
    %v7213 = vpop.f32.mrb[0].mxu0
    %v7214 = vadd.f32 %v1282, %v7213
    %v7215 = vpop.f32.mrb[0].mxu0
    %v7216 = vadd.f32 %v1286, %v7215
    %v7217 = vpop.f32.mrb[0].mxu0
    %v7218 = vadd.f32 %v1282, %v7217
    %v7219 = vpop.f32.mrb[0].mxu0
    %v7220 = vadd.f32 %v1286, %v7219
    %7221 = vmatprep.mubr.bf16.mxu0 %v414
    %7222 = vmatmul.mubr.bf16.gmra.mrb[0].mxu0 %v413
    %v7223 = vpop.f32.mrb[0].mxu0
    %v7224 = vadd.f32 %v1282, %v7223
    %v7225 = vpop.f32.mrb[0].mxu0
    %v7226 = vadd.f32 %v1286, %v7225
    %v7227 = vpop.f32.mrb[0].mxu0
    %v7228 = vadd.f32 %v1282, %v7227
    %v7229 = vpop.f32.mrb[0].mxu0
    %v7230 = vadd.f32 %v1286, %v7229
    %7231 = vmatprep.mubr.bf16.mxu0 %v426
    %7232 = vmatmul.mubr.bf16.gmra.mrb[0].mxu0 %v425
    %v7233 = vpop.f32.mrb[0].mxu0
    %v7234 = vadd.f32 %v1282, %v7233
    %v7235 = vpop.f32.mrb[0].mxu0
    %v7236 = vadd.f32 %v1286, %v7235
    %v7237 = vpop.f32.mrb[0].mxu0
    %v7238 = vadd.f32 %v1282, %v7237
    %v7239 = vpop.f32.mrb[0].mxu0
    %v7240 = vadd.f32 %v1286, %v7239
    %7241 = vmatprep.mubr.bf16.mxu0 %v438
    %7242 = vmatmul.mubr.bf16.gmra.mrb[0].mxu0 %v437
    %v7243 = vpop.f32.mrb[0].mxu0
    %v7244 = vadd.f32 %v1282, %v7243
    %v7245 = vpop.f32.mrb[0].mxu0
    %v7246 = vadd.f32 %v1286, %v7245
    %v7247 = vpop.f32.mrb[0].mxu0
    %v7248 = vadd.f32 %v1282, %v7247
    %v7249 = vpop.f32.mrb[0].mxu0
    %v7250 = vadd.f32 %v1286, %v7249
    %7251 = vmatprep.mubr.bf16.mxu0 %v450
    %7252 = vmatmul.mubr.bf16.gmra.mrb[0].mxu0 %v449
    %v7253 = vpop.f32.mrb[0].mxu0
    %v7254 = vadd.f32 %v1282, %v7253
    %v7255 = vpop.f32.mrb[0].mxu0
    %v7256 = vadd.f32 %v1286, %v7255
    %v7257 = vpop.f32.mrb[0].mxu0
    %v7258 = vadd.f32 %v1282, %v7257
    %v7259 = vpop.f32.mrb[0].mxu0
    %v7260 = vadd.f32 %v1286, %v7259
    %7261 = vmatprep.mubr.bf16.mxu0 %v462
    %7262 = vmatmul.mubr.bf16.gmra.mrb[0].mxu0 %v461
    %v7263 = vpop.f32.mrb[0].mxu0
    %v7264 = vadd.f32 %v1282, %v7263
    %v7265 = vpop.f32.mrb[0].mxu0
    %v7266 = vadd.f32 %v1286, %v7265
    %v7267 = vpop.f32.mrb[0].mxu0
    %v7268 = vadd.f32 %v1282, %v7267
    %v7269 = vpop.f32.mrb[0].mxu0
    %v7270 = vadd.f32 %v1286, %v7269
    %7271 = vmatprep.mubr.bf16.mxu0 %v474
    %7272 = vmatmul.mubr.bf16.gmra.mrb[0].mxu0 %v473
    %v7273 = vpop.f32.mrb[0].mxu0
    %v7274 = vadd.f32 %v1282, %v7273
    %v7275 = vpop.f32.mrb[0].mxu0
    %v7276 = vadd.f32 %v1286, %v7275
    %v7277 = vpop.f32.mrb[0].mxu0
    %v7278 = vadd.f32 %v1282, %v7277
    %v7279 = vpop.f32.mrb[0].mxu0
    %v7280 = vadd.f32 %v1286, %v7279
    %7281 = vdwg.mxu0
    %7282 = vmatprep.subr.bf16.mxu0 %v3734
    %7283 = vmatpush1.bf16.msra.mxu0 %v3733
    %7284 = vmatprep.subr.bf16.mxu0 %v3742
    %7285 = vmatpush1.bf16.msra.mxu0 %v3741
    %7286 = vmatprep.subr.bf16.mxu0 %v3750
    %7287 = vmatpush1.bf16.msra.mxu0 %v3749
    %7288 = vmatprep.subr.bf16.mxu0 %v3758
    %7289 = vmatpush1.bf16.msra.mxu0 %v3757
    %7290 = vmatprep.subr.bf16.mxu0 %v3766
    %7291 = vmatpush1.bf16.msra.mxu0 %v3765
    %7292 = vmatprep.subr.bf16.mxu0 %v3774
    %7293 = vmatpush1.bf16.msra.mxu0 %v3773
    %7294 = vmatprep.subr.bf16.mxu0 %v3782
    %7295 = vmatpush1.bf16.msra.mxu0 %v3781
    %7296 = vmatprep.subr.bf16.mxu0 %v3790
    %7297 = vmatpush1.bf16.msra.mxu0 %v3789
    %7298 = vmatprep.subr.bf16.mxu0 %v3798
    %7299 = vmatpush1.bf16.msra.mxu0 %v3797
    %7300 = vmatprep.subr.bf16.mxu0 %v3806
    %7301 = vmatpush1.bf16.msra.mxu0 %v3805
    %7302 = vmatprep.subr.bf16.mxu0 %v3814
    %7303 = vmatpush1.bf16.msra.mxu0 %v3813
    %7304 = vmatprep.subr.bf16.mxu0 %v3822
    %7305 = vmatpush1.bf16.msra.mxu0 %v3821
    %7306 = vmatprep.subr.bf16.mxu0 %v3830
    %7307 = vmatpush1.bf16.msra.mxu0 %v3829
    %7308 = vmatprep.subr.bf16.mxu0 %v3838
    %7309 = vmatpush1.bf16.msra.mxu0 %v3837
    %7310 = vmatprep.subr.bf16.mxu0 %v3846
    %7311 = vmatpush1.bf16.msra.mxu0 %v3845
    %7312 = vmatprep.subr.bf16.mxu0 %v3854
    %7313 = vmatpush1.bf16.msra.mxu0 %v3853
    %7314 = vmatprep.mubr.bf16.mxu0 %v392
    %7315 = vmatmul.mubr.bf16.gmra.mrb[0].mxu0 %v391
    %v7316 = vpop.f32.mrb[0].mxu0
    %v7317 = vadd.f32 %v7204, %v7316
    %v7318 = vpop.f32.mrb[0].mxu0
    %v7319 = vadd.f32 %v7206, %v7318
    %v7320 = vpop.f32.mrb[0].mxu0
    %v7321 = vadd.f32 %v7208, %v7320
    %v7322 = vpop.f32.mrb[0].mxu0
    %v7323 = vadd.f32 %v7210, %v7322
    %7324 = vmatprep.mubr.bf16.mxu0 %v404
    %7325 = vmatmul.mubr.bf16.gmra.mrb[0].mxu0 %v403
    %v7326 = vpop.f32.mrb[0].mxu0
    %v7327 = vadd.f32 %v7214, %v7326
    %v7328 = vpop.f32.mrb[0].mxu0
    %v7329 = vadd.f32 %v7216, %v7328
    %v7330 = vpop.f32.mrb[0].mxu0
    %v7331 = vadd.f32 %v7218, %v7330
    %v7332 = vpop.f32.mrb[0].mxu0
    %v7333 = vadd.f32 %v7220, %v7332
    %7334 = vmatprep.mubr.bf16.mxu0 %v416
    %7335 = vmatmul.mubr.bf16.gmra.mrb[0].mxu0 %v415
    %v7336 = vpop.f32.mrb[0].mxu0
    %v7337 = vadd.f32 %v7224, %v7336
    %v7338 = vpop.f32.mrb[0].mxu0
    %v7339 = vadd.f32 %v7226, %v7338
    %v7340 = vpop.f32.mrb[0].mxu0
    %v7341 = vadd.f32 %v7228, %v7340
    %v7342 = vpop.f32.mrb[0].mxu0
    %v7343 = vadd.f32 %v7230, %v7342
    %7344 = vmatprep.mubr.bf16.mxu0 %v428
    %7345 = vmatmul.mubr.bf16.gmra.mrb[0].mxu0 %v427
    %v7346 = vpop.f32.mrb[0].mxu0
    %v7347 = vadd.f32 %v7234, %v7346
    %v7348 = vpop.f32.mrb[0].mxu0
    %v7349 = vadd.f32 %v7236, %v7348
    %v7350 = vpop.f32.mrb[0].mxu0
    %v7351 = vadd.f32 %v7238, %v7350
    %v7352 = vpop.f32.mrb[0].mxu0
    %v7353 = vadd.f32 %v7240, %v7352
    %7354 = vmatprep.mubr.bf16.mxu0 %v440
    %7355 = vmatmul.mubr.bf16.gmra.mrb[0].mxu0 %v439
    %v7356 = vpop.f32.mrb[0].mxu0
    %v7357 = vadd.f32 %v7244, %v7356
    %v7358 = vpop.f32.mrb[0].mxu0
    %v7359 = vadd.f32 %v7246, %v7358
    %v7360 = vpop.f32.mrb[0].mxu0
    %v7361 = vadd.f32 %v7248, %v7360
    %v7362 = vpop.f32.mrb[0].mxu0
    %v7363 = vadd.f32 %v7250, %v7362
    %7364 = vmatprep.mubr.bf16.mxu0 %v452
    %7365 = vmatmul.mubr.bf16.gmra.mrb[0].mxu0 %v451
    %v7366 = vpop.f32.mrb[0].mxu0
    %v7367 = vadd.f32 %v7254, %v7366
    %v7368 = vpop.f32.mrb[0].mxu0
    %v7369 = vadd.f32 %v7256, %v7368
    %v7370 = vpop.f32.mrb[0].mxu0
    %v7371 = vadd.f32 %v7258, %v7370
    %v7372 = vpop.f32.mrb[0].mxu0
    %v7373 = vadd.f32 %v7260, %v7372
    %7374 = vmatprep.mubr.bf16.mxu0 %v464
    %7375 = vmatmul.mubr.bf16.gmra.mrb[0].mxu0 %v463
    %v7376 = vpop.f32.mrb[0].mxu0
    %v7377 = vadd.f32 %v7264, %v7376
    %v7378 = vpop.f32.mrb[0].mxu0
    %v7379 = vadd.f32 %v7266, %v7378
    %v7380 = vpop.f32.mrb[0].mxu0
    %v7381 = vadd.f32 %v7268, %v7380
    %v7382 = vpop.f32.mrb[0].mxu0
    %v7383 = vadd.f32 %v7270, %v7382
    %7384 = vmatprep.mubr.bf16.mxu0 %v476
    %7385 = vmatmul.mubr.bf16.gmra.mrb[0].mxu0 %v475
    %v7386 = vpop.f32.mrb[0].mxu0
    %v7387 = vadd.f32 %v7274, %v7386
    %v7388 = vpop.f32.mrb[0].mxu0
    %v7389 = vadd.f32 %v7276, %v7388
    %v7390 = vpop.f32.mrb[0].mxu0
    %v7391 = vadd.f32 %v7278, %v7390
    %v7392 = vpop.f32.mrb[0].mxu0
    %v7393 = vadd.f32 %v7280, %v7392
    %7394 = vdwg.mxu0
    %7395 = vmatprep.subr.bf16.mxu0 %v3862
    %7396 = vmatpush1.bf16.msra.mxu0 %v3861
    %7397 = vmatprep.subr.bf16.mxu0 %v3870
    %7398 = vmatpush1.bf16.msra.mxu0 %v3869
    %7399 = vmatprep.subr.bf16.mxu0 %v3878
    %7400 = vmatpush1.bf16.msra.mxu0 %v3877
    %7401 = vmatprep.subr.bf16.mxu0 %v3886
    %7402 = vmatpush1.bf16.msra.mxu0 %v3885
    %7403 = vmatprep.subr.bf16.mxu0 %v3894
    %7404 = vmatpush1.bf16.msra.mxu0 %v3893
    %7405 = vmatprep.subr.bf16.mxu0 %v3902
    %7406 = vmatpush1.bf16.msra.mxu0 %v3901
    %7407 = vmatprep.subr.bf16.mxu0 %v3910
    %7408 = vmatpush1.bf16.msra.mxu0 %v3909
    %7409 = vmatprep.subr.bf16.mxu0 %v3918
    %7410 = vmatpush1.bf16.msra.mxu0 %v3917
    %7411 = vmatprep.subr.bf16.mxu0 %v3926
    %7412 = vmatpush1.bf16.msra.mxu0 %v3925
    %7413 = vmatprep.subr.bf16.mxu0 %v3934
    %7414 = vmatpush1.bf16.msra.mxu0 %v3933
    %7415 = vmatprep.subr.bf16.mxu0 %v3942
    %7416 = vmatpush1.bf16.msra.mxu0 %v3941
    %7417 = vmatprep.subr.bf16.mxu0 %v3950
    %7418 = vmatpush1.bf16.msra.mxu0 %v3949
    %7419 = vmatprep.subr.bf16.mxu0 %v3958
    %7420 = vmatpush1.bf16.msra.mxu0 %v3957
    %7421 = vmatprep.subr.bf16.mxu0 %v3966
    %7422 = vmatpush1.bf16.msra.mxu0 %v3965
    %7423 = vmatprep.subr.bf16.mxu0 %v3974
    %7424 = vmatpush1.bf16.msra.mxu0 %v3973
    %7425 = vmatprep.subr.bf16.mxu0 %v3982
    %7426 = vmatpush1.bf16.msra.mxu0 %v3981
    %7427 = vmatprep.mubr.bf16.mxu0 %v394
    %7428 = vmatmul.mubr.bf16.gmra.mrb[0].mxu0 %v393
    %v7429 = vpop.f32.mrb[0].mxu0
    %v7430 = vadd.f32 %v7317, %v7429
    %v7431 = vpop.f32.mrb[0].mxu0
    %v7432 = vadd.f32 %v7319, %v7431
    %v7433 = vpop.f32.mrb[0].mxu0
    %v7434 = vadd.f32 %v7321, %v7433
    %v7435 = vpop.f32.mrb[0].mxu0
    %v7436 = vadd.f32 %v7323, %v7435
    %7437 = vmatprep.mubr.bf16.mxu0 %v406
    %7438 = vmatmul.mubr.bf16.gmra.mrb[0].mxu0 %v405
    %v7439 = vpop.f32.mrb[0].mxu0
    %v7440 = vadd.f32 %v7327, %v7439
    %v7441 = vpop.f32.mrb[0].mxu0
    %v7442 = vadd.f32 %v7329, %v7441
    %v7443 = vpop.f32.mrb[0].mxu0
    %v7444 = vadd.f32 %v7331, %v7443
    %v7445 = vpop.f32.mrb[0].mxu0
    %v7446 = vadd.f32 %v7333, %v7445
    %7447 = vmatprep.mubr.bf16.mxu0 %v418
    %7448 = vmatmul.mubr.bf16.gmra.mrb[0].mxu0 %v417
    %v7449 = vpop.f32.mrb[0].mxu0
    %v7450 = vadd.f32 %v7337, %v7449
    %v7451 = vpop.f32.mrb[0].mxu0
    %v7452 = vadd.f32 %v7339, %v7451
    %v7453 = vpop.f32.mrb[0].mxu0
    %v7454 = vadd.f32 %v7341, %v7453
    %v7455 = vpop.f32.mrb[0].mxu0
    %v7456 = vadd.f32 %v7343, %v7455
    %7457 = vmatprep.mubr.bf16.mxu0 %v430
    %7458 = vmatmul.mubr.bf16.gmra.mrb[0].mxu0 %v429
    %v7459 = vpop.f32.mrb[0].mxu0
    %v7460 = vadd.f32 %v7347, %v7459
    %v7461 = vpop.f32.mrb[0].mxu0
    %v7462 = vadd.f32 %v7349, %v7461
    %v7463 = vpop.f32.mrb[0].mxu0
    %v7464 = vadd.f32 %v7351, %v7463
    %v7465 = vpop.f32.mrb[0].mxu0
    %v7466 = vadd.f32 %v7353, %v7465
    %7467 = vmatprep.mubr.bf16.mxu0 %v442
    %7468 = vmatmul.mubr.bf16.gmra.mrb[0].mxu0 %v441
    %v7469 = vpop.f32.mrb[0].mxu0
    %v7470 = vadd.f32 %v7357, %v7469
    %v7471 = vpop.f32.mrb[0].mxu0
    %v7472 = vadd.f32 %v7359, %v7471
    %v7473 = vpop.f32.mrb[0].mxu0
    %v7474 = vadd.f32 %v7361, %v7473
    %v7475 = vpop.f32.mrb[0].mxu0
    %v7476 = vadd.f32 %v7363, %v7475
    %7477 = vmatprep.mubr.bf16.mxu0 %v454
    %7478 = vmatmul.mubr.bf16.gmra.mrb[0].mxu0 %v453
    %v7479 = vpop.f32.mrb[0].mxu0
    %v7480 = vadd.f32 %v7367, %v7479
    %v7481 = vpop.f32.mrb[0].mxu0
    %v7482 = vadd.f32 %v7369, %v7481
    %v7483 = vpop.f32.mrb[0].mxu0
    %v7484 = vadd.f32 %v7371, %v7483
    %v7485 = vpop.f32.mrb[0].mxu0
    %v7486 = vadd.f32 %v7373, %v7485
    %7487 = vmatprep.mubr.bf16.mxu0 %v466
    %7488 = vmatmul.mubr.bf16.gmra.mrb[0].mxu0 %v465
    %v7489 = vpop.f32.mrb[0].mxu0
    %v7490 = vadd.f32 %v7377, %v7489
    %v7491 = vpop.f32.mrb[0].mxu0
    %v7492 = vadd.f32 %v7379, %v7491
    %v7493 = vpop.f32.mrb[0].mxu0
    %v7494 = vadd.f32 %v7381, %v7493
    %v7495 = vpop.f32.mrb[0].mxu0
    %v7496 = vadd.f32 %v7383, %v7495
    %7497 = vmatprep.mubr.bf16.mxu0 %v478
    %7498 = vmatmul.mubr.bf16.gmra.mrb[0].mxu0 %v477
    %v7499 = vpop.f32.mrb[0].mxu0
    %v7500 = vadd.f32 %v7387, %v7499
    %v7501 = vpop.f32.mrb[0].mxu0
    %v7502 = vadd.f32 %v7389, %v7501
    %v7503 = vpop.f32.mrb[0].mxu0
    %v7504 = vadd.f32 %v7391, %v7503
    %v7505 = vpop.f32.mrb[0].mxu0
    %v7506 = vadd.f32 %v7393, %v7505
    %7507 = vdwg.mxu0
    %7508 = vmatprep.subr.bf16.mxu0 %v3990
    %7509 = vmatpush1.bf16.msra.mxu0 %v3989
    %7510 = vmatprep.subr.bf16.mxu0 %v3998
    %7511 = vmatpush1.bf16.msra.mxu0 %v3997
    %7512 = vmatprep.subr.bf16.mxu0 %v4006
    %7513 = vmatpush1.bf16.msra.mxu0 %v4005
    %7514 = vmatprep.subr.bf16.mxu0 %v4014
    %7515 = vmatpush1.bf16.msra.mxu0 %v4013
    %7516 = vmatprep.subr.bf16.mxu0 %v4022
    %7517 = vmatpush1.bf16.msra.mxu0 %v4021
    %7518 = vmatprep.subr.bf16.mxu0 %v4030
    %7519 = vmatpush1.bf16.msra.mxu0 %v4029
    %7520 = vmatprep.subr.bf16.mxu0 %v4038
    %7521 = vmatpush1.bf16.msra.mxu0 %v4037
    %7522 = vmatprep.subr.bf16.mxu0 %v4046
    %7523 = vmatpush1.bf16.msra.mxu0 %v4045
    %7524 = vmatprep.subr.bf16.mxu0 %v4054
    %7525 = vmatpush1.bf16.msra.mxu0 %v4053
    %7526 = vmatprep.subr.bf16.mxu0 %v4062
    %7527 = vmatpush1.bf16.msra.mxu0 %v4061
    %7528 = vmatprep.subr.bf16.mxu0 %v4070
    %7529 = vmatpush1.bf16.msra.mxu0 %v4069
    %7530 = vmatprep.subr.bf16.mxu0 %v4078
    %7531 = vmatpush1.bf16.msra.mxu0 %v4077
    %7532 = vmatprep.subr.bf16.mxu0 %v4086
    %7533 = vmatpush1.bf16.msra.mxu0 %v4085
    %7534 = vmatprep.subr.bf16.mxu0 %v4094
    %7535 = vmatpush1.bf16.msra.mxu0 %v4093
    %7536 = vmatprep.subr.bf16.mxu0 %v4102
    %7537 = vmatpush1.bf16.msra.mxu0 %v4101
    %7538 = vmatprep.subr.bf16.mxu0 %v4110
    %7539 = vmatpush1.bf16.msra.mxu0 %v4109
    %7540 = vmatprep.mubr.bf16.mxu0 %v396
    %7541 = vmatmul.mubr.bf16.gmra.mrb[0].mxu0 %v395
    %v7542 = vpop.f32.mrb[0].mxu0
    %v7543 = vadd.f32 %v7430, %v7542
    %v7544 = vpop.f32.mrb[0].mxu0
    %v7545 = vadd.f32 %v7432, %v7544
    %v7546 = vpop.f32.mrb[0].mxu0
    %v7547 = vadd.f32 %v7434, %v7546
    %v7548 = vpop.f32.mrb[0].mxu0
    %v7549 = vadd.f32 %v7436, %v7548
    %7550 = vmatprep.mubr.bf16.mxu0 %v408
    %7551 = vmatmul.mubr.bf16.gmra.mrb[0].mxu0 %v407
    %v7552 = vpop.f32.mrb[0].mxu0
    %v7553 = vadd.f32 %v7440, %v7552
    %v7554 = vpop.f32.mrb[0].mxu0
    %v7555 = vadd.f32 %v7442, %v7554
    %v7556 = vpop.f32.mrb[0].mxu0
    %v7557 = vadd.f32 %v7444, %v7556
    %v7558 = vpop.f32.mrb[0].mxu0
    %v7559 = vadd.f32 %v7446, %v7558
    %7560 = vmatprep.mubr.bf16.mxu0 %v420
    %7561 = vmatmul.mubr.bf16.gmra.mrb[0].mxu0 %v419
    %v7562 = vpop.f32.mrb[0].mxu0
    %v7563 = vadd.f32 %v7450, %v7562
    %v7564 = vpop.f32.mrb[0].mxu0
    %v7565 = vadd.f32 %v7452, %v7564
    %v7566 = vpop.f32.mrb[0].mxu0
    %v7567 = vadd.f32 %v7454, %v7566
    %v7568 = vpop.f32.mrb[0].mxu0
    %v7569 = vadd.f32 %v7456, %v7568
    %7570 = vmatprep.mubr.bf16.mxu0 %v432
    %7571 = vmatmul.mubr.bf16.gmra.mrb[0].mxu0 %v431
    %v7572 = vpop.f32.mrb[0].mxu0
    %v7573 = vadd.f32 %v7460, %v7572
    %v7574 = vpop.f32.mrb[0].mxu0
    %v7575 = vadd.f32 %v7462, %v7574
    %v7576 = vpop.f32.mrb[0].mxu0
    %v7577 = vadd.f32 %v7464, %v7576
    %v7578 = vpop.f32.mrb[0].mxu0
    %v7579 = vadd.f32 %v7466, %v7578
    %7580 = vmatprep.mubr.bf16.mxu0 %v444
    %7581 = vmatmul.mubr.bf16.gmra.mrb[0].mxu0 %v443
    %v7582 = vpop.f32.mrb[0].mxu0
    %v7583 = vadd.f32 %v7470, %v7582
    %v7584 = vpop.f32.mrb[0].mxu0
    %v7585 = vadd.f32 %v7472, %v7584
    %v7586 = vpop.f32.mrb[0].mxu0
    %v7587 = vadd.f32 %v7474, %v7586
    %v7588 = vpop.f32.mrb[0].mxu0
    %v7589 = vadd.f32 %v7476, %v7588
    %7590 = vmatprep.mubr.bf16.mxu0 %v456
    %7591 = vmatmul.mubr.bf16.gmra.mrb[0].mxu0 %v455
    %v7592 = vpop.f32.mrb[0].mxu0
    %v7593 = vadd.f32 %v7480, %v7592
    %v7594 = vpop.f32.mrb[0].mxu0
    %v7595 = vadd.f32 %v7482, %v7594
    %v7596 = vpop.f32.mrb[0].mxu0
    %v7597 = vadd.f32 %v7484, %v7596
    %v7598 = vpop.f32.mrb[0].mxu0
    %v7599 = vadd.f32 %v7486, %v7598
    %7600 = vmatprep.mubr.bf16.mxu0 %v468
    %7601 = vmatmul.mubr.bf16.gmra.mrb[0].mxu0 %v467
    %v7602 = vpop.f32.mrb[0].mxu0
    %v7603 = vadd.f32 %v7490, %v7602
    %v7604 = vpop.f32.mrb[0].mxu0
    %v7605 = vadd.f32 %v7492, %v7604
    %v7606 = vpop.f32.mrb[0].mxu0
    %v7607 = vadd.f32 %v7494, %v7606
    %v7608 = vpop.f32.mrb[0].mxu0
    %v7609 = vadd.f32 %v7496, %v7608
    %7610 = vmatprep.mubr.bf16.mxu0 %v480
    %7611 = vmatmul.mubr.bf16.gmra.mrb[0].mxu0 %v479
    %v7612 = vpop.f32.mrb[0].mxu0
    %v7613 = vadd.f32 %v7500, %v7612
    %v7614 = vpop.f32.mrb[0].mxu0
    %v7615 = vadd.f32 %v7502, %v7614
    %v7616 = vpop.f32.mrb[0].mxu0
    %v7617 = vadd.f32 %v7504, %v7616
    %v7618 = vpop.f32.mrb[0].mxu0
    %v7619 = vadd.f32 %v7506, %v7618
    %7620 = vdwg.mxu0
    %7621 = vmatprep.subr.bf16.mxu0 %v4118
    %7622 = vmatpush1.bf16.msra.mxu0 %v4117
    %7623 = vmatprep.subr.bf16.mxu0 %v4126
    %7624 = vmatpush1.bf16.msra.mxu0 %v4125
    %7625 = vmatprep.subr.bf16.mxu0 %v4134
    %7626 = vmatpush1.bf16.msra.mxu0 %v4133
    %7627 = vmatprep.subr.bf16.mxu0 %v4142
    %7628 = vmatpush1.bf16.msra.mxu0 %v4141
    %7629 = vmatprep.subr.bf16.mxu0 %v4150
    %7630 = vmatpush1.bf16.msra.mxu0 %v4149
    %7631 = vmatprep.subr.bf16.mxu0 %v4158
    %7632 = vmatpush1.bf16.msra.mxu0 %v4157
    %7633 = vmatprep.subr.bf16.mxu0 %v4166
    %7634 = vmatpush1.bf16.msra.mxu0 %v4165
    %7635 = vmatprep.subr.bf16.mxu0 %v4174
    %7636 = vmatpush1.bf16.msra.mxu0 %v4173
    %7637 = vmatprep.subr.bf16.mxu0 %v4182
    %7638 = vmatpush1.bf16.msra.mxu0 %v4181
    %7639 = vmatprep.subr.bf16.mxu0 %v4190
    %7640 = vmatpush1.bf16.msra.mxu0 %v4189
    %7641 = vmatprep.subr.bf16.mxu0 %v4198
    %7642 = vmatpush1.bf16.msra.mxu0 %v4197
    %7643 = vmatprep.subr.bf16.mxu0 %v4206
    %7644 = vmatpush1.bf16.msra.mxu0 %v4205
    %7645 = vmatprep.subr.bf16.mxu0 %v4214
    %7646 = vmatpush1.bf16.msra.mxu0 %v4213
    %7647 = vmatprep.subr.bf16.mxu0 %v4222
    %7648 = vmatpush1.bf16.msra.mxu0 %v4221
    %7649 = vmatprep.subr.bf16.mxu0 %v4230
    %7650 = vmatpush1.bf16.msra.mxu0 %v4229
    %7651 = vmatprep.subr.bf16.mxu0 %v4238
    %7652 = vmatpush1.bf16.msra.mxu0 %v4237
    %7653 = vmatprep.mubr.bf16.mxu0 %v398
    %7654 = vmatmul.mubr.bf16.gmra.mrb[0].mxu0 %v397
    %v7655 = vpop.f32.mrb[0].mxu0
    %v7656 = vadd.f32 %v7543, %v7655
    %v7657 = vpop.f32.mrb[0].mxu0
    %v7658 = vadd.f32 %v7545, %v7657
    %v7659 = vpop.f32.mrb[0].mxu0
    %v7660 = vadd.f32 %v7547, %v7659
    %v7661 = vpop.f32.mrb[0].mxu0
    %v7662 = vadd.f32 %v7549, %v7661
    %7663 = vmatprep.mubr.bf16.mxu0 %v410
    %7664 = vmatmul.mubr.bf16.gmra.mrb[0].mxu0 %v409
    %v7665 = vpop.f32.mrb[0].mxu0
    %v7666 = vadd.f32 %v7553, %v7665
    %v7667 = vpop.f32.mrb[0].mxu0
    %v7668 = vadd.f32 %v7555, %v7667
    %v7669 = vpop.f32.mrb[0].mxu0
    %v7670 = vadd.f32 %v7557, %v7669
    %v7671 = vpop.f32.mrb[0].mxu0
    %v7672 = vadd.f32 %v7559, %v7671
    %7673 = vmatprep.mubr.bf16.mxu0 %v422
    %7674 = vmatmul.mubr.bf16.gmra.mrb[0].mxu0 %v421
    %v7675 = vpop.f32.mrb[0].mxu0
    %v7676 = vadd.f32 %v7563, %v7675
    %v7677 = vpop.f32.mrb[0].mxu0
    %v7678 = vadd.f32 %v7565, %v7677
    %v7679 = vpop.f32.mrb[0].mxu0
    %v7680 = vadd.f32 %v7567, %v7679
    %v7681 = vpop.f32.mrb[0].mxu0
    %v7682 = vadd.f32 %v7569, %v7681
    %7683 = vmatprep.mubr.bf16.mxu0 %v434
    %7684 = vmatmul.mubr.bf16.gmra.mrb[0].mxu0 %v433
    %v7685 = vpop.f32.mrb[0].mxu0
    %v7686 = vadd.f32 %v7573, %v7685
    %v7687 = vpop.f32.mrb[0].mxu0
    %v7688 = vadd.f32 %v7575, %v7687
    %v7689 = vpop.f32.mrb[0].mxu0
    %v7690 = vadd.f32 %v7577, %v7689
    %v7691 = vpop.f32.mrb[0].mxu0
    %v7692 = vadd.f32 %v7579, %v7691
    %7693 = vmatprep.mubr.bf16.mxu0 %v446
    %7694 = vmatmul.mubr.bf16.gmra.mrb[0].mxu0 %v445
    %v7695 = vpop.f32.mrb[0].mxu0
    %v7696 = vadd.f32 %v7583, %v7695
    %v7697 = vpop.f32.mrb[0].mxu0
    %v7698 = vadd.f32 %v7585, %v7697
    %v7699 = vpop.f32.mrb[0].mxu0
    %v7700 = vadd.f32 %v7587, %v7699
    %v7701 = vpop.f32.mrb[0].mxu0
    %v7702 = vadd.f32 %v7589, %v7701
    %7703 = vmatprep.mubr.bf16.mxu0 %v458
    %7704 = vmatmul.mubr.bf16.gmra.mrb[0].mxu0 %v457
    %v7705 = vpop.f32.mrb[0].mxu0
    %v7706 = vadd.f32 %v7593, %v7705
    %v7707 = vpop.f32.mrb[0].mxu0
    %v7708 = vadd.f32 %v7595, %v7707
    %v7709 = vpop.f32.mrb[0].mxu0
    %v7710 = vadd.f32 %v7597, %v7709
    %v7711 = vpop.f32.mrb[0].mxu0
    %v7712 = vadd.f32 %v7599, %v7711
    %7713 = vmatprep.mubr.bf16.mxu0 %v470
    %7714 = vmatmul.mubr.bf16.gmra.mrb[0].mxu0 %v469
    %v7715 = vpop.f32.mrb[0].mxu0
    %v7716 = vadd.f32 %v7603, %v7715
    %v7717 = vpop.f32.mrb[0].mxu0
    %v7718 = vadd.f32 %v7605, %v7717
    %v7719 = vpop.f32.mrb[0].mxu0
    %v7720 = vadd.f32 %v7607, %v7719
    %v7721 = vpop.f32.mrb[0].mxu0
    %v7722 = vadd.f32 %v7609, %v7721
    %7723 = vmatprep.mubr.bf16.mxu0 %v482
    %7724 = vmatmul.mubr.bf16.gmra.mrb[0].mxu0 %v481
    %v7725 = vpop.f32.mrb[0].mxu0
    %v7726 = vadd.f32 %v7613, %v7725
    %v7727 = vpop.f32.mrb[0].mxu0
    %v7728 = vadd.f32 %v7615, %v7727
    %v7729 = vpop.f32.mrb[0].mxu0
    %v7730 = vadd.f32 %v7617, %v7729
    %v7731 = vpop.f32.mrb[0].mxu0
    %v7732 = vadd.f32 %v7619, %v7731
    %7733 = vdwg.mxu0
    %7734 = vmatprep.subr.bf16.mxu0 %v4246
    %7735 = vmatpush1.bf16.msra.mxu0 %v4245
    %7736 = vmatprep.subr.bf16.mxu0 %v4254
    %7737 = vmatpush1.bf16.msra.mxu0 %v4253
    %7738 = vmatprep.subr.bf16.mxu0 %v4262
    %7739 = vmatpush1.bf16.msra.mxu0 %v4261
    %7740 = vmatprep.subr.bf16.mxu0 %v4270
    %7741 = vmatpush1.bf16.msra.mxu0 %v4269
    %7742 = vmatprep.subr.bf16.mxu0 %v4278
    %7743 = vmatpush1.bf16.msra.mxu0 %v4277
    %7744 = vmatprep.subr.bf16.mxu0 %v4286
    %7745 = vmatpush1.bf16.msra.mxu0 %v4285
    %7746 = vmatprep.subr.bf16.mxu0 %v4294
    %7747 = vmatpush1.bf16.msra.mxu0 %v4293
    %7748 = vmatprep.subr.bf16.mxu0 %v4302
    %7749 = vmatpush1.bf16.msra.mxu0 %v4301
    %7750 = vmatprep.subr.bf16.mxu0 %v4310
    %7751 = vmatpush1.bf16.msra.mxu0 %v4309
    %7752 = vmatprep.subr.bf16.mxu0 %v4318
    %7753 = vmatpush1.bf16.msra.mxu0 %v4317
    %7754 = vmatprep.subr.bf16.mxu0 %v4326
    %7755 = vmatpush1.bf16.msra.mxu0 %v4325
    %7756 = vmatprep.subr.bf16.mxu0 %v4334
    %7757 = vmatpush1.bf16.msra.mxu0 %v4333
    %7758 = vmatprep.subr.bf16.mxu0 %v4342
    %7759 = vmatpush1.bf16.msra.mxu0 %v4341
    %7760 = vmatprep.subr.bf16.mxu0 %v4350
    %7761 = vmatpush1.bf16.msra.mxu0 %v4349
    %7762 = vmatprep.subr.bf16.mxu0 %v4358
    %7763 = vmatpush1.bf16.msra.mxu0 %v4357
    %7764 = vmatprep.subr.bf16.mxu0 %v4366
    %7765 = vmatpush1.bf16.msra.mxu0 %v4365
    %7766 = vmatprep.mubr.bf16.mxu0 %v400
    %7767 = vmatmul.mubr.bf16.gmra.mrb[0].mxu0 %v399
    %v7768 = vpop.f32.mrb[0].mxu0
    %v7769 = vadd.f32 %v7656, %v7768
    %v7770 = vpop.f32.mrb[0].mxu0
    %v7771 = vadd.f32 %v7658, %v7770
    %v7772 = vpop.f32.mrb[0].mxu0
    %v7773 = vadd.f32 %v7660, %v7772
    %v7774 = vpop.f32.mrb[0].mxu0
    %v7775 = vadd.f32 %v7662, %v7774
    %7776 = vmatprep.mubr.bf16.mxu0 %v412
    %7777 = vmatmul.mubr.bf16.gmra.mrb[0].mxu0 %v411
    %v7778 = vpop.f32.mrb[0].mxu0
    %v7779 = vadd.f32 %v7666, %v7778
    %v7780 = vpop.f32.mrb[0].mxu0
    %v7781 = vadd.f32 %v7668, %v7780
    %v7782 = vpop.f32.mrb[0].mxu0
    %v7783 = vadd.f32 %v7670, %v7782
    %v7784 = vpop.f32.mrb[0].mxu0
    %v7785 = vadd.f32 %v7672, %v7784
    %7786 = vmatprep.mubr.bf16.mxu0 %v424
    %7787 = vmatmul.mubr.bf16.gmra.mrb[0].mxu0 %v423
    %v7788 = vpop.f32.mrb[0].mxu0
    %v7789 = vadd.f32 %v7676, %v7788
    %v7790 = vpop.f32.mrb[0].mxu0
    %v7791 = vadd.f32 %v7678, %v7790
    %v7792 = vpop.f32.mrb[0].mxu0
    %v7793 = vadd.f32 %v7680, %v7792
    %v7794 = vpop.f32.mrb[0].mxu0
    %v7795 = vadd.f32 %v7682, %v7794
    %7796 = vmatprep.mubr.bf16.mxu0 %v436
    %7797 = vmatmul.mubr.bf16.gmra.mrb[0].mxu0 %v435
    %v7798 = vpop.f32.mrb[0].mxu0
    %v7799 = vadd.f32 %v7686, %v7798
    %v7800 = vpop.f32.mrb[0].mxu0
    %v7801 = vadd.f32 %v7688, %v7800
    %v7802 = vpop.f32.mrb[0].mxu0
    %v7803 = vadd.f32 %v7690, %v7802
    %v7804 = vpop.f32.mrb[0].mxu0
    %v7805 = vadd.f32 %v7692, %v7804
    %7806 = vmatprep.mubr.bf16.mxu0 %v448
    %7807 = vmatmul.mubr.bf16.gmra.mrb[0].mxu0 %v447
    %v7808 = vpop.f32.mrb[0].mxu0
    %v7809 = vadd.f32 %v7696, %v7808
    %v7810 = vpop.f32.mrb[0].mxu0
    %v7811 = vadd.f32 %v7698, %v7810
    %v7812 = vpop.f32.mrb[0].mxu0
    %v7813 = vadd.f32 %v7700, %v7812
    %v7814 = vpop.f32.mrb[0].mxu0
    %v7815 = vadd.f32 %v7702, %v7814
    %7816 = vmatprep.mubr.bf16.mxu0 %v460
    %7817 = vmatmul.mubr.bf16.gmra.mrb[0].mxu0 %v459
    %v7818 = vpop.f32.mrb[0].mxu0
    %v7819 = vadd.f32 %v7706, %v7818
    %v7820 = vpop.f32.mrb[0].mxu0
    %v7821 = vadd.f32 %v7708, %v7820
    %v7822 = vpop.f32.mrb[0].mxu0
    %v7823 = vadd.f32 %v7710, %v7822
    %v7824 = vpop.f32.mrb[0].mxu0
    %v7825 = vadd.f32 %v7712, %v7824
    %7826 = vmatprep.mubr.bf16.mxu0 %v472
    %7827 = vmatmul.mubr.bf16.gmra.mrb[0].mxu0 %v471
    %v7828 = vpop.f32.mrb[0].mxu0
    %v7829 = vadd.f32 %v7716, %v7828
    %v7830 = vpop.f32.mrb[0].mxu0
    %v7831 = vadd.f32 %v7718, %v7830
    %v7832 = vpop.f32.mrb[0].mxu0
    %v7833 = vadd.f32 %v7720, %v7832
    %v7834 = vpop.f32.mrb[0].mxu0
    %v7835 = vadd.f32 %v7722, %v7834
    %7836 = vmatprep.mubr.bf16.mxu0 %v484
    %7837 = vmatmul.mubr.bf16.gmra.mrb[0].mxu0 %v483
    %v7838 = vpop.f32.mrb[0].mxu0
    %v7839 = vadd.f32 %v7726, %v7838
    %v7840 = vpop.f32.mrb[0].mxu0
    %v7841 = vadd.f32 %v7728, %v7840
    %v7842 = vpop.f32.mrb[0].mxu0
    %v7843 = vadd.f32 %v7730, %v7842
    %v7844 = vpop.f32.mrb[0].mxu0
    %v7845 = vadd.f32 %v7732, %v7844
    %7846 = vdwg.mxu0
    %v7847 = vmax.f32 %v5735, 0.0
    %v7848 = vmax.f32 %v5737, 0.0
    %v7849 = vmax.f32 %v6413, 0.0
    %v7850 = vmax.f32 %v6415, 0.0
    %v7851 = vmax.f32 %v7091, 0.0
    %v7852 = vmax.f32 %v7093, 0.0
    %v7853 = vmax.f32 %v7769, 0.0
    %v7854 = vmax.f32 %v7771, 0.0
    %v7855 = vmax.f32 %v5739, 0.0
    %v7856 = vmax.f32 %v5741, 0.0
    %v7857 = vmax.f32 %v6417, 0.0
    %v7858 = vmax.f32 %v6419, 0.0
    %v7859 = vmax.f32 %v7095, 0.0
    %v7860 = vmax.f32 %v7097, 0.0
    %v7861 = vmax.f32 %v7773, 0.0
    %v7862 = vmax.f32 %v7775, 0.0
    %v7863 = vmax.f32 %v5745, 0.0
    %v7864 = vmax.f32 %v5747, 0.0
    %v7865 = vmax.f32 %v6423, 0.0
    %v7866 = vmax.f32 %v6425, 0.0
    %v7867 = vmax.f32 %v7101, 0.0
    %v7868 = vmax.f32 %v7103, 0.0
    %v7869 = vmax.f32 %v7779, 0.0
    %v7870 = vmax.f32 %v7781, 0.0
    %v7871 = vmax.f32 %v5749, 0.0
    %v7872 = vmax.f32 %v5751, 0.0
    %v7873 = vmax.f32 %v6427, 0.0
    %v7874 = vmax.f32 %v6429, 0.0
    %v7875 = vmax.f32 %v7105, 0.0
    %v7876 = vmax.f32 %v7107, 0.0
    %v7877 = vmax.f32 %v7783, 0.0
    %v7878 = vmax.f32 %v7785, 0.0
    %v7879 = vmax.f32 %v5755, 0.0
    %v7880 = vmax.f32 %v5757, 0.0
    %v7881 = vmax.f32 %v6433, 0.0
    %v7882 = vmax.f32 %v6435, 0.0
    %v7883 = vmax.f32 %v7111, 0.0
    %v7884 = vmax.f32 %v7113, 0.0
    %v7885 = vmax.f32 %v7789, 0.0
    %v7886 = vmax.f32 %v7791, 0.0
    %v7887 = vmax.f32 %v5759, 0.0
    %v7888 = vmax.f32 %v5761, 0.0
    %v7889 = vmax.f32 %v6437, 0.0
    %v7890 = vmax.f32 %v6439, 0.0
    %v7891 = vmax.f32 %v7115, 0.0
    %v7892 = vmax.f32 %v7117, 0.0
    %v7893 = vmax.f32 %v7793, 0.0
    %v7894 = vmax.f32 %v7795, 0.0
    %v7895 = vmax.f32 %v5765, 0.0
    %v7896 = vmax.f32 %v5767, 0.0
    %v7897 = vmax.f32 %v6443, 0.0
    %v7898 = vmax.f32 %v6445, 0.0
    %v7899 = vmax.f32 %v7121, 0.0
    %v7900 = vmax.f32 %v7123, 0.0
    %v7901 = vmax.f32 %v7799, 0.0
    %v7902 = vmax.f32 %v7801, 0.0
    %v7903 = vmax.f32 %v5769, 0.0
    %v7904 = vmax.f32 %v5771, 0.0
    %v7905 = vmax.f32 %v6447, 0.0
    %v7906 = vmax.f32 %v6449, 0.0
    %v7907 = vmax.f32 %v7125, 0.0
    %v7908 = vmax.f32 %v7127, 0.0
    %v7909 = vmax.f32 %v7803, 0.0
    %v7910 = vmax.f32 %v7805, 0.0
    %v7911 = vmax.f32 %v5775, 0.0
    %v7912 = vmax.f32 %v5777, 0.0
    %v7913 = vmax.f32 %v6453, 0.0
    %v7914 = vmax.f32 %v6455, 0.0
    %v7915 = vmax.f32 %v7131, 0.0
    %v7916 = vmax.f32 %v7133, 0.0
    %v7917 = vmax.f32 %v7809, 0.0
    %v7918 = vmax.f32 %v7811, 0.0
    %v7919 = vmax.f32 %v5779, 0.0
    %v7920 = vmax.f32 %v5781, 0.0
    %v7921 = vmax.f32 %v6457, 0.0
    %v7922 = vmax.f32 %v6459, 0.0
    %v7923 = vmax.f32 %v7135, 0.0
    %v7924 = vmax.f32 %v7137, 0.0
    %v7925 = vmax.f32 %v7813, 0.0
    %v7926 = vmax.f32 %v7815, 0.0
    %v7927 = vmax.f32 %v5785, 0.0
    %v7928 = vmax.f32 %v5787, 0.0
    %v7929 = vmax.f32 %v6463, 0.0
    %v7930 = vmax.f32 %v6465, 0.0
    %v7931 = vmax.f32 %v7141, 0.0
    %v7932 = vmax.f32 %v7143, 0.0
    %v7933 = vmax.f32 %v7819, 0.0
    %v7934 = vmax.f32 %v7821, 0.0
    %v7935 = vmax.f32 %v5789, 0.0
    %v7936 = vmax.f32 %v5791, 0.0
    %v7937 = vmax.f32 %v6467, 0.0
    %v7938 = vmax.f32 %v6469, 0.0
    %v7939 = vmax.f32 %v7145, 0.0
    %v7940 = vmax.f32 %v7147, 0.0
    %v7941 = vmax.f32 %v7823, 0.0
    %v7942 = vmax.f32 %v7825, 0.0
    %v7943 = vmax.f32 %v5795, 0.0
    %v7944 = vmax.f32 %v5797, 0.0
    %v7945 = vmax.f32 %v6473, 0.0
    %v7946 = vmax.f32 %v6475, 0.0
    %v7947 = vmax.f32 %v7151, 0.0
    %v7948 = vmax.f32 %v7153, 0.0
    %v7949 = vmax.f32 %v7829, 0.0
    %v7950 = vmax.f32 %v7831, 0.0
    %v7951 = vmax.f32 %v5799, 0.0
    %v7952 = vmax.f32 %v5801, 0.0
    %v7953 = vmax.f32 %v6477, 0.0
    %v7954 = vmax.f32 %v6479, 0.0
    %v7955 = vmax.f32 %v7155, 0.0
    %v7956 = vmax.f32 %v7157, 0.0
    %v7957 = vmax.f32 %v7833, 0.0
    %v7958 = vmax.f32 %v7835, 0.0
    %v7959 = vmax.f32 %v5805, 0.0
    %v7960 = vmax.f32 %v5807, 0.0
    %v7961 = vmax.f32 %v6483, 0.0
    %v7962 = vmax.f32 %v6485, 0.0
    %v7963 = vmax.f32 %v7161, 0.0
    %v7964 = vmax.f32 %v7163, 0.0
    %v7965 = vmax.f32 %v7839, 0.0
    %v7966 = vmax.f32 %v7841, 0.0
    %v7967 = vmax.f32 %v5809, 0.0
    %v7968 = vmax.f32 %v5811, 0.0
    %v7969 = vmax.f32 %v6487, 0.0
    %v7970 = vmax.f32 %v6489, 0.0
    %v7971 = vmax.f32 %v7165, 0.0
    %v7972 = vmax.f32 %v7167, 0.0
    %v7973 = vmax.f32 %v7843, 0.0
    %v7974 = vmax.f32 %v7845, 0.0
    %v7975 = vpack.c.bf16 %v7855, %v7847
    %v7976 = vpack.c.bf16 %v7856, %v7848
    %v7977 = vpack.c.bf16 %v7857, %v7849
    %v7978 = vpack.c.bf16 %v7858, %v7850
    %v7979 = vpack.c.bf16 %v7859, %v7851
    %v7980 = vpack.c.bf16 %v7860, %v7852
    %v7981 = vpack.c.bf16 %v7861, %v7853
    %v7982 = vpack.c.bf16 %v7862, %v7854
    %v7983 = vpack.c.bf16 %v7871, %v7863
    %v7984 = vpack.c.bf16 %v7872, %v7864
    %v7985 = vpack.c.bf16 %v7873, %v7865
    %v7986 = vpack.c.bf16 %v7874, %v7866
    %v7987 = vpack.c.bf16 %v7875, %v7867
    %v7988 = vpack.c.bf16 %v7876, %v7868
    %v7989 = vpack.c.bf16 %v7877, %v7869
    %v7990 = vpack.c.bf16 %v7878, %v7870
    %v7991 = vpack.c.bf16 %v7887, %v7879
    %v7992 = vpack.c.bf16 %v7888, %v7880
    %v7993 = vpack.c.bf16 %v7889, %v7881
    %v7994 = vpack.c.bf16 %v7890, %v7882
    %v7995 = vpack.c.bf16 %v7891, %v7883
    %v7996 = vpack.c.bf16 %v7892, %v7884
    %v7997 = vpack.c.bf16 %v7893, %v7885
    %v7998 = vpack.c.bf16 %v7894, %v7886
    %v7999 = vpack.c.bf16 %v7903, %v7895
    %v8000 = vpack.c.bf16 %v7904, %v7896
    %v8001 = vpack.c.bf16 %v7905, %v7897
    %v8002 = vpack.c.bf16 %v7906, %v7898
    %v8003 = vpack.c.bf16 %v7907, %v7899
    %v8004 = vpack.c.bf16 %v7908, %v7900
    %v8005 = vpack.c.bf16 %v7909, %v7901
    %v8006 = vpack.c.bf16 %v7910, %v7902
    %v8007 = vpack.c.bf16 %v7919, %v7911
    %v8008 = vpack.c.bf16 %v7920, %v7912
    %v8009 = vpack.c.bf16 %v7921, %v7913
    %v8010 = vpack.c.bf16 %v7922, %v7914
    %v8011 = vpack.c.bf16 %v7923, %v7915
    %v8012 = vpack.c.bf16 %v7924, %v7916
    %v8013 = vpack.c.bf16 %v7925, %v7917
    %v8014 = vpack.c.bf16 %v7926, %v7918
    %v8015 = vpack.c.bf16 %v7935, %v7927
    %v8016 = vpack.c.bf16 %v7936, %v7928
    %v8017 = vpack.c.bf16 %v7937, %v7929
    %v8018 = vpack.c.bf16 %v7938, %v7930
    %v8019 = vpack.c.bf16 %v7939, %v7931
    %v8020 = vpack.c.bf16 %v7940, %v7932
    %v8021 = vpack.c.bf16 %v7941, %v7933
    %v8022 = vpack.c.bf16 %v7942, %v7934
    %v8023 = vpack.c.bf16 %v7951, %v7943
    %v8024 = vpack.c.bf16 %v7952, %v7944
    %v8025 = vpack.c.bf16 %v7953, %v7945
    %v8026 = vpack.c.bf16 %v7954, %v7946
    %v8027 = vpack.c.bf16 %v7955, %v7947
    %v8028 = vpack.c.bf16 %v7956, %v7948
    %v8029 = vpack.c.bf16 %v7957, %v7949
    %v8030 = vpack.c.bf16 %v7958, %v7950
    %v8031 = vpack.c.bf16 %v7967, %v7959
    %v8032 = vpack.c.bf16 %v7968, %v7960
    %v8033 = vpack.c.bf16 %v7969, %v7961
    %v8034 = vpack.c.bf16 %v7970, %v7962
    %v8035 = vpack.c.bf16 %v7971, %v7963
    %v8036 = vpack.c.bf16 %v7972, %v7964
    %v8037 = vpack.c.bf16 %v7973, %v7965
    %v8038 = vpack.c.bf16 %v7974, %v7966
    %v8039 = vld [vmem:[#allocation8] sm:$0xff]
    %v8040 = vld [vmem:[#allocation8 + $0x8] sm:$0xff]
    %v8041 = vld [vmem:[#allocation8 + $0x10] sm:$0xff]
    %v8042 = vld [vmem:[#allocation8 + $0x18] sm:$0xff]
    %v8043 = vld [vmem:[#allocation8 + $0x20] sm:$0xff]
    %v8044 = vld [vmem:[#allocation8 + $0x28] sm:$0xff]
    %v8045 = vld [vmem:[#allocation8 + $0x30] sm:$0xff]
    %v8046 = vld [vmem:[#allocation8 + $0x38] sm:$0xff]
    %v8047 = vld [vmem:[#allocation8 + $0x40] sm:$0xff]
    %v8048 = vld [vmem:[#allocation8 + $0x48] sm:$0xff]
    %v8049 = vld [vmem:[#allocation8 + $0x50] sm:$0xff]
    %v8050 = vld [vmem:[#allocation8 + $0x58] sm:$0xff]
    %v8051 = vld [vmem:[#allocation8 + $0x60] sm:$0xff]
    %v8052 = vld [vmem:[#allocation8 + $0x68] sm:$0xff]
    %v8053 = vld [vmem:[#allocation8 + $0x70] sm:$0xff]
    %v8054 = vld [vmem:[#allocation8 + $0x78] sm:$0xff]
    %v8055 = vld [vmem:[#allocation8 + $0x80] sm:$0xff]
    %v8056 = vld [vmem:[#allocation8 + $0x88] sm:$0xff]
    %v8057 = vld [vmem:[#allocation8 + $0x90] sm:$0xff]
    %v8058 = vld [vmem:[#allocation8 + $0x98] sm:$0xff]
    %v8059 = vld [vmem:[#allocation8 + $0xa0] sm:$0xff]
    %v8060 = vld [vmem:[#allocation8 + $0xa8] sm:$0xff]
    %v8061 = vld [vmem:[#allocation8 + $0xb0] sm:$0xff]
    %v8062 = vld [vmem:[#allocation8 + $0xb8] sm:$0xff]
    %v8063 = vld [vmem:[#allocation8 + $0xc0] sm:$0xff]
    %v8064 = vld [vmem:[#allocation8 + $0xc8] sm:$0xff]
    %v8065 = vld [vmem:[#allocation8 + $0xd0] sm:$0xff]
    %v8066 = vld [vmem:[#allocation8 + $0xd8] sm:$0xff]
    %v8067 = vld [vmem:[#allocation8 + $0xe0] sm:$0xff]
    %v8068 = vld [vmem:[#allocation8 + $0xe8] sm:$0xff]
    %v8069 = vld [vmem:[#allocation8 + $0xf0] sm:$0xff]
    %v8070 = vld [vmem:[#allocation8 + $0xf8] sm:$0xff]
    %v8071 = vld [vmem:[#allocation8 + $0x100] sm:$0xff]
    %v8072 = vld [vmem:[#allocation8 + $0x108] sm:$0xff]
    %v8073 = vld [vmem:[#allocation8 + $0x110] sm:$0xff]
    %v8074 = vld [vmem:[#allocation8 + $0x118] sm:$0xff]
    %v8075 = vld [vmem:[#allocation8 + $0x120] sm:$0xff]
    %v8076 = vld [vmem:[#allocation8 + $0x128] sm:$0xff]
    %v8077 = vld [vmem:[#allocation8 + $0x130] sm:$0xff]
    %v8078 = vld [vmem:[#allocation8 + $0x138] sm:$0xff]
    %v8079 = vld [vmem:[#allocation8 + $0x140] sm:$0xff]
    %v8080 = vld [vmem:[#allocation8 + $0x148] sm:$0xff]
    %v8081 = vld [vmem:[#allocation8 + $0x150] sm:$0xff]
    %v8082 = vld [vmem:[#allocation8 + $0x158] sm:$0xff]
    %v8083 = vld [vmem:[#allocation8 + $0x160] sm:$0xff]
    %v8084 = vld [vmem:[#allocation8 + $0x168] sm:$0xff]
    %v8085 = vld [vmem:[#allocation8 + $0x170] sm:$0xff]
    %v8086 = vld [vmem:[#allocation8 + $0x178] sm:$0xff]
    %v8087 = vld [vmem:[#allocation8 + $0x180] sm:$0xff]
    %v8088 = vld [vmem:[#allocation8 + $0x188] sm:$0xff]
    %v8089 = vld [vmem:[#allocation8 + $0x190] sm:$0xff]
    %v8090 = vld [vmem:[#allocation8 + $0x198] sm:$0xff]
    %v8091 = vld [vmem:[#allocation8 + $0x1a0] sm:$0xff]
    %v8092 = vld [vmem:[#allocation8 + $0x1a8] sm:$0xff]
    %v8093 = vld [vmem:[#allocation8 + $0x1b0] sm:$0xff]
    %v8094 = vld [vmem:[#allocation8 + $0x1b8] sm:$0xff]
    %v8095 = vld [vmem:[#allocation8 + $0x1c0] sm:$0xff]
    %v8096 = vld [vmem:[#allocation8 + $0x1c8] sm:$0xff]
    %v8097 = vld [vmem:[#allocation8 + $0x1d0] sm:$0xff]
    %v8098 = vld [vmem:[#allocation8 + $0x1d8] sm:$0xff]
    %v8099 = vld [vmem:[#allocation8 + $0x1e0] sm:$0xff]
    %v8100 = vld [vmem:[#allocation8 + $0x1e8] sm:$0xff]
    %v8101 = vld [vmem:[#allocation8 + $0x1f0] sm:$0xff]
    %v8102 = vld [vmem:[#allocation8 + $0x1f8] sm:$0xff]
    %v8103 = vld [vmem:[#allocation8 + $0x200] sm:$0xff]
    %v8104 = vld [vmem:[#allocation8 + $0x208] sm:$0xff]
    %v8105 = vld [vmem:[#allocation8 + $0x210] sm:$0xff]
    %v8106 = vld [vmem:[#allocation8 + $0x218] sm:$0xff]
    %v8107 = vld [vmem:[#allocation8 + $0x220] sm:$0xff]
    %v8108 = vld [vmem:[#allocation8 + $0x228] sm:$0xff]
    %v8109 = vld [vmem:[#allocation8 + $0x230] sm:$0xff]
    %v8110 = vld [vmem:[#allocation8 + $0x238] sm:$0xff]
    %v8111 = vld [vmem:[#allocation8 + $0x240] sm:$0xff]
    %v8112 = vld [vmem:[#allocation8 + $0x248] sm:$0xff]
    %v8113 = vld [vmem:[#allocation8 + $0x250] sm:$0xff]
    %v8114 = vld [vmem:[#allocation8 + $0x258] sm:$0xff]
    %v8115 = vld [vmem:[#allocation8 + $0x260] sm:$0xff]
    %v8116 = vld [vmem:[#allocation8 + $0x268] sm:$0xff]
    %v8117 = vld [vmem:[#allocation8 + $0x270] sm:$0xff]
    %v8118 = vld [vmem:[#allocation8 + $0x278] sm:$0xff]
    %v8119 = vld [vmem:[#allocation8 + $0x280] sm:$0xff]
    %v8120 = vld [vmem:[#allocation8 + $0x288] sm:$0xff]
    %v8121 = vld [vmem:[#allocation8 + $0x290] sm:$0xff]
    %v8122 = vld [vmem:[#allocation8 + $0x298] sm:$0xff]
    %v8123 = vld [vmem:[#allocation8 + $0x2a0] sm:$0xff]
    %v8124 = vld [vmem:[#allocation8 + $0x2a8] sm:$0xff]
    %v8125 = vld [vmem:[#allocation8 + $0x2b0] sm:$0xff]
    %v8126 = vld [vmem:[#allocation8 + $0x2b8] sm:$0xff]
    %v8127 = vld [vmem:[#allocation8 + $0x2c0] sm:$0xff]
    %v8128 = vld [vmem:[#allocation8 + $0x2c8] sm:$0xff]
    %v8129 = vld [vmem:[#allocation8 + $0x2d0] sm:$0xff]
    %v8130 = vld [vmem:[#allocation8 + $0x2d8] sm:$0xff]
    %v8131 = vld [vmem:[#allocation8 + $0x2e0] sm:$0xff]
    %v8132 = vld [vmem:[#allocation8 + $0x2e8] sm:$0xff]
    %v8133 = vld [vmem:[#allocation8 + $0x2f0] sm:$0xff]
    %v8134 = vld [vmem:[#allocation8 + $0x2f8] sm:$0xff]
    %v8135 = vld [vmem:[#allocation8 + $0x300] sm:$0xff]
    %v8136 = vld [vmem:[#allocation8 + $0x308] sm:$0xff]
    %v8137 = vld [vmem:[#allocation8 + $0x310] sm:$0xff]
    %v8138 = vld [vmem:[#allocation8 + $0x318] sm:$0xff]
    %v8139 = vld [vmem:[#allocation8 + $0x320] sm:$0xff]
    %v8140 = vld [vmem:[#allocation8 + $0x328] sm:$0xff]
    %v8141 = vld [vmem:[#allocation8 + $0x330] sm:$0xff]
    %v8142 = vld [vmem:[#allocation8 + $0x338] sm:$0xff]
    %v8143 = vld [vmem:[#allocation8 + $0x340] sm:$0xff]
    %v8144 = vld [vmem:[#allocation8 + $0x348] sm:$0xff]
    %v8145 = vld [vmem:[#allocation8 + $0x350] sm:$0xff]
    %v8146 = vld [vmem:[#allocation8 + $0x358] sm:$0xff]
    %v8147 = vld [vmem:[#allocation8 + $0x360] sm:$0xff]
    %v8148 = vld [vmem:[#allocation8 + $0x368] sm:$0xff]
    %v8149 = vld [vmem:[#allocation8 + $0x370] sm:$0xff]
    %v8150 = vld [vmem:[#allocation8 + $0x378] sm:$0xff]
    %v8151 = vld [vmem:[#allocation8 + $0x380] sm:$0xff]
    %v8152 = vld [vmem:[#allocation8 + $0x388] sm:$0xff]
    %v8153 = vld [vmem:[#allocation8 + $0x390] sm:$0xff]
    %v8154 = vld [vmem:[#allocation8 + $0x398] sm:$0xff]
    %v8155 = vld [vmem:[#allocation8 + $0x3a0] sm:$0xff]
    %v8156 = vld [vmem:[#allocation8 + $0x3a8] sm:$0xff]
    %v8157 = vld [vmem:[#allocation8 + $0x3b0] sm:$0xff]
    %v8158 = vld [vmem:[#allocation8 + $0x3b8] sm:$0xff]
    %v8159 = vld [vmem:[#allocation8 + $0x3c0] sm:$0xff]
    %v8160 = vld [vmem:[#allocation8 + $0x3c8] sm:$0xff]
    %v8161 = vld [vmem:[#allocation8 + $0x3d0] sm:$0xff]
    %v8162 = vld [vmem:[#allocation8 + $0x3d8] sm:$0xff]
    %v8163 = vld [vmem:[#allocation8 + $0x3e0] sm:$0xff]
    %v8164 = vld [vmem:[#allocation8 + $0x3e8] sm:$0xff]
    %v8165 = vld [vmem:[#allocation8 + $0x3f0] sm:$0xff]
    %v8166 = vld [vmem:[#allocation8 + $0x3f8] sm:$0xff]
    %v8167 = vld [vmem:[#allocation8 + $0x400] sm:$0xff]
    %v8168 = vld [vmem:[#allocation8 + $0x408] sm:$0xff]
    %v8169 = vld [vmem:[#allocation8 + $0x410] sm:$0xff]
    %v8170 = vld [vmem:[#allocation8 + $0x418] sm:$0xff]
    %v8171 = vld [vmem:[#allocation8 + $0x420] sm:$0xff]
    %v8172 = vld [vmem:[#allocation8 + $0x428] sm:$0xff]
    %v8173 = vld [vmem:[#allocation8 + $0x430] sm:$0xff]
    %v8174 = vld [vmem:[#allocation8 + $0x438] sm:$0xff]
    %v8175 = vld [vmem:[#allocation8 + $0x440] sm:$0xff]
    %v8176 = vld [vmem:[#allocation8 + $0x448] sm:$0xff]
    %v8177 = vld [vmem:[#allocation8 + $0x450] sm:$0xff]
    %v8178 = vld [vmem:[#allocation8 + $0x458] sm:$0xff]
    %v8179 = vld [vmem:[#allocation8 + $0x460] sm:$0xff]
    %v8180 = vld [vmem:[#allocation8 + $0x468] sm:$0xff]
    %v8181 = vld [vmem:[#allocation8 + $0x470] sm:$0xff]
    %v8182 = vld [vmem:[#allocation8 + $0x478] sm:$0xff]
    %v8183 = vld [vmem:[#allocation8 + $0x480] sm:$0xff]
    %v8184 = vld [vmem:[#allocation8 + $0x488] sm:$0xff]
    %v8185 = vld [vmem:[#allocation8 + $0x490] sm:$0xff]
    %v8186 = vld [vmem:[#allocation8 + $0x498] sm:$0xff]
    %v8187 = vld [vmem:[#allocation8 + $0x4a0] sm:$0xff]
    %v8188 = vld [vmem:[#allocation8 + $0x4a8] sm:$0xff]
    %v8189 = vld [vmem:[#allocation8 + $0x4b0] sm:$0xff]
    %v8190 = vld [vmem:[#allocation8 + $0x4b8] sm:$0xff]
    %v8191 = vld [vmem:[#allocation8 + $0x4c0] sm:$0xff]
    %v8192 = vld [vmem:[#allocation8 + $0x4c8] sm:$0xff]
    %v8193 = vld [vmem:[#allocation8 + $0x4d0] sm:$0xff]
    %v8194 = vld [vmem:[#allocation8 + $0x4d8] sm:$0xff]
    %v8195 = vld [vmem:[#allocation8 + $0x4e0] sm:$0xff]
    %v8196 = vld [vmem:[#allocation8 + $0x4e8] sm:$0xff]
    %v8197 = vld [vmem:[#allocation8 + $0x4f0] sm:$0xff]
    %v8198 = vld [vmem:[#allocation8 + $0x4f8] sm:$0xff]
    %v8199 = vld [vmem:[#allocation8 + $0x500] sm:$0xff]
    %v8200 = vld [vmem:[#allocation8 + $0x508] sm:$0xff]
    %v8201 = vld [vmem:[#allocation8 + $0x510] sm:$0xff]
    %v8202 = vld [vmem:[#allocation8 + $0x518] sm:$0xff]
    %v8203 = vld [vmem:[#allocation8 + $0x520] sm:$0xff]
    %v8204 = vld [vmem:[#allocation8 + $0x528] sm:$0xff]
    %v8205 = vld [vmem:[#allocation8 + $0x530] sm:$0xff]
    %v8206 = vld [vmem:[#allocation8 + $0x538] sm:$0xff]
    %v8207 = vld [vmem:[#allocation8 + $0x540] sm:$0xff]
    %v8208 = vld [vmem:[#allocation8 + $0x548] sm:$0xff]
    %v8209 = vld [vmem:[#allocation8 + $0x550] sm:$0xff]
    %v8210 = vld [vmem:[#allocation8 + $0x558] sm:$0xff]
    %v8211 = vld [vmem:[#allocation8 + $0x560] sm:$0xff]
    %v8212 = vld [vmem:[#allocation8 + $0x568] sm:$0xff]
    %v8213 = vld [vmem:[#allocation8 + $0x570] sm:$0xff]
    %v8214 = vld [vmem:[#allocation8 + $0x578] sm:$0xff]
    %v8215 = vld [vmem:[#allocation8 + $0x580] sm:$0xff]
    %v8216 = vld [vmem:[#allocation8 + $0x588] sm:$0xff]
    %v8217 = vld [vmem:[#allocation8 + $0x590] sm:$0xff]
    %v8218 = vld [vmem:[#allocation8 + $0x598] sm:$0xff]
    %v8219 = vld [vmem:[#allocation8 + $0x5a0] sm:$0xff]
    %v8220 = vld [vmem:[#allocation8 + $0x5a8] sm:$0xff]
    %v8221 = vld [vmem:[#allocation8 + $0x5b0] sm:$0xff]
    %v8222 = vld [vmem:[#allocation8 + $0x5b8] sm:$0xff]
    %v8223 = vld [vmem:[#allocation8 + $0x5c0] sm:$0xff]
    %v8224 = vld [vmem:[#allocation8 + $0x5c8] sm:$0xff]
    %v8225 = vld [vmem:[#allocation8 + $0x5d0] sm:$0xff]
    %v8226 = vld [vmem:[#allocation8 + $0x5d8] sm:$0xff]
    %v8227 = vld [vmem:[#allocation8 + $0x5e0] sm:$0xff]
    %v8228 = vld [vmem:[#allocation8 + $0x5e8] sm:$0xff]
    %v8229 = vld [vmem:[#allocation8 + $0x5f0] sm:$0xff]
    %v8230 = vld [vmem:[#allocation8 + $0x5f8] sm:$0xff]
    %v8231 = vld [vmem:[#allocation8 + $0x600] sm:$0xff]
    %v8232 = vld [vmem:[#allocation8 + $0x608] sm:$0xff]
    %v8233 = vld [vmem:[#allocation8 + $0x610] sm:$0xff]
    %v8234 = vld [vmem:[#allocation8 + $0x618] sm:$0xff]
    %v8235 = vld [vmem:[#allocation8 + $0x620] sm:$0xff]
    %v8236 = vld [vmem:[#allocation8 + $0x628] sm:$0xff]
    %v8237 = vld [vmem:[#allocation8 + $0x630] sm:$0xff]
    %v8238 = vld [vmem:[#allocation8 + $0x638] sm:$0xff]
    %v8239 = vld [vmem:[#allocation8 + $0x640] sm:$0xff]
    %v8240 = vld [vmem:[#allocation8 + $0x648] sm:$0xff]
    %v8241 = vld [vmem:[#allocation8 + $0x650] sm:$0xff]
    %v8242 = vld [vmem:[#allocation8 + $0x658] sm:$0xff]
    %v8243 = vld [vmem:[#allocation8 + $0x660] sm:$0xff]
    %v8244 = vld [vmem:[#allocation8 + $0x668] sm:$0xff]
    %v8245 = vld [vmem:[#allocation8 + $0x670] sm:$0xff]
    %v8246 = vld [vmem:[#allocation8 + $0x678] sm:$0xff]
    %v8247 = vld [vmem:[#allocation8 + $0x680] sm:$0xff]
    %v8248 = vld [vmem:[#allocation8 + $0x688] sm:$0xff]
    %v8249 = vld [vmem:[#allocation8 + $0x690] sm:$0xff]
    %v8250 = vld [vmem:[#allocation8 + $0x698] sm:$0xff]
    %v8251 = vld [vmem:[#allocation8 + $0x6a0] sm:$0xff]
    %v8252 = vld [vmem:[#allocation8 + $0x6a8] sm:$0xff]
    %v8253 = vld [vmem:[#allocation8 + $0x6b0] sm:$0xff]
    %v8254 = vld [vmem:[#allocation8 + $0x6b8] sm:$0xff]
    %v8255 = vld [vmem:[#allocation8 + $0x6c0] sm:$0xff]
    %v8256 = vld [vmem:[#allocation8 + $0x6c8] sm:$0xff]
    %v8257 = vld [vmem:[#allocation8 + $0x6d0] sm:$0xff]
    %v8258 = vld [vmem:[#allocation8 + $0x6d8] sm:$0xff]
    %v8259 = vld [vmem:[#allocation8 + $0x6e0] sm:$0xff]
    %v8260 = vld [vmem:[#allocation8 + $0x6e8] sm:$0xff]
    %v8261 = vld [vmem:[#allocation8 + $0x6f0] sm:$0xff]
    %v8262 = vld [vmem:[#allocation8 + $0x6f8] sm:$0xff]
    %v8263 = vld [vmem:[#allocation8 + $0x700] sm:$0xff]
    %v8264 = vld [vmem:[#allocation8 + $0x708] sm:$0xff]
    %v8265 = vld [vmem:[#allocation8 + $0x710] sm:$0xff]
    %v8266 = vld [vmem:[#allocation8 + $0x718] sm:$0xff]
    %v8267 = vld [vmem:[#allocation8 + $0x720] sm:$0xff]
    %v8268 = vld [vmem:[#allocation8 + $0x728] sm:$0xff]
    %v8269 = vld [vmem:[#allocation8 + $0x730] sm:$0xff]
    %v8270 = vld [vmem:[#allocation8 + $0x738] sm:$0xff]
    %v8271 = vld [vmem:[#allocation8 + $0x740] sm:$0xff]
    %v8272 = vld [vmem:[#allocation8 + $0x748] sm:$0xff]
    %v8273 = vld [vmem:[#allocation8 + $0x750] sm:$0xff]
    %v8274 = vld [vmem:[#allocation8 + $0x758] sm:$0xff]
    %v8275 = vld [vmem:[#allocation8 + $0x760] sm:$0xff]
    %v8276 = vld [vmem:[#allocation8 + $0x768] sm:$0xff]
    %v8277 = vld [vmem:[#allocation8 + $0x770] sm:$0xff]
    %v8278 = vld [vmem:[#allocation8 + $0x778] sm:$0xff]
    %v8279 = vld [vmem:[#allocation8 + $0x780] sm:$0xff]
    %v8280 = vld [vmem:[#allocation8 + $0x788] sm:$0xff]
    %v8281 = vld [vmem:[#allocation8 + $0x790] sm:$0xff]
    %v8282 = vld [vmem:[#allocation8 + $0x798] sm:$0xff]
    %v8283 = vld [vmem:[#allocation8 + $0x7a0] sm:$0xff]
    %v8284 = vld [vmem:[#allocation8 + $0x7a8] sm:$0xff]
    %v8285 = vld [vmem:[#allocation8 + $0x7b0] sm:$0xff]
    %v8286 = vld [vmem:[#allocation8 + $0x7b8] sm:$0xff]
    %v8287 = vld [vmem:[#allocation8 + $0x7c0] sm:$0xff]
    %v8288 = vld [vmem:[#allocation8 + $0x7c8] sm:$0xff]
    %v8289 = vld [vmem:[#allocation8 + $0x7d0] sm:$0xff]
    %v8290 = vld [vmem:[#allocation8 + $0x7d8] sm:$0xff]
    %v8291 = vld [vmem:[#allocation8 + $0x7e0] sm:$0xff]
    %v8292 = vld [vmem:[#allocation8 + $0x7e8] sm:$0xff]
    %v8293 = vld [vmem:[#allocation8 + $0x7f0] sm:$0xff]
    %v8294 = vld [vmem:[#allocation8 + $0x7f8] sm:$0xff]
    %v8295 = vld [vmem:[#allocation10] sm:$0xf]
    %v8297 = vlaneseq
    %v8298 = vshrl.u32 %v8297, 7
    %v8299 = vsub.s32 0, %v8298
    %v8300 = vrot.slane %v8295, %v8299
    %v8301 = vlaneseq
    %v8302 = vshrl.u32 %v8301, 7
    %v8303 = vsub.s32 1, %v8302
    %v8304 = vrot.slane %v8295, %v8303
    %v8305 = vlaneseq
    %v8306 = vshrl.u32 %v8305, 7
    %v8307 = vsub.s32 2, %v8306
    %v8308 = vrot.slane %v8295, %v8307
    %v8309 = vlaneseq
    %v8310 = vshrl.u32 %v8309, 7
    %v8311 = vsub.s32 3, %v8310
    %v8312 = vrot.slane %v8295, %v8311
    %v8573 = vunpack.c.l.b16 %v8039
    %v8574 = vunpack.c.h.b16 %v8039
    %v8575 = vunpack.c.l.b16 %v8040
    %v8576 = vunpack.c.h.b16 %v8040
    %v8577 = vunpack.c.l.b16 %v8041
    %v8578 = vunpack.c.h.b16 %v8041
    %v8579 = vunpack.c.l.b16 %v8042
    %v8580 = vunpack.c.h.b16 %v8042
    %v8581 = vunpack.c.l.b16 %v8043
    %v8582 = vunpack.c.h.b16 %v8043
    %v8583 = vunpack.c.l.b16 %v8044
    %v8584 = vunpack.c.h.b16 %v8044
    %v8585 = vunpack.c.l.b16 %v8045
    %v8586 = vunpack.c.h.b16 %v8045
    %v8587 = vunpack.c.l.b16 %v8046
    %v8588 = vunpack.c.h.b16 %v8046
    %v8589 = vunpack.c.l.b16 %v8047
    %v8590 = vunpack.c.h.b16 %v8047
    %v8591 = vunpack.c.l.b16 %v8048
    %v8592 = vunpack.c.h.b16 %v8048
    %v8593 = vunpack.c.l.b16 %v8049
    %v8594 = vunpack.c.h.b16 %v8049
    %v8595 = vunpack.c.l.b16 %v8050
    %v8596 = vunpack.c.h.b16 %v8050
    %v8597 = vunpack.c.l.b16 %v8051
    %v8598 = vunpack.c.h.b16 %v8051
    %v8599 = vunpack.c.l.b16 %v8052
    %v8600 = vunpack.c.h.b16 %v8052
    %v8601 = vunpack.c.l.b16 %v8053
    %v8602 = vunpack.c.h.b16 %v8053
    %v8603 = vunpack.c.l.b16 %v8054
    %v8604 = vunpack.c.h.b16 %v8054
    %v8605 = vunpack.c.l.b16 %v8055
    %v8606 = vunpack.c.h.b16 %v8055
    %v8607 = vunpack.c.l.b16 %v8056
    %v8608 = vunpack.c.h.b16 %v8056
    %v8609 = vunpack.c.l.b16 %v8057
    %v8610 = vunpack.c.h.b16 %v8057
    %v8611 = vunpack.c.l.b16 %v8058
    %v8612 = vunpack.c.h.b16 %v8058
    %v8613 = vunpack.c.l.b16 %v8059
    %v8614 = vunpack.c.h.b16 %v8059
    %v8615 = vunpack.c.l.b16 %v8060
    %v8616 = vunpack.c.h.b16 %v8060
    %v8617 = vunpack.c.l.b16 %v8061
    %v8618 = vunpack.c.h.b16 %v8061
    %v8619 = vunpack.c.l.b16 %v8062
    %v8620 = vunpack.c.h.b16 %v8062
    %v8621 = vunpack.c.l.b16 %v8063
    %v8622 = vunpack.c.h.b16 %v8063
    %v8623 = vunpack.c.l.b16 %v8064
    %v8624 = vunpack.c.h.b16 %v8064
    %v8625 = vunpack.c.l.b16 %v8065
    %v8626 = vunpack.c.h.b16 %v8065
    %v8627 = vunpack.c.l.b16 %v8066
    %v8628 = vunpack.c.h.b16 %v8066
    %v8629 = vunpack.c.l.b16 %v8067
    %v8630 = vunpack.c.h.b16 %v8067
    %v8631 = vunpack.c.l.b16 %v8068
    %v8632 = vunpack.c.h.b16 %v8068
    %v8633 = vunpack.c.l.b16 %v8069
    %v8634 = vunpack.c.h.b16 %v8069
    %v8635 = vunpack.c.l.b16 %v8070
    %v8636 = vunpack.c.h.b16 %v8070
    %v8637 = vunpack.c.l.b16 %v8071
    %v8638 = vunpack.c.h.b16 %v8071
    %v8639 = vunpack.c.l.b16 %v8072
    %v8640 = vunpack.c.h.b16 %v8072
    %v8641 = vunpack.c.l.b16 %v8073
    %v8642 = vunpack.c.h.b16 %v8073
    %v8643 = vunpack.c.l.b16 %v8074
    %v8644 = vunpack.c.h.b16 %v8074
    %v8645 = vunpack.c.l.b16 %v8075
    %v8646 = vunpack.c.h.b16 %v8075
    %v8647 = vunpack.c.l.b16 %v8076
    %v8648 = vunpack.c.h.b16 %v8076
    %v8649 = vunpack.c.l.b16 %v8077
    %v8650 = vunpack.c.h.b16 %v8077
    %v8651 = vunpack.c.l.b16 %v8078
    %v8652 = vunpack.c.h.b16 %v8078
    %v8653 = vunpack.c.l.b16 %v8079
    %v8654 = vunpack.c.h.b16 %v8079
    %v8655 = vunpack.c.l.b16 %v8080
    %v8656 = vunpack.c.h.b16 %v8080
    %v8657 = vunpack.c.l.b16 %v8081
    %v8658 = vunpack.c.h.b16 %v8081
    %v8659 = vunpack.c.l.b16 %v8082
    %v8660 = vunpack.c.h.b16 %v8082
    %v8661 = vunpack.c.l.b16 %v8083
    %v8662 = vunpack.c.h.b16 %v8083
    %v8663 = vunpack.c.l.b16 %v8084
    %v8664 = vunpack.c.h.b16 %v8084
    %v8665 = vunpack.c.l.b16 %v8085
    %v8666 = vunpack.c.h.b16 %v8085
    %v8667 = vunpack.c.l.b16 %v8086
    %v8668 = vunpack.c.h.b16 %v8086
    %v8669 = vunpack.c.l.b16 %v8087
    %v8670 = vunpack.c.h.b16 %v8087
    %v8671 = vunpack.c.l.b16 %v8088
    %v8672 = vunpack.c.h.b16 %v8088
    %v8673 = vunpack.c.l.b16 %v8089
    %v8674 = vunpack.c.h.b16 %v8089
    %v8675 = vunpack.c.l.b16 %v8090
    %v8676 = vunpack.c.h.b16 %v8090
    %v8677 = vunpack.c.l.b16 %v8091
    %v8678 = vunpack.c.h.b16 %v8091
    %v8679 = vunpack.c.l.b16 %v8092
    %v8680 = vunpack.c.h.b16 %v8092
    %v8681 = vunpack.c.l.b16 %v8093
    %v8682 = vunpack.c.h.b16 %v8093
    %v8683 = vunpack.c.l.b16 %v8094
    %v8684 = vunpack.c.h.b16 %v8094
    %v8685 = vunpack.c.l.b16 %v8095
    %v8686 = vunpack.c.h.b16 %v8095
    %v8687 = vunpack.c.l.b16 %v8096
    %v8688 = vunpack.c.h.b16 %v8096
    %v8689 = vunpack.c.l.b16 %v8097
    %v8690 = vunpack.c.h.b16 %v8097
    %v8691 = vunpack.c.l.b16 %v8098
    %v8692 = vunpack.c.h.b16 %v8098
    %v8693 = vunpack.c.l.b16 %v8099
    %v8694 = vunpack.c.h.b16 %v8099
    %v8695 = vunpack.c.l.b16 %v8100
    %v8696 = vunpack.c.h.b16 %v8100
    %v8697 = vunpack.c.l.b16 %v8101
    %v8698 = vunpack.c.h.b16 %v8101
    %v8699 = vunpack.c.l.b16 %v8102
    %v8700 = vunpack.c.h.b16 %v8102
    %v8701 = vunpack.c.l.b16 %v8103
    %v8702 = vunpack.c.h.b16 %v8103
    %v8703 = vunpack.c.l.b16 %v8104
    %v8704 = vunpack.c.h.b16 %v8104
    %v8705 = vunpack.c.l.b16 %v8105
    %v8706 = vunpack.c.h.b16 %v8105
    %v8707 = vunpack.c.l.b16 %v8106
    %v8708 = vunpack.c.h.b16 %v8106
    %v8709 = vunpack.c.l.b16 %v8107
    %v8710 = vunpack.c.h.b16 %v8107
    %v8711 = vunpack.c.l.b16 %v8108
    %v8712 = vunpack.c.h.b16 %v8108
    %v8713 = vunpack.c.l.b16 %v8109
    %v8714 = vunpack.c.h.b16 %v8109
    %v8715 = vunpack.c.l.b16 %v8110
    %v8716 = vunpack.c.h.b16 %v8110
    %v8717 = vunpack.c.l.b16 %v8111
    %v8718 = vunpack.c.h.b16 %v8111
    %v8719 = vunpack.c.l.b16 %v8112
    %v8720 = vunpack.c.h.b16 %v8112
    %v8721 = vunpack.c.l.b16 %v8113
    %v8722 = vunpack.c.h.b16 %v8113
    %v8723 = vunpack.c.l.b16 %v8114
    %v8724 = vunpack.c.h.b16 %v8114
    %v8725 = vunpack.c.l.b16 %v8115
    %v8726 = vunpack.c.h.b16 %v8115
    %v8727 = vunpack.c.l.b16 %v8116
    %v8728 = vunpack.c.h.b16 %v8116
    %v8729 = vunpack.c.l.b16 %v8117
    %v8730 = vunpack.c.h.b16 %v8117
    %v8731 = vunpack.c.l.b16 %v8118
    %v8732 = vunpack.c.h.b16 %v8118
    %v8733 = vunpack.c.l.b16 %v8119
    %v8734 = vunpack.c.h.b16 %v8119
    %v8735 = vunpack.c.l.b16 %v8120
    %v8736 = vunpack.c.h.b16 %v8120
    %v8737 = vunpack.c.l.b16 %v8121
    %v8738 = vunpack.c.h.b16 %v8121
    %v8739 = vunpack.c.l.b16 %v8122
    %v8740 = vunpack.c.h.b16 %v8122
    %v8741 = vunpack.c.l.b16 %v8123
    %v8742 = vunpack.c.h.b16 %v8123
    %v8743 = vunpack.c.l.b16 %v8124
    %v8744 = vunpack.c.h.b16 %v8124
    %v8745 = vunpack.c.l.b16 %v8125
    %v8746 = vunpack.c.h.b16 %v8125
    %v8747 = vunpack.c.l.b16 %v8126
    %v8748 = vunpack.c.h.b16 %v8126
    %v8749 = vunpack.c.l.b16 %v8127
    %v8750 = vunpack.c.h.b16 %v8127
    %v8751 = vunpack.c.l.b16 %v8128
    %v8752 = vunpack.c.h.b16 %v8128
    %v8753 = vunpack.c.l.b16 %v8129
    %v8754 = vunpack.c.h.b16 %v8129
    %v8755 = vunpack.c.l.b16 %v8130
    %v8756 = vunpack.c.h.b16 %v8130
    %v8757 = vunpack.c.l.b16 %v8131
    %v8758 = vunpack.c.h.b16 %v8131
    %v8759 = vunpack.c.l.b16 %v8132
    %v8760 = vunpack.c.h.b16 %v8132
    %v8761 = vunpack.c.l.b16 %v8133
    %v8762 = vunpack.c.h.b16 %v8133
    %v8763 = vunpack.c.l.b16 %v8134
    %v8764 = vunpack.c.h.b16 %v8134
    %v8765 = vunpack.c.l.b16 %v8135
    %v8766 = vunpack.c.h.b16 %v8135
    %v8767 = vunpack.c.l.b16 %v8136
    %v8768 = vunpack.c.h.b16 %v8136
    %v8769 = vunpack.c.l.b16 %v8137
    %v8770 = vunpack.c.h.b16 %v8137
    %v8771 = vunpack.c.l.b16 %v8138
    %v8772 = vunpack.c.h.b16 %v8138
    %v8773 = vunpack.c.l.b16 %v8139
    %v8774 = vunpack.c.h.b16 %v8139
    %v8775 = vunpack.c.l.b16 %v8140
    %v8776 = vunpack.c.h.b16 %v8140
    %v8777 = vunpack.c.l.b16 %v8141
    %v8778 = vunpack.c.h.b16 %v8141
    %v8779 = vunpack.c.l.b16 %v8142
    %v8780 = vunpack.c.h.b16 %v8142
    %v8781 = vunpack.c.l.b16 %v8143
    %v8782 = vunpack.c.h.b16 %v8143
    %v8783 = vunpack.c.l.b16 %v8144
    %v8784 = vunpack.c.h.b16 %v8144
    %v8785 = vunpack.c.l.b16 %v8145
    %v8786 = vunpack.c.h.b16 %v8145
    %v8787 = vunpack.c.l.b16 %v8146
    %v8788 = vunpack.c.h.b16 %v8146
    %v8789 = vunpack.c.l.b16 %v8147
    %v8790 = vunpack.c.h.b16 %v8147
    %v8791 = vunpack.c.l.b16 %v8148
    %v8792 = vunpack.c.h.b16 %v8148
    %v8793 = vunpack.c.l.b16 %v8149
    %v8794 = vunpack.c.h.b16 %v8149
    %v8795 = vunpack.c.l.b16 %v8150
    %v8796 = vunpack.c.h.b16 %v8150
    %v8797 = vunpack.c.l.b16 %v8151
    %v8798 = vunpack.c.h.b16 %v8151
    %v8799 = vunpack.c.l.b16 %v8152
    %v8800 = vunpack.c.h.b16 %v8152
    %v8801 = vunpack.c.l.b16 %v8153
    %v8802 = vunpack.c.h.b16 %v8153
    %v8803 = vunpack.c.l.b16 %v8154
    %v8804 = vunpack.c.h.b16 %v8154
    %v8805 = vunpack.c.l.b16 %v8155
    %v8806 = vunpack.c.h.b16 %v8155
    %v8807 = vunpack.c.l.b16 %v8156
    %v8808 = vunpack.c.h.b16 %v8156
    %v8809 = vunpack.c.l.b16 %v8157
    %v8810 = vunpack.c.h.b16 %v8157
    %v8811 = vunpack.c.l.b16 %v8158
    %v8812 = vunpack.c.h.b16 %v8158
    %v8813 = vunpack.c.l.b16 %v8159
    %v8814 = vunpack.c.h.b16 %v8159
    %v8815 = vunpack.c.l.b16 %v8160
    %v8816 = vunpack.c.h.b16 %v8160
    %v8817 = vunpack.c.l.b16 %v8161
    %v8818 = vunpack.c.h.b16 %v8161
    %v8819 = vunpack.c.l.b16 %v8162
    %v8820 = vunpack.c.h.b16 %v8162
    %v8821 = vunpack.c.l.b16 %v8163
    %v8822 = vunpack.c.h.b16 %v8163
    %v8823 = vunpack.c.l.b16 %v8164
    %v8824 = vunpack.c.h.b16 %v8164
    %v8825 = vunpack.c.l.b16 %v8165
    %v8826 = vunpack.c.h.b16 %v8165
    %v8827 = vunpack.c.l.b16 %v8166
    %v8828 = vunpack.c.h.b16 %v8166
    %v8829 = vunpack.c.l.b16 %v8167
    %v8830 = vunpack.c.h.b16 %v8167
    %v8831 = vunpack.c.l.b16 %v8168
    %v8832 = vunpack.c.h.b16 %v8168
    %v8833 = vunpack.c.l.b16 %v8169
    %v8834 = vunpack.c.h.b16 %v8169
    %v8835 = vunpack.c.l.b16 %v8170
    %v8836 = vunpack.c.h.b16 %v8170
    %v8837 = vunpack.c.l.b16 %v8171
    %v8838 = vunpack.c.h.b16 %v8171
    %v8839 = vunpack.c.l.b16 %v8172
    %v8840 = vunpack.c.h.b16 %v8172
    %v8841 = vunpack.c.l.b16 %v8173
    %v8842 = vunpack.c.h.b16 %v8173
    %v8843 = vunpack.c.l.b16 %v8174
    %v8844 = vunpack.c.h.b16 %v8174
    %v8845 = vunpack.c.l.b16 %v8175
    %v8846 = vunpack.c.h.b16 %v8175
    %v8847 = vunpack.c.l.b16 %v8176
    %v8848 = vunpack.c.h.b16 %v8176
    %v8849 = vunpack.c.l.b16 %v8177
    %v8850 = vunpack.c.h.b16 %v8177
    %v8851 = vunpack.c.l.b16 %v8178
    %v8852 = vunpack.c.h.b16 %v8178
    %v8853 = vunpack.c.l.b16 %v8179
    %v8854 = vunpack.c.h.b16 %v8179
    %v8855 = vunpack.c.l.b16 %v8180
    %v8856 = vunpack.c.h.b16 %v8180
    %v8857 = vunpack.c.l.b16 %v8181
    %v8858 = vunpack.c.h.b16 %v8181
    %v8859 = vunpack.c.l.b16 %v8182
    %v8860 = vunpack.c.h.b16 %v8182
    %v8861 = vunpack.c.l.b16 %v8183
    %v8862 = vunpack.c.h.b16 %v8183
    %v8863 = vunpack.c.l.b16 %v8184
    %v8864 = vunpack.c.h.b16 %v8184
    %v8865 = vunpack.c.l.b16 %v8185
    %v8866 = vunpack.c.h.b16 %v8185
    %v8867 = vunpack.c.l.b16 %v8186
    %v8868 = vunpack.c.h.b16 %v8186
    %v8869 = vunpack.c.l.b16 %v8187
    %v8870 = vunpack.c.h.b16 %v8187
    %v8871 = vunpack.c.l.b16 %v8188
    %v8872 = vunpack.c.h.b16 %v8188
    %v8873 = vunpack.c.l.b16 %v8189
    %v8874 = vunpack.c.h.b16 %v8189
    %v8875 = vunpack.c.l.b16 %v8190
    %v8876 = vunpack.c.h.b16 %v8190
    %v8877 = vunpack.c.l.b16 %v8191
    %v8878 = vunpack.c.h.b16 %v8191
    %v8879 = vunpack.c.l.b16 %v8192
    %v8880 = vunpack.c.h.b16 %v8192
    %v8881 = vunpack.c.l.b16 %v8193
    %v8882 = vunpack.c.h.b16 %v8193
    %v8883 = vunpack.c.l.b16 %v8194
    %v8884 = vunpack.c.h.b16 %v8194
    %v8885 = vunpack.c.l.b16 %v8195
    %v8886 = vunpack.c.h.b16 %v8195
    %v8887 = vunpack.c.l.b16 %v8196
    %v8888 = vunpack.c.h.b16 %v8196
    %v8889 = vunpack.c.l.b16 %v8197
    %v8890 = vunpack.c.h.b16 %v8197
    %v8891 = vunpack.c.l.b16 %v8198
    %v8892 = vunpack.c.h.b16 %v8198
    %v8893 = vunpack.c.l.b16 %v8199
    %v8894 = vunpack.c.h.b16 %v8199
    %v8895 = vunpack.c.l.b16 %v8200
    %v8896 = vunpack.c.h.b16 %v8200
    %v8897 = vunpack.c.l.b16 %v8201
    %v8898 = vunpack.c.h.b16 %v8201
    %v8899 = vunpack.c.l.b16 %v8202
    %v8900 = vunpack.c.h.b16 %v8202
    %v8901 = vunpack.c.l.b16 %v8203
    %v8902 = vunpack.c.h.b16 %v8203
    %v8903 = vunpack.c.l.b16 %v8204
    %v8904 = vunpack.c.h.b16 %v8204
    %v8905 = vunpack.c.l.b16 %v8205
    %v8906 = vunpack.c.h.b16 %v8205
    %v8907 = vunpack.c.l.b16 %v8206
    %v8908 = vunpack.c.h.b16 %v8206
    %v8909 = vunpack.c.l.b16 %v8207
    %v8910 = vunpack.c.h.b16 %v8207
    %v8911 = vunpack.c.l.b16 %v8208
    %v8912 = vunpack.c.h.b16 %v8208
    %v8913 = vunpack.c.l.b16 %v8209
    %v8914 = vunpack.c.h.b16 %v8209
    %v8915 = vunpack.c.l.b16 %v8210
    %v8916 = vunpack.c.h.b16 %v8210
    %v8917 = vunpack.c.l.b16 %v8211
    %v8918 = vunpack.c.h.b16 %v8211
    %v8919 = vunpack.c.l.b16 %v8212
    %v8920 = vunpack.c.h.b16 %v8212
    %v8921 = vunpack.c.l.b16 %v8213
    %v8922 = vunpack.c.h.b16 %v8213
    %v8923 = vunpack.c.l.b16 %v8214
    %v8924 = vunpack.c.h.b16 %v8214
    %v8925 = vunpack.c.l.b16 %v8215
    %v8926 = vunpack.c.h.b16 %v8215
    %v8927 = vunpack.c.l.b16 %v8216
    %v8928 = vunpack.c.h.b16 %v8216
    %v8929 = vunpack.c.l.b16 %v8217
    %v8930 = vunpack.c.h.b16 %v8217
    %v8931 = vunpack.c.l.b16 %v8218
    %v8932 = vunpack.c.h.b16 %v8218
    %v8933 = vunpack.c.l.b16 %v8219
    %v8934 = vunpack.c.h.b16 %v8219
    %v8935 = vunpack.c.l.b16 %v8220
    %v8936 = vunpack.c.h.b16 %v8220
    %v8937 = vunpack.c.l.b16 %v8221
    %v8938 = vunpack.c.h.b16 %v8221
    %v8939 = vunpack.c.l.b16 %v8222
    %v8940 = vunpack.c.h.b16 %v8222
    %v8941 = vunpack.c.l.b16 %v8223
    %v8942 = vunpack.c.h.b16 %v8223
    %v8943 = vunpack.c.l.b16 %v8224
    %v8944 = vunpack.c.h.b16 %v8224
    %v8945 = vunpack.c.l.b16 %v8225
    %v8946 = vunpack.c.h.b16 %v8225
    %v8947 = vunpack.c.l.b16 %v8226
    %v8948 = vunpack.c.h.b16 %v8226
    %v8949 = vunpack.c.l.b16 %v8227
    %v8950 = vunpack.c.h.b16 %v8227
    %v8951 = vunpack.c.l.b16 %v8228
    %v8952 = vunpack.c.h.b16 %v8228
    %v8953 = vunpack.c.l.b16 %v8229
    %v8954 = vunpack.c.h.b16 %v8229
    %v8955 = vunpack.c.l.b16 %v8230
    %v8956 = vunpack.c.h.b16 %v8230
    %v8957 = vunpack.c.l.b16 %v8231
    %v8958 = vunpack.c.h.b16 %v8231
    %v8959 = vunpack.c.l.b16 %v8232
    %v8960 = vunpack.c.h.b16 %v8232
    %v8961 = vunpack.c.l.b16 %v8233
    %v8962 = vunpack.c.h.b16 %v8233
    %v8963 = vunpack.c.l.b16 %v8234
    %v8964 = vunpack.c.h.b16 %v8234
    %v8965 = vunpack.c.l.b16 %v8235
    %v8966 = vunpack.c.h.b16 %v8235
    %v8967 = vunpack.c.l.b16 %v8236
    %v8968 = vunpack.c.h.b16 %v8236
    %v8969 = vunpack.c.l.b16 %v8237
    %v8970 = vunpack.c.h.b16 %v8237
    %v8971 = vunpack.c.l.b16 %v8238
    %v8972 = vunpack.c.h.b16 %v8238
    %v8973 = vunpack.c.l.b16 %v8239
    %v8974 = vunpack.c.h.b16 %v8239
    %v8975 = vunpack.c.l.b16 %v8240
    %v8976 = vunpack.c.h.b16 %v8240
    %v8977 = vunpack.c.l.b16 %v8241
    %v8978 = vunpack.c.h.b16 %v8241
    %v8979 = vunpack.c.l.b16 %v8242
    %v8980 = vunpack.c.h.b16 %v8242
    %v8981 = vunpack.c.l.b16 %v8243
    %v8982 = vunpack.c.h.b16 %v8243
    %v8983 = vunpack.c.l.b16 %v8244
    %v8984 = vunpack.c.h.b16 %v8244
    %v8985 = vunpack.c.l.b16 %v8245
    %v8986 = vunpack.c.h.b16 %v8245
    %v8987 = vunpack.c.l.b16 %v8246
    %v8988 = vunpack.c.h.b16 %v8246
    %v8989 = vunpack.c.l.b16 %v8247
    %v8990 = vunpack.c.h.b16 %v8247
    %v8991 = vunpack.c.l.b16 %v8248
    %v8992 = vunpack.c.h.b16 %v8248
    %v8993 = vunpack.c.l.b16 %v8249
    %v8994 = vunpack.c.h.b16 %v8249
    %v8995 = vunpack.c.l.b16 %v8250
    %v8996 = vunpack.c.h.b16 %v8250
    %v8997 = vunpack.c.l.b16 %v8251
    %v8998 = vunpack.c.h.b16 %v8251
    %v8999 = vunpack.c.l.b16 %v8252
    %v9000 = vunpack.c.h.b16 %v8252
    %v9001 = vunpack.c.l.b16 %v8253
    %v9002 = vunpack.c.h.b16 %v8253
    %v9003 = vunpack.c.l.b16 %v8254
    %v9004 = vunpack.c.h.b16 %v8254
    %v9005 = vunpack.c.l.b16 %v8255
    %v9006 = vunpack.c.h.b16 %v8255
    %v9007 = vunpack.c.l.b16 %v8256
    %v9008 = vunpack.c.h.b16 %v8256
    %v9009 = vunpack.c.l.b16 %v8257
    %v9010 = vunpack.c.h.b16 %v8257
    %v9011 = vunpack.c.l.b16 %v8258
    %v9012 = vunpack.c.h.b16 %v8258
    %v9013 = vunpack.c.l.b16 %v8259
    %v9014 = vunpack.c.h.b16 %v8259
    %v9015 = vunpack.c.l.b16 %v8260
    %v9016 = vunpack.c.h.b16 %v8260
    %v9017 = vunpack.c.l.b16 %v8261
    %v9018 = vunpack.c.h.b16 %v8261
    %v9019 = vunpack.c.l.b16 %v8262
    %v9020 = vunpack.c.h.b16 %v8262
    %v9021 = vunpack.c.l.b16 %v8263
    %v9022 = vunpack.c.h.b16 %v8263
    %v9023 = vunpack.c.l.b16 %v8264
    %v9024 = vunpack.c.h.b16 %v8264
    %v9025 = vunpack.c.l.b16 %v8265
    %v9026 = vunpack.c.h.b16 %v8265
    %v9027 = vunpack.c.l.b16 %v8266
    %v9028 = vunpack.c.h.b16 %v8266
    %v9029 = vunpack.c.l.b16 %v8267
    %v9030 = vunpack.c.h.b16 %v8267
    %v9031 = vunpack.c.l.b16 %v8268
    %v9032 = vunpack.c.h.b16 %v8268
    %v9033 = vunpack.c.l.b16 %v8269
    %v9034 = vunpack.c.h.b16 %v8269
    %v9035 = vunpack.c.l.b16 %v8270
    %v9036 = vunpack.c.h.b16 %v8270
    %v9037 = vunpack.c.l.b16 %v8271
    %v9038 = vunpack.c.h.b16 %v8271
    %v9039 = vunpack.c.l.b16 %v8272
    %v9040 = vunpack.c.h.b16 %v8272
    %v9041 = vunpack.c.l.b16 %v8273
    %v9042 = vunpack.c.h.b16 %v8273
    %v9043 = vunpack.c.l.b16 %v8274
    %v9044 = vunpack.c.h.b16 %v8274
    %v9045 = vunpack.c.l.b16 %v8275
    %v9046 = vunpack.c.h.b16 %v8275
    %v9047 = vunpack.c.l.b16 %v8276
    %v9048 = vunpack.c.h.b16 %v8276
    %v9049 = vunpack.c.l.b16 %v8277
    %v9050 = vunpack.c.h.b16 %v8277
    %v9051 = vunpack.c.l.b16 %v8278
    %v9052 = vunpack.c.h.b16 %v8278
    %v9053 = vunpack.c.l.b16 %v8279
    %v9054 = vunpack.c.h.b16 %v8279
    %v9055 = vunpack.c.l.b16 %v8280
    %v9056 = vunpack.c.h.b16 %v8280
    %v9057 = vunpack.c.l.b16 %v8281
    %v9058 = vunpack.c.h.b16 %v8281
    %v9059 = vunpack.c.l.b16 %v8282
    %v9060 = vunpack.c.h.b16 %v8282
    %v9061 = vunpack.c.l.b16 %v8283
    %v9062 = vunpack.c.h.b16 %v8283
    %v9063 = vunpack.c.l.b16 %v8284
    %v9064 = vunpack.c.h.b16 %v8284
    %v9065 = vunpack.c.l.b16 %v8285
    %v9066 = vunpack.c.h.b16 %v8285
    %v9067 = vunpack.c.l.b16 %v8286
    %v9068 = vunpack.c.h.b16 %v8286
    %v9069 = vunpack.c.l.b16 %v8287
    %v9070 = vunpack.c.h.b16 %v8287
    %v9071 = vunpack.c.l.b16 %v8288
    %v9072 = vunpack.c.h.b16 %v8288
    %v9073 = vunpack.c.l.b16 %v8289
    %v9074 = vunpack.c.h.b16 %v8289
    %v9075 = vunpack.c.l.b16 %v8290
    %v9076 = vunpack.c.h.b16 %v8290
    %v9077 = vunpack.c.l.b16 %v8291
    %v9078 = vunpack.c.h.b16 %v8291
    %v9079 = vunpack.c.l.b16 %v8292
    %v9080 = vunpack.c.h.b16 %v8292
    %v9081 = vunpack.c.l.b16 %v8293
    %v9082 = vunpack.c.h.b16 %v8293
    %v9083 = vunpack.c.l.b16 %v8294
    %v9084 = vunpack.c.h.b16 %v8294
    %v9085 = vpack.c.b16 %v8577, %v8573
    %v9086 = vpack.c.b16 %v8578, %v8574
    %v9087 = vpack.c.b16 %v8579, %v8575
    %v9088 = vpack.c.b16 %v8580, %v8576
    %v9089 = vpack.c.b16 %v8585, %v8581
    %v9090 = vpack.c.b16 %v8586, %v8582
    %v9091 = vpack.c.b16 %v8587, %v8583
    %v9092 = vpack.c.b16 %v8588, %v8584
    %v9093 = vpack.c.b16 %v8593, %v8589
    %v9094 = vpack.c.b16 %v8594, %v8590
    %v9095 = vpack.c.b16 %v8595, %v8591
    %v9096 = vpack.c.b16 %v8596, %v8592
    %v9097 = vpack.c.b16 %v8601, %v8597
    %v9098 = vpack.c.b16 %v8602, %v8598
    %v9099 = vpack.c.b16 %v8603, %v8599
    %v9100 = vpack.c.b16 %v8604, %v8600
    %v9101 = vpack.c.b16 %v8609, %v8605
    %v9102 = vpack.c.b16 %v8610, %v8606
    %v9103 = vpack.c.b16 %v8611, %v8607
    %v9104 = vpack.c.b16 %v8612, %v8608
    %v9105 = vpack.c.b16 %v8617, %v8613
    %v9106 = vpack.c.b16 %v8618, %v8614
    %v9107 = vpack.c.b16 %v8619, %v8615
    %v9108 = vpack.c.b16 %v8620, %v8616
    %v9109 = vpack.c.b16 %v8625, %v8621
    %v9110 = vpack.c.b16 %v8626, %v8622
    %v9111 = vpack.c.b16 %v8627, %v8623
    %v9112 = vpack.c.b16 %v8628, %v8624
    %v9113 = vpack.c.b16 %v8633, %v8629
    %v9114 = vpack.c.b16 %v8634, %v8630
    %v9115 = vpack.c.b16 %v8635, %v8631
    %v9116 = vpack.c.b16 %v8636, %v8632
    %v9117 = vpack.c.b16 %v8641, %v8637
    %v9118 = vpack.c.b16 %v8642, %v8638
    %v9119 = vpack.c.b16 %v8643, %v8639
    %v9120 = vpack.c.b16 %v8644, %v8640
    %v9121 = vpack.c.b16 %v8649, %v8645
    %v9122 = vpack.c.b16 %v8650, %v8646
    %v9123 = vpack.c.b16 %v8651, %v8647
    %v9124 = vpack.c.b16 %v8652, %v8648
    %v9125 = vpack.c.b16 %v8657, %v8653
    %v9126 = vpack.c.b16 %v8658, %v8654
    %v9127 = vpack.c.b16 %v8659, %v8655
    %v9128 = vpack.c.b16 %v8660, %v8656
    %v9129 = vpack.c.b16 %v8665, %v8661
    %v9130 = vpack.c.b16 %v8666, %v8662
    %v9131 = vpack.c.b16 %v8667, %v8663
    %v9132 = vpack.c.b16 %v8668, %v8664
    %v9133 = vpack.c.b16 %v8673, %v8669
    %v9134 = vpack.c.b16 %v8674, %v8670
    %v9135 = vpack.c.b16 %v8675, %v8671
    %v9136 = vpack.c.b16 %v8676, %v8672
    %v9137 = vpack.c.b16 %v8681, %v8677
    %v9138 = vpack.c.b16 %v8682, %v8678
    %v9139 = vpack.c.b16 %v8683, %v8679
    %v9140 = vpack.c.b16 %v8684, %v8680
    %v9141 = vpack.c.b16 %v8689, %v8685
    %v9142 = vpack.c.b16 %v8690, %v8686
    %v9143 = vpack.c.b16 %v8691, %v8687
    %v9144 = vpack.c.b16 %v8692, %v8688
    %v9145 = vpack.c.b16 %v8697, %v8693
    %v9146 = vpack.c.b16 %v8698, %v8694
    %v9147 = vpack.c.b16 %v8699, %v8695
    %v9148 = vpack.c.b16 %v8700, %v8696
    %v9149 = vpack.c.b16 %v8705, %v8701
    %v9150 = vpack.c.b16 %v8706, %v8702
    %v9151 = vpack.c.b16 %v8707, %v8703
    %v9152 = vpack.c.b16 %v8708, %v8704
    %v9153 = vpack.c.b16 %v8713, %v8709
    %v9154 = vpack.c.b16 %v8714, %v8710
    %v9155 = vpack.c.b16 %v8715, %v8711
    %v9156 = vpack.c.b16 %v8716, %v8712
    %v9157 = vpack.c.b16 %v8721, %v8717
    %v9158 = vpack.c.b16 %v8722, %v8718
    %v9159 = vpack.c.b16 %v8723, %v8719
    %v9160 = vpack.c.b16 %v8724, %v8720
    %v9161 = vpack.c.b16 %v8729, %v8725
    %v9162 = vpack.c.b16 %v8730, %v8726
    %v9163 = vpack.c.b16 %v8731, %v8727
    %v9164 = vpack.c.b16 %v8732, %v8728
    %v9165 = vpack.c.b16 %v8737, %v8733
    %v9166 = vpack.c.b16 %v8738, %v8734
    %v9167 = vpack.c.b16 %v8739, %v8735
    %v9168 = vpack.c.b16 %v8740, %v8736
    %v9169 = vpack.c.b16 %v8745, %v8741
    %v9170 = vpack.c.b16 %v8746, %v8742
    %v9171 = vpack.c.b16 %v8747, %v8743
    %v9172 = vpack.c.b16 %v8748, %v8744
    %v9173 = vpack.c.b16 %v8753, %v8749
    %v9174 = vpack.c.b16 %v8754, %v8750
    %v9175 = vpack.c.b16 %v8755, %v8751
    %v9176 = vpack.c.b16 %v8756, %v8752
    %v9177 = vpack.c.b16 %v8761, %v8757
    %v9178 = vpack.c.b16 %v8762, %v8758
    %v9179 = vpack.c.b16 %v8763, %v8759
    %v9180 = vpack.c.b16 %v8764, %v8760
    %v9181 = vpack.c.b16 %v8769, %v8765
    %v9182 = vpack.c.b16 %v8770, %v8766
    %v9183 = vpack.c.b16 %v8771, %v8767
    %v9184 = vpack.c.b16 %v8772, %v8768
    %v9185 = vpack.c.b16 %v8777, %v8773
    %v9186 = vpack.c.b16 %v8778, %v8774
    %v9187 = vpack.c.b16 %v8779, %v8775
    %v9188 = vpack.c.b16 %v8780, %v8776
    %v9189 = vpack.c.b16 %v8785, %v8781
    %v9190 = vpack.c.b16 %v8786, %v8782
    %v9191 = vpack.c.b16 %v8787, %v8783
    %v9192 = vpack.c.b16 %v8788, %v8784
    %v9193 = vpack.c.b16 %v8793, %v8789
    %v9194 = vpack.c.b16 %v8794, %v8790
    %v9195 = vpack.c.b16 %v8795, %v8791
    %v9196 = vpack.c.b16 %v8796, %v8792
    %v9197 = vpack.c.b16 %v8801, %v8797
    %v9198 = vpack.c.b16 %v8802, %v8798
    %v9199 = vpack.c.b16 %v8803, %v8799
    %v9200 = vpack.c.b16 %v8804, %v8800
    %v9201 = vpack.c.b16 %v8809, %v8805
    %v9202 = vpack.c.b16 %v8810, %v8806
    %v9203 = vpack.c.b16 %v8811, %v8807
    %v9204 = vpack.c.b16 %v8812, %v8808
    %v9205 = vpack.c.b16 %v8817, %v8813
    %v9206 = vpack.c.b16 %v8818, %v8814
    %v9207 = vpack.c.b16 %v8819, %v8815
    %v9208 = vpack.c.b16 %v8820, %v8816
    %v9209 = vpack.c.b16 %v8825, %v8821
    %v9210 = vpack.c.b16 %v8826, %v8822
    %v9211 = vpack.c.b16 %v8827, %v8823
    %v9212 = vpack.c.b16 %v8828, %v8824
    %v9213 = vpack.c.b16 %v8833, %v8829
    %v9214 = vpack.c.b16 %v8834, %v8830
    %v9215 = vpack.c.b16 %v8835, %v8831
    %v9216 = vpack.c.b16 %v8836, %v8832
    %v9217 = vpack.c.b16 %v8841, %v8837
    %v9218 = vpack.c.b16 %v8842, %v8838
    %v9219 = vpack.c.b16 %v8843, %v8839
    %v9220 = vpack.c.b16 %v8844, %v8840
    %v9221 = vpack.c.b16 %v8849, %v8845
    %v9222 = vpack.c.b16 %v8850, %v8846
    %v9223 = vpack.c.b16 %v8851, %v8847
    %v9224 = vpack.c.b16 %v8852, %v8848
    %v9225 = vpack.c.b16 %v8857, %v8853
    %v9226 = vpack.c.b16 %v8858, %v8854
    %v9227 = vpack.c.b16 %v8859, %v8855
    %v9228 = vpack.c.b16 %v8860, %v8856
    %v9229 = vpack.c.b16 %v8865, %v8861
    %v9230 = vpack.c.b16 %v8866, %v8862
    %v9231 = vpack.c.b16 %v8867, %v8863
    %v9232 = vpack.c.b16 %v8868, %v8864
    %v9233 = vpack.c.b16 %v8873, %v8869
    %v9234 = vpack.c.b16 %v8874, %v8870
    %v9235 = vpack.c.b16 %v8875, %v8871
    %v9236 = vpack.c.b16 %v8876, %v8872
    %v9237 = vpack.c.b16 %v8881, %v8877
    %v9238 = vpack.c.b16 %v8882, %v8878
    %v9239 = vpack.c.b16 %v8883, %v8879
    %v9240 = vpack.c.b16 %v8884, %v8880
    %v9241 = vpack.c.b16 %v8889, %v8885
    %v9242 = vpack.c.b16 %v8890, %v8886
    %v9243 = vpack.c.b16 %v8891, %v8887
    %v9244 = vpack.c.b16 %v8892, %v8888
    %v9245 = vpack.c.b16 %v8897, %v8893
    %v9246 = vpack.c.b16 %v8898, %v8894
    %v9247 = vpack.c.b16 %v8899, %v8895
    %v9248 = vpack.c.b16 %v8900, %v8896
    %v9249 = vpack.c.b16 %v8905, %v8901
    %v9250 = vpack.c.b16 %v8906, %v8902
    %v9251 = vpack.c.b16 %v8907, %v8903
    %v9252 = vpack.c.b16 %v8908, %v8904
    %v9253 = vpack.c.b16 %v8913, %v8909
    %v9254 = vpack.c.b16 %v8914, %v8910
    %v9255 = vpack.c.b16 %v8915, %v8911
    %v9256 = vpack.c.b16 %v8916, %v8912
    %v9257 = vpack.c.b16 %v8921, %v8917
    %v9258 = vpack.c.b16 %v8922, %v8918
    %v9259 = vpack.c.b16 %v8923, %v8919
    %v9260 = vpack.c.b16 %v8924, %v8920
    %v9261 = vpack.c.b16 %v8929, %v8925
    %v9262 = vpack.c.b16 %v8930, %v8926
    %v9263 = vpack.c.b16 %v8931, %v8927
    %v9264 = vpack.c.b16 %v8932, %v8928
    %v9265 = vpack.c.b16 %v8937, %v8933
    %v9266 = vpack.c.b16 %v8938, %v8934
    %v9267 = vpack.c.b16 %v8939, %v8935
    %v9268 = vpack.c.b16 %v8940, %v8936
    %v9269 = vpack.c.b16 %v8945, %v8941
    %v9270 = vpack.c.b16 %v8946, %v8942
    %v9271 = vpack.c.b16 %v8947, %v8943
    %v9272 = vpack.c.b16 %v8948, %v8944
    %v9273 = vpack.c.b16 %v8953, %v8949
    %v9274 = vpack.c.b16 %v8954, %v8950
    %v9275 = vpack.c.b16 %v8955, %v8951
    %v9276 = vpack.c.b16 %v8956, %v8952
    %v9277 = vpack.c.b16 %v8961, %v8957
    %v9278 = vpack.c.b16 %v8962, %v8958
    %v9279 = vpack.c.b16 %v8963, %v8959
    %v9280 = vpack.c.b16 %v8964, %v8960
    %v9281 = vpack.c.b16 %v8969, %v8965
    %v9282 = vpack.c.b16 %v8970, %v8966
    %v9283 = vpack.c.b16 %v8971, %v8967
    %v9284 = vpack.c.b16 %v8972, %v8968
    %v9285 = vpack.c.b16 %v8977, %v8973
    %v9286 = vpack.c.b16 %v8978, %v8974
    %v9287 = vpack.c.b16 %v8979, %v8975
    %v9288 = vpack.c.b16 %v8980, %v8976
    %v9289 = vpack.c.b16 %v8985, %v8981
    %v9290 = vpack.c.b16 %v8986, %v8982
    %v9291 = vpack.c.b16 %v8987, %v8983
    %v9292 = vpack.c.b16 %v8988, %v8984
    %v9293 = vpack.c.b16 %v8993, %v8989
    %v9294 = vpack.c.b16 %v8994, %v8990
    %v9295 = vpack.c.b16 %v8995, %v8991
    %v9296 = vpack.c.b16 %v8996, %v8992
    %v9297 = vpack.c.b16 %v9001, %v8997
    %v9298 = vpack.c.b16 %v9002, %v8998
    %v9299 = vpack.c.b16 %v9003, %v8999
    %v9300 = vpack.c.b16 %v9004, %v9000
    %v9301 = vpack.c.b16 %v9009, %v9005
    %v9302 = vpack.c.b16 %v9010, %v9006
    %v9303 = vpack.c.b16 %v9011, %v9007
    %v9304 = vpack.c.b16 %v9012, %v9008
    %v9305 = vpack.c.b16 %v9017, %v9013
    %v9306 = vpack.c.b16 %v9018, %v9014
    %v9307 = vpack.c.b16 %v9019, %v9015
    %v9308 = vpack.c.b16 %v9020, %v9016
    %v9309 = vpack.c.b16 %v9025, %v9021
    %v9310 = vpack.c.b16 %v9026, %v9022
    %v9311 = vpack.c.b16 %v9027, %v9023
    %v9312 = vpack.c.b16 %v9028, %v9024
    %v9313 = vpack.c.b16 %v9033, %v9029
    %v9314 = vpack.c.b16 %v9034, %v9030
    %v9315 = vpack.c.b16 %v9035, %v9031
    %v9316 = vpack.c.b16 %v9036, %v9032
    %v9317 = vpack.c.b16 %v9041, %v9037
    %v9318 = vpack.c.b16 %v9042, %v9038
    %v9319 = vpack.c.b16 %v9043, %v9039
    %v9320 = vpack.c.b16 %v9044, %v9040
    %v9321 = vpack.c.b16 %v9049, %v9045
    %v9322 = vpack.c.b16 %v9050, %v9046
    %v9323 = vpack.c.b16 %v9051, %v9047
    %v9324 = vpack.c.b16 %v9052, %v9048
    %v9325 = vpack.c.b16 %v9057, %v9053
    %v9326 = vpack.c.b16 %v9058, %v9054
    %v9327 = vpack.c.b16 %v9059, %v9055
    %v9328 = vpack.c.b16 %v9060, %v9056
    %v9329 = vpack.c.b16 %v9065, %v9061
    %v9330 = vpack.c.b16 %v9066, %v9062
    %v9331 = vpack.c.b16 %v9067, %v9063
    %v9332 = vpack.c.b16 %v9068, %v9064
    %v9333 = vpack.c.b16 %v9073, %v9069
    %v9334 = vpack.c.b16 %v9074, %v9070
    %v9335 = vpack.c.b16 %v9075, %v9071
    %v9336 = vpack.c.b16 %v9076, %v9072
    %v9337 = vpack.c.b16 %v9081, %v9077
    %v9338 = vpack.c.b16 %v9082, %v9078
    %v9339 = vpack.c.b16 %v9083, %v9079
    %v9340 = vpack.c.b16 %v9084, %v9080
    %9597 = vmatprep.subr.bf16.mxu0 %v9086
    %9598 = vmatpush1.bf16.msra.mxu0 %v9085
    %9599 = vmatprep.subr.bf16.mxu0 %v9090
    %9600 = vmatpush1.bf16.msra.mxu0 %v9089
    %9601 = vmatprep.subr.bf16.mxu0 %v9094
    %9602 = vmatpush1.bf16.msra.mxu0 %v9093
    %9603 = vmatprep.subr.bf16.mxu0 %v9098
    %9604 = vmatpush1.bf16.msra.mxu0 %v9097
    %9605 = vmatprep.subr.bf16.mxu0 %v9102
    %9606 = vmatpush1.bf16.msra.mxu0 %v9101
    %9607 = vmatprep.subr.bf16.mxu0 %v9106
    %9608 = vmatpush1.bf16.msra.mxu0 %v9105
    %9609 = vmatprep.subr.bf16.mxu0 %v9110
    %9610 = vmatpush1.bf16.msra.mxu0 %v9109
    %9611 = vmatprep.subr.bf16.mxu0 %v9114
    %9612 = vmatpush1.bf16.msra.mxu0 %v9113
    %9613 = vmatprep.subr.bf16.mxu0 %v9118
    %9614 = vmatpush1.bf16.msra.mxu0 %v9117
    %9615 = vmatprep.subr.bf16.mxu0 %v9122
    %9616 = vmatpush1.bf16.msra.mxu0 %v9121
    %9617 = vmatprep.subr.bf16.mxu0 %v9126
    %9618 = vmatpush1.bf16.msra.mxu0 %v9125
    %9619 = vmatprep.subr.bf16.mxu0 %v9130
    %9620 = vmatpush1.bf16.msra.mxu0 %v9129
    %9621 = vmatprep.subr.bf16.mxu0 %v9134
    %9622 = vmatpush1.bf16.msra.mxu0 %v9133
    %9623 = vmatprep.subr.bf16.mxu0 %v9138
    %9624 = vmatpush1.bf16.msra.mxu0 %v9137
    %9625 = vmatprep.subr.bf16.mxu0 %v9142
    %9626 = vmatpush1.bf16.msra.mxu0 %v9141
    %9627 = vmatprep.subr.bf16.mxu0 %v9146
    %9628 = vmatpush1.bf16.msra.mxu0 %v9145
    %9629 = vmatprep.mubr.bf16.mxu0 %v7976
    %9630 = vmatmul.mubr.bf16.gmra.mrb[0].mxu0 %v7975
    %v9631 = vpop.f32.mrb[0].mxu0
    %v9632 = vadd.f32 %v8300, %v9631
    %v9633 = vpop.f32.mrb[0].mxu0
    %v9634 = vadd.f32 %v8304, %v9633
    %v9635 = vpop.f32.mrb[0].mxu0
    %v9636 = vadd.f32 %v8300, %v9635
    %v9637 = vpop.f32.mrb[0].mxu0
    %v9638 = vadd.f32 %v8304, %v9637
    %9639 = vmatprep.mubr.bf16.mxu0 %v7984
    %9640 = vmatmul.mubr.bf16.gmra.mrb[0].mxu0 %v7983
    %v9641 = vpop.f32.mrb[0].mxu0
    %v9642 = vadd.f32 %v8300, %v9641
    %v9643 = vpop.f32.mrb[0].mxu0
    %v9644 = vadd.f32 %v8304, %v9643
    %v9645 = vpop.f32.mrb[0].mxu0
    %v9646 = vadd.f32 %v8300, %v9645
    %v9647 = vpop.f32.mrb[0].mxu0
    %v9648 = vadd.f32 %v8304, %v9647
    %9649 = vmatprep.mubr.bf16.mxu0 %v7992
    %9650 = vmatmul.mubr.bf16.gmra.mrb[0].mxu0 %v7991
    %v9651 = vpop.f32.mrb[0].mxu0
    %v9652 = vadd.f32 %v8300, %v9651
    %v9653 = vpop.f32.mrb[0].mxu0
    %v9654 = vadd.f32 %v8304, %v9653
    %v9655 = vpop.f32.mrb[0].mxu0
    %v9656 = vadd.f32 %v8300, %v9655
    %v9657 = vpop.f32.mrb[0].mxu0
    %v9658 = vadd.f32 %v8304, %v9657
    %9659 = vmatprep.mubr.bf16.mxu0 %v8000
    %9660 = vmatmul.mubr.bf16.gmra.mrb[0].mxu0 %v7999
    %v9661 = vpop.f32.mrb[0].mxu0
    %v9662 = vadd.f32 %v8300, %v9661
    %v9663 = vpop.f32.mrb[0].mxu0
    %v9664 = vadd.f32 %v8304, %v9663
    %v9665 = vpop.f32.mrb[0].mxu0
    %v9666 = vadd.f32 %v8300, %v9665
    %v9667 = vpop.f32.mrb[0].mxu0
    %v9668 = vadd.f32 %v8304, %v9667
    %9669 = vmatprep.mubr.bf16.mxu0 %v8008
    %9670 = vmatmul.mubr.bf16.gmra.mrb[0].mxu0 %v8007
    %v9671 = vpop.f32.mrb[0].mxu0
    %v9672 = vadd.f32 %v8300, %v9671
    %v9673 = vpop.f32.mrb[0].mxu0
    %v9674 = vadd.f32 %v8304, %v9673
    %v9675 = vpop.f32.mrb[0].mxu0
    %v9676 = vadd.f32 %v8300, %v9675
    %v9677 = vpop.f32.mrb[0].mxu0
    %v9678 = vadd.f32 %v8304, %v9677
    %9679 = vmatprep.mubr.bf16.mxu0 %v8016
    %9680 = vmatmul.mubr.bf16.gmra.mrb[0].mxu0 %v8015
    %v9681 = vpop.f32.mrb[0].mxu0
    %v9682 = vadd.f32 %v8300, %v9681
    %v9683 = vpop.f32.mrb[0].mxu0
    %v9684 = vadd.f32 %v8304, %v9683
    %v9685 = vpop.f32.mrb[0].mxu0
    %v9686 = vadd.f32 %v8300, %v9685
    %v9687 = vpop.f32.mrb[0].mxu0
    %v9688 = vadd.f32 %v8304, %v9687
    %9689 = vmatprep.mubr.bf16.mxu0 %v8024
    %9690 = vmatmul.mubr.bf16.gmra.mrb[0].mxu0 %v8023
    %v9691 = vpop.f32.mrb[0].mxu0
    %v9692 = vadd.f32 %v8300, %v9691
    %v9693 = vpop.f32.mrb[0].mxu0
    %v9694 = vadd.f32 %v8304, %v9693
    %v9695 = vpop.f32.mrb[0].mxu0
    %v9696 = vadd.f32 %v8300, %v9695
    %v9697 = vpop.f32.mrb[0].mxu0
    %v9698 = vadd.f32 %v8304, %v9697
    %9699 = vmatprep.mubr.bf16.mxu0 %v8032
    %9700 = vmatmul.mubr.bf16.gmra.mrb[0].mxu0 %v8031
    %v9701 = vpop.f32.mrb[0].mxu0
    %v9702 = vadd.f32 %v8300, %v9701
    %v9703 = vpop.f32.mrb[0].mxu0
    %v9704 = vadd.f32 %v8304, %v9703
    %v9705 = vpop.f32.mrb[0].mxu0
    %v9706 = vadd.f32 %v8300, %v9705
    %v9707 = vpop.f32.mrb[0].mxu0
    %v9708 = vadd.f32 %v8304, %v9707
    %9709 = vdwg.mxu0
    %9710 = vmatprep.subr.bf16.mxu0 %v9150
    %9711 = vmatpush1.bf16.msra.mxu0 %v9149
    %9712 = vmatprep.subr.bf16.mxu0 %v9154
    %9713 = vmatpush1.bf16.msra.mxu0 %v9153
    %9714 = vmatprep.subr.bf16.mxu0 %v9158
    %9715 = vmatpush1.bf16.msra.mxu0 %v9157
    %9716 = vmatprep.subr.bf16.mxu0 %v9162
    %9717 = vmatpush1.bf16.msra.mxu0 %v9161
    %9718 = vmatprep.subr.bf16.mxu0 %v9166
    %9719 = vmatpush1.bf16.msra.mxu0 %v9165
    %9720 = vmatprep.subr.bf16.mxu0 %v9170
    %9721 = vmatpush1.bf16.msra.mxu0 %v9169
    %9722 = vmatprep.subr.bf16.mxu0 %v9174
    %9723 = vmatpush1.bf16.msra.mxu0 %v9173
    %9724 = vmatprep.subr.bf16.mxu0 %v9178
    %9725 = vmatpush1.bf16.msra.mxu0 %v9177
    %9726 = vmatprep.subr.bf16.mxu0 %v9182
    %9727 = vmatpush1.bf16.msra.mxu0 %v9181
    %9728 = vmatprep.subr.bf16.mxu0 %v9186
    %9729 = vmatpush1.bf16.msra.mxu0 %v9185
    %9730 = vmatprep.subr.bf16.mxu0 %v9190
    %9731 = vmatpush1.bf16.msra.mxu0 %v9189
    %9732 = vmatprep.subr.bf16.mxu0 %v9194
    %9733 = vmatpush1.bf16.msra.mxu0 %v9193
    %9734 = vmatprep.subr.bf16.mxu0 %v9198
    %9735 = vmatpush1.bf16.msra.mxu0 %v9197
    %9736 = vmatprep.subr.bf16.mxu0 %v9202
    %9737 = vmatpush1.bf16.msra.mxu0 %v9201
    %9738 = vmatprep.subr.bf16.mxu0 %v9206
    %9739 = vmatpush1.bf16.msra.mxu0 %v9205
    %9740 = vmatprep.subr.bf16.mxu0 %v9210
    %9741 = vmatpush1.bf16.msra.mxu0 %v9209
    %9742 = vmatprep.mubr.bf16.mxu0 %v7978
    %9743 = vmatmul.mubr.bf16.gmra.mrb[0].mxu0 %v7977
    %v9744 = vpop.f32.mrb[0].mxu0
    %v9745 = vadd.f32 %v9632, %v9744
    %v9746 = vpop.f32.mrb[0].mxu0
    %v9747 = vadd.f32 %v9634, %v9746
    %v9748 = vpop.f32.mrb[0].mxu0
    %v9749 = vadd.f32 %v9636, %v9748
    %v9750 = vpop.f32.mrb[0].mxu0
    %v9751 = vadd.f32 %v9638, %v9750
    %9752 = vmatprep.mubr.bf16.mxu0 %v7986
    %9753 = vmatmul.mubr.bf16.gmra.mrb[0].mxu0 %v7985
    %v9754 = vpop.f32.mrb[0].mxu0
    %v9755 = vadd.f32 %v9642, %v9754
    %v9756 = vpop.f32.mrb[0].mxu0
    %v9757 = vadd.f32 %v9644, %v9756
    %v9758 = vpop.f32.mrb[0].mxu0
    %v9759 = vadd.f32 %v9646, %v9758
    %v9760 = vpop.f32.mrb[0].mxu0
    %v9761 = vadd.f32 %v9648, %v9760
    %9762 = vmatprep.mubr.bf16.mxu0 %v7994
    %9763 = vmatmul.mubr.bf16.gmra.mrb[0].mxu0 %v7993
    %v9764 = vpop.f32.mrb[0].mxu0
    %v9765 = vadd.f32 %v9652, %v9764
    %v9766 = vpop.f32.mrb[0].mxu0
    %v9767 = vadd.f32 %v9654, %v9766
    %v9768 = vpop.f32.mrb[0].mxu0
    %v9769 = vadd.f32 %v9656, %v9768
    %v9770 = vpop.f32.mrb[0].mxu0
    %v9771 = vadd.f32 %v9658, %v9770
    %9772 = vmatprep.mubr.bf16.mxu0 %v8002
    %9773 = vmatmul.mubr.bf16.gmra.mrb[0].mxu0 %v8001
    %v9774 = vpop.f32.mrb[0].mxu0
    %v9775 = vadd.f32 %v9662, %v9774
    %v9776 = vpop.f32.mrb[0].mxu0
    %v9777 = vadd.f32 %v9664, %v9776
    %v9778 = vpop.f32.mrb[0].mxu0
    %v9779 = vadd.f32 %v9666, %v9778
    %v9780 = vpop.f32.mrb[0].mxu0
    %v9781 = vadd.f32 %v9668, %v9780
    %9782 = vmatprep.mubr.bf16.mxu0 %v8010
    %9783 = vmatmul.mubr.bf16.gmra.mrb[0].mxu0 %v8009
    %v9784 = vpop.f32.mrb[0].mxu0
    %v9785 = vadd.f32 %v9672, %v9784
    %v9786 = vpop.f32.mrb[0].mxu0
    %v9787 = vadd.f32 %v9674, %v9786
    %v9788 = vpop.f32.mrb[0].mxu0
    %v9789 = vadd.f32 %v9676, %v9788
    %v9790 = vpop.f32.mrb[0].mxu0
    %v9791 = vadd.f32 %v9678, %v9790
    %9792 = vmatprep.mubr.bf16.mxu0 %v8018
    %9793 = vmatmul.mubr.bf16.gmra.mrb[0].mxu0 %v8017
    %v9794 = vpop.f32.mrb[0].mxu0
    %v9795 = vadd.f32 %v9682, %v9794
    %v9796 = vpop.f32.mrb[0].mxu0
    %v9797 = vadd.f32 %v9684, %v9796
    %v9798 = vpop.f32.mrb[0].mxu0
    %v9799 = vadd.f32 %v9686, %v9798
    %v9800 = vpop.f32.mrb[0].mxu0
    %v9801 = vadd.f32 %v9688, %v9800
    %9802 = vmatprep.mubr.bf16.mxu0 %v8026
    %9803 = vmatmul.mubr.bf16.gmra.mrb[0].mxu0 %v8025
    %v9804 = vpop.f32.mrb[0].mxu0
    %v9805 = vadd.f32 %v9692, %v9804
    %v9806 = vpop.f32.mrb[0].mxu0
    %v9807 = vadd.f32 %v9694, %v9806
    %v9808 = vpop.f32.mrb[0].mxu0
    %v9809 = vadd.f32 %v9696, %v9808
    %v9810 = vpop.f32.mrb[0].mxu0
    %v9811 = vadd.f32 %v9698, %v9810
    %9812 = vmatprep.mubr.bf16.mxu0 %v8034
    %9813 = vmatmul.mubr.bf16.gmra.mrb[0].mxu0 %v8033
    %v9814 = vpop.f32.mrb[0].mxu0
    %v9815 = vadd.f32 %v9702, %v9814
    %v9816 = vpop.f32.mrb[0].mxu0
    %v9817 = vadd.f32 %v9704, %v9816
    %v9818 = vpop.f32.mrb[0].mxu0
    %v9819 = vadd.f32 %v9706, %v9818
    %v9820 = vpop.f32.mrb[0].mxu0
    %v9821 = vadd.f32 %v9708, %v9820
    %9822 = vdwg.mxu0
    %9823 = vmatprep.subr.bf16.mxu0 %v9214
    %9824 = vmatpush1.bf16.msra.mxu0 %v9213
    %9825 = vmatprep.subr.bf16.mxu0 %v9218
    %9826 = vmatpush1.bf16.msra.mxu0 %v9217
    %9827 = vmatprep.subr.bf16.mxu0 %v9222
    %9828 = vmatpush1.bf16.msra.mxu0 %v9221
    %9829 = vmatprep.subr.bf16.mxu0 %v9226
    %9830 = vmatpush1.bf16.msra.mxu0 %v9225
    %9831 = vmatprep.subr.bf16.mxu0 %v9230
    %9832 = vmatpush1.bf16.msra.mxu0 %v9229
    %9833 = vmatprep.subr.bf16.mxu0 %v9234
    %9834 = vmatpush1.bf16.msra.mxu0 %v9233
    %9835 = vmatprep.subr.bf16.mxu0 %v9238
    %9836 = vmatpush1.bf16.msra.mxu0 %v9237
    %9837 = vmatprep.subr.bf16.mxu0 %v9242
    %9838 = vmatpush1.bf16.msra.mxu0 %v9241
    %9839 = vmatprep.subr.bf16.mxu0 %v9246
    %9840 = vmatpush1.bf16.msra.mxu0 %v9245
    %9841 = vmatprep.subr.bf16.mxu0 %v9250
    %9842 = vmatpush1.bf16.msra.mxu0 %v9249
    %9843 = vmatprep.subr.bf16.mxu0 %v9254
    %9844 = vmatpush1.bf16.msra.mxu0 %v9253
    %9845 = vmatprep.subr.bf16.mxu0 %v9258
    %9846 = vmatpush1.bf16.msra.mxu0 %v9257
    %9847 = vmatprep.subr.bf16.mxu0 %v9262
    %9848 = vmatpush1.bf16.msra.mxu0 %v9261
    %9849 = vmatprep.subr.bf16.mxu0 %v9266
    %9850 = vmatpush1.bf16.msra.mxu0 %v9265
    %9851 = vmatprep.subr.bf16.mxu0 %v9270
    %9852 = vmatpush1.bf16.msra.mxu0 %v9269
    %9853 = vmatprep.subr.bf16.mxu0 %v9274
    %9854 = vmatpush1.bf16.msra.mxu0 %v9273
    %9855 = vmatprep.mubr.bf16.mxu0 %v7980
    %9856 = vmatmul.mubr.bf16.gmra.mrb[0].mxu0 %v7979
    %v9857 = vpop.f32.mrb[0].mxu0
    %v9858 = vadd.f32 %v9745, %v9857
    %v9859 = vpop.f32.mrb[0].mxu0
    %v9860 = vadd.f32 %v9747, %v9859
    %v9861 = vpop.f32.mrb[0].mxu0
    %v9862 = vadd.f32 %v9749, %v9861
    %v9863 = vpop.f32.mrb[0].mxu0
    %v9864 = vadd.f32 %v9751, %v9863
    %9865 = vmatprep.mubr.bf16.mxu0 %v7988
    %9866 = vmatmul.mubr.bf16.gmra.mrb[0].mxu0 %v7987
    %v9867 = vpop.f32.mrb[0].mxu0
    %v9868 = vadd.f32 %v9755, %v9867
    %v9869 = vpop.f32.mrb[0].mxu0
    %v9870 = vadd.f32 %v9757, %v9869
    %v9871 = vpop.f32.mrb[0].mxu0
    %v9872 = vadd.f32 %v9759, %v9871
    %v9873 = vpop.f32.mrb[0].mxu0
    %v9874 = vadd.f32 %v9761, %v9873
    %9875 = vmatprep.mubr.bf16.mxu0 %v7996
    %9876 = vmatmul.mubr.bf16.gmra.mrb[0].mxu0 %v7995
    %v9877 = vpop.f32.mrb[0].mxu0
    %v9878 = vadd.f32 %v9765, %v9877
    %v9879 = vpop.f32.mrb[0].mxu0
    %v9880 = vadd.f32 %v9767, %v9879
    %v9881 = vpop.f32.mrb[0].mxu0
    %v9882 = vadd.f32 %v9769, %v9881
    %v9883 = vpop.f32.mrb[0].mxu0
    %v9884 = vadd.f32 %v9771, %v9883
    %9885 = vmatprep.mubr.bf16.mxu0 %v8004
    %9886 = vmatmul.mubr.bf16.gmra.mrb[0].mxu0 %v8003
    %v9887 = vpop.f32.mrb[0].mxu0
    %v9888 = vadd.f32 %v9775, %v9887
    %v9889 = vpop.f32.mrb[0].mxu0
    %v9890 = vadd.f32 %v9777, %v9889
    %v9891 = vpop.f32.mrb[0].mxu0
    %v9892 = vadd.f32 %v9779, %v9891
    %v9893 = vpop.f32.mrb[0].mxu0
    %v9894 = vadd.f32 %v9781, %v9893
    %9895 = vmatprep.mubr.bf16.mxu0 %v8012
    %9896 = vmatmul.mubr.bf16.gmra.mrb[0].mxu0 %v8011
    %v9897 = vpop.f32.mrb[0].mxu0
    %v9898 = vadd.f32 %v9785, %v9897
    %v9899 = vpop.f32.mrb[0].mxu0
    %v9900 = vadd.f32 %v9787, %v9899
    %v9901 = vpop.f32.mrb[0].mxu0
    %v9902 = vadd.f32 %v9789, %v9901
    %v9903 = vpop.f32.mrb[0].mxu0
    %v9904 = vadd.f32 %v9791, %v9903
    %9905 = vmatprep.mubr.bf16.mxu0 %v8020
    %9906 = vmatmul.mubr.bf16.gmra.mrb[0].mxu0 %v8019
    %v9907 = vpop.f32.mrb[0].mxu0
    %v9908 = vadd.f32 %v9795, %v9907
    %v9909 = vpop.f32.mrb[0].mxu0
    %v9910 = vadd.f32 %v9797, %v9909
    %v9911 = vpop.f32.mrb[0].mxu0
    %v9912 = vadd.f32 %v9799, %v9911
    %v9913 = vpop.f32.mrb[0].mxu0
    %v9914 = vadd.f32 %v9801, %v9913
    %9915 = vmatprep.mubr.bf16.mxu0 %v8028
    %9916 = vmatmul.mubr.bf16.gmra.mrb[0].mxu0 %v8027
    %v9917 = vpop.f32.mrb[0].mxu0
    %v9918 = vadd.f32 %v9805, %v9917
    %v9919 = vpop.f32.mrb[0].mxu0
    %v9920 = vadd.f32 %v9807, %v9919
    %v9921 = vpop.f32.mrb[0].mxu0
    %v9922 = vadd.f32 %v9809, %v9921
    %v9923 = vpop.f32.mrb[0].mxu0
    %v9924 = vadd.f32 %v9811, %v9923
    %9925 = vmatprep.mubr.bf16.mxu0 %v8036
    %9926 = vmatmul.mubr.bf16.gmra.mrb[0].mxu0 %v8035
    %v9927 = vpop.f32.mrb[0].mxu0
    %v9928 = vadd.f32 %v9815, %v9927
    %v9929 = vpop.f32.mrb[0].mxu0
    %v9930 = vadd.f32 %v9817, %v9929
    %v9931 = vpop.f32.mrb[0].mxu0
    %v9932 = vadd.f32 %v9819, %v9931
    %v9933 = vpop.f32.mrb[0].mxu0
    %v9934 = vadd.f32 %v9821, %v9933
    %9935 = vdwg.mxu0
    %9936 = vmatprep.subr.bf16.mxu0 %v9278
    %9937 = vmatpush1.bf16.msra.mxu0 %v9277
    %9938 = vmatprep.subr.bf16.mxu0 %v9282
    %9939 = vmatpush1.bf16.msra.mxu0 %v9281
    %9940 = vmatprep.subr.bf16.mxu0 %v9286
    %9941 = vmatpush1.bf16.msra.mxu0 %v9285
    %9942 = vmatprep.subr.bf16.mxu0 %v9290
    %9943 = vmatpush1.bf16.msra.mxu0 %v9289
    %9944 = vmatprep.subr.bf16.mxu0 %v9294
    %9945 = vmatpush1.bf16.msra.mxu0 %v9293
    %9946 = vmatprep.subr.bf16.mxu0 %v9298
    %9947 = vmatpush1.bf16.msra.mxu0 %v9297
    %9948 = vmatprep.subr.bf16.mxu0 %v9302
    %9949 = vmatpush1.bf16.msra.mxu0 %v9301
    %9950 = vmatprep.subr.bf16.mxu0 %v9306
    %9951 = vmatpush1.bf16.msra.mxu0 %v9305
    %9952 = vmatprep.subr.bf16.mxu0 %v9310
    %9953 = vmatpush1.bf16.msra.mxu0 %v9309
    %9954 = vmatprep.subr.bf16.mxu0 %v9314
    %9955 = vmatpush1.bf16.msra.mxu0 %v9313
    %9956 = vmatprep.subr.bf16.mxu0 %v9318
    %9957 = vmatpush1.bf16.msra.mxu0 %v9317
    %9958 = vmatprep.subr.bf16.mxu0 %v9322
    %9959 = vmatpush1.bf16.msra.mxu0 %v9321
    %9960 = vmatprep.subr.bf16.mxu0 %v9326
    %9961 = vmatpush1.bf16.msra.mxu0 %v9325
    %9962 = vmatprep.subr.bf16.mxu0 %v9330
    %9963 = vmatpush1.bf16.msra.mxu0 %v9329
    %9964 = vmatprep.subr.bf16.mxu0 %v9334
    %9965 = vmatpush1.bf16.msra.mxu0 %v9333
    %9966 = vmatprep.subr.bf16.mxu0 %v9338
    %9967 = vmatpush1.bf16.msra.mxu0 %v9337
    %9968 = vmatprep.mubr.bf16.mxu0 %v7982
    %9969 = vmatmul.mubr.bf16.gmra.mrb[0].mxu0 %v7981
    %v9970 = vpop.f32.mrb[0].mxu0
    %v9971 = vadd.f32 %v9858, %v9970
    %v9972 = vpop.f32.mrb[0].mxu0
    %v9973 = vadd.f32 %v9860, %v9972
    %v9974 = vpop.f32.mrb[0].mxu0
    %v9975 = vadd.f32 %v9862, %v9974
    %v9976 = vpop.f32.mrb[0].mxu0
    %v9977 = vadd.f32 %v9864, %v9976
    %9978 = vmatprep.mubr.bf16.mxu0 %v7990
    %9979 = vmatmul.mubr.bf16.gmra.mrb[0].mxu0 %v7989
    %v9980 = vpop.f32.mrb[0].mxu0
    %v9981 = vadd.f32 %v9868, %v9980
    %v9982 = vpop.f32.mrb[0].mxu0
    %v9983 = vadd.f32 %v9870, %v9982
    %v9984 = vpop.f32.mrb[0].mxu0
    %v9985 = vadd.f32 %v9872, %v9984
    %v9986 = vpop.f32.mrb[0].mxu0
    %v9987 = vadd.f32 %v9874, %v9986
    %9988 = vmatprep.mubr.bf16.mxu0 %v7998
    %9989 = vmatmul.mubr.bf16.gmra.mrb[0].mxu0 %v7997
    %v9990 = vpop.f32.mrb[0].mxu0
    %v9991 = vadd.f32 %v9878, %v9990
    %v9992 = vpop.f32.mrb[0].mxu0
    %v9993 = vadd.f32 %v9880, %v9992
    %v9994 = vpop.f32.mrb[0].mxu0
    %v9995 = vadd.f32 %v9882, %v9994
    %v9996 = vpop.f32.mrb[0].mxu0
    %v9997 = vadd.f32 %v9884, %v9996
    %9998 = vmatprep.mubr.bf16.mxu0 %v8006
    %9999 = vmatmul.mubr.bf16.gmra.mrb[0].mxu0 %v8005
    %v10000 = vpop.f32.mrb[0].mxu0
    %v10001 = vadd.f32 %v9888, %v10000
    %v10002 = vpop.f32.mrb[0].mxu0
    %v10003 = vadd.f32 %v9890, %v10002
    %v10004 = vpop.f32.mrb[0].mxu0
    %v10005 = vadd.f32 %v9892, %v10004
    %v10006 = vpop.f32.mrb[0].mxu0
    %v10007 = vadd.f32 %v9894, %v10006
    %10008 = vmatprep.mubr.bf16.mxu0 %v8014
    %10009 = vmatmul.mubr.bf16.gmra.mrb[0].mxu0 %v8013
    %v10010 = vpop.f32.mrb[0].mxu0
    %v10011 = vadd.f32 %v9898, %v10010
    %v10012 = vpop.f32.mrb[0].mxu0
    %v10013 = vadd.f32 %v9900, %v10012
    %v10014 = vpop.f32.mrb[0].mxu0
    %v10015 = vadd.f32 %v9902, %v10014
    %v10016 = vpop.f32.mrb[0].mxu0
    %v10017 = vadd.f32 %v9904, %v10016
    %10018 = vmatprep.mubr.bf16.mxu0 %v8022
    %10019 = vmatmul.mubr.bf16.gmra.mrb[0].mxu0 %v8021
    %v10020 = vpop.f32.mrb[0].mxu0
    %v10021 = vadd.f32 %v9908, %v10020
    %v10022 = vpop.f32.mrb[0].mxu0
    %v10023 = vadd.f32 %v9910, %v10022
    %v10024 = vpop.f32.mrb[0].mxu0
    %v10025 = vadd.f32 %v9912, %v10024
    %v10026 = vpop.f32.mrb[0].mxu0
    %v10027 = vadd.f32 %v9914, %v10026
    %10028 = vmatprep.mubr.bf16.mxu0 %v8030
    %10029 = vmatmul.mubr.bf16.gmra.mrb[0].mxu0 %v8029
    %v10030 = vpop.f32.mrb[0].mxu0
    %v10031 = vadd.f32 %v9918, %v10030
    %v10032 = vpop.f32.mrb[0].mxu0
    %v10033 = vadd.f32 %v9920, %v10032
    %v10034 = vpop.f32.mrb[0].mxu0
    %v10035 = vadd.f32 %v9922, %v10034
    %v10036 = vpop.f32.mrb[0].mxu0
    %v10037 = vadd.f32 %v9924, %v10036
    %10038 = vmatprep.mubr.bf16.mxu0 %v8038
    %10039 = vmatmul.mubr.bf16.gmra.mrb[0].mxu0 %v8037
    %v10040 = vpop.f32.mrb[0].mxu0
    %v10041 = vadd.f32 %v9928, %v10040
    %v10042 = vpop.f32.mrb[0].mxu0
    %v10043 = vadd.f32 %v9930, %v10042
    %v10044 = vpop.f32.mrb[0].mxu0
    %v10045 = vadd.f32 %v9932, %v10044
    %v10046 = vpop.f32.mrb[0].mxu0
    %v10047 = vadd.f32 %v9934, %v10046
    %10048 = vdwg.mxu0
    %10049 = vmatprep.subr.bf16.mxu0 %v9088
    %10050 = vmatpush1.bf16.msra.mxu0 %v9087
    %10051 = vmatprep.subr.bf16.mxu0 %v9092
    %10052 = vmatpush1.bf16.msra.mxu0 %v9091
    %10053 = vmatprep.subr.bf16.mxu0 %v9096
    %10054 = vmatpush1.bf16.msra.mxu0 %v9095
    %10055 = vmatprep.subr.bf16.mxu0 %v9100
    %10056 = vmatpush1.bf16.msra.mxu0 %v9099
    %10057 = vmatprep.subr.bf16.mxu0 %v9104
    %10058 = vmatpush1.bf16.msra.mxu0 %v9103
    %10059 = vmatprep.subr.bf16.mxu0 %v9108
    %10060 = vmatpush1.bf16.msra.mxu0 %v9107
    %10061 = vmatprep.subr.bf16.mxu0 %v9112
    %10062 = vmatpush1.bf16.msra.mxu0 %v9111
    %10063 = vmatprep.subr.bf16.mxu0 %v9116
    %10064 = vmatpush1.bf16.msra.mxu0 %v9115
    %10065 = vmatprep.subr.bf16.mxu0 %v9120
    %10066 = vmatpush1.bf16.msra.mxu0 %v9119
    %10067 = vmatprep.subr.bf16.mxu0 %v9124
    %10068 = vmatpush1.bf16.msra.mxu0 %v9123
    %10069 = vmatprep.subr.bf16.mxu0 %v9128
    %10070 = vmatpush1.bf16.msra.mxu0 %v9127
    %10071 = vmatprep.subr.bf16.mxu0 %v9132
    %10072 = vmatpush1.bf16.msra.mxu0 %v9131
    %10073 = vmatprep.subr.bf16.mxu0 %v9136
    %10074 = vmatpush1.bf16.msra.mxu0 %v9135
    %10075 = vmatprep.subr.bf16.mxu0 %v9140
    %10076 = vmatpush1.bf16.msra.mxu0 %v9139
    %10077 = vmatprep.subr.bf16.mxu0 %v9144
    %10078 = vmatpush1.bf16.msra.mxu0 %v9143
    %10079 = vmatprep.subr.bf16.mxu0 %v9148
    %10080 = vmatpush1.bf16.msra.mxu0 %v9147
    %10081 = vmatprep.mubr.bf16.mxu0 %v7976
    %10082 = vmatmul.mubr.bf16.gmra.mrb[0].mxu0 %v7975
    %v10083 = vpop.f32.mrb[0].mxu0
    %v10084 = vadd.f32 %v8308, %v10083
    %v10085 = vpop.f32.mrb[0].mxu0
    %v10086 = vadd.f32 %v8312, %v10085
    %v10087 = vpop.f32.mrb[0].mxu0
    %v10088 = vadd.f32 %v8308, %v10087
    %v10089 = vpop.f32.mrb[0].mxu0
    %v10090 = vadd.f32 %v8312, %v10089
    %10091 = vmatprep.mubr.bf16.mxu0 %v7984
    %10092 = vmatmul.mubr.bf16.gmra.mrb[0].mxu0 %v7983
    %v10093 = vpop.f32.mrb[0].mxu0
    %v10094 = vadd.f32 %v8308, %v10093
    %v10095 = vpop.f32.mrb[0].mxu0
    %v10096 = vadd.f32 %v8312, %v10095
    %v10097 = vpop.f32.mrb[0].mxu0
    %v10098 = vadd.f32 %v8308, %v10097
    %v10099 = vpop.f32.mrb[0].mxu0
    %v10100 = vadd.f32 %v8312, %v10099
    %10101 = vmatprep.mubr.bf16.mxu0 %v7992
    %10102 = vmatmul.mubr.bf16.gmra.mrb[0].mxu0 %v7991
    %v10103 = vpop.f32.mrb[0].mxu0
    %v10104 = vadd.f32 %v8308, %v10103
    %v10105 = vpop.f32.mrb[0].mxu0
    %v10106 = vadd.f32 %v8312, %v10105
    %v10107 = vpop.f32.mrb[0].mxu0
    %v10108 = vadd.f32 %v8308, %v10107
    %v10109 = vpop.f32.mrb[0].mxu0
    %v10110 = vadd.f32 %v8312, %v10109
    %10111 = vmatprep.mubr.bf16.mxu0 %v8000
    %10112 = vmatmul.mubr.bf16.gmra.mrb[0].mxu0 %v7999
    %v10113 = vpop.f32.mrb[0].mxu0
    %v10114 = vadd.f32 %v8308, %v10113
    %v10115 = vpop.f32.mrb[0].mxu0
    %v10116 = vadd.f32 %v8312, %v10115
    %v10117 = vpop.f32.mrb[0].mxu0
    %v10118 = vadd.f32 %v8308, %v10117
    %v10119 = vpop.f32.mrb[0].mxu0
    %v10120 = vadd.f32 %v8312, %v10119
    %10121 = vmatprep.mubr.bf16.mxu0 %v8008
    %10122 = vmatmul.mubr.bf16.gmra.mrb[0].mxu0 %v8007
    %v10123 = vpop.f32.mrb[0].mxu0
    %v10124 = vadd.f32 %v8308, %v10123
    %v10125 = vpop.f32.mrb[0].mxu0
    %v10126 = vadd.f32 %v8312, %v10125
    %v10127 = vpop.f32.mrb[0].mxu0
    %v10128 = vadd.f32 %v8308, %v10127
    %v10129 = vpop.f32.mrb[0].mxu0
    %v10130 = vadd.f32 %v8312, %v10129
    %10131 = vmatprep.mubr.bf16.mxu0 %v8016
    %10132 = vmatmul.mubr.bf16.gmra.mrb[0].mxu0 %v8015
    %v10133 = vpop.f32.mrb[0].mxu0
    %v10134 = vadd.f32 %v8308, %v10133
    %v10135 = vpop.f32.mrb[0].mxu0
    %v10136 = vadd.f32 %v8312, %v10135
    %v10137 = vpop.f32.mrb[0].mxu0
    %v10138 = vadd.f32 %v8308, %v10137
    %v10139 = vpop.f32.mrb[0].mxu0
    %v10140 = vadd.f32 %v8312, %v10139
    %10141 = vmatprep.mubr.bf16.mxu0 %v8024
    %10142 = vmatmul.mubr.bf16.gmra.mrb[0].mxu0 %v8023
    %v10143 = vpop.f32.mrb[0].mxu0
    %v10144 = vadd.f32 %v8308, %v10143
    %v10145 = vpop.f32.mrb[0].mxu0
    %v10146 = vadd.f32 %v8312, %v10145
    %v10147 = vpop.f32.mrb[0].mxu0
    %v10148 = vadd.f32 %v8308, %v10147
    %v10149 = vpop.f32.mrb[0].mxu0
    %v10150 = vadd.f32 %v8312, %v10149
    %10151 = vmatprep.mubr.bf16.mxu0 %v8032
    %10152 = vmatmul.mubr.bf16.gmra.mrb[0].mxu0 %v8031
    %v10153 = vpop.f32.mrb[0].mxu0
    %v10154 = vadd.f32 %v8308, %v10153
    %v10155 = vpop.f32.mrb[0].mxu0
    %v10156 = vadd.f32 %v8312, %v10155
    %v10157 = vpop.f32.mrb[0].mxu0
    %v10158 = vadd.f32 %v8308, %v10157
    %v10159 = vpop.f32.mrb[0].mxu0
    %v10160 = vadd.f32 %v8312, %v10159
    %10161 = vdwg.mxu0
    %10162 = vmatprep.subr.bf16.mxu0 %v9152
    %10163 = vmatpush1.bf16.msra.mxu0 %v9151
    %10164 = vmatprep.subr.bf16.mxu0 %v9156
    %10165 = vmatpush1.bf16.msra.mxu0 %v9155
    %10166 = vmatprep.subr.bf16.mxu0 %v9160
    %10167 = vmatpush1.bf16.msra.mxu0 %v9159
    %10168 = vmatprep.subr.bf16.mxu0 %v9164
    %10169 = vmatpush1.bf16.msra.mxu0 %v9163
    %10170 = vmatprep.subr.bf16.mxu0 %v9168
    %10171 = vmatpush1.bf16.msra.mxu0 %v9167
    %10172 = vmatprep.subr.bf16.mxu0 %v9172
    %10173 = vmatpush1.bf16.msra.mxu0 %v9171
    %10174 = vmatprep.subr.bf16.mxu0 %v9176
    %10175 = vmatpush1.bf16.msra.mxu0 %v9175
    %10176 = vmatprep.subr.bf16.mxu0 %v9180
    %10177 = vmatpush1.bf16.msra.mxu0 %v9179
    %10178 = vmatprep.subr.bf16.mxu0 %v9184
    %10179 = vmatpush1.bf16.msra.mxu0 %v9183
    %10180 = vmatprep.subr.bf16.mxu0 %v9188
    %10181 = vmatpush1.bf16.msra.mxu0 %v9187
    %10182 = vmatprep.subr.bf16.mxu0 %v9192
    %10183 = vmatpush1.bf16.msra.mxu0 %v9191
    %10184 = vmatprep.subr.bf16.mxu0 %v9196
    %10185 = vmatpush1.bf16.msra.mxu0 %v9195
    %10186 = vmatprep.subr.bf16.mxu0 %v9200
    %10187 = vmatpush1.bf16.msra.mxu0 %v9199
    %10188 = vmatprep.subr.bf16.mxu0 %v9204
    %10189 = vmatpush1.bf16.msra.mxu0 %v9203
    %10190 = vmatprep.subr.bf16.mxu0 %v9208
    %10191 = vmatpush1.bf16.msra.mxu0 %v9207
    %10192 = vmatprep.subr.bf16.mxu0 %v9212
    %10193 = vmatpush1.bf16.msra.mxu0 %v9211
    %10194 = vmatprep.mubr.bf16.mxu0 %v7978
    %10195 = vmatmul.mubr.bf16.gmra.mrb[0].mxu0 %v7977
    %v10196 = vpop.f32.mrb[0].mxu0
    %v10197 = vadd.f32 %v10084, %v10196
    %v10198 = vpop.f32.mrb[0].mxu0
    %v10199 = vadd.f32 %v10086, %v10198
    %v10200 = vpop.f32.mrb[0].mxu0
    %v10201 = vadd.f32 %v10088, %v10200
    %v10202 = vpop.f32.mrb[0].mxu0
    %v10203 = vadd.f32 %v10090, %v10202
    %10204 = vmatprep.mubr.bf16.mxu0 %v7986
    %10205 = vmatmul.mubr.bf16.gmra.mrb[0].mxu0 %v7985
    %v10206 = vpop.f32.mrb[0].mxu0
    %v10207 = vadd.f32 %v10094, %v10206
    %v10208 = vpop.f32.mrb[0].mxu0
    %v10209 = vadd.f32 %v10096, %v10208
    %v10210 = vpop.f32.mrb[0].mxu0
    %v10211 = vadd.f32 %v10098, %v10210
    %v10212 = vpop.f32.mrb[0].mxu0
    %v10213 = vadd.f32 %v10100, %v10212
    %10214 = vmatprep.mubr.bf16.mxu0 %v7994
    %10215 = vmatmul.mubr.bf16.gmra.mrb[0].mxu0 %v7993
    %v10216 = vpop.f32.mrb[0].mxu0
    %v10217 = vadd.f32 %v10104, %v10216
    %v10218 = vpop.f32.mrb[0].mxu0
    %v10219 = vadd.f32 %v10106, %v10218
    %v10220 = vpop.f32.mrb[0].mxu0
    %v10221 = vadd.f32 %v10108, %v10220
    %v10222 = vpop.f32.mrb[0].mxu0
    %v10223 = vadd.f32 %v10110, %v10222
    %10224 = vmatprep.mubr.bf16.mxu0 %v8002
    %10225 = vmatmul.mubr.bf16.gmra.mrb[0].mxu0 %v8001
    %v10226 = vpop.f32.mrb[0].mxu0
    %v10227 = vadd.f32 %v10114, %v10226
    %v10228 = vpop.f32.mrb[0].mxu0
    %v10229 = vadd.f32 %v10116, %v10228
    %v10230 = vpop.f32.mrb[0].mxu0
    %v10231 = vadd.f32 %v10118, %v10230
    %v10232 = vpop.f32.mrb[0].mxu0
    %v10233 = vadd.f32 %v10120, %v10232
    %10234 = vmatprep.mubr.bf16.mxu0 %v8010
    %10235 = vmatmul.mubr.bf16.gmra.mrb[0].mxu0 %v8009
    %v10236 = vpop.f32.mrb[0].mxu0
    %v10237 = vadd.f32 %v10124, %v10236
    %v10238 = vpop.f32.mrb[0].mxu0
    %v10239 = vadd.f32 %v10126, %v10238
    %v10240 = vpop.f32.mrb[0].mxu0
    %v10241 = vadd.f32 %v10128, %v10240
    %v10242 = vpop.f32.mrb[0].mxu0
    %v10243 = vadd.f32 %v10130, %v10242
    %10244 = vmatprep.mubr.bf16.mxu0 %v8018
    %10245 = vmatmul.mubr.bf16.gmra.mrb[0].mxu0 %v8017
    %v10246 = vpop.f32.mrb[0].mxu0
    %v10247 = vadd.f32 %v10134, %v10246
    %v10248 = vpop.f32.mrb[0].mxu0
    %v10249 = vadd.f32 %v10136, %v10248
    %v10250 = vpop.f32.mrb[0].mxu0
    %v10251 = vadd.f32 %v10138, %v10250
    %v10252 = vpop.f32.mrb[0].mxu0
    %v10253 = vadd.f32 %v10140, %v10252
    %10254 = vmatprep.mubr.bf16.mxu0 %v8026
    %10255 = vmatmul.mubr.bf16.gmra.mrb[0].mxu0 %v8025
    %v10256 = vpop.f32.mrb[0].mxu0
    %v10257 = vadd.f32 %v10144, %v10256
    %v10258 = vpop.f32.mrb[0].mxu0
    %v10259 = vadd.f32 %v10146, %v10258
    %v10260 = vpop.f32.mrb[0].mxu0
    %v10261 = vadd.f32 %v10148, %v10260
    %v10262 = vpop.f32.mrb[0].mxu0
    %v10263 = vadd.f32 %v10150, %v10262
    %10264 = vmatprep.mubr.bf16.mxu0 %v8034
    %10265 = vmatmul.mubr.bf16.gmra.mrb[0].mxu0 %v8033
    %v10266 = vpop.f32.mrb[0].mxu0
    %v10267 = vadd.f32 %v10154, %v10266
    %v10268 = vpop.f32.mrb[0].mxu0
    %v10269 = vadd.f32 %v10156, %v10268
    %v10270 = vpop.f32.mrb[0].mxu0
    %v10271 = vadd.f32 %v10158, %v10270
    %v10272 = vpop.f32.mrb[0].mxu0
    %v10273 = vadd.f32 %v10160, %v10272
    %10274 = vdwg.mxu0
    %10275 = vmatprep.subr.bf16.mxu0 %v9216
    %10276 = vmatpush1.bf16.msra.mxu0 %v9215
    %10277 = vmatprep.subr.bf16.mxu0 %v9220
    %10278 = vmatpush1.bf16.msra.mxu0 %v9219
    %10279 = vmatprep.subr.bf16.mxu0 %v9224
    %10280 = vmatpush1.bf16.msra.mxu0 %v9223
    %10281 = vmatprep.subr.bf16.mxu0 %v9228
    %10282 = vmatpush1.bf16.msra.mxu0 %v9227
    %10283 = vmatprep.subr.bf16.mxu0 %v9232
    %10284 = vmatpush1.bf16.msra.mxu0 %v9231
    %10285 = vmatprep.subr.bf16.mxu0 %v9236
    %10286 = vmatpush1.bf16.msra.mxu0 %v9235
    %10287 = vmatprep.subr.bf16.mxu0 %v9240
    %10288 = vmatpush1.bf16.msra.mxu0 %v9239
    %10289 = vmatprep.subr.bf16.mxu0 %v9244
    %10290 = vmatpush1.bf16.msra.mxu0 %v9243
    %10291 = vmatprep.subr.bf16.mxu0 %v9248
    %10292 = vmatpush1.bf16.msra.mxu0 %v9247
    %10293 = vmatprep.subr.bf16.mxu0 %v9252
    %10294 = vmatpush1.bf16.msra.mxu0 %v9251
    %10295 = vmatprep.subr.bf16.mxu0 %v9256
    %10296 = vmatpush1.bf16.msra.mxu0 %v9255
    %10297 = vmatprep.subr.bf16.mxu0 %v9260
    %10298 = vmatpush1.bf16.msra.mxu0 %v9259
    %10299 = vmatprep.subr.bf16.mxu0 %v9264
    %10300 = vmatpush1.bf16.msra.mxu0 %v9263
    %10301 = vmatprep.subr.bf16.mxu0 %v9268
    %10302 = vmatpush1.bf16.msra.mxu0 %v9267
    %10303 = vmatprep.subr.bf16.mxu0 %v9272
    %10304 = vmatpush1.bf16.msra.mxu0 %v9271
    %10305 = vmatprep.subr.bf16.mxu0 %v9276
    %10306 = vmatpush1.bf16.msra.mxu0 %v9275
    %10307 = vmatprep.mubr.bf16.mxu0 %v7980
    %10308 = vmatmul.mubr.bf16.gmra.mrb[0].mxu0 %v7979
    %v10309 = vpop.f32.mrb[0].mxu0
    %v10310 = vadd.f32 %v10197, %v10309
    %v10311 = vpop.f32.mrb[0].mxu0
    %v10312 = vadd.f32 %v10199, %v10311
    %v10313 = vpop.f32.mrb[0].mxu0
    %v10314 = vadd.f32 %v10201, %v10313
    %v10315 = vpop.f32.mrb[0].mxu0
    %v10316 = vadd.f32 %v10203, %v10315
    %10317 = vmatprep.mubr.bf16.mxu0 %v7988
    %10318 = vmatmul.mubr.bf16.gmra.mrb[0].mxu0 %v7987
    %v10319 = vpop.f32.mrb[0].mxu0
    %v10320 = vadd.f32 %v10207, %v10319
    %v10321 = vpop.f32.mrb[0].mxu0
    %v10322 = vadd.f32 %v10209, %v10321
    %v10323 = vpop.f32.mrb[0].mxu0
    %v10324 = vadd.f32 %v10211, %v10323
    %v10325 = vpop.f32.mrb[0].mxu0
    %v10326 = vadd.f32 %v10213, %v10325
    %10327 = vmatprep.mubr.bf16.mxu0 %v7996
    %10328 = vmatmul.mubr.bf16.gmra.mrb[0].mxu0 %v7995
    %v10329 = vpop.f32.mrb[0].mxu0
    %v10330 = vadd.f32 %v10217, %v10329
    %v10331 = vpop.f32.mrb[0].mxu0
    %v10332 = vadd.f32 %v10219, %v10331
    %v10333 = vpop.f32.mrb[0].mxu0
    %v10334 = vadd.f32 %v10221, %v10333
    %v10335 = vpop.f32.mrb[0].mxu0
    %v10336 = vadd.f32 %v10223, %v10335
    %10337 = vmatprep.mubr.bf16.mxu0 %v8004
    %10338 = vmatmul.mubr.bf16.gmra.mrb[0].mxu0 %v8003
    %v10339 = vpop.f32.mrb[0].mxu0
    %v10340 = vadd.f32 %v10227, %v10339
    %v10341 = vpop.f32.mrb[0].mxu0
    %v10342 = vadd.f32 %v10229, %v10341
    %v10343 = vpop.f32.mrb[0].mxu0
    %v10344 = vadd.f32 %v10231, %v10343
    %v10345 = vpop.f32.mrb[0].mxu0
    %v10346 = vadd.f32 %v10233, %v10345
    %10347 = vmatprep.mubr.bf16.mxu0 %v8012
    %10348 = vmatmul.mubr.bf16.gmra.mrb[0].mxu0 %v8011
    %v10349 = vpop.f32.mrb[0].mxu0
    %v10350 = vadd.f32 %v10237, %v10349
    %v10351 = vpop.f32.mrb[0].mxu0
    %v10352 = vadd.f32 %v10239, %v10351
    %v10353 = vpop.f32.mrb[0].mxu0
    %v10354 = vadd.f32 %v10241, %v10353
    %v10355 = vpop.f32.mrb[0].mxu0
    %v10356 = vadd.f32 %v10243, %v10355
    %10357 = vmatprep.mubr.bf16.mxu0 %v8020
    %10358 = vmatmul.mubr.bf16.gmra.mrb[0].mxu0 %v8019
    %v10359 = vpop.f32.mrb[0].mxu0
    %v10360 = vadd.f32 %v10247, %v10359
    %v10361 = vpop.f32.mrb[0].mxu0
    %v10362 = vadd.f32 %v10249, %v10361
    %v10363 = vpop.f32.mrb[0].mxu0
    %v10364 = vadd.f32 %v10251, %v10363
    %v10365 = vpop.f32.mrb[0].mxu0
    %v10366 = vadd.f32 %v10253, %v10365
    %10367 = vmatprep.mubr.bf16.mxu0 %v8028
    %10368 = vmatmul.mubr.bf16.gmra.mrb[0].mxu0 %v8027
    %v10369 = vpop.f32.mrb[0].mxu0
    %v10370 = vadd.f32 %v10257, %v10369
    %v10371 = vpop.f32.mrb[0].mxu0
    %v10372 = vadd.f32 %v10259, %v10371
    %v10373 = vpop.f32.mrb[0].mxu0
    %v10374 = vadd.f32 %v10261, %v10373
    %v10375 = vpop.f32.mrb[0].mxu0
    %v10376 = vadd.f32 %v10263, %v10375
    %10377 = vmatprep.mubr.bf16.mxu0 %v8036
    %10378 = vmatmul.mubr.bf16.gmra.mrb[0].mxu0 %v8035
    %v10379 = vpop.f32.mrb[0].mxu0
    %v10380 = vadd.f32 %v10267, %v10379
    %v10381 = vpop.f32.mrb[0].mxu0
    %v10382 = vadd.f32 %v10269, %v10381
    %v10383 = vpop.f32.mrb[0].mxu0
    %v10384 = vadd.f32 %v10271, %v10383
    %v10385 = vpop.f32.mrb[0].mxu0
    %v10386 = vadd.f32 %v10273, %v10385
    %10387 = vdwg.mxu0
    %10388 = vmatprep.subr.bf16.mxu0 %v9280
    %10389 = vmatpush1.bf16.msra.mxu0 %v9279
    %10390 = vmatprep.subr.bf16.mxu0 %v9284
    %10391 = vmatpush1.bf16.msra.mxu0 %v9283
    %10392 = vmatprep.subr.bf16.mxu0 %v9288
    %10393 = vmatpush1.bf16.msra.mxu0 %v9287
    %10394 = vmatprep.subr.bf16.mxu0 %v9292
    %10395 = vmatpush1.bf16.msra.mxu0 %v9291
    %10396 = vmatprep.subr.bf16.mxu0 %v9296
    %10397 = vmatpush1.bf16.msra.mxu0 %v9295
    %10398 = vmatprep.subr.bf16.mxu0 %v9300
    %10399 = vmatpush1.bf16.msra.mxu0 %v9299
    %10400 = vmatprep.subr.bf16.mxu0 %v9304
    %10401 = vmatpush1.bf16.msra.mxu0 %v9303
    %10402 = vmatprep.subr.bf16.mxu0 %v9308
    %10403 = vmatpush1.bf16.msra.mxu0 %v9307
    %10404 = vmatprep.subr.bf16.mxu0 %v9312
    %10405 = vmatpush1.bf16.msra.mxu0 %v9311
    %10406 = vmatprep.subr.bf16.mxu0 %v9316
    %10407 = vmatpush1.bf16.msra.mxu0 %v9315
    %10408 = vmatprep.subr.bf16.mxu0 %v9320
    %10409 = vmatpush1.bf16.msra.mxu0 %v9319
    %10410 = vmatprep.subr.bf16.mxu0 %v9324
    %10411 = vmatpush1.bf16.msra.mxu0 %v9323
    %10412 = vmatprep.subr.bf16.mxu0 %v9328
    %10413 = vmatpush1.bf16.msra.mxu0 %v9327
    %10414 = vmatprep.subr.bf16.mxu0 %v9332
    %10415 = vmatpush1.bf16.msra.mxu0 %v9331
    %10416 = vmatprep.subr.bf16.mxu0 %v9336
    %10417 = vmatpush1.bf16.msra.mxu0 %v9335
    %10418 = vmatprep.subr.bf16.mxu0 %v9340
    %10419 = vmatpush1.bf16.msra.mxu0 %v9339
    %10420 = vmatprep.mubr.bf16.mxu0 %v7982
    %10421 = vmatmul.mubr.bf16.gmra.mrb[0].mxu0 %v7981
    %v10422 = vpop.f32.mrb[0].mxu0
    %v10423 = vadd.f32 %v10310, %v10422
    %v10424 = vpop.f32.mrb[0].mxu0
    %v10425 = vadd.f32 %v10312, %v10424
    %v10426 = vpop.f32.mrb[0].mxu0
    %v10427 = vadd.f32 %v10314, %v10426
    %v10428 = vpop.f32.mrb[0].mxu0
    %v10429 = vadd.f32 %v10316, %v10428
    %10430 = vmatprep.mubr.bf16.mxu0 %v7990
    %10431 = vmatmul.mubr.bf16.gmra.mrb[0].mxu0 %v7989
    %v10432 = vpop.f32.mrb[0].mxu0
    %v10433 = vadd.f32 %v10320, %v10432
    %v10434 = vpop.f32.mrb[0].mxu0
    %v10435 = vadd.f32 %v10322, %v10434
    %v10436 = vpop.f32.mrb[0].mxu0
    %v10437 = vadd.f32 %v10324, %v10436
    %v10438 = vpop.f32.mrb[0].mxu0
    %v10439 = vadd.f32 %v10326, %v10438
    %10440 = vmatprep.mubr.bf16.mxu0 %v7998
    %10441 = vmatmul.mubr.bf16.gmra.mrb[0].mxu0 %v7997
    %v10442 = vpop.f32.mrb[0].mxu0
    %v10443 = vadd.f32 %v10330, %v10442
    %v10444 = vpop.f32.mrb[0].mxu0
    %v10445 = vadd.f32 %v10332, %v10444
    %v10446 = vpop.f32.mrb[0].mxu0
    %v10447 = vadd.f32 %v10334, %v10446
    %v10448 = vpop.f32.mrb[0].mxu0
    %v10449 = vadd.f32 %v10336, %v10448
    %10450 = vmatprep.mubr.bf16.mxu0 %v8006
    %10451 = vmatmul.mubr.bf16.gmra.mrb[0].mxu0 %v8005
    %v10452 = vpop.f32.mrb[0].mxu0
    %v10453 = vadd.f32 %v10340, %v10452
    %v10454 = vpop.f32.mrb[0].mxu0
    %v10455 = vadd.f32 %v10342, %v10454
    %v10456 = vpop.f32.mrb[0].mxu0
    %v10457 = vadd.f32 %v10344, %v10456
    %v10458 = vpop.f32.mrb[0].mxu0
    %v10459 = vadd.f32 %v10346, %v10458
    %10460 = vmatprep.mubr.bf16.mxu0 %v8014
    %10461 = vmatmul.mubr.bf16.gmra.mrb[0].mxu0 %v8013
    %v10462 = vpop.f32.mrb[0].mxu0
    %v10463 = vadd.f32 %v10350, %v10462
    %v10464 = vpop.f32.mrb[0].mxu0
    %v10465 = vadd.f32 %v10352, %v10464
    %v10466 = vpop.f32.mrb[0].mxu0
    %v10467 = vadd.f32 %v10354, %v10466
    %v10468 = vpop.f32.mrb[0].mxu0
    %v10469 = vadd.f32 %v10356, %v10468
    %10470 = vmatprep.mubr.bf16.mxu0 %v8022
    %10471 = vmatmul.mubr.bf16.gmra.mrb[0].mxu0 %v8021
    %v10472 = vpop.f32.mrb[0].mxu0
    %v10473 = vadd.f32 %v10360, %v10472
    %v10474 = vpop.f32.mrb[0].mxu0
    %v10475 = vadd.f32 %v10362, %v10474
    %v10476 = vpop.f32.mrb[0].mxu0
    %v10477 = vadd.f32 %v10364, %v10476
    %v10478 = vpop.f32.mrb[0].mxu0
    %v10479 = vadd.f32 %v10366, %v10478
    %10480 = vmatprep.mubr.bf16.mxu0 %v8030
    %10481 = vmatmul.mubr.bf16.gmra.mrb[0].mxu0 %v8029
    %v10482 = vpop.f32.mrb[0].mxu0
    %v10483 = vadd.f32 %v10370, %v10482
    %v10484 = vpop.f32.mrb[0].mxu0
    %v10485 = vadd.f32 %v10372, %v10484
    %v10486 = vpop.f32.mrb[0].mxu0
    %v10487 = vadd.f32 %v10374, %v10486
    %v10488 = vpop.f32.mrb[0].mxu0
    %v10489 = vadd.f32 %v10376, %v10488
    %10490 = vmatprep.mubr.bf16.mxu0 %v8038
    %10491 = vmatmul.mubr.bf16.gmra.mrb[0].mxu0 %v8037
    %v10492 = vpop.f32.mrb[0].mxu0
    %v10493 = vadd.f32 %v10380, %v10492
    %v10494 = vpop.f32.mrb[0].mxu0
    %v10495 = vadd.f32 %v10382, %v10494
    %v10496 = vpop.f32.mrb[0].mxu0
    %v10497 = vadd.f32 %v10384, %v10496
    %v10498 = vpop.f32.mrb[0].mxu0
    %v10499 = vadd.f32 %v10386, %v10498
    %10500 = vdwg.mxu0
    %v10501 = vmax.f32 %v9971, 0.0
    %v10502 = vmax.f32 %v9973, 0.0
    %v10503 = vmax.f32 %v10423, 0.0
    %v10504 = vmax.f32 %v10425, 0.0
    %v10505 = vmax.f32 %v9975, 0.0
    %v10506 = vmax.f32 %v9977, 0.0
    %v10507 = vmax.f32 %v10427, 0.0
    %v10508 = vmax.f32 %v10429, 0.0
    %v10509 = vmax.f32 %v9981, 0.0
    %v10510 = vmax.f32 %v9983, 0.0
    %v10511 = vmax.f32 %v10433, 0.0
    %v10512 = vmax.f32 %v10435, 0.0
    %v10513 = vmax.f32 %v9985, 0.0
    %v10514 = vmax.f32 %v9987, 0.0
    %v10515 = vmax.f32 %v10437, 0.0
    %v10516 = vmax.f32 %v10439, 0.0
    %v10517 = vmax.f32 %v9991, 0.0
    %v10518 = vmax.f32 %v9993, 0.0
    %v10519 = vmax.f32 %v10443, 0.0
    %v10520 = vmax.f32 %v10445, 0.0
    %v10521 = vmax.f32 %v9995, 0.0
    %v10522 = vmax.f32 %v9997, 0.0
    %v10523 = vmax.f32 %v10447, 0.0
    %v10524 = vmax.f32 %v10449, 0.0
    %v10525 = vmax.f32 %v10001, 0.0
    %v10526 = vmax.f32 %v10003, 0.0
    %v10527 = vmax.f32 %v10453, 0.0
    %v10528 = vmax.f32 %v10455, 0.0
    %v10529 = vmax.f32 %v10005, 0.0
    %v10530 = vmax.f32 %v10007, 0.0
    %v10531 = vmax.f32 %v10457, 0.0
    %v10532 = vmax.f32 %v10459, 0.0
    %v10533 = vmax.f32 %v10011, 0.0
    %v10534 = vmax.f32 %v10013, 0.0
    %v10535 = vmax.f32 %v10463, 0.0
    %v10536 = vmax.f32 %v10465, 0.0
    %v10537 = vmax.f32 %v10015, 0.0
    %v10538 = vmax.f32 %v10017, 0.0
    %v10539 = vmax.f32 %v10467, 0.0
    %v10540 = vmax.f32 %v10469, 0.0
    %v10541 = vmax.f32 %v10021, 0.0
    %v10542 = vmax.f32 %v10023, 0.0
    %v10543 = vmax.f32 %v10473, 0.0
    %v10544 = vmax.f32 %v10475, 0.0
    %v10545 = vmax.f32 %v10025, 0.0
    %v10546 = vmax.f32 %v10027, 0.0
    %v10547 = vmax.f32 %v10477, 0.0
    %v10548 = vmax.f32 %v10479, 0.0
    %v10549 = vmax.f32 %v10031, 0.0
    %v10550 = vmax.f32 %v10033, 0.0
    %v10551 = vmax.f32 %v10483, 0.0
    %v10552 = vmax.f32 %v10485, 0.0
    %v10553 = vmax.f32 %v10035, 0.0
    %v10554 = vmax.f32 %v10037, 0.0
    %v10555 = vmax.f32 %v10487, 0.0
    %v10556 = vmax.f32 %v10489, 0.0
    %v10557 = vmax.f32 %v10041, 0.0
    %v10558 = vmax.f32 %v10043, 0.0
    %v10559 = vmax.f32 %v10493, 0.0
    %v10560 = vmax.f32 %v10495, 0.0
    %v10561 = vmax.f32 %v10045, 0.0
    %v10562 = vmax.f32 %v10047, 0.0
    %v10563 = vmax.f32 %v10497, 0.0
    %v10564 = vmax.f32 %v10499, 0.0
    %v10565 = vpack.c.bf16 %v10505, %v10501
    %v10566 = vpack.c.bf16 %v10506, %v10502
    %v10567 = vpack.c.bf16 %v10507, %v10503
    %v10568 = vpack.c.bf16 %v10508, %v10504
    %v10569 = vpack.c.bf16 %v10513, %v10509
    %v10570 = vpack.c.bf16 %v10514, %v10510
    %v10571 = vpack.c.bf16 %v10515, %v10511
    %v10572 = vpack.c.bf16 %v10516, %v10512
    %v10573 = vpack.c.bf16 %v10521, %v10517
    %v10574 = vpack.c.bf16 %v10522, %v10518
    %v10575 = vpack.c.bf16 %v10523, %v10519
    %v10576 = vpack.c.bf16 %v10524, %v10520
    %v10577 = vpack.c.bf16 %v10529, %v10525
    %v10578 = vpack.c.bf16 %v10530, %v10526
    %v10579 = vpack.c.bf16 %v10531, %v10527
    %v10580 = vpack.c.bf16 %v10532, %v10528
    %v10581 = vpack.c.bf16 %v10537, %v10533
    %v10582 = vpack.c.bf16 %v10538, %v10534
    %v10583 = vpack.c.bf16 %v10539, %v10535
    %v10584 = vpack.c.bf16 %v10540, %v10536
    %v10585 = vpack.c.bf16 %v10545, %v10541
    %v10586 = vpack.c.bf16 %v10546, %v10542
    %v10587 = vpack.c.bf16 %v10547, %v10543
    %v10588 = vpack.c.bf16 %v10548, %v10544
    %v10589 = vpack.c.bf16 %v10553, %v10549
    %v10590 = vpack.c.bf16 %v10554, %v10550
    %v10591 = vpack.c.bf16 %v10555, %v10551
    %v10592 = vpack.c.bf16 %v10556, %v10552
    %v10593 = vpack.c.bf16 %v10561, %v10557
    %v10594 = vpack.c.bf16 %v10562, %v10558
    %v10595 = vpack.c.bf16 %v10563, %v10559
    %v10596 = vpack.c.bf16 %v10564, %v10560
    %v10597 = vld [vmem:[#allocation11] sm:$0xff]
    %v10598 = vld [vmem:[#allocation11 + $0x8] sm:$0xff]
    %v10599 = vld [vmem:[#allocation11 + $0x10] sm:$0xff]
    %v10600 = vld [vmem:[#allocation11 + $0x18] sm:$0xff]
    %v10601 = vld [vmem:[#allocation11 + $0x20] sm:$0xff]
    %v10602 = vld [vmem:[#allocation11 + $0x28] sm:$0xff]
    %v10603 = vld [vmem:[#allocation11 + $0x30] sm:$0xff]
    %v10604 = vld [vmem:[#allocation11 + $0x38] sm:$0xff]
    %v10605 = vld [vmem:[#allocation11 + $0x40] sm:$0xff]
    %v10606 = vld [vmem:[#allocation11 + $0x48] sm:$0xff]
    %v10607 = vld [vmem:[#allocation11 + $0x50] sm:$0xff]
    %v10608 = vld [vmem:[#allocation11 + $0x58] sm:$0xff]
    %v10609 = vld [vmem:[#allocation11 + $0x60] sm:$0xff]
    %v10610 = vld [vmem:[#allocation11 + $0x68] sm:$0xff]
    %v10611 = vld [vmem:[#allocation11 + $0x70] sm:$0xff]
    %v10612 = vld [vmem:[#allocation11 + $0x78] sm:$0xff]
    %v10613 = vld [vmem:[#allocation11 + $0x80] sm:$0xff]
    %v10614 = vld [vmem:[#allocation11 + $0x88] sm:$0xff]
    %v10615 = vld [vmem:[#allocation11 + $0x90] sm:$0xff]
    %v10616 = vld [vmem:[#allocation11 + $0x98] sm:$0xff]
    %v10617 = vld [vmem:[#allocation11 + $0xa0] sm:$0xff]
    %v10618 = vld [vmem:[#allocation11 + $0xa8] sm:$0xff]
    %v10619 = vld [vmem:[#allocation11 + $0xb0] sm:$0xff]
    %v10620 = vld [vmem:[#allocation11 + $0xb8] sm:$0xff]
    %v10621 = vld [vmem:[#allocation11 + $0xc0] sm:$0xff]
    %v10622 = vld [vmem:[#allocation11 + $0xc8] sm:$0xff]
    %v10623 = vld [vmem:[#allocation11 + $0xd0] sm:$0xff]
    %v10624 = vld [vmem:[#allocation11 + $0xd8] sm:$0xff]
    %v10625 = vld [vmem:[#allocation11 + $0xe0] sm:$0xff]
    %v10626 = vld [vmem:[#allocation11 + $0xe8] sm:$0xff]
    %v10627 = vld [vmem:[#allocation11 + $0xf0] sm:$0xff]
    %v10628 = vld [vmem:[#allocation11 + $0xf8] sm:$0xff]
    %v10629 = vld [vmem:[#allocation11 + $0x100] sm:$0xff]
    %v10630 = vld [vmem:[#allocation11 + $0x108] sm:$0xff]
    %v10631 = vld [vmem:[#allocation11 + $0x110] sm:$0xff]
    %v10632 = vld [vmem:[#allocation11 + $0x118] sm:$0xff]
    %v10633 = vld [vmem:[#allocation11 + $0x120] sm:$0xff]
    %v10634 = vld [vmem:[#allocation11 + $0x128] sm:$0xff]
    %v10635 = vld [vmem:[#allocation11 + $0x130] sm:$0xff]
    %v10636 = vld [vmem:[#allocation11 + $0x138] sm:$0xff]
    %v10637 = vld [vmem:[#allocation11 + $0x140] sm:$0xff]
    %v10638 = vld [vmem:[#allocation11 + $0x148] sm:$0xff]
    %v10639 = vld [vmem:[#allocation11 + $0x150] sm:$0xff]
    %v10640 = vld [vmem:[#allocation11 + $0x158] sm:$0xff]
    %v10641 = vld [vmem:[#allocation11 + $0x160] sm:$0xff]
    %v10642 = vld [vmem:[#allocation11 + $0x168] sm:$0xff]
    %v10643 = vld [vmem:[#allocation11 + $0x170] sm:$0xff]
    %v10644 = vld [vmem:[#allocation11 + $0x178] sm:$0xff]
    %v10645 = vld [vmem:[#allocation11 + $0x180] sm:$0xff]
    %v10646 = vld [vmem:[#allocation11 + $0x188] sm:$0xff]
    %v10647 = vld [vmem:[#allocation11 + $0x190] sm:$0xff]
    %v10648 = vld [vmem:[#allocation11 + $0x198] sm:$0xff]
    %v10649 = vld [vmem:[#allocation11 + $0x1a0] sm:$0xff]
    %v10650 = vld [vmem:[#allocation11 + $0x1a8] sm:$0xff]
    %v10651 = vld [vmem:[#allocation11 + $0x1b0] sm:$0xff]
    %v10652 = vld [vmem:[#allocation11 + $0x1b8] sm:$0xff]
    %v10653 = vld [vmem:[#allocation11 + $0x1c0] sm:$0xff]
    %v10654 = vld [vmem:[#allocation11 + $0x1c8] sm:$0xff]
    %v10655 = vld [vmem:[#allocation11 + $0x1d0] sm:$0xff]
    %v10656 = vld [vmem:[#allocation11 + $0x1d8] sm:$0xff]
    %v10657 = vld [vmem:[#allocation11 + $0x1e0] sm:$0xff]
    %v10658 = vld [vmem:[#allocation11 + $0x1e8] sm:$0xff]
    %v10659 = vld [vmem:[#allocation11 + $0x1f0] sm:$0xff]
    %v10660 = vld [vmem:[#allocation11 + $0x1f8] sm:$0xff]
    %v10661 = vld [vmem:[#allocation13] sm:$0x3]
    %v10663 = vlaneseq
    %v10664 = vshrl.u32 %v10663, 7
    %v10665 = vsub.s32 0, %v10664
    %v10666 = vrot.slane %v10661, %v10665
    %v10667 = vlaneseq
    %v10668 = vshrl.u32 %v10667, 7
    %v10669 = vsub.s32 1, %v10668
    %v10670 = vrot.slane %v10661, %v10669
    %v10737 = vunpack.c.l.b16 %v10597
    %v10738 = vunpack.c.h.b16 %v10597
    %v10739 = vunpack.c.l.b16 %v10598
    %v10740 = vunpack.c.h.b16 %v10598
    %v10741 = vunpack.c.l.b16 %v10599
    %v10742 = vunpack.c.h.b16 %v10599
    %v10743 = vunpack.c.l.b16 %v10600
    %v10744 = vunpack.c.h.b16 %v10600
    %v10745 = vunpack.c.l.b16 %v10601
    %v10746 = vunpack.c.h.b16 %v10601
    %v10747 = vunpack.c.l.b16 %v10602
    %v10748 = vunpack.c.h.b16 %v10602
    %v10749 = vunpack.c.l.b16 %v10603
    %v10750 = vunpack.c.h.b16 %v10603
    %v10751 = vunpack.c.l.b16 %v10604
    %v10752 = vunpack.c.h.b16 %v10604
    %v10753 = vunpack.c.l.b16 %v10605
    %v10754 = vunpack.c.h.b16 %v10605
    %v10755 = vunpack.c.l.b16 %v10606
    %v10756 = vunpack.c.h.b16 %v10606
    %v10757 = vunpack.c.l.b16 %v10607
    %v10758 = vunpack.c.h.b16 %v10607
    %v10759 = vunpack.c.l.b16 %v10608
    %v10760 = vunpack.c.h.b16 %v10608
    %v10761 = vunpack.c.l.b16 %v10609
    %v10762 = vunpack.c.h.b16 %v10609
    %v10763 = vunpack.c.l.b16 %v10610
    %v10764 = vunpack.c.h.b16 %v10610
    %v10765 = vunpack.c.l.b16 %v10611
    %v10766 = vunpack.c.h.b16 %v10611
    %v10767 = vunpack.c.l.b16 %v10612
    %v10768 = vunpack.c.h.b16 %v10612
    %v10769 = vunpack.c.l.b16 %v10613
    %v10770 = vunpack.c.h.b16 %v10613
    %v10771 = vunpack.c.l.b16 %v10614
    %v10772 = vunpack.c.h.b16 %v10614
    %v10773 = vunpack.c.l.b16 %v10615
    %v10774 = vunpack.c.h.b16 %v10615
    %v10775 = vunpack.c.l.b16 %v10616
    %v10776 = vunpack.c.h.b16 %v10616
    %v10777 = vunpack.c.l.b16 %v10617
    %v10778 = vunpack.c.h.b16 %v10617
    %v10779 = vunpack.c.l.b16 %v10618
    %v10780 = vunpack.c.h.b16 %v10618
    %v10781 = vunpack.c.l.b16 %v10619
    %v10782 = vunpack.c.h.b16 %v10619
    %v10783 = vunpack.c.l.b16 %v10620
    %v10784 = vunpack.c.h.b16 %v10620
    %v10785 = vunpack.c.l.b16 %v10621
    %v10786 = vunpack.c.h.b16 %v10621
    %v10787 = vunpack.c.l.b16 %v10622
    %v10788 = vunpack.c.h.b16 %v10622
    %v10789 = vunpack.c.l.b16 %v10623
    %v10790 = vunpack.c.h.b16 %v10623
    %v10791 = vunpack.c.l.b16 %v10624
    %v10792 = vunpack.c.h.b16 %v10624
    %v10793 = vunpack.c.l.b16 %v10625
    %v10794 = vunpack.c.h.b16 %v10625
    %v10795 = vunpack.c.l.b16 %v10626
    %v10796 = vunpack.c.h.b16 %v10626
    %v10797 = vunpack.c.l.b16 %v10627
    %v10798 = vunpack.c.h.b16 %v10627
    %v10799 = vunpack.c.l.b16 %v10628
    %v10800 = vunpack.c.h.b16 %v10628
    %v10801 = vunpack.c.l.b16 %v10629
    %v10802 = vunpack.c.h.b16 %v10629
    %v10803 = vunpack.c.l.b16 %v10630
    %v10804 = vunpack.c.h.b16 %v10630
    %v10805 = vunpack.c.l.b16 %v10631
    %v10806 = vunpack.c.h.b16 %v10631
    %v10807 = vunpack.c.l.b16 %v10632
    %v10808 = vunpack.c.h.b16 %v10632
    %v10809 = vunpack.c.l.b16 %v10633
    %v10810 = vunpack.c.h.b16 %v10633
    %v10811 = vunpack.c.l.b16 %v10634
    %v10812 = vunpack.c.h.b16 %v10634
    %v10813 = vunpack.c.l.b16 %v10635
    %v10814 = vunpack.c.h.b16 %v10635
    %v10815 = vunpack.c.l.b16 %v10636
    %v10816 = vunpack.c.h.b16 %v10636
    %v10817 = vunpack.c.l.b16 %v10637
    %v10818 = vunpack.c.h.b16 %v10637
    %v10819 = vunpack.c.l.b16 %v10638
    %v10820 = vunpack.c.h.b16 %v10638
    %v10821 = vunpack.c.l.b16 %v10639
    %v10822 = vunpack.c.h.b16 %v10639
    %v10823 = vunpack.c.l.b16 %v10640
    %v10824 = vunpack.c.h.b16 %v10640
    %v10825 = vunpack.c.l.b16 %v10641
    %v10826 = vunpack.c.h.b16 %v10641
    %v10827 = vunpack.c.l.b16 %v10642
    %v10828 = vunpack.c.h.b16 %v10642
    %v10829 = vunpack.c.l.b16 %v10643
    %v10830 = vunpack.c.h.b16 %v10643
    %v10831 = vunpack.c.l.b16 %v10644
    %v10832 = vunpack.c.h.b16 %v10644
    %v10833 = vunpack.c.l.b16 %v10645
    %v10834 = vunpack.c.h.b16 %v10645
    %v10835 = vunpack.c.l.b16 %v10646
    %v10836 = vunpack.c.h.b16 %v10646
    %v10837 = vunpack.c.l.b16 %v10647
    %v10838 = vunpack.c.h.b16 %v10647
    %v10839 = vunpack.c.l.b16 %v10648
    %v10840 = vunpack.c.h.b16 %v10648
    %v10841 = vunpack.c.l.b16 %v10649
    %v10842 = vunpack.c.h.b16 %v10649
    %v10843 = vunpack.c.l.b16 %v10650
    %v10844 = vunpack.c.h.b16 %v10650
    %v10845 = vunpack.c.l.b16 %v10651
    %v10846 = vunpack.c.h.b16 %v10651
    %v10847 = vunpack.c.l.b16 %v10652
    %v10848 = vunpack.c.h.b16 %v10652
    %v10849 = vunpack.c.l.b16 %v10653
    %v10850 = vunpack.c.h.b16 %v10653
    %v10851 = vunpack.c.l.b16 %v10654
    %v10852 = vunpack.c.h.b16 %v10654
    %v10853 = vunpack.c.l.b16 %v10655
    %v10854 = vunpack.c.h.b16 %v10655
    %v10855 = vunpack.c.l.b16 %v10656
    %v10856 = vunpack.c.h.b16 %v10656
    %v10857 = vunpack.c.l.b16 %v10657
    %v10858 = vunpack.c.h.b16 %v10657
    %v10859 = vunpack.c.l.b16 %v10658
    %v10860 = vunpack.c.h.b16 %v10658
    %v10861 = vunpack.c.l.b16 %v10659
    %v10862 = vunpack.c.h.b16 %v10659
    %v10863 = vunpack.c.l.b16 %v10660
    %v10864 = vunpack.c.h.b16 %v10660
    %v10865 = vpack.c.b16 %v10739, %v10737
    %v10866 = vpack.c.b16 %v10740, %v10738
    %v10867 = vpack.c.b16 %v10743, %v10741
    %v10868 = vpack.c.b16 %v10744, %v10742
    %v10869 = vpack.c.b16 %v10747, %v10745
    %v10870 = vpack.c.b16 %v10748, %v10746
    %v10871 = vpack.c.b16 %v10751, %v10749
    %v10872 = vpack.c.b16 %v10752, %v10750
    %v10873 = vpack.c.b16 %v10755, %v10753
    %v10874 = vpack.c.b16 %v10756, %v10754
    %v10875 = vpack.c.b16 %v10759, %v10757
    %v10876 = vpack.c.b16 %v10760, %v10758
    %v10877 = vpack.c.b16 %v10763, %v10761
    %v10878 = vpack.c.b16 %v10764, %v10762
    %v10879 = vpack.c.b16 %v10767, %v10765
    %v10880 = vpack.c.b16 %v10768, %v10766
    %v10881 = vpack.c.b16 %v10771, %v10769
    %v10882 = vpack.c.b16 %v10772, %v10770
    %v10883 = vpack.c.b16 %v10775, %v10773
    %v10884 = vpack.c.b16 %v10776, %v10774
    %v10885 = vpack.c.b16 %v10779, %v10777
    %v10886 = vpack.c.b16 %v10780, %v10778
    %v10887 = vpack.c.b16 %v10783, %v10781
    %v10888 = vpack.c.b16 %v10784, %v10782
    %v10889 = vpack.c.b16 %v10787, %v10785
    %v10890 = vpack.c.b16 %v10788, %v10786
    %v10891 = vpack.c.b16 %v10791, %v10789
    %v10892 = vpack.c.b16 %v10792, %v10790
    %v10893 = vpack.c.b16 %v10795, %v10793
    %v10894 = vpack.c.b16 %v10796, %v10794
    %v10895 = vpack.c.b16 %v10799, %v10797
    %v10896 = vpack.c.b16 %v10800, %v10798
    %v10897 = vpack.c.b16 %v10803, %v10801
    %v10898 = vpack.c.b16 %v10804, %v10802
    %v10899 = vpack.c.b16 %v10807, %v10805
    %v10900 = vpack.c.b16 %v10808, %v10806
    %v10901 = vpack.c.b16 %v10811, %v10809
    %v10902 = vpack.c.b16 %v10812, %v10810
    %v10903 = vpack.c.b16 %v10815, %v10813
    %v10904 = vpack.c.b16 %v10816, %v10814
    %v10905 = vpack.c.b16 %v10819, %v10817
    %v10906 = vpack.c.b16 %v10820, %v10818
    %v10907 = vpack.c.b16 %v10823, %v10821
    %v10908 = vpack.c.b16 %v10824, %v10822
    %v10909 = vpack.c.b16 %v10827, %v10825
    %v10910 = vpack.c.b16 %v10828, %v10826
    %v10911 = vpack.c.b16 %v10831, %v10829
    %v10912 = vpack.c.b16 %v10832, %v10830
    %v10913 = vpack.c.b16 %v10835, %v10833
    %v10914 = vpack.c.b16 %v10836, %v10834
    %v10915 = vpack.c.b16 %v10839, %v10837
    %v10916 = vpack.c.b16 %v10840, %v10838
    %v10917 = vpack.c.b16 %v10843, %v10841
    %v10918 = vpack.c.b16 %v10844, %v10842
    %v10919 = vpack.c.b16 %v10847, %v10845
    %v10920 = vpack.c.b16 %v10848, %v10846
    %v10921 = vpack.c.b16 %v10851, %v10849
    %v10922 = vpack.c.b16 %v10852, %v10850
    %v10923 = vpack.c.b16 %v10855, %v10853
    %v10924 = vpack.c.b16 %v10856, %v10854
    %v10925 = vpack.c.b16 %v10859, %v10857
    %v10926 = vpack.c.b16 %v10860, %v10858
    %v10927 = vpack.c.b16 %v10863, %v10861
    %v10928 = vpack.c.b16 %v10864, %v10862
    %10993 = vmatprep.subr.bf16.mxu0 %v10866
    %10994 = vmatpush1.bf16.msra.mxu0 %v10865
    %10995 = vmatprep.subr.bf16.mxu0 %v10868
    %10996 = vmatpush1.bf16.msra.mxu0 %v10867
    %10997 = vmatprep.subr.bf16.mxu0 %v10870
    %10998 = vmatpush1.bf16.msra.mxu0 %v10869
    %10999 = vmatprep.subr.bf16.mxu0 %v10872
    %11000 = vmatpush1.bf16.msra.mxu0 %v10871
    %11001 = vmatprep.subr.bf16.mxu0 %v10874
    %11002 = vmatpush1.bf16.msra.mxu0 %v10873
    %11003 = vmatprep.subr.bf16.mxu0 %v10876
    %11004 = vmatpush1.bf16.msra.mxu0 %v10875
    %11005 = vmatprep.subr.bf16.mxu0 %v10878
    %11006 = vmatpush1.bf16.msra.mxu0 %v10877
    %11007 = vmatprep.subr.bf16.mxu0 %v10880
    %11008 = vmatpush1.bf16.msra.mxu0 %v10879
    %11009 = vmatprep.subr.bf16.mxu0 %v10882
    %11010 = vmatpush1.bf16.msra.mxu0 %v10881
    %11011 = vmatprep.subr.bf16.mxu0 %v10884
    %11012 = vmatpush1.bf16.msra.mxu0 %v10883
    %11013 = vmatprep.subr.bf16.mxu0 %v10886
    %11014 = vmatpush1.bf16.msra.mxu0 %v10885
    %11015 = vmatprep.subr.bf16.mxu0 %v10888
    %11016 = vmatpush1.bf16.msra.mxu0 %v10887
    %11017 = vmatprep.subr.bf16.mxu0 %v10890
    %11018 = vmatpush1.bf16.msra.mxu0 %v10889
    %11019 = vmatprep.subr.bf16.mxu0 %v10892
    %11020 = vmatpush1.bf16.msra.mxu0 %v10891
    %11021 = vmatprep.subr.bf16.mxu0 %v10894
    %11022 = vmatpush1.bf16.msra.mxu0 %v10893
    %11023 = vmatprep.subr.bf16.mxu0 %v10896
    %11024 = vmatpush1.bf16.msra.mxu0 %v10895
    %11025 = vmatprep.mubr.bf16.mxu0 %v10566
    %11026 = vmatmul.mubr.bf16.gmra.mrb[0].mxu0 %v10565
    %v11027 = vpop.f32.mrb[0].mxu0
    %v11028 = vadd.f32 %v10666, %v11027
    %v11029 = vpop.f32.mrb[0].mxu0
    %v11030 = vadd.f32 %v10670, %v11029
    %v11031 = vpop.f32.mrb[0].mxu0
    %v11032 = vadd.f32 %v10666, %v11031
    %v11033 = vpop.f32.mrb[0].mxu0
    %v11034 = vadd.f32 %v10670, %v11033
    %11035 = vmatprep.mubr.bf16.mxu0 %v10570
    %11036 = vmatmul.mubr.bf16.gmra.mrb[0].mxu0 %v10569
    %v11037 = vpop.f32.mrb[0].mxu0
    %v11038 = vadd.f32 %v10666, %v11037
    %v11039 = vpop.f32.mrb[0].mxu0
    %v11040 = vadd.f32 %v10670, %v11039
    %v11041 = vpop.f32.mrb[0].mxu0
    %v11042 = vadd.f32 %v10666, %v11041
    %v11043 = vpop.f32.mrb[0].mxu0
    %v11044 = vadd.f32 %v10670, %v11043
    %11045 = vmatprep.mubr.bf16.mxu0 %v10574
    %11046 = vmatmul.mubr.bf16.gmra.mrb[0].mxu0 %v10573
    %v11047 = vpop.f32.mrb[0].mxu0
    %v11048 = vadd.f32 %v10666, %v11047
    %v11049 = vpop.f32.mrb[0].mxu0
    %v11050 = vadd.f32 %v10670, %v11049
    %v11051 = vpop.f32.mrb[0].mxu0
    %v11052 = vadd.f32 %v10666, %v11051
    %v11053 = vpop.f32.mrb[0].mxu0
    %v11054 = vadd.f32 %v10670, %v11053
    %11055 = vmatprep.mubr.bf16.mxu0 %v10578
    %11056 = vmatmul.mubr.bf16.gmra.mrb[0].mxu0 %v10577
    %v11057 = vpop.f32.mrb[0].mxu0
    %v11058 = vadd.f32 %v10666, %v11057
    %v11059 = vpop.f32.mrb[0].mxu0
    %v11060 = vadd.f32 %v10670, %v11059
    %v11061 = vpop.f32.mrb[0].mxu0
    %v11062 = vadd.f32 %v10666, %v11061
    %v11063 = vpop.f32.mrb[0].mxu0
    %v11064 = vadd.f32 %v10670, %v11063
    %11065 = vmatprep.mubr.bf16.mxu0 %v10582
    %11066 = vmatmul.mubr.bf16.gmra.mrb[0].mxu0 %v10581
    %v11067 = vpop.f32.mrb[0].mxu0
    %v11068 = vadd.f32 %v10666, %v11067
    %v11069 = vpop.f32.mrb[0].mxu0
    %v11070 = vadd.f32 %v10670, %v11069
    %v11071 = vpop.f32.mrb[0].mxu0
    %v11072 = vadd.f32 %v10666, %v11071
    %v11073 = vpop.f32.mrb[0].mxu0
    %v11074 = vadd.f32 %v10670, %v11073
    %11075 = vmatprep.mubr.bf16.mxu0 %v10586
    %11076 = vmatmul.mubr.bf16.gmra.mrb[0].mxu0 %v10585
    %v11077 = vpop.f32.mrb[0].mxu0
    %v11078 = vadd.f32 %v10666, %v11077
    %v11079 = vpop.f32.mrb[0].mxu0
    %v11080 = vadd.f32 %v10670, %v11079
    %v11081 = vpop.f32.mrb[0].mxu0
    %v11082 = vadd.f32 %v10666, %v11081
    %v11083 = vpop.f32.mrb[0].mxu0
    %v11084 = vadd.f32 %v10670, %v11083
    %11085 = vmatprep.mubr.bf16.mxu0 %v10590
    %11086 = vmatmul.mubr.bf16.gmra.mrb[0].mxu0 %v10589
    %v11087 = vpop.f32.mrb[0].mxu0
    %v11088 = vadd.f32 %v10666, %v11087
    %v11089 = vpop.f32.mrb[0].mxu0
    %v11090 = vadd.f32 %v10670, %v11089
    %v11091 = vpop.f32.mrb[0].mxu0
    %v11092 = vadd.f32 %v10666, %v11091
    %v11093 = vpop.f32.mrb[0].mxu0
    %v11094 = vadd.f32 %v10670, %v11093
    %11095 = vmatprep.mubr.bf16.mxu0 %v10594
    %11096 = vmatmul.mubr.bf16.gmra.mrb[0].mxu0 %v10593
    %v11097 = vpop.f32.mrb[0].mxu0
    %v11098 = vadd.f32 %v10666, %v11097
    %v11099 = vpop.f32.mrb[0].mxu0
    %v11100 = vadd.f32 %v10670, %v11099
    %v11101 = vpop.f32.mrb[0].mxu0
    %v11102 = vadd.f32 %v10666, %v11101
    %v11103 = vpop.f32.mrb[0].mxu0
    %v11104 = vadd.f32 %v10670, %v11103
    %11105 = vdwg.mxu0
    %11106 = vmatprep.subr.bf16.mxu0 %v10898
    %11107 = vmatpush1.bf16.msra.mxu0 %v10897
    %11108 = vmatprep.subr.bf16.mxu0 %v10900
    %11109 = vmatpush1.bf16.msra.mxu0 %v10899
    %11110 = vmatprep.subr.bf16.mxu0 %v10902
    %11111 = vmatpush1.bf16.msra.mxu0 %v10901
    %11112 = vmatprep.subr.bf16.mxu0 %v10904
    %11113 = vmatpush1.bf16.msra.mxu0 %v10903
    %11114 = vmatprep.subr.bf16.mxu0 %v10906
    %11115 = vmatpush1.bf16.msra.mxu0 %v10905
    %11116 = vmatprep.subr.bf16.mxu0 %v10908
    %11117 = vmatpush1.bf16.msra.mxu0 %v10907
    %11118 = vmatprep.subr.bf16.mxu0 %v10910
    %11119 = vmatpush1.bf16.msra.mxu0 %v10909
    %11120 = vmatprep.subr.bf16.mxu0 %v10912
    %11121 = vmatpush1.bf16.msra.mxu0 %v10911
    %11122 = vmatprep.subr.bf16.mxu0 %v10914
    %11123 = vmatpush1.bf16.msra.mxu0 %v10913
    %11124 = vmatprep.subr.bf16.mxu0 %v10916
    %11125 = vmatpush1.bf16.msra.mxu0 %v10915
    %11126 = vmatprep.subr.bf16.mxu0 %v10918
    %11127 = vmatpush1.bf16.msra.mxu0 %v10917
    %11128 = vmatprep.subr.bf16.mxu0 %v10920
    %11129 = vmatpush1.bf16.msra.mxu0 %v10919
    %11130 = vmatprep.subr.bf16.mxu0 %v10922
    %11131 = vmatpush1.bf16.msra.mxu0 %v10921
    %11132 = vmatprep.subr.bf16.mxu0 %v10924
    %11133 = vmatpush1.bf16.msra.mxu0 %v10923
    %11134 = vmatprep.subr.bf16.mxu0 %v10926
    %11135 = vmatpush1.bf16.msra.mxu0 %v10925
    %11136 = vmatprep.subr.bf16.mxu0 %v10928
    %11137 = vmatpush1.bf16.msra.mxu0 %v10927
    %11138 = vmatprep.mubr.bf16.mxu0 %v10568
    %11139 = vmatmul.mubr.bf16.gmra.mrb[0].mxu0 %v10567
    %v11140 = vpop.f32.mrb[0].mxu0
    %v11141 = vadd.f32 %v11028, %v11140
    %v11142 = vpop.f32.mrb[0].mxu0
    %v11143 = vadd.f32 %v11030, %v11142
    %v11144 = vpop.f32.mrb[0].mxu0
    %v11145 = vadd.f32 %v11032, %v11144
    %v11146 = vpop.f32.mrb[0].mxu0
    %v11147 = vadd.f32 %v11034, %v11146
    %11148 = vmatprep.mubr.bf16.mxu0 %v10572
    %11149 = vmatmul.mubr.bf16.gmra.mrb[0].mxu0 %v10571
    %v11150 = vpop.f32.mrb[0].mxu0
    %v11151 = vadd.f32 %v11038, %v11150
    %v11152 = vpop.f32.mrb[0].mxu0
    %v11153 = vadd.f32 %v11040, %v11152
    %v11154 = vpop.f32.mrb[0].mxu0
    %v11155 = vadd.f32 %v11042, %v11154
    %v11156 = vpop.f32.mrb[0].mxu0
    %v11157 = vadd.f32 %v11044, %v11156
    %11158 = vmatprep.mubr.bf16.mxu0 %v10576
    %11159 = vmatmul.mubr.bf16.gmra.mrb[0].mxu0 %v10575
    %v11160 = vpop.f32.mrb[0].mxu0
    %v11161 = vadd.f32 %v11048, %v11160
    %v11162 = vpop.f32.mrb[0].mxu0
    %v11163 = vadd.f32 %v11050, %v11162
    %v11164 = vpop.f32.mrb[0].mxu0
    %v11165 = vadd.f32 %v11052, %v11164
    %v11166 = vpop.f32.mrb[0].mxu0
    %v11167 = vadd.f32 %v11054, %v11166
    %11168 = vmatprep.mubr.bf16.mxu0 %v10580
    %11169 = vmatmul.mubr.bf16.gmra.mrb[0].mxu0 %v10579
    %v11170 = vpop.f32.mrb[0].mxu0
    %v11171 = vadd.f32 %v11058, %v11170
    %v11172 = vpop.f32.mrb[0].mxu0
    %v11173 = vadd.f32 %v11060, %v11172
    %v11174 = vpop.f32.mrb[0].mxu0
    %v11175 = vadd.f32 %v11062, %v11174
    %v11176 = vpop.f32.mrb[0].mxu0
    %v11177 = vadd.f32 %v11064, %v11176
    %11178 = vmatprep.mubr.bf16.mxu0 %v10584
    %11179 = vmatmul.mubr.bf16.gmra.mrb[0].mxu0 %v10583
    %v11180 = vpop.f32.mrb[0].mxu0
    %v11181 = vadd.f32 %v11068, %v11180
    %v11182 = vpop.f32.mrb[0].mxu0
    %v11183 = vadd.f32 %v11070, %v11182
    %v11184 = vpop.f32.mrb[0].mxu0
    %v11185 = vadd.f32 %v11072, %v11184
    %v11186 = vpop.f32.mrb[0].mxu0
    %v11187 = vadd.f32 %v11074, %v11186
    %11188 = vmatprep.mubr.bf16.mxu0 %v10588
    %11189 = vmatmul.mubr.bf16.gmra.mrb[0].mxu0 %v10587
    %v11190 = vpop.f32.mrb[0].mxu0
    %v11191 = vadd.f32 %v11078, %v11190
    %v11192 = vpop.f32.mrb[0].mxu0
    %v11193 = vadd.f32 %v11080, %v11192
    %v11194 = vpop.f32.mrb[0].mxu0
    %v11195 = vadd.f32 %v11082, %v11194
    %v11196 = vpop.f32.mrb[0].mxu0
    %v11197 = vadd.f32 %v11084, %v11196
    %11198 = vmatprep.mubr.bf16.mxu0 %v10592
    %11199 = vmatmul.mubr.bf16.gmra.mrb[0].mxu0 %v10591
    %v11200 = vpop.f32.mrb[0].mxu0
    %v11201 = vadd.f32 %v11088, %v11200
    %v11202 = vpop.f32.mrb[0].mxu0
    %v11203 = vadd.f32 %v11090, %v11202
    %v11204 = vpop.f32.mrb[0].mxu0
    %v11205 = vadd.f32 %v11092, %v11204
    %v11206 = vpop.f32.mrb[0].mxu0
    %v11207 = vadd.f32 %v11094, %v11206
    %11208 = vmatprep.mubr.bf16.mxu0 %v10596
    %11209 = vmatmul.mubr.bf16.gmra.mrb[0].mxu0 %v10595
    %v11210 = vpop.f32.mrb[0].mxu0
    %v11211 = vadd.f32 %v11098, %v11210
    %v11212 = vpop.f32.mrb[0].mxu0
    %v11213 = vadd.f32 %v11100, %v11212
    %v11214 = vpop.f32.mrb[0].mxu0
    %v11215 = vadd.f32 %v11102, %v11214
    %v11216 = vpop.f32.mrb[0].mxu0
    %v11217 = vadd.f32 %v11104, %v11216
    %11218 = vdwg.mxu0
    %v11219 = vmax.f32 %v11141, 0.0
    %v11220 = vmax.f32 %v11143, 0.0
    %v11221 = vmax.f32 %v11145, 0.0
    %v11222 = vmax.f32 %v11147, 0.0
    %v11223 = vmax.f32 %v11151, 0.0
    %v11224 = vmax.f32 %v11153, 0.0
    %v11225 = vmax.f32 %v11155, 0.0
    %v11226 = vmax.f32 %v11157, 0.0
    %v11227 = vmax.f32 %v11161, 0.0
    %v11228 = vmax.f32 %v11163, 0.0
    %v11229 = vmax.f32 %v11165, 0.0
    %v11230 = vmax.f32 %v11167, 0.0
    %v11231 = vmax.f32 %v11171, 0.0
    %v11232 = vmax.f32 %v11173, 0.0
    %v11233 = vmax.f32 %v11175, 0.0
    %v11234 = vmax.f32 %v11177, 0.0
    %v11235 = vmax.f32 %v11181, 0.0
    %v11236 = vmax.f32 %v11183, 0.0
    %v11237 = vmax.f32 %v11185, 0.0
    %v11238 = vmax.f32 %v11187, 0.0
    %v11239 = vmax.f32 %v11191, 0.0
    %v11240 = vmax.f32 %v11193, 0.0
    %v11241 = vmax.f32 %v11195, 0.0
    %v11242 = vmax.f32 %v11197, 0.0
    %v11243 = vmax.f32 %v11201, 0.0
    %v11244 = vmax.f32 %v11203, 0.0
    %v11245 = vmax.f32 %v11205, 0.0
    %v11246 = vmax.f32 %v11207, 0.0
    %v11247 = vmax.f32 %v11211, 0.0
    %v11248 = vmax.f32 %v11213, 0.0
    %v11249 = vmax.f32 %v11215, 0.0
    %v11250 = vmax.f32 %v11217, 0.0
    %v11251 = vpack.c.bf16 %v11221, %v11219
    %v11252 = vpack.c.bf16 %v11222, %v11220
    %v11253 = vpack.c.bf16 %v11225, %v11223
    %v11254 = vpack.c.bf16 %v11226, %v11224
    %v11255 = vpack.c.bf16 %v11229, %v11227
    %v11256 = vpack.c.bf16 %v11230, %v11228
    %v11257 = vpack.c.bf16 %v11233, %v11231
    %v11258 = vpack.c.bf16 %v11234, %v11232
    %v11259 = vpack.c.bf16 %v11237, %v11235
    %v11260 = vpack.c.bf16 %v11238, %v11236
    %v11261 = vpack.c.bf16 %v11241, %v11239
    %v11262 = vpack.c.bf16 %v11242, %v11240
    %v11263 = vpack.c.bf16 %v11245, %v11243
    %v11264 = vpack.c.bf16 %v11246, %v11244
    %v11265 = vpack.c.bf16 %v11249, %v11247
    %v11266 = vpack.c.bf16 %v11250, %v11248
    %v11267 = vld [vmem:[#allocation14] sm:$0xf]
    %v11268 = vld [vmem:[#allocation14 + $0x4] sm:$0xf]
    %v11269 = vld [vmem:[#allocation14 + $0x8] sm:$0xf]
    %v11270 = vld [vmem:[#allocation14 + $0xc] sm:$0xf]
    %v11271 = vld [vmem:[#allocation14 + $0x10] sm:$0xf]
    %v11272 = vld [vmem:[#allocation14 + $0x14] sm:$0xf]
    %v11273 = vld [vmem:[#allocation14 + $0x18] sm:$0xf]
    %v11274 = vld [vmem:[#allocation14 + $0x1c] sm:$0xf]
    %v11275 = vld [vmem:[#allocation14 + $0x20] sm:$0xf]
    %v11276 = vld [vmem:[#allocation14 + $0x24] sm:$0xf]
    %v11277 = vld [vmem:[#allocation14 + $0x28] sm:$0xf]
    %v11278 = vld [vmem:[#allocation14 + $0x2c] sm:$0xf]
    %v11279 = vld [vmem:[#allocation14 + $0x30] sm:$0xf]
    %v11280 = vld [vmem:[#allocation14 + $0x34] sm:$0xf]
    %v11281 = vld [vmem:[#allocation14 + $0x38] sm:$0xf]
    %v11282 = vld [vmem:[#allocation14 + $0x3c] sm:$0xf]
    %v11283 = vld [vmem:[#allocation14 + $0x40] sm:$0xf]
    %v11284 = vld [vmem:[#allocation14 + $0x44] sm:$0xf]
    %v11285 = vld [vmem:[#allocation14 + $0x48] sm:$0xf]
    %v11286 = vld [vmem:[#allocation14 + $0x4c] sm:$0xf]
    %v11287 = vld [vmem:[#allocation14 + $0x50] sm:$0xf]
    %v11288 = vld [vmem:[#allocation14 + $0x54] sm:$0xf]
    %v11289 = vld [vmem:[#allocation14 + $0x58] sm:$0xf]
    %v11290 = vld [vmem:[#allocation14 + $0x5c] sm:$0xf]
    %v11291 = vld [vmem:[#allocation14 + $0x60] sm:$0xf]
    %v11292 = vld [vmem:[#allocation14 + $0x64] sm:$0xf]
    %v11293 = vld [vmem:[#allocation14 + $0x68] sm:$0xf]
    %v11294 = vld [vmem:[#allocation14 + $0x6c] sm:$0xf]
    %v11295 = vld [vmem:[#allocation14 + $0x70] sm:$0xf]
    %v11296 = vld [vmem:[#allocation14 + $0x74] sm:$0xf]
    %v11297 = vld [vmem:[#allocation14 + $0x78] sm:$0xf]
    %v11298 = vld [vmem:[#allocation14 + $0x7c] sm:$0xf]
    %v11299 = vld [vmem:[#allocation16] sm:$0x1]
    %v11301 = vlaneseq
    %v11302 = vshrl.u32 %v11301, 7
    %v11303 = vsub.s32 0, %v11302
    %v11304 = vrot.slane %v11299, %v11303
    %v11338 = vunpack.c.l.b16 %v11267
    %v11339 = vunpack.c.l.b16 %v11268
    %v11340 = vunpack.c.l.b16 %v11269
    %v11341 = vunpack.c.l.b16 %v11270
    %v11342 = vunpack.c.l.b16 %v11271
    %v11343 = vunpack.c.l.b16 %v11272
    %v11344 = vunpack.c.l.b16 %v11273
    %v11345 = vunpack.c.l.b16 %v11274
    %v11346 = vunpack.c.l.b16 %v11275
    %v11347 = vunpack.c.l.b16 %v11276
    %v11348 = vunpack.c.l.b16 %v11277
    %v11349 = vunpack.c.l.b16 %v11278
    %v11350 = vunpack.c.l.b16 %v11279
    %v11351 = vunpack.c.l.b16 %v11280
    %v11352 = vunpack.c.l.b16 %v11281
    %v11353 = vunpack.c.l.b16 %v11282
    %v11354 = vunpack.c.l.b16 %v11283
    %v11355 = vunpack.c.l.b16 %v11284
    %v11356 = vunpack.c.l.b16 %v11285
    %v11357 = vunpack.c.l.b16 %v11286
    %v11358 = vunpack.c.l.b16 %v11287
    %v11359 = vunpack.c.l.b16 %v11288
    %v11360 = vunpack.c.l.b16 %v11289
    %v11361 = vunpack.c.l.b16 %v11290
    %v11362 = vunpack.c.l.b16 %v11291
    %v11363 = vunpack.c.l.b16 %v11292
    %v11364 = vunpack.c.l.b16 %v11293
    %v11365 = vunpack.c.l.b16 %v11294
    %v11366 = vunpack.c.l.b16 %v11295
    %v11367 = vunpack.c.l.b16 %v11296
    %v11368 = vunpack.c.l.b16 %v11297
    %v11369 = vunpack.c.l.b16 %v11298
    %v11370 = vpack.c.b16 %v11339, %v11338
    %v11371 = vpack.c.b16 %v11341, %v11340
    %v11372 = vpack.c.b16 %v11343, %v11342
    %v11373 = vpack.c.b16 %v11345, %v11344
    %v11374 = vpack.c.b16 %v11347, %v11346
    %v11375 = vpack.c.b16 %v11349, %v11348
    %v11376 = vpack.c.b16 %v11351, %v11350
    %v11377 = vpack.c.b16 %v11353, %v11352
    %v11378 = vpack.c.b16 %v11355, %v11354
    %v11379 = vpack.c.b16 %v11357, %v11356
    %v11380 = vpack.c.b16 %v11359, %v11358
    %v11381 = vpack.c.b16 %v11361, %v11360
    %v11382 = vpack.c.b16 %v11363, %v11362
    %v11383 = vpack.c.b16 %v11365, %v11364
    %v11384 = vpack.c.b16 %v11367, %v11366
    %v11385 = vpack.c.b16 %v11369, %v11368
    %11402 = vmatprep.subr.bf16.mxu0 0
    %11403 = vmatpush1.bf16.msra.mxu0 %v11370
    %11404 = vmatprep.subr.bf16.mxu0 0
    %11405 = vmatpush1.bf16.msra.mxu0 %v11371
    %11406 = vmatprep.subr.bf16.mxu0 0
    %11407 = vmatpush1.bf16.msra.mxu0 %v11372
    %11408 = vmatprep.subr.bf16.mxu0 0
    %11409 = vmatpush1.bf16.msra.mxu0 %v11373
    %11410 = vmatprep.subr.bf16.mxu0 0
    %11411 = vmatpush1.bf16.msra.mxu0 %v11374
    %11412 = vmatprep.subr.bf16.mxu0 0
    %11413 = vmatpush1.bf16.msra.mxu0 %v11375
    %11414 = vmatprep.subr.bf16.mxu0 0
    %11415 = vmatpush1.bf16.msra.mxu0 %v11376
    %11416 = vmatprep.subr.bf16.mxu0 0
    %11417 = vmatpush1.bf16.msra.mxu0 %v11377
    %11418 = vmatprep.subr.bf16.mxu0 0
    %11419 = vmatpush1.bf16.msra.mxu0 %v11378
    %11420 = vmatprep.subr.bf16.mxu0 0
    %11421 = vmatpush1.bf16.msra.mxu0 %v11379
    %11422 = vmatprep.subr.bf16.mxu0 0
    %11423 = vmatpush1.bf16.msra.mxu0 %v11380
    %11424 = vmatprep.subr.bf16.mxu0 0
    %11425 = vmatpush1.bf16.msra.mxu0 %v11381
    %11426 = vmatprep.subr.bf16.mxu0 0
    %11427 = vmatpush1.bf16.msra.mxu0 %v11382
    %11428 = vmatprep.subr.bf16.mxu0 0
    %11429 = vmatpush1.bf16.msra.mxu0 %v11383
    %11430 = vmatprep.subr.bf16.mxu0 0
    %11431 = vmatpush1.bf16.msra.mxu0 %v11384
    %11432 = vmatprep.subr.bf16.mxu0 0
    %11433 = vmatpush1.bf16.msra.mxu0 %v11385
    %11434 = vmatprep.mubr.bf16.mxu0 %v11252
    %11435 = vmatmul.mubr.bf16.gmra.mrb[0].mxu0 %v11251
    %v11436 = vpop.f32.mrb[0].mxu0
    %v11437 = vadd.f32 %v11304, %v11436
    %v11438 = vpop.f32.mrb[0].mxu0
    %v11439 = vpop.f32.mrb[0].mxu0
    %v11440 = vadd.f32 %v11304, %v11439
    %v11441 = vpop.f32.mrb[0].mxu0
    %11442 = vmatprep.mubr.bf16.mxu0 %v11254
    %11443 = vmatmul.mubr.bf16.gmra.mrb[0].mxu0 %v11253
    %v11444 = vpop.f32.mrb[0].mxu0
    %v11445 = vadd.f32 %v11304, %v11444
    %v11446 = vpop.f32.mrb[0].mxu0
    %v11447 = vpop.f32.mrb[0].mxu0
    %v11448 = vadd.f32 %v11304, %v11447
    %v11449 = vpop.f32.mrb[0].mxu0
    %11450 = vmatprep.mubr.bf16.mxu0 %v11256
    %11451 = vmatmul.mubr.bf16.gmra.mrb[0].mxu0 %v11255
    %v11452 = vpop.f32.mrb[0].mxu0
    %v11453 = vadd.f32 %v11304, %v11452
    %v11454 = vpop.f32.mrb[0].mxu0
    %v11455 = vpop.f32.mrb[0].mxu0
    %v11456 = vadd.f32 %v11304, %v11455
    %v11457 = vpop.f32.mrb[0].mxu0
    %11458 = vmatprep.mubr.bf16.mxu0 %v11258
    %11459 = vmatmul.mubr.bf16.gmra.mrb[0].mxu0 %v11257
    %v11460 = vpop.f32.mrb[0].mxu0
    %v11461 = vadd.f32 %v11304, %v11460
    %v11462 = vpop.f32.mrb[0].mxu0
    %v11463 = vpop.f32.mrb[0].mxu0
    %v11464 = vadd.f32 %v11304, %v11463
    %v11465 = vpop.f32.mrb[0].mxu0
    %11466 = vmatprep.mubr.bf16.mxu0 %v11260
    %11467 = vmatmul.mubr.bf16.gmra.mrb[0].mxu0 %v11259
    %v11468 = vpop.f32.mrb[0].mxu0
    %v11469 = vadd.f32 %v11304, %v11468
    %v11470 = vpop.f32.mrb[0].mxu0
    %v11471 = vpop.f32.mrb[0].mxu0
    %v11472 = vadd.f32 %v11304, %v11471
    %v11473 = vpop.f32.mrb[0].mxu0
    %11474 = vmatprep.mubr.bf16.mxu0 %v11262
    %11475 = vmatmul.mubr.bf16.gmra.mrb[0].mxu0 %v11261
    %v11476 = vpop.f32.mrb[0].mxu0
    %v11477 = vadd.f32 %v11304, %v11476
    %v11478 = vpop.f32.mrb[0].mxu0
    %v11479 = vpop.f32.mrb[0].mxu0
    %v11480 = vadd.f32 %v11304, %v11479
    %v11481 = vpop.f32.mrb[0].mxu0
    %11482 = vmatprep.mubr.bf16.mxu0 %v11264
    %11483 = vmatmul.mubr.bf16.gmra.mrb[0].mxu0 %v11263
    %v11484 = vpop.f32.mrb[0].mxu0
    %v11485 = vadd.f32 %v11304, %v11484
    %v11486 = vpop.f32.mrb[0].mxu0
    %v11487 = vpop.f32.mrb[0].mxu0
    %v11488 = vadd.f32 %v11304, %v11487
    %v11489 = vpop.f32.mrb[0].mxu0
    %11490 = vmatprep.mubr.bf16.mxu0 %v11266
    %11491 = vmatmul.mubr.bf16.gmra.mrb[0].mxu0 %v11265
    %v11492 = vpop.f32.mrb[0].mxu0
    %v11493 = vadd.f32 %v11304, %v11492
    %v11494 = vpop.f32.mrb[0].mxu0
    %v11495 = vpop.f32.mrb[0].mxu0
    %v11496 = vadd.f32 %v11304, %v11495
    %v11497 = vpop.f32.mrb[0].mxu0
    %11498 = vdwg.mxu0
    %v11499 = vmax.f32 %v11437, 0.0
    %v11500 = vmax.f32 %v11440, 0.0
    %v11501 = vmax.f32 %v11445, 0.0
    %v11502 = vmax.f32 %v11448, 0.0
    %v11503 = vmax.f32 %v11453, 0.0
    %v11504 = vmax.f32 %v11456, 0.0
    %v11505 = vmax.f32 %v11461, 0.0
    %v11506 = vmax.f32 %v11464, 0.0
    %v11507 = vmax.f32 %v11469, 0.0
    %v11508 = vmax.f32 %v11472, 0.0
    %v11509 = vmax.f32 %v11477, 0.0
    %v11510 = vmax.f32 %v11480, 0.0
    %v11511 = vmax.f32 %v11485, 0.0
    %v11512 = vmax.f32 %v11488, 0.0
    %v11513 = vmax.f32 %v11493, 0.0
    %v11514 = vmax.f32 %v11496, 0.0
    %v11515 = vpack.c.bf16 %v11500, %v11499
    %v11516 = vpack.c.bf16 %v11502, %v11501
    %v11517 = vpack.c.bf16 %v11504, %v11503
    %v11518 = vpack.c.bf16 %v11506, %v11505
    %v11519 = vpack.c.bf16 %v11508, %v11507
    %v11520 = vpack.c.bf16 %v11510, %v11509
    %v11521 = vpack.c.bf16 %v11512, %v11511
    %v11522 = vpack.c.bf16 %v11514, %v11513
    %v11523 = vld [vmem:[%s9] sm:$0xf]
    %v11524 = vld [vmem:[%s9 + $0x4] sm:$0xf]
    %v11525 = vld [vmem:[%s9 + $0x8] sm:$0xf]
    %v11526 = vld [vmem:[%s9 + $0xc] sm:$0xf]
    %v11527 = vld [vmem:[%s9 + $0x10] sm:$0xf]
    %v11528 = vld [vmem:[%s9 + $0x14] sm:$0xf]
    %v11529 = vld [vmem:[%s9 + $0x18] sm:$0xf]
    %v11530 = vld [vmem:[%s9 + $0x1c] sm:$0xf]
    %v11531 = vld [vmem:[%s9 + $0x20] sm:$0xf]
    %v11532 = vld [vmem:[%s9 + $0x24] sm:$0xf]
    %v11533 = vld [vmem:[%s9 + $0x28] sm:$0xf]
    %v11534 = vld [vmem:[%s9 + $0x2c] sm:$0xf]
    %v11535 = vld [vmem:[%s9 + $0x30] sm:$0xf]
    %v11536 = vld [vmem:[%s9 + $0x34] sm:$0xf]
    %v11537 = vld [vmem:[%s9 + $0x38] sm:$0xf]
    %v11538 = vld [vmem:[%s9 + $0x3c] sm:$0xf]
    %v11539 = vld [vmem:[#allocation17] sm:$0x1]
    %v11541 = vlaneseq
    %v11542 = vshrl.u32 %v11541, 7
    %v11543 = vsub.s32 0, %v11542
    %v11544 = vrot.slane %v11539, %v11543
    %v11562 = vunpack.c.l.b16 %v11523
    %v11563 = vunpack.c.l.b16 %v11524
    %v11564 = vunpack.c.l.b16 %v11525
    %v11565 = vunpack.c.l.b16 %v11526
    %v11566 = vunpack.c.l.b16 %v11527
    %v11567 = vunpack.c.l.b16 %v11528
    %v11568 = vunpack.c.l.b16 %v11529
    %v11569 = vunpack.c.l.b16 %v11530
    %v11570 = vunpack.c.l.b16 %v11531
    %v11571 = vunpack.c.l.b16 %v11532
    %v11572 = vunpack.c.l.b16 %v11533
    %v11573 = vunpack.c.l.b16 %v11534
    %v11574 = vunpack.c.l.b16 %v11535
    %v11575 = vunpack.c.l.b16 %v11536
    %v11576 = vunpack.c.l.b16 %v11537
    %v11577 = vunpack.c.l.b16 %v11538
    %v11578 = vpack.c.b16 %v11563, %v11562
    %v11579 = vpack.c.b16 %v11565, %v11564
    %v11580 = vpack.c.b16 %v11567, %v11566
    %v11581 = vpack.c.b16 %v11569, %v11568
    %v11582 = vpack.c.b16 %v11571, %v11570
    %v11583 = vpack.c.b16 %v11573, %v11572
    %v11584 = vpack.c.b16 %v11575, %v11574
    %v11585 = vpack.c.b16 %v11577, %v11576
    %11594 = vmatprep.subr.bf16.mxu0 0
    %11595 = vmatpush1.bf16.msra.mxu0 %v11578
    %11596 = vmatprep.subr.bf16.mxu0 0
    %11597 = vmatpush1.bf16.msra.mxu0 %v11579
    %11598 = vmatprep.subr.bf16.mxu0 0
    %11599 = vmatpush1.bf16.msra.mxu0 %v11580
    %11600 = vmatprep.subr.bf16.mxu0 0
    %11601 = vmatpush1.bf16.msra.mxu0 %v11581
    %11602 = vmatprep.subr.bf16.mxu0 0
    %11603 = vmatpush1.bf16.msra.mxu0 %v11582
    %11604 = vmatprep.subr.bf16.mxu0 0
    %11605 = vmatpush1.bf16.msra.mxu0 %v11583
    %11606 = vmatprep.subr.bf16.mxu0 0
    %11607 = vmatpush1.bf16.msra.mxu0 %v11584
    %11608 = vmatprep.subr.bf16.mxu0 0
    %11609 = vmatpush1.bf16.msra.mxu0 %v11585
    %11610 = vmatprep.subr.bf16.mxu0 0
    %11611 = vmatpush1.bf16.msra.mxu0 0
    %11612 = vmatprep.subr.bf16.mxu0 0
    %11613 = vmatpush1.bf16.msra.mxu0 0
    %11614 = vmatprep.subr.bf16.mxu0 0
    %11615 = vmatpush1.bf16.msra.mxu0 0
    %11616 = vmatprep.subr.bf16.mxu0 0
    %11617 = vmatpush1.bf16.msra.mxu0 0
    %11618 = vmatprep.subr.bf16.mxu0 0
    %11619 = vmatpush1.bf16.msra.mxu0 0
    %11620 = vmatprep.subr.bf16.mxu0 0
    %11621 = vmatpush1.bf16.msra.mxu0 0
    %11622 = vmatprep.subr.bf16.mxu0 0
    %11623 = vmatpush1.bf16.msra.mxu0 0
    %11624 = vmatprep.subr.bf16.mxu0 0
    %11625 = vmatpush1.bf16.msra.mxu0 0
    %11626 = vmatprep.mubr.bf16.mxu0 0
    %11627 = vmatmul.mubr.bf16.gmra.mrb[0].mxu0 %v11515
    %v11628 = vpop.f32.mrb[0].mxu0
    %v11629 = vadd.f32 %v11544, %v11628
    %v11630 = vpop.f32.mrb[0].mxu0
    %v11631 = vpop.f32.mrb[0].mxu0
    %v11632 = vadd.f32 %v11544, %v11631
    %v11633 = vpop.f32.mrb[0].mxu0
    %11634 = vmatprep.mubr.bf16.mxu0 0
    %11635 = vmatmul.mubr.bf16.gmra.mrb[0].mxu0 %v11516
    %v11636 = vpop.f32.mrb[0].mxu0
    %v11637 = vadd.f32 %v11544, %v11636
    %v11638 = vpop.f32.mrb[0].mxu0
    %v11639 = vpop.f32.mrb[0].mxu0
    %v11640 = vadd.f32 %v11544, %v11639
    %v11641 = vpop.f32.mrb[0].mxu0
    %11642 = vmatprep.mubr.bf16.mxu0 0
    %11643 = vmatmul.mubr.bf16.gmra.mrb[0].mxu0 %v11517
    %v11644 = vpop.f32.mrb[0].mxu0
    %v11645 = vadd.f32 %v11544, %v11644
    %v11646 = vpop.f32.mrb[0].mxu0
    %v11647 = vpop.f32.mrb[0].mxu0
    %v11648 = vadd.f32 %v11544, %v11647
    %v11649 = vpop.f32.mrb[0].mxu0
    %11650 = vmatprep.mubr.bf16.mxu0 0
    %11651 = vmatmul.mubr.bf16.gmra.mrb[0].mxu0 %v11518
    %v11652 = vpop.f32.mrb[0].mxu0
    %v11653 = vadd.f32 %v11544, %v11652
    %v11654 = vpop.f32.mrb[0].mxu0
    %v11655 = vpop.f32.mrb[0].mxu0
    %v11656 = vadd.f32 %v11544, %v11655
    %v11657 = vpop.f32.mrb[0].mxu0
    %11658 = vmatprep.mubr.bf16.mxu0 0
    %11659 = vmatmul.mubr.bf16.gmra.mrb[0].mxu0 %v11519
    %v11660 = vpop.f32.mrb[0].mxu0
    %v11661 = vadd.f32 %v11544, %v11660
    %v11662 = vpop.f32.mrb[0].mxu0
    %v11663 = vpop.f32.mrb[0].mxu0
    %v11664 = vadd.f32 %v11544, %v11663
    %v11665 = vpop.f32.mrb[0].mxu0
    %11666 = vmatprep.mubr.bf16.mxu0 0
    %11667 = vmatmul.mubr.bf16.gmra.mrb[0].mxu0 %v11520
    %v11668 = vpop.f32.mrb[0].mxu0
    %v11669 = vadd.f32 %v11544, %v11668
    %v11670 = vpop.f32.mrb[0].mxu0
    %v11671 = vpop.f32.mrb[0].mxu0
    %v11672 = vadd.f32 %v11544, %v11671
    %v11673 = vpop.f32.mrb[0].mxu0
    %11674 = vmatprep.mubr.bf16.mxu0 0
    %11675 = vmatmul.mubr.bf16.gmra.mrb[0].mxu0 %v11521
    %v11676 = vpop.f32.mrb[0].mxu0
    %v11677 = vadd.f32 %v11544, %v11676
    %v11678 = vpop.f32.mrb[0].mxu0
    %v11679 = vpop.f32.mrb[0].mxu0
    %v11680 = vadd.f32 %v11544, %v11679
    %v11681 = vpop.f32.mrb[0].mxu0
    %11682 = vmatprep.mubr.bf16.mxu0 0
    %11683 = vmatmul.mubr.bf16.gmra.mrb[0].mxu0 %v11522
    %v11684 = vpop.f32.mrb[0].mxu0
    %v11685 = vadd.f32 %v11544, %v11684
    %v11686 = vpop.f32.mrb[0].mxu0
    %v11687 = vpop.f32.mrb[0].mxu0
    %v11688 = vadd.f32 %v11544, %v11687
    %v11689 = vpop.f32.mrb[0].mxu0
    %11690 = vdwg.mxu0
    %v11691 = vmax.f32 %v11629, 0.0
    %v11692 = vmax.f32 %v11632, 0.0
    %v11693 = vmax.f32 %v11637, 0.0
    %v11694 = vmax.f32 %v11640, 0.0
    %v11695 = vmax.f32 %v11645, 0.0
    %v11696 = vmax.f32 %v11648, 0.0
    %v11697 = vmax.f32 %v11653, 0.0
    %v11698 = vmax.f32 %v11656, 0.0
    %v11699 = vmax.f32 %v11661, 0.0
    %v11700 = vmax.f32 %v11664, 0.0
    %v11701 = vmax.f32 %v11669, 0.0
    %v11702 = vmax.f32 %v11672, 0.0
    %v11703 = vmax.f32 %v11677, 0.0
    %v11704 = vmax.f32 %v11680, 0.0
    %v11705 = vmax.f32 %v11685, 0.0
    %v11706 = vmax.f32 %v11688, 0.0
    %v11707 = vpack.c.bf16 %v11692, %v11691
    %v11708 = vpack.c.bf16 %v11694, %v11693
    %v11709 = vpack.c.bf16 %v11696, %v11695
    %v11710 = vpack.c.bf16 %v11698, %v11697
    %v11711 = vpack.c.bf16 %v11700, %v11699
    %v11712 = vpack.c.bf16 %v11702, %v11701
    %v11713 = vpack.c.bf16 %v11704, %v11703
    %v11714 = vpack.c.bf16 %v11706, %v11705
    %v11715 = vld [vmem:[#allocation19] sm:$0xf]
    %v11716 = vld [vmem:[#allocation19 + $0x4] sm:$0xf]
    %v11717 = vld [vmem:[#allocation19 + $0x8] sm:$0xf]
    %v11718 = vld [vmem:[#allocation19 + $0xc] sm:$0xf]
    %v11719 = vld [vmem:[#allocation19 + $0x10] sm:$0xf]
    %v11720 = vld [vmem:[#allocation19 + $0x14] sm:$0xf]
    %v11721 = vld [vmem:[#allocation19 + $0x18] sm:$0xf]
    %v11722 = vld [vmem:[#allocation19 + $0x1c] sm:$0xf]
    %v11723 = vld [vmem:[#allocation20] sm:$0x1]
    %v11725 = vlaneseq
    %v11726 = vshrl.u32 %v11725, 7
    %v11727 = vsub.s32 0, %v11726
    %v11728 = vrot.slane %v11723, %v11727
    %v11738 = vunpack.c.l.b16 %v11715
    %v11739 = vunpack.c.l.b16 %v11716
    %v11740 = vunpack.c.l.b16 %v11717
    %v11741 = vunpack.c.l.b16 %v11718
    %v11742 = vunpack.c.l.b16 %v11719
    %v11743 = vunpack.c.l.b16 %v11720
    %v11744 = vunpack.c.l.b16 %v11721
    %v11745 = vunpack.c.l.b16 %v11722
    %v11746 = vpack.c.b16 %v11739, %v11738
    %v11747 = vpack.c.b16 %v11741, %v11740
    %v11748 = vpack.c.b16 %v11743, %v11742
    %v11749 = vpack.c.b16 %v11745, %v11744
    %vm11754 = vcmask 523264
    %v11756 = vsel %vm11754, %v11707, 0
    %v11759 = vsel %vm11754, %v11708, 0
    %v11762 = vsel %vm11754, %v11709, 0
    %v11765 = vsel %vm11754, %v11710, 0
    %v11768 = vsel %vm11754, %v11711, 0
    %v11771 = vsel %vm11754, %v11712, 0
    %v11774 = vsel %vm11754, %v11713, 0
    %v11777 = vsel %vm11754, %v11714, 0
    %11779 = vmatprep.subr.bf16.mxu0 0
    %11780 = vmatpush1.bf16.msra.mxu0 %v11746
    %11781 = vmatprep.subr.bf16.mxu0 0
    %11782 = vmatpush1.bf16.msra.mxu0 %v11747
    %11783 = vmatprep.subr.bf16.mxu0 0
    %11784 = vmatpush1.bf16.msra.mxu0 %v11748
    %11785 = vmatprep.subr.bf16.mxu0 0
    %11786 = vmatpush1.bf16.msra.mxu0 %v11749
    %11787 = vmatprep.subr.bf16.mxu0 0
    %11788 = vmatpush1.bf16.msra.mxu0 0
    %11789 = vmatprep.subr.bf16.mxu0 0
    %11790 = vmatpush1.bf16.msra.mxu0 0
    %11791 = vmatprep.subr.bf16.mxu0 0
    %11792 = vmatpush1.bf16.msra.mxu0 0
    %11793 = vmatprep.subr.bf16.mxu0 0
    %11794 = vmatpush1.bf16.msra.mxu0 0
    %11795 = vmatprep.subr.bf16.mxu0 0
    %11796 = vmatpush1.bf16.msra.mxu0 0
    %11797 = vmatprep.subr.bf16.mxu0 0
    %11798 = vmatpush1.bf16.msra.mxu0 0
    %11799 = vmatprep.subr.bf16.mxu0 0
    %11800 = vmatpush1.bf16.msra.mxu0 0
    %11801 = vmatprep.subr.bf16.mxu0 0
    %11802 = vmatpush1.bf16.msra.mxu0 0
    %11803 = vmatprep.subr.bf16.mxu0 0
    %11804 = vmatpush1.bf16.msra.mxu0 0
    %11805 = vmatprep.subr.bf16.mxu0 0
    %11806 = vmatpush1.bf16.msra.mxu0 0
    %11807 = vmatprep.subr.bf16.mxu0 0
    %11808 = vmatpush1.bf16.msra.mxu0 0
    %11809 = vmatprep.subr.bf16.mxu0 0
    %11810 = vmatpush1.bf16.msra.mxu0 0
    %11811 = vmatprep.mubr.bf16.mxu0 0
    %11812 = vmatmul.mubr.bf16.gmra.mrb[0].mxu0 %v11756
    %v11813 = vpop.f32.mrb[0].mxu0
    %v11814 = vadd.f32 %v11728, %v11813
    %v11815 = vpop.f32.mrb[0].mxu0
    %v11816 = vpop.f32.mrb[0].mxu0
    %v11817 = vadd.f32 %v11728, %v11816
    %v11818 = vpop.f32.mrb[0].mxu0
    %11819 = vmatprep.mubr.bf16.mxu0 0
    %11820 = vmatmul.mubr.bf16.gmra.mrb[0].mxu0 %v11759
    %v11821 = vpop.f32.mrb[0].mxu0
    %v11822 = vadd.f32 %v11728, %v11821
    %v11823 = vpop.f32.mrb[0].mxu0
    %v11824 = vpop.f32.mrb[0].mxu0
    %v11825 = vadd.f32 %v11728, %v11824
    %v11826 = vpop.f32.mrb[0].mxu0
    %11827 = vmatprep.mubr.bf16.mxu0 0
    %11828 = vmatmul.mubr.bf16.gmra.mrb[0].mxu0 %v11762
    %v11829 = vpop.f32.mrb[0].mxu0
    %v11830 = vadd.f32 %v11728, %v11829
    %v11831 = vpop.f32.mrb[0].mxu0
    %v11832 = vpop.f32.mrb[0].mxu0
    %v11833 = vadd.f32 %v11728, %v11832
    %v11834 = vpop.f32.mrb[0].mxu0
    %11835 = vmatprep.mubr.bf16.mxu0 0
    %11836 = vmatmul.mubr.bf16.gmra.mrb[0].mxu0 %v11765
    %v11837 = vpop.f32.mrb[0].mxu0
    %v11838 = vadd.f32 %v11728, %v11837
    %v11839 = vpop.f32.mrb[0].mxu0
    %v11840 = vpop.f32.mrb[0].mxu0
    %v11841 = vadd.f32 %v11728, %v11840
    %v11842 = vpop.f32.mrb[0].mxu0
    %11843 = vmatprep.mubr.bf16.mxu0 0
    %11844 = vmatmul.mubr.bf16.gmra.mrb[0].mxu0 %v11768
    %v11845 = vpop.f32.mrb[0].mxu0
    %v11846 = vadd.f32 %v11728, %v11845
    %v11847 = vpop.f32.mrb[0].mxu0
    %v11848 = vpop.f32.mrb[0].mxu0
    %v11849 = vadd.f32 %v11728, %v11848
    %v11850 = vpop.f32.mrb[0].mxu0
    %11851 = vmatprep.mubr.bf16.mxu0 0
    %11852 = vmatmul.mubr.bf16.gmra.mrb[0].mxu0 %v11771
    %v11853 = vpop.f32.mrb[0].mxu0
    %v11854 = vadd.f32 %v11728, %v11853
    %v11855 = vpop.f32.mrb[0].mxu0
    %v11856 = vpop.f32.mrb[0].mxu0
    %v11857 = vadd.f32 %v11728, %v11856
    %v11858 = vpop.f32.mrb[0].mxu0
    %11859 = vmatprep.mubr.bf16.mxu0 0
    %11860 = vmatmul.mubr.bf16.gmra.mrb[0].mxu0 %v11774
    %v11861 = vpop.f32.mrb[0].mxu0
    %v11862 = vadd.f32 %v11728, %v11861
    %v11863 = vpop.f32.mrb[0].mxu0
    %v11864 = vpop.f32.mrb[0].mxu0
    %v11865 = vadd.f32 %v11728, %v11864
    %v11866 = vpop.f32.mrb[0].mxu0
    %11867 = vmatprep.mubr.bf16.mxu0 0
    %11868 = vmatmul.mubr.bf16.gmra.mrb[0].mxu0 %v11777
    %v11869 = vpop.f32.mrb[0].mxu0
    %v11870 = vadd.f32 %v11728, %v11869
    %v11871 = vpop.f32.mrb[0].mxu0
    %v11872 = vpop.f32.mrb[0].mxu0
    %v11873 = vadd.f32 %v11728, %v11872
    %v11874 = vpop.f32.mrb[0].mxu0
    %11875 = vdwg.mxu0
    %11876 = vst [vmem:[#allocation22] sm:$0xff] %v11814
    %11877 = vst [vmem:[#allocation22 + $0x8] sm:$0xff] %v11817
    %11878 = vst [vmem:[#allocation22 + $0x10] sm:$0xff] %v11822
    %11879 = vst [vmem:[#allocation22 + $0x18] sm:$0xff] %v11825
    %11880 = vst [vmem:[#allocation22 + $0x20] sm:$0xff] %v11830
    %11881 = vst [vmem:[#allocation22 + $0x28] sm:$0xff] %v11833
    %11882 = vst [vmem:[#allocation22 + $0x30] sm:$0xff] %v11838
    %11883 = vst [vmem:[#allocation22 + $0x38] sm:$0xff] %v11841
    %11884 = vst [vmem:[#allocation22 + $0x40] sm:$0xff] %v11846
    %11885 = vst [vmem:[#allocation22 + $0x48] sm:$0xff] %v11849
    %11886 = vst [vmem:[#allocation22 + $0x50] sm:$0xff] %v11854
    %11887 = vst [vmem:[#allocation22 + $0x58] sm:$0xff] %v11857
    %11888 = vst [vmem:[#allocation22 + $0x60] sm:$0xff] %v11862
    %11889 = vst [vmem:[#allocation22 + $0x68] sm:$0xff] %v11865
    %11890 = vst [vmem:[#allocation22 + $0x70] sm:$0xff] %v11870
    %11891 = vst [vmem:[#allocation22 + $0x78] sm:$0xff] %v11873
    // Predicated region
    $region102: #{tpu_custom_call.1} parent=1 // pred_check
      _
    $region103: #{tpu_custom_call.1} parent=1 // pred_check_branch
      %11893 = sbr.rel (0) target = $region105
    $region104: #{tpu_custom_call.1} parent=1 // pred_region
      %s11895 = ssub.s32 2048, 2048
      %11896 = vsyncadd [#allocation4], %s11895
      %s11897 = sshll.u32 [#allocation22], 4
      %s11898 = int_to_ptr.vmem [resolvable:$true] %s11897
      %11903 = dma.vmem_to_hbm [thread:$0]  %s11898, 2048, %s13, [#allocation4], 128, 128, 8
    $region105: #{tpu_custom_call.1} parent=1 // pred_fallthru
      _
    // Predicated region
    $region106: #{tpu_custom_call.1} parent=1 // pred_check
      _
    $region107: #{tpu_custom_call.1} parent=1 // pred_check_branch
      %11905 = sbr.rel (0) target = $region109
    $region108: #{tpu_custom_call.1} parent=1 // pred_region
      %11906 = dma.done [#allocation4], 2048
    $region109: #{tpu_custom_call.1} parent=1 // pred_fallthru
      _
    %11907 = vsyncpa [#allocation3], 1
    %11908 = vsyncpa [#allocation6], 1
    %11909 = vsyncpa [#allocation9], 1
    %11910 = vsyncpa [#allocation12], 1
    %11911 = vsyncpa [#allocation15], 1
    %11912 = vsyncpa [#allocation18], 1
    %11913 = vsyncpa [#allocation21], 1
    %11914 = vsyncpa [#allocation4], 1

</llo_original>
